<compile_context>
chip_gen: v7x
topology: tpu7x:2x2x1
jax: 0.10.0
libtpu: 0.0.40
codegen_flags: <defaults>
</compile_context>

<pallas_src>
import jax
import jax.numpy as jnp
from jax.experimental import pallas as pl
from jax.experimental.pallas import tpu as pltpu


def cvrae_kernel(
    x_ref, eps_ref, epsf_ref, h0_ref,
    wx_ref, bx_ref,
    wep1x_ref, wep1h_ref, bep1_ref,
    wep2_ref, bep2_ref,
    wz_ref, bz_ref,
    wdz_ref, wdh_ref, bd_ref,
    wa_ref, ba_ref,
    gih_ref, ghh_ref, gbih_ref, gbhh_ref,
    pred_ref, kld_ref,
):
    TB = x_ref.shape[0]
    T, B, Z = eps_ref.shape
    L, _, H = h0_ref.shape
    A = wa_ref.shape[1]
    f32 = jnp.float32

    def mm(a, w):
        return jnp.dot(a, w, preferred_element_type=f32)

    relu = lambda v: jnp.maximum(v, 0.0)
    sigmoid = jax.nn.sigmoid
    softplus = jax.nn.softplus

    # ---------------- hoisted, loop-invariant work ----------------
    # one-hot(x) for all T*B rows at once, then a single batched phi_x matmul.
    x_idx = x_ref[...]                                                  # (T*B, 1) int32
    lanes = jax.lax.broadcasted_iota(jnp.int32, (TB, A), 1)
    one_hot = (x_idx == lanes).astype(f32)                              # (T*B, A)
    phi_x_all = relu(mm(one_hot, wx_ref[...])
                     + jnp.broadcast_to(bx_ref[...], (TB, H)))          # (T*B, H)

    # Bias broadcasts hoisted out of the unrolled time loop.
    b_ep1 = jnp.broadcast_to(bep1_ref[...], (B, 2 * H))
    b_ep2 = jnp.broadcast_to(bep2_ref[...], (B, 2 * Z))
    b_z = jnp.broadcast_to(bz_ref[...], (B, H))
    gb_ih = [jnp.broadcast_to(gbih_ref[l], (B, 3 * H)) for l in range(L)]
    gb_hh = [jnp.broadcast_to(gbhh_ref[l], (B, 3 * H)) for l in range(L)]

    def gru_layer(l, gx, h_prev):
        # gx already holds input-path gates + input bias (B, 3H), order r|z|n.
        gh = mm(h_prev, ghh_ref[l]) + gb_hh[l]
        rz = sigmoid(gx[:, 0:2 * H] + gh[:, 0:2 * H])                   # fused r|z sigmoid
        r, zg = rz[:, 0:H], rz[:, H:2 * H]
        n = jnp.tanh(gx[:, 2 * H:3 * H] + r * gh[:, 2 * H:3 * H])       # b_hn inside r*(.)
        return (1.0 - zg) * n + zg * h_prev

    # Hidden state + elementwise KLD accumulator carried as values.
    h = [h0_ref[l] for l in range(L)]
    kld_acc = jnp.zeros((B, Z), f32)

    for t in range(T):
        phi_x_t = phi_x_all[t * B:(t + 1) * B, :]                       # (B, H)
        h_last = h[L - 1]

        # Fused encoder|prior: two split-input matmuls -> (B, 2H) = enc_h1|pr_h1,
        # one block-diagonal matmul -> (B, 2Z) = enc_t|prior_t, one softplus.
        hid = relu(mm(phi_x_t, wep1x_ref[...]) + mm(h_last, wep1h_ref[...]) + b_ep1)
        ep_t = mm(hid, wep2_ref[...]) + b_ep2
        ep_std = softplus(ep_t)
        enc_mean, pr_mean = ep_t[:, 0:Z], ep_t[:, Z:2 * Z]
        enc_std, pr_std = ep_std[:, 0:Z], ep_std[:, Z:2 * Z]

        # Elementwise KLD accumulation; "-1" and the 0.5*sum are folded in after
        # the loop so no cross-lane reduction sits on the per-step chain.
        diff = enc_mean - pr_mean
        kld_acc = kld_acc + (2.0 * jnp.log(pr_std / enc_std)
                             + (enc_std * enc_std + diff * diff) / (pr_std * pr_std))

        # Reparameterized sample + phi_z.
        z_t = eps_ref[t] * enc_std + enc_mean
        phi_z_t = relu(mm(z_t, wz_ref[...]) + b_z)

        # Stacked GRU.  Layer-0 input path is split (phi_x / phi_z weights) to
        # avoid a lane-axis concat; upper layers take the layer below's output.
        gx = mm(phi_x_t, gih_ref[0]) + mm(phi_z_t, gih_ref[1]) + gb_ih[0]
        h[0] = gru_layer(0, gx, h[0])
        for l in range(1, L):
            gx = mm(h[l - 1], gih_ref[l + 1]) + gb_ih[l]
            h[l] = gru_layer(l, gx, h[l])

    # ---------------- epilogue: prior sample -> decoder -> act head ----------------
    hT = h[L - 1]
    # Reuse the fused enc|prior weights; only the prior half (cols H:2H / Z:2Z)
    # of the fused outputs is consumed (block-diagonal second layer guarantees
    # the encoder columns do not leak into it).
    hid_p = relu(mm(hT, wep1h_ref[...]) + b_ep1)
    pr_full = mm(hid_p, wep2_ref[...]) + b_ep2
    pr_mean = pr_full[:, Z:2 * Z]
    pr_std = softplus(pr_mean)
    z_f = epsf_ref[...] * pr_std + pr_mean
    phi_zf = relu(mm(z_f, wz_ref[...]) + b_z)
    dec = relu(mm(phi_zf, wdz_ref[...]) + mm(hT, wdh_ref[...])
               + jnp.broadcast_to(bd_ref[...], (B, H)))
    pred_ref[...] = mm(dec, wa_ref[...]) + jnp.broadcast_to(ba_ref[...], (B, A))
    kld_ref[...] = 0.5 * (jnp.sum(kld_acc, keepdims=True) - T * B * Z)


def cvrae_next_action(x, packed_params, h0, eps_enc, eps_final):
    """x: (B, T) int32 action indices.  Returns (pred_act (B, A), kld scalar)."""
    B, T = x.shape
    L, _, H = h0.shape
    Z = eps_enc.shape[-1]
    A = packed_params[0].shape[0]                 # Wx is (A, H)

    # Time-major flat index vector (t*B + b) <-> x_one_hot[t, b] in the reference.
    x_flat = jnp.transpose(x, (1, 0)).reshape(T * B, 1).astype(jnp.int32)

    operands = (x_flat, eps_enc, eps_final, h0) + tuple(packed_params)

    # Advisory cost hint so XLA schedules around the (latency-bound) custom call.
    macs_step = 4 * H * H + 4 * H * Z + Z * H + (2 * L + 1) * 3 * H * H
    macs = T * B * (macs_step + A * H) + B * (2 * H * H + 2 * H * Z + Z * H + 2 * H * H + H * A)
    transc = T * B * (2 * Z + Z + L * 3 * H) + B * (Z + 2 * H)
    bytes_acc = sum(int(a.size) * a.dtype.itemsize for a in operands) + (B * A + 1) * 4
    cost = pl.CostEstimate(flops=int(2 * macs), transcendentals=int(transc),
                           bytes_accessed=int(bytes_acc))

    vmem_specs = [pl.BlockSpec(memory_space=pltpu.MemorySpace.VMEM)
                  for _ in range(len(operands))]
    pred, kld = pl.pallas_call(
        cvrae_kernel,
        out_shape=(
            jax.ShapeDtypeStruct((B, A), jnp.float32),
            jax.ShapeDtypeStruct((1, 1), jnp.float32),
        ),
        in_specs=vmem_specs,
        out_specs=(pl.BlockSpec(memory_space=pltpu.MemorySpace.VMEM),
                   pl.BlockSpec(memory_space=pltpu.MemorySpace.VMEM)),
        cost_estimate=cost,
    )(*operands)
    return pred, kld[0, 0]


# ---------------------------------------------------------------------------
# Parameter construction: natural (PyTorch-equivalent, pre-transposed) weights,
# explicitly repacked into the fused layout the kernel consumes.
# ---------------------------------------------------------------------------
def init_params(key, A, H, Z, L):
    keys = iter(jax.random.split(key, 16 + 4 * L))

    def lin(in_dim, out_dim):
        bound = 1.0 / (in_dim ** 0.5)
        w = jax.random.uniform(next(keys), (in_dim, out_dim), jnp.float32, -bound, bound)
        b = jax.random.uniform(next(keys), (out_dim,), jnp.float32, -bound, bound)
        return w, b

    p = {}
    p['Wx'], p['bx'] = lin(A, H)            # phi_x
    p['We1'], p['be1'] = lin(2 * H, H)      # encoder L1 (input [phi_x ; h])
    p['We2'], p['be2'] = lin(H, Z)          # encoder L2
    p['Wp1'], p['bp1'] = lin(H, H)          # prior L1
    p['Wp2'], p['bp2'] = lin(H, Z)          # prior L2
    p['Wz'], p['bz'] = lin(Z, H)            # phi_z
    p['Wd'], p['bd'] = lin(2 * H, H)        # decoder (input [phi_z ; h])
    p['Wa'], p['ba'] = lin(H, A)            # act_decoder
    p['gru'] = []
    for l in range(L):                      # gate order r|z|n, (in, 3H) layout
        wih, bih = lin(2 * H if l == 0 else H, 3 * H)
        whh, bhh = lin(H, 3 * H)
        p['gru'].append((wih, bih, whh, bhh))
    return p


def pack_params(p, A, H, Z, L):
    """Pack natural weights into the fused operand layout the kernel expects."""
    f32 = jnp.float32
    zHH = jnp.zeros((H, H), f32)
    zHZ = jnp.zeros((H, Z), f32)
    # Fused encoder|prior first layer, input split into phi_x / h operands.
    w_ep1_x = jnp.concatenate([p['We1'][:H], zHH], axis=1)              # (H, 2H)
    w_ep1_h = jnp.concatenate([p['We1'][H:], p['Wp1']], axis=1)         # (H, 2H)
    b_ep1 = jnp.concatenate([p['be1'], p['bp1']])[None, :]              # (1, 2H)
    # Fused second layer: block-diagonal [[We2, 0], [0, Wp2]].
    w_ep2 = jnp.concatenate(
        [jnp.concatenate([p['We2'], zHZ], axis=1),
         jnp.concatenate([zHZ, p['Wp2']], axis=1)], axis=0)             # (2H, 2Z)
    b_ep2 = jnp.concatenate([p['be2'], p['bp2']])[None, :]              # (1, 2Z)
    # GRU input-path weights: slot 0 = layer-0 phi_x part, slot 1 = layer-0
    # phi_z part, slot l+1 = layer-l (l>=1) input weight.
    gih = jnp.stack([p['gru'][0][0][:H], p['gru'][0][0][H:]]
                    + [p['gru'][l][0] for l in range(1, L)])            # (L+1, H, 3H)
    ghh = jnp.stack([p['gru'][l][2] for l in range(L)])                 # (L, H, 3H)
    gbih = jnp.stack([p['gru'][l][1][None, :] for l in range(L)])       # (L, 1, 3H)
    gbhh = jnp.stack([p['gru'][l][3][None, :] for l in range(L)])       # (L, 1, 3H)
    return (
        p['Wx'], p['bx'][None, :],
        w_ep1_x, w_ep1_h, b_ep1,
        w_ep2, b_ep2,
        p['Wz'], p['bz'][None, :],
        p['Wd'][:H], p['Wd'][H:], p['bd'][None, :],
        p['Wa'], p['ba'][None, :],
        gih, ghh, gbih, gbhh,
    )


if __name__ == "__main__":
    # Small shapes: act_dim=8, h_dim=32, z_dim=16, n_layers=2, batch=4, seq=6.
    A, H, Z, L = 8, 32, 16, 2
    B, T = 4, 6

    root = jax.random.PRNGKey(0)
    k_x, k_h, k_e, k_ef, k_p = jax.random.split(root, 5)

    x = jax.random.randint(k_x, (B, T), 0, A, dtype=jnp.int32)
    h0 = jax.random.normal(k_h, (L, B, H), jnp.float32)       # init_hidden randn
    eps_enc = jax.random.normal(k_e, (T, B, Z), jnp.float32)  # per-step reparam noise
    eps_final = jax.random.normal(k_ef, (B, Z), jnp.float32)  # post-loop reparam noise
    params = pack_params(init_params(k_p, A, H, Z, L), A, H, Z, L)

    pred_act, kld = jax.jit(cvrae_next_action)(x, params, h0, eps_enc, eps_final)
    jax.block_until_ready((pred_act, kld))

    assert pred_act.shape == (B, A)
    assert bool(jnp.all(jnp.isfinite(pred_act))) and bool(jnp.isfinite(kld))
    print("KERNEL_OK")
</pallas_src>

<mosaic_0001>
module attributes {stable_mosaic.version = 11 : i64} {
  func.func @cvrae_kernel(%arg0: memref<24x1xi32, #tpu.memory_space<vmem>>, %arg1: memref<6x4x16xf32, #tpu.memory_space<vmem>>, %arg2: memref<4x16xf32, #tpu.memory_space<vmem>>, %arg3: memref<2x4x32xf32, #tpu.memory_space<vmem>>, %arg4: memref<8x32xf32, #tpu.memory_space<vmem>>, %arg5: memref<1x32xf32, #tpu.memory_space<vmem>>, %arg6: memref<32x64xf32, #tpu.memory_space<vmem>>, %arg7: memref<32x64xf32, #tpu.memory_space<vmem>>, %arg8: memref<1x64xf32, #tpu.memory_space<vmem>>, %arg9: memref<64x32xf32, #tpu.memory_space<vmem>>, %arg10: memref<1x32xf32, #tpu.memory_space<vmem>>, %arg11: memref<16x32xf32, #tpu.memory_space<vmem>>, %arg12: memref<1x32xf32, #tpu.memory_space<vmem>>, %arg13: memref<32x32xf32, #tpu.memory_space<vmem>>, %arg14: memref<32x32xf32, #tpu.memory_space<vmem>>, %arg15: memref<1x32xf32, #tpu.memory_space<vmem>>, %arg16: memref<32x8xf32, #tpu.memory_space<vmem>>, %arg17: memref<1x8xf32, #tpu.memory_space<vmem>>, %arg18: memref<3x32x96xf32, #tpu.memory_space<vmem>>, %arg19: memref<2x32x96xf32, #tpu.memory_space<vmem>>, %arg20: memref<2x1x96xf32, #tpu.memory_space<vmem>>, %arg21: memref<2x1x96xf32, #tpu.memory_space<vmem>>, %arg22: memref<4x8xf32, #tpu.memory_space<vmem>>, %arg23: memref<1x1xf32, #tpu.memory_space<vmem>>) attributes {dimension_semantics = [], scalar_prefetch = 0 : i64, scratch_operands = 0 : i64, tpu.core_type = #tpu.core_type<tc>} {
    %c0 = arith.constant 0 : index
    %c0_0 = arith.constant 0 : index
    %0 = vector.load %arg0[%c0, %c0_0] : memref<24x1xi32, #tpu.memory_space<vmem>>, vector<24x1xi32>
    %1 = tpu.iota {dimensions = array<i32: 1>} : vector<24x8xi32>
    %2 = vector.broadcast %0 : vector<24x1xi32> to vector<24x8xi32>
    %3 = arith.cmpi eq, %2, %1 : vector<24x8xi32>
    %4 = arith.extui %3 : vector<24x8xi1> to vector<24x8xi32>
    %5 = arith.sitofp %4 : vector<24x8xi32> to vector<24x8xf32>
    %c0_1 = arith.constant 0 : index
    %c0_2 = arith.constant 0 : index
    %6 = vector.load %arg4[%c0_1, %c0_2] : memref<8x32xf32, #tpu.memory_space<vmem>>, vector<8x32xf32>
    %cst = arith.constant dense<0.000000e+00> : vector<24x32xf32>
    %7 = tpu.matmul %5, %6, %cst {dimension_numbers = #tpu.dot_dimension_numbers<[1], [0], [0], [1], [0, 0, 1, 1], [], []>} : vector<24x8xf32>, vector<8x32xf32>, vector<24x32xf32> -> vector<24x32xf32>
    %c0_3 = arith.constant 0 : index
    %c0_4 = arith.constant 0 : index
    %8 = vector.load %arg5[%c0_3, %c0_4] : memref<1x32xf32, #tpu.memory_space<vmem>>, vector<1x32xf32>
    %9 = vector.shape_cast %8 : vector<1x32xf32> to vector<1x32xf32>
    %10 = vector.broadcast %9 : vector<1x32xf32> to vector<24x32xf32>
    %11 = arith.addf %7, %10 : vector<24x32xf32>
    %cst_5 = arith.constant 0.000000e+00 : f32
    %12 = vector.broadcast %cst_5 : f32 to vector<24x32xf32>
    %13 = arith.maximumf %11, %12 : vector<24x32xf32>
    %c0_6 = arith.constant 0 : index
    %c0_7 = arith.constant 0 : index
    %14 = vector.load %arg8[%c0_6, %c0_7] : memref<1x64xf32, #tpu.memory_space<vmem>>, vector<1x64xf32>
    %15 = vector.shape_cast %14 : vector<1x64xf32> to vector<1x64xf32>
    %16 = vector.broadcast %15 : vector<1x64xf32> to vector<4x64xf32>
    %c0_8 = arith.constant 0 : index
    %c0_9 = arith.constant 0 : index
    %17 = vector.load %arg10[%c0_8, %c0_9] : memref<1x32xf32, #tpu.memory_space<vmem>>, vector<1x32xf32>
    %18 = vector.shape_cast %17 : vector<1x32xf32> to vector<1x32xf32>
    %19 = vector.broadcast %18 : vector<1x32xf32> to vector<4x32xf32>
    %c0_10 = arith.constant 0 : index
    %c0_11 = arith.constant 0 : index
    %20 = vector.load %arg12[%c0_10, %c0_11] : memref<1x32xf32, #tpu.memory_space<vmem>>, vector<1x32xf32>
    %21 = vector.shape_cast %20 : vector<1x32xf32> to vector<1x32xf32>
    %22 = vector.broadcast %21 : vector<1x32xf32> to vector<4x32xf32>
    %c0_12 = arith.constant 0 : index
    %c0_13 = arith.constant 0 : index
    %c0_14 = arith.constant 0 : index
    %23 = vector.load %arg20[%c0_12, %c0_13, %c0_14] : memref<2x1x96xf32, #tpu.memory_space<vmem>>, vector<1x1x96xf32>
    %24 = vector.shape_cast %23 : vector<1x1x96xf32> to vector<1x96xf32>
    %25 = vector.shape_cast %24 : vector<1x96xf32> to vector<1x96xf32>
    %26 = vector.broadcast %25 : vector<1x96xf32> to vector<4x96xf32>
    %c1 = arith.constant 1 : index
    %c0_15 = arith.constant 0 : index
    %c0_16 = arith.constant 0 : index
    %27 = vector.load %arg20[%c1, %c0_15, %c0_16] : memref<2x1x96xf32, #tpu.memory_space<vmem>>, vector<1x1x96xf32>
    %28 = vector.shape_cast %27 : vector<1x1x96xf32> to vector<1x96xf32>
    %29 = vector.shape_cast %28 : vector<1x96xf32> to vector<1x96xf32>
    %30 = vector.broadcast %29 : vector<1x96xf32> to vector<4x96xf32>
    %c0_17 = arith.constant 0 : index
    %c0_18 = arith.constant 0 : index
    %c0_19 = arith.constant 0 : index
    %31 = vector.load %arg21[%c0_17, %c0_18, %c0_19] : memref<2x1x96xf32, #tpu.memory_space<vmem>>, vector<1x1x96xf32>
    %32 = vector.shape_cast %31 : vector<1x1x96xf32> to vector<1x96xf32>
    %33 = vector.shape_cast %32 : vector<1x96xf32> to vector<1x96xf32>
    %34 = vector.broadcast %33 : vector<1x96xf32> to vector<4x96xf32>
    %c1_20 = arith.constant 1 : index
    %c0_21 = arith.constant 0 : index
    %c0_22 = arith.constant 0 : index
    %35 = vector.load %arg21[%c1_20, %c0_21, %c0_22] : memref<2x1x96xf32, #tpu.memory_space<vmem>>, vector<1x1x96xf32>
    %36 = vector.shape_cast %35 : vector<1x1x96xf32> to vector<1x96xf32>
    %37 = vector.shape_cast %36 : vector<1x96xf32> to vector<1x96xf32>
    %38 = vector.broadcast %37 : vector<1x96xf32> to vector<4x96xf32>
    %c0_23 = arith.constant 0 : index
    %c0_24 = arith.constant 0 : index
    %c0_25 = arith.constant 0 : index
    %39 = vector.load %arg3[%c0_23, %c0_24, %c0_25] : memref<2x4x32xf32, #tpu.memory_space<vmem>>, vector<1x4x32xf32>
    %40 = vector.shape_cast %39 : vector<1x4x32xf32> to vector<4x32xf32>
    %c1_26 = arith.constant 1 : index
    %c0_27 = arith.constant 0 : index
    %c0_28 = arith.constant 0 : index
    %41 = vector.load %arg3[%c1_26, %c0_27, %c0_28] : memref<2x4x32xf32, #tpu.memory_space<vmem>>, vector<1x4x32xf32>
    %42 = vector.shape_cast %41 : vector<1x4x32xf32> to vector<4x32xf32>
    %cst_29 = arith.constant 0.000000e+00 : f32
    %43 = vector.broadcast %cst_29 : f32 to vector<4x16xf32>
    %44 = vector.extract_strided_slice %13 {offsets = [0, 0], sizes = [4, 32], strides = [1, 1]} : vector<24x32xf32> to vector<4x32xf32>
    %c0_30 = arith.constant 0 : index
    %c0_31 = arith.constant 0 : index
    %45 = vector.load %arg6[%c0_30, %c0_31] : memref<32x64xf32, #tpu.memory_space<vmem>>, vector<32x64xf32>
    %cst_32 = arith.constant dense<0.000000e+00> : vector<4x64xf32>
    %46 = tpu.matmul %44, %45, %cst_32 {dimension_numbers = #tpu.dot_dimension_numbers<[1], [0], [0], [1], [0, 0, 1, 1], [], []>} : vector<4x32xf32>, vector<32x64xf32>, vector<4x64xf32> -> vector<4x64xf32>
    %c0_33 = arith.constant 0 : index
    %c0_34 = arith.constant 0 : index
    %47 = vector.load %arg7[%c0_33, %c0_34] : memref<32x64xf32, #tpu.memory_space<vmem>>, vector<32x64xf32>
    %cst_35 = arith.constant dense<0.000000e+00> : vector<4x64xf32>
    %48 = tpu.matmul %42, %47, %cst_35 {dimension_numbers = #tpu.dot_dimension_numbers<[1], [0], [0], [1], [0, 0, 1, 1], [], []>} : vector<4x32xf32>, vector<32x64xf32>, vector<4x64xf32> -> vector<4x64xf32>
    %49 = arith.addf %46, %48 : vector<4x64xf32>
    %50 = arith.addf %49, %16 : vector<4x64xf32>
    %cst_36 = arith.constant 0.000000e+00 : f32
    %51 = vector.broadcast %cst_36 : f32 to vector<4x64xf32>
    %52 = arith.maximumf %50, %51 : vector<4x64xf32>
    %c0_37 = arith.constant 0 : index
    %c0_38 = arith.constant 0 : index
    %53 = vector.load %arg9[%c0_37, %c0_38] : memref<64x32xf32, #tpu.memory_space<vmem>>, vector<64x32xf32>
    %cst_39 = arith.constant dense<0.000000e+00> : vector<4x32xf32>
    %54 = tpu.matmul %52, %53, %cst_39 {dimension_numbers = #tpu.dot_dimension_numbers<[1], [0], [0], [1], [0, 0, 1, 1], [], []>} : vector<4x64xf32>, vector<64x32xf32>, vector<4x32xf32> -> vector<4x32xf32>
    %55 = arith.addf %54, %19 : vector<4x32xf32>
    %cst_40 = arith.constant 0.000000e+00 : f32
    %56 = vector.broadcast %cst_40 : f32 to vector<4x32xf32>
    %57 = arith.maximumf %55, %56 : vector<4x32xf32>
    %58 = vector.broadcast %cst_40 : f32 to vector<4x32xf32>
    %59 = arith.subf %55, %58 : vector<4x32xf32>
    %60 = arith.cmpf one, %59, %59 : vector<4x32xf32>
    %61 = vector.broadcast %cst_40 : f32 to vector<4x32xf32>
    %62 = arith.addf %55, %61 : vector<4x32xf32>
    %63 = math.absf %59 : vector<4x32xf32>
    %cst_41 = arith.constant 0.000000e+00 : f32
    %64 = vector.broadcast %cst_41 : f32 to vector<4x32xf32>
    %65 = arith.subf %64, %63 : vector<4x32xf32>
    %66 = math.exp %65 : vector<4x32xf32>
    %67 = math.log1p %66 : vector<4x32xf32>
    %68 = arith.addf %57, %67 : vector<4x32xf32>
    %69 = arith.select %60, %62, %68 : vector<4x32xi1>, vector<4x32xf32>
    %70 = vector.extract_strided_slice %55 {offsets = [0, 0], sizes = [4, 16], strides = [1, 1]} : vector<4x32xf32> to vector<4x16xf32>
    %71 = vector.extract_strided_slice %55 {offsets = [0, 16], sizes = [4, 16], strides = [1, 1]} : vector<4x32xf32> to vector<4x16xf32>
    %72 = vector.extract_strided_slice %69 {offsets = [0, 0], sizes = [4, 16], strides = [1, 1]} : vector<4x32xf32> to vector<4x16xf32>
    %73 = vector.extract_strided_slice %69 {offsets = [0, 16], sizes = [4, 16], strides = [1, 1]} : vector<4x32xf32> to vector<4x16xf32>
    %74 = arith.subf %70, %71 : vector<4x16xf32>
    %75 = arith.divf %73, %72 : vector<4x16xf32>
    %76 = math.log %75 : vector<4x16xf32>
    %cst_42 = arith.constant 2.000000e+00 : f32
    %77 = vector.broadcast %cst_42 : f32 to vector<4x16xf32>
    %78 = arith.mulf %77, %76 : vector<4x16xf32>
    %79 = arith.mulf %72, %72 : vector<4x16xf32>
    %80 = arith.mulf %74, %74 : vector<4x16xf32>
    %81 = arith.addf %79, %80 : vector<4x16xf32>
    %82 = arith.mulf %73, %73 : vector<4x16xf32>
    %83 = arith.divf %81, %82 : vector<4x16xf32>
    %84 = arith.addf %78, %83 : vector<4x16xf32>
    %85 = arith.addf %43, %84 : vector<4x16xf32>
    %c0_43 = arith.constant 0 : index
    %c0_44 = arith.constant 0 : index
    %c0_45 = arith.constant 0 : index
    %86 = vector.load %arg1[%c0_43, %c0_44, %c0_45] : memref<6x4x16xf32, #tpu.memory_space<vmem>>, vector<1x4x16xf32>
    %87 = vector.shape_cast %86 : vector<1x4x16xf32> to vector<4x16xf32>
    %88 = arith.mulf %87, %72 : vector<4x16xf32>
    %89 = arith.addf %88, %70 : vector<4x16xf32>
    %c0_46 = arith.constant 0 : index
    %c0_47 = arith.constant 0 : index
    %90 = vector.load %arg11[%c0_46, %c0_47] : memref<16x32xf32, #tpu.memory_space<vmem>>, vector<16x32xf32>
    %cst_48 = arith.constant dense<0.000000e+00> : vector<4x32xf32>
    %91 = tpu.matmul %89, %90, %cst_48 {dimension_numbers = #tpu.dot_dimension_numbers<[1], [0], [0], [1], [0, 0, 1, 1], [], []>} : vector<4x16xf32>, vector<16x32xf32>, vector<4x32xf32> -> vector<4x32xf32>
    %92 = arith.addf %91, %22 : vector<4x32xf32>
    %cst_49 = arith.constant 0.000000e+00 : f32
    %93 = vector.broadcast %cst_49 : f32 to vector<4x32xf32>
    %94 = arith.maximumf %92, %93 : vector<4x32xf32>
    %c0_50 = arith.constant 0 : index
    %c0_51 = arith.constant 0 : index
    %c0_52 = arith.constant 0 : index
    %95 = vector.load %arg18[%c0_50, %c0_51, %c0_52] : memref<3x32x96xf32, #tpu.memory_space<vmem>>, vector<1x32x96xf32>
    %96 = vector.shape_cast %95 : vector<1x32x96xf32> to vector<32x96xf32>
    %cst_53 = arith.constant dense<0.000000e+00> : vector<4x96xf32>
    %97 = tpu.matmul %44, %96, %cst_53 {dimension_numbers = #tpu.dot_dimension_numbers<[1], [0], [0], [1], [0, 0, 1, 1], [], []>} : vector<4x32xf32>, vector<32x96xf32>, vector<4x96xf32> -> vector<4x96xf32>
    %c1_54 = arith.constant 1 : index
    %c0_55 = arith.constant 0 : index
    %c0_56 = arith.constant 0 : index
    %98 = vector.load %arg18[%c1_54, %c0_55, %c0_56] : memref<3x32x96xf32, #tpu.memory_space<vmem>>, vector<1x32x96xf32>
    %99 = vector.shape_cast %98 : vector<1x32x96xf32> to vector<32x96xf32>
    %cst_57 = arith.constant dense<0.000000e+00> : vector<4x96xf32>
    %100 = tpu.matmul %94, %99, %cst_57 {dimension_numbers = #tpu.dot_dimension_numbers<[1], [0], [0], [1], [0, 0, 1, 1], [], []>} : vector<4x32xf32>, vector<32x96xf32>, vector<4x96xf32> -> vector<4x96xf32>
    %101 = arith.addf %97, %100 : vector<4x96xf32>
    %102 = arith.addf %101, %26 : vector<4x96xf32>
    %c0_58 = arith.constant 0 : index
    %c0_59 = arith.constant 0 : index
    %c0_60 = arith.constant 0 : index
    %103 = vector.load %arg19[%c0_58, %c0_59, %c0_60] : memref<2x32x96xf32, #tpu.memory_space<vmem>>, vector<1x32x96xf32>
    %104 = vector.shape_cast %103 : vector<1x32x96xf32> to vector<32x96xf32>
    %cst_61 = arith.constant dense<0.000000e+00> : vector<4x96xf32>
    %105 = tpu.matmul %40, %104, %cst_61 {dimension_numbers = #tpu.dot_dimension_numbers<[1], [0], [0], [1], [0, 0, 1, 1], [], []>} : vector<4x32xf32>, vector<32x96xf32>, vector<4x96xf32> -> vector<4x96xf32>
    %106 = arith.addf %105, %34 : vector<4x96xf32>
    %107 = vector.extract_strided_slice %102 {offsets = [0, 0], sizes = [4, 64], strides = [1, 1]} : vector<4x96xf32> to vector<4x64xf32>
    %108 = vector.extract_strided_slice %106 {offsets = [0, 0], sizes = [4, 64], strides = [1, 1]} : vector<4x96xf32> to vector<4x64xf32>
    %109 = arith.addf %107, %108 : vector<4x64xf32>
    %110 = arith.negf %109 : vector<4x64xf32>
    %111 = math.exp %110 : vector<4x64xf32>
    %cst_62 = arith.constant 1.000000e+00 : f32
    %112 = vector.broadcast %cst_62 : f32 to vector<4x64xf32>
    %113 = arith.addf %112, %111 : vector<4x64xf32>
    %114 = arith.divf %112, %113 : vector<4x64xf32>
    %115 = vector.extract_strided_slice %114 {offsets = [0, 0], sizes = [4, 32], strides = [1, 1]} : vector<4x64xf32> to vector<4x32xf32>
    %116 = vector.extract_strided_slice %114 {offsets = [0, 32], sizes = [4, 32], strides = [1, 1]} : vector<4x64xf32> to vector<4x32xf32>
    %117 = vector.extract_strided_slice %102 {offsets = [0, 64], sizes = [4, 32], strides = [1, 1]} : vector<4x96xf32> to vector<4x32xf32>
    %118 = vector.extract_strided_slice %106 {offsets = [0, 64], sizes = [4, 32], strides = [1, 1]} : vector<4x96xf32> to vector<4x32xf32>
    %119 = arith.mulf %115, %118 : vector<4x32xf32>
    %120 = arith.addf %117, %119 : vector<4x32xf32>
    %121 = math.tanh %120 : vector<4x32xf32>
    %cst_63 = arith.constant 1.000000e+00 : f32
    %122 = vector.broadcast %cst_63 : f32 to vector<4x32xf32>
    %123 = arith.subf %122, %116 : vector<4x32xf32>
    %124 = arith.mulf %123, %121 : vector<4x32xf32>
    %125 = arith.mulf %116, %40 : vector<4x32xf32>
    %126 = arith.addf %124, %125 : vector<4x32xf32>
    %c2 = arith.constant 2 : index
    %c0_64 = arith.constant 0 : index
    %c0_65 = arith.constant 0 : index
    %127 = vector.load %arg18[%c2, %c0_64, %c0_65] : memref<3x32x96xf32, #tpu.memory_space<vmem>>, vector<1x32x96xf32>
    %128 = vector.shape_cast %127 : vector<1x32x96xf32> to vector<32x96xf32>
    %cst_66 = arith.constant dense<0.000000e+00> : vector<4x96xf32>
    %129 = tpu.matmul %126, %128, %cst_66 {dimension_numbers = #tpu.dot_dimension_numbers<[1], [0], [0], [1], [0, 0, 1, 1], [], []>} : vector<4x32xf32>, vector<32x96xf32>, vector<4x96xf32> -> vector<4x96xf32>
    %130 = arith.addf %129, %30 : vector<4x96xf32>
    %c1_67 = arith.constant 1 : index
    %c0_68 = arith.constant 0 : index
    %c0_69 = arith.constant 0 : index
    %131 = vector.load %arg19[%c1_67, %c0_68, %c0_69] : memref<2x32x96xf32, #tpu.memory_space<vmem>>, vector<1x32x96xf32>
    %132 = vector.shape_cast %131 : vector<1x32x96xf32> to vector<32x96xf32>
    %cst_70 = arith.constant dense<0.000000e+00> : vector<4x96xf32>
    %133 = tpu.matmul %42, %132, %cst_70 {dimension_numbers = #tpu.dot_dimension_numbers<[1], [0], [0], [1], [0, 0, 1, 1], [], []>} : vector<4x32xf32>, vector<32x96xf32>, vector<4x96xf32> -> vector<4x96xf32>
    %134 = arith.addf %133, %38 : vector<4x96xf32>
    %135 = vector.extract_strided_slice %130 {offsets = [0, 0], sizes = [4, 64], strides = [1, 1]} : vector<4x96xf32> to vector<4x64xf32>
    %136 = vector.extract_strided_slice %134 {offsets = [0, 0], sizes = [4, 64], strides = [1, 1]} : vector<4x96xf32> to vector<4x64xf32>
    %137 = arith.addf %135, %136 : vector<4x64xf32>
    %138 = arith.negf %137 : vector<4x64xf32>
    %139 = math.exp %138 : vector<4x64xf32>
    %cst_71 = arith.constant 1.000000e+00 : f32
    %140 = vector.broadcast %cst_71 : f32 to vector<4x64xf32>
    %141 = arith.addf %140, %139 : vector<4x64xf32>
    %142 = arith.divf %140, %141 : vector<4x64xf32>
    %143 = vector.extract_strided_slice %142 {offsets = [0, 0], sizes = [4, 32], strides = [1, 1]} : vector<4x64xf32> to vector<4x32xf32>
    %144 = vector.extract_strided_slice %142 {offsets = [0, 32], sizes = [4, 32], strides = [1, 1]} : vector<4x64xf32> to vector<4x32xf32>
    %145 = vector.extract_strided_slice %130 {offsets = [0, 64], sizes = [4, 32], strides = [1, 1]} : vector<4x96xf32> to vector<4x32xf32>
    %146 = vector.extract_strided_slice %134 {offsets = [0, 64], sizes = [4, 32], strides = [1, 1]} : vector<4x96xf32> to vector<4x32xf32>
    %147 = arith.mulf %143, %146 : vector<4x32xf32>
    %148 = arith.addf %145, %147 : vector<4x32xf32>
    %149 = math.tanh %148 : vector<4x32xf32>
    %cst_72 = arith.constant 1.000000e+00 : f32
    %150 = vector.broadcast %cst_72 : f32 to vector<4x32xf32>
    %151 = arith.subf %150, %144 : vector<4x32xf32>
    %152 = arith.mulf %151, %149 : vector<4x32xf32>
    %153 = arith.mulf %144, %42 : vector<4x32xf32>
    %154 = arith.addf %152, %153 : vector<4x32xf32>
    %155 = vector.extract_strided_slice %13 {offsets = [4, 0], sizes = [4, 32], strides = [1, 1]} : vector<24x32xf32> to vector<4x32xf32>
    %c0_73 = arith.constant 0 : index
    %c0_74 = arith.constant 0 : index
    %156 = vector.load %arg6[%c0_73, %c0_74] : memref<32x64xf32, #tpu.memory_space<vmem>>, vector<32x64xf32>
    %cst_75 = arith.constant dense<0.000000e+00> : vector<4x64xf32>
    %157 = tpu.matmul %155, %156, %cst_75 {dimension_numbers = #tpu.dot_dimension_numbers<[1], [0], [0], [1], [0, 0, 1, 1], [], []>} : vector<4x32xf32>, vector<32x64xf32>, vector<4x64xf32> -> vector<4x64xf32>
    %c0_76 = arith.constant 0 : index
    %c0_77 = arith.constant 0 : index
    %158 = vector.load %arg7[%c0_76, %c0_77] : memref<32x64xf32, #tpu.memory_space<vmem>>, vector<32x64xf32>
    %cst_78 = arith.constant dense<0.000000e+00> : vector<4x64xf32>
    %159 = tpu.matmul %154, %158, %cst_78 {dimension_numbers = #tpu.dot_dimension_numbers<[1], [0], [0], [1], [0, 0, 1, 1], [], []>} : vector<4x32xf32>, vector<32x64xf32>, vector<4x64xf32> -> vector<4x64xf32>
    %160 = arith.addf %157, %159 : vector<4x64xf32>
    %161 = arith.addf %160, %16 : vector<4x64xf32>
    %cst_79 = arith.constant 0.000000e+00 : f32
    %162 = vector.broadcast %cst_79 : f32 to vector<4x64xf32>
    %163 = arith.maximumf %161, %162 : vector<4x64xf32>
    %c0_80 = arith.constant 0 : index
    %c0_81 = arith.constant 0 : index
    %164 = vector.load %arg9[%c0_80, %c0_81] : memref<64x32xf32, #tpu.memory_space<vmem>>, vector<64x32xf32>
    %cst_82 = arith.constant dense<0.000000e+00> : vector<4x32xf32>
    %165 = tpu.matmul %163, %164, %cst_82 {dimension_numbers = #tpu.dot_dimension_numbers<[1], [0], [0], [1], [0, 0, 1, 1], [], []>} : vector<4x64xf32>, vector<64x32xf32>, vector<4x32xf32> -> vector<4x32xf32>
    %166 = arith.addf %165, %19 : vector<4x32xf32>
    %cst_83 = arith.constant 0.000000e+00 : f32
    %167 = vector.broadcast %cst_83 : f32 to vector<4x32xf32>
    %168 = arith.maximumf %166, %167 : vector<4x32xf32>
    %169 = vector.broadcast %cst_83 : f32 to vector<4x32xf32>
    %170 = arith.subf %166, %169 : vector<4x32xf32>
    %171 = arith.cmpf one, %170, %170 : vector<4x32xf32>
    %172 = vector.broadcast %cst_83 : f32 to vector<4x32xf32>
    %173 = arith.addf %166, %172 : vector<4x32xf32>
    %174 = math.absf %170 : vector<4x32xf32>
    %cst_84 = arith.constant 0.000000e+00 : f32
    %175 = vector.broadcast %cst_84 : f32 to vector<4x32xf32>
    %176 = arith.subf %175, %174 : vector<4x32xf32>
    %177 = math.exp %176 : vector<4x32xf32>
    %178 = math.log1p %177 : vector<4x32xf32>
    %179 = arith.addf %168, %178 : vector<4x32xf32>
    %180 = arith.select %171, %173, %179 : vector<4x32xi1>, vector<4x32xf32>
    %181 = vector.extract_strided_slice %166 {offsets = [0, 0], sizes = [4, 16], strides = [1, 1]} : vector<4x32xf32> to vector<4x16xf32>
    %182 = vector.extract_strided_slice %166 {offsets = [0, 16], sizes = [4, 16], strides = [1, 1]} : vector<4x32xf32> to vector<4x16xf32>
    %183 = vector.extract_strided_slice %180 {offsets = [0, 0], sizes = [4, 16], strides = [1, 1]} : vector<4x32xf32> to vector<4x16xf32>
    %184 = vector.extract_strided_slice %180 {offsets = [0, 16], sizes = [4, 16], strides = [1, 1]} : vector<4x32xf32> to vector<4x16xf32>
    %185 = arith.subf %181, %182 : vector<4x16xf32>
    %186 = arith.divf %184, %183 : vector<4x16xf32>
    %187 = math.log %186 : vector<4x16xf32>
    %cst_85 = arith.constant 2.000000e+00 : f32
    %188 = vector.broadcast %cst_85 : f32 to vector<4x16xf32>
    %189 = arith.mulf %188, %187 : vector<4x16xf32>
    %190 = arith.mulf %183, %183 : vector<4x16xf32>
    %191 = arith.mulf %185, %185 : vector<4x16xf32>
    %192 = arith.addf %190, %191 : vector<4x16xf32>
    %193 = arith.mulf %184, %184 : vector<4x16xf32>
    %194 = arith.divf %192, %193 : vector<4x16xf32>
    %195 = arith.addf %189, %194 : vector<4x16xf32>
    %196 = arith.addf %85, %195 : vector<4x16xf32>
    %c1_86 = arith.constant 1 : index
    %c0_87 = arith.constant 0 : index
    %c0_88 = arith.constant 0 : index
    %197 = vector.load %arg1[%c1_86, %c0_87, %c0_88] : memref<6x4x16xf32, #tpu.memory_space<vmem>>, vector<1x4x16xf32>
    %198 = vector.shape_cast %197 : vector<1x4x16xf32> to vector<4x16xf32>
    %199 = arith.mulf %198, %183 : vector<4x16xf32>
    %200 = arith.addf %199, %181 : vector<4x16xf32>
    %c0_89 = arith.constant 0 : index
    %c0_90 = arith.constant 0 : index
    %201 = vector.load %arg11[%c0_89, %c0_90] : memref<16x32xf32, #tpu.memory_space<vmem>>, vector<16x32xf32>
    %cst_91 = arith.constant dense<0.000000e+00> : vector<4x32xf32>
    %202 = tpu.matmul %200, %201, %cst_91 {dimension_numbers = #tpu.dot_dimension_numbers<[1], [0], [0], [1], [0, 0, 1, 1], [], []>} : vector<4x16xf32>, vector<16x32xf32>, vector<4x32xf32> -> vector<4x32xf32>
    %203 = arith.addf %202, %22 : vector<4x32xf32>
    %cst_92 = arith.constant 0.000000e+00 : f32
    %204 = vector.broadcast %cst_92 : f32 to vector<4x32xf32>
    %205 = arith.maximumf %203, %204 : vector<4x32xf32>
    %c0_93 = arith.constant 0 : index
    %c0_94 = arith.constant 0 : index
    %c0_95 = arith.constant 0 : index
    %206 = vector.load %arg18[%c0_93, %c0_94, %c0_95] : memref<3x32x96xf32, #tpu.memory_space<vmem>>, vector<1x32x96xf32>
    %207 = vector.shape_cast %206 : vector<1x32x96xf32> to vector<32x96xf32>
    %cst_96 = arith.constant dense<0.000000e+00> : vector<4x96xf32>
    %208 = tpu.matmul %155, %207, %cst_96 {dimension_numbers = #tpu.dot_dimension_numbers<[1], [0], [0], [1], [0, 0, 1, 1], [], []>} : vector<4x32xf32>, vector<32x96xf32>, vector<4x96xf32> -> vector<4x96xf32>
    %c1_97 = arith.constant 1 : index
    %c0_98 = arith.constant 0 : index
    %c0_99 = arith.constant 0 : index
    %209 = vector.load %arg18[%c1_97, %c0_98, %c0_99] : memref<3x32x96xf32, #tpu.memory_space<vmem>>, vector<1x32x96xf32>
    %210 = vector.shape_cast %209 : vector<1x32x96xf32> to vector<32x96xf32>
    %cst_100 = arith.constant dense<0.000000e+00> : vector<4x96xf32>
    %211 = tpu.matmul %205, %210, %cst_100 {dimension_numbers = #tpu.dot_dimension_numbers<[1], [0], [0], [1], [0, 0, 1, 1], [], []>} : vector<4x32xf32>, vector<32x96xf32>, vector<4x96xf32> -> vector<4x96xf32>
    %212 = arith.addf %208, %211 : vector<4x96xf32>
    %213 = arith.addf %212, %26 : vector<4x96xf32>
    %c0_101 = arith.constant 0 : index
    %c0_102 = arith.constant 0 : index
    %c0_103 = arith.constant 0 : index
    %214 = vector.load %arg19[%c0_101, %c0_102, %c0_103] : memref<2x32x96xf32, #tpu.memory_space<vmem>>, vector<1x32x96xf32>
    %215 = vector.shape_cast %214 : vector<1x32x96xf32> to vector<32x96xf32>
    %cst_104 = arith.constant dense<0.000000e+00> : vector<4x96xf32>
    %216 = tpu.matmul %126, %215, %cst_104 {dimension_numbers = #tpu.dot_dimension_numbers<[1], [0], [0], [1], [0, 0, 1, 1], [], []>} : vector<4x32xf32>, vector<32x96xf32>, vector<4x96xf32> -> vector<4x96xf32>
    %217 = arith.addf %216, %34 : vector<4x96xf32>
    %218 = vector.extract_strided_slice %213 {offsets = [0, 0], sizes = [4, 64], strides = [1, 1]} : vector<4x96xf32> to vector<4x64xf32>
    %219 = vector.extract_strided_slice %217 {offsets = [0, 0], sizes = [4, 64], strides = [1, 1]} : vector<4x96xf32> to vector<4x64xf32>
    %220 = arith.addf %218, %219 : vector<4x64xf32>
    %221 = arith.negf %220 : vector<4x64xf32>
    %222 = math.exp %221 : vector<4x64xf32>
    %cst_105 = arith.constant 1.000000e+00 : f32
    %223 = vector.broadcast %cst_105 : f32 to vector<4x64xf32>
    %224 = arith.addf %223, %222 : vector<4x64xf32>
    %225 = arith.divf %223, %224 : vector<4x64xf32>
    %226 = vector.extract_strided_slice %225 {offsets = [0, 0], sizes = [4, 32], strides = [1, 1]} : vector<4x64xf32> to vector<4x32xf32>
    %227 = vector.extract_strided_slice %225 {offsets = [0, 32], sizes = [4, 32], strides = [1, 1]} : vector<4x64xf32> to vector<4x32xf32>
    %228 = vector.extract_strided_slice %213 {offsets = [0, 64], sizes = [4, 32], strides = [1, 1]} : vector<4x96xf32> to vector<4x32xf32>
    %229 = vector.extract_strided_slice %217 {offsets = [0, 64], sizes = [4, 32], strides = [1, 1]} : vector<4x96xf32> to vector<4x32xf32>
    %230 = arith.mulf %226, %229 : vector<4x32xf32>
    %231 = arith.addf %228, %230 : vector<4x32xf32>
    %232 = math.tanh %231 : vector<4x32xf32>
    %cst_106 = arith.constant 1.000000e+00 : f32
    %233 = vector.broadcast %cst_106 : f32 to vector<4x32xf32>
    %234 = arith.subf %233, %227 : vector<4x32xf32>
    %235 = arith.mulf %234, %232 : vector<4x32xf32>
    %236 = arith.mulf %227, %126 : vector<4x32xf32>
    %237 = arith.addf %235, %236 : vector<4x32xf32>
    %c2_107 = arith.constant 2 : index
    %c0_108 = arith.constant 0 : index
    %c0_109 = arith.constant 0 : index
    %238 = vector.load %arg18[%c2_107, %c0_108, %c0_109] : memref<3x32x96xf32, #tpu.memory_space<vmem>>, vector<1x32x96xf32>
    %239 = vector.shape_cast %238 : vector<1x32x96xf32> to vector<32x96xf32>
    %cst_110 = arith.constant dense<0.000000e+00> : vector<4x96xf32>
    %240 = tpu.matmul %237, %239, %cst_110 {dimension_numbers = #tpu.dot_dimension_numbers<[1], [0], [0], [1], [0, 0, 1, 1], [], []>} : vector<4x32xf32>, vector<32x96xf32>, vector<4x96xf32> -> vector<4x96xf32>
    %241 = arith.addf %240, %30 : vector<4x96xf32>
    %c1_111 = arith.constant 1 : index
    %c0_112 = arith.constant 0 : index
    %c0_113 = arith.constant 0 : index
    %242 = vector.load %arg19[%c1_111, %c0_112, %c0_113] : memref<2x32x96xf32, #tpu.memory_space<vmem>>, vector<1x32x96xf32>
    %243 = vector.shape_cast %242 : vector<1x32x96xf32> to vector<32x96xf32>
    %cst_114 = arith.constant dense<0.000000e+00> : vector<4x96xf32>
    %244 = tpu.matmul %154, %243, %cst_114 {dimension_numbers = #tpu.dot_dimension_numbers<[1], [0], [0], [1], [0, 0, 1, 1], [], []>} : vector<4x32xf32>, vector<32x96xf32>, vector<4x96xf32> -> vector<4x96xf32>
    %245 = arith.addf %244, %38 : vector<4x96xf32>
    %246 = vector.extract_strided_slice %241 {offsets = [0, 0], sizes = [4, 64], strides = [1, 1]} : vector<4x96xf32> to vector<4x64xf32>
    %247 = vector.extract_strided_slice %245 {offsets = [0, 0], sizes = [4, 64], strides = [1, 1]} : vector<4x96xf32> to vector<4x64xf32>
    %248 = arith.addf %246, %247 : vector<4x64xf32>
    %249 = arith.negf %248 : vector<4x64xf32>
    %250 = math.exp %249 : vector<4x64xf32>
    %cst_115 = arith.constant 1.000000e+00 : f32
    %251 = vector.broadcast %cst_115 : f32 to vector<4x64xf32>
    %252 = arith.addf %251, %250 : vector<4x64xf32>
    %253 = arith.divf %251, %252 : vector<4x64xf32>
    %254 = vector.extract_strided_slice %253 {offsets = [0, 0], sizes = [4, 32], strides = [1, 1]} : vector<4x64xf32> to vector<4x32xf32>
    %255 = vector.extract_strided_slice %253 {offsets = [0, 32], sizes = [4, 32], strides = [1, 1]} : vector<4x64xf32> to vector<4x32xf32>
    %256 = vector.extract_strided_slice %241 {offsets = [0, 64], sizes = [4, 32], strides = [1, 1]} : vector<4x96xf32> to vector<4x32xf32>
    %257 = vector.extract_strided_slice %245 {offsets = [0, 64], sizes = [4, 32], strides = [1, 1]} : vector<4x96xf32> to vector<4x32xf32>
    %258 = arith.mulf %254, %257 : vector<4x32xf32>
    %259 = arith.addf %256, %258 : vector<4x32xf32>
    %260 = math.tanh %259 : vector<4x32xf32>
    %cst_116 = arith.constant 1.000000e+00 : f32
    %261 = vector.broadcast %cst_116 : f32 to vector<4x32xf32>
    %262 = arith.subf %261, %255 : vector<4x32xf32>
    %263 = arith.mulf %262, %260 : vector<4x32xf32>
    %264 = arith.mulf %255, %154 : vector<4x32xf32>
    %265 = arith.addf %263, %264 : vector<4x32xf32>
    %266 = vector.extract_strided_slice %13 {offsets = [8, 0], sizes = [4, 32], strides = [1, 1]} : vector<24x32xf32> to vector<4x32xf32>
    %c0_117 = arith.constant 0 : index
    %c0_118 = arith.constant 0 : index
    %267 = vector.load %arg6[%c0_117, %c0_118] : memref<32x64xf32, #tpu.memory_space<vmem>>, vector<32x64xf32>
    %cst_119 = arith.constant dense<0.000000e+00> : vector<4x64xf32>
    %268 = tpu.matmul %266, %267, %cst_119 {dimension_numbers = #tpu.dot_dimension_numbers<[1], [0], [0], [1], [0, 0, 1, 1], [], []>} : vector<4x32xf32>, vector<32x64xf32>, vector<4x64xf32> -> vector<4x64xf32>
    %c0_120 = arith.constant 0 : index
    %c0_121 = arith.constant 0 : index
    %269 = vector.load %arg7[%c0_120, %c0_121] : memref<32x64xf32, #tpu.memory_space<vmem>>, vector<32x64xf32>
    %cst_122 = arith.constant dense<0.000000e+00> : vector<4x64xf32>
    %270 = tpu.matmul %265, %269, %cst_122 {dimension_numbers = #tpu.dot_dimension_numbers<[1], [0], [0], [1], [0, 0, 1, 1], [], []>} : vector<4x32xf32>, vector<32x64xf32>, vector<4x64xf32> -> vector<4x64xf32>
    %271 = arith.addf %268, %270 : vector<4x64xf32>
    %272 = arith.addf %271, %16 : vector<4x64xf32>
    %cst_123 = arith.constant 0.000000e+00 : f32
    %273 = vector.broadcast %cst_123 : f32 to vector<4x64xf32>
    %274 = arith.maximumf %272, %273 : vector<4x64xf32>
    %c0_124 = arith.constant 0 : index
    %c0_125 = arith.constant 0 : index
    %275 = vector.load %arg9[%c0_124, %c0_125] : memref<64x32xf32, #tpu.memory_space<vmem>>, vector<64x32xf32>
    %cst_126 = arith.constant dense<0.000000e+00> : vector<4x32xf32>
    %276 = tpu.matmul %274, %275, %cst_126 {dimension_numbers = #tpu.dot_dimension_numbers<[1], [0], [0], [1], [0, 0, 1, 1], [], []>} : vector<4x64xf32>, vector<64x32xf32>, vector<4x32xf32> -> vector<4x32xf32>
    %277 = arith.addf %276, %19 : vector<4x32xf32>
    %cst_127 = arith.constant 0.000000e+00 : f32
    %278 = vector.broadcast %cst_127 : f32 to vector<4x32xf32>
    %279 = arith.maximumf %277, %278 : vector<4x32xf32>
    %280 = vector.broadcast %cst_127 : f32 to vector<4x32xf32>
    %281 = arith.subf %277, %280 : vector<4x32xf32>
    %282 = arith.cmpf one, %281, %281 : vector<4x32xf32>
    %283 = vector.broadcast %cst_127 : f32 to vector<4x32xf32>
    %284 = arith.addf %277, %283 : vector<4x32xf32>
    %285 = math.absf %281 : vector<4x32xf32>
    %cst_128 = arith.constant 0.000000e+00 : f32
    %286 = vector.broadcast %cst_128 : f32 to vector<4x32xf32>
    %287 = arith.subf %286, %285 : vector<4x32xf32>
    %288 = math.exp %287 : vector<4x32xf32>
    %289 = math.log1p %288 : vector<4x32xf32>
    %290 = arith.addf %279, %289 : vector<4x32xf32>
    %291 = arith.select %282, %284, %290 : vector<4x32xi1>, vector<4x32xf32>
    %292 = vector.extract_strided_slice %277 {offsets = [0, 0], sizes = [4, 16], strides = [1, 1]} : vector<4x32xf32> to vector<4x16xf32>
    %293 = vector.extract_strided_slice %277 {offsets = [0, 16], sizes = [4, 16], strides = [1, 1]} : vector<4x32xf32> to vector<4x16xf32>
    %294 = vector.extract_strided_slice %291 {offsets = [0, 0], sizes = [4, 16], strides = [1, 1]} : vector<4x32xf32> to vector<4x16xf32>
    %295 = vector.extract_strided_slice %291 {offsets = [0, 16], sizes = [4, 16], strides = [1, 1]} : vector<4x32xf32> to vector<4x16xf32>
    %296 = arith.subf %292, %293 : vector<4x16xf32>
    %297 = arith.divf %295, %294 : vector<4x16xf32>
    %298 = math.log %297 : vector<4x16xf32>
    %cst_129 = arith.constant 2.000000e+00 : f32
    %299 = vector.broadcast %cst_129 : f32 to vector<4x16xf32>
    %300 = arith.mulf %299, %298 : vector<4x16xf32>
    %301 = arith.mulf %294, %294 : vector<4x16xf32>
    %302 = arith.mulf %296, %296 : vector<4x16xf32>
    %303 = arith.addf %301, %302 : vector<4x16xf32>
    %304 = arith.mulf %295, %295 : vector<4x16xf32>
    %305 = arith.divf %303, %304 : vector<4x16xf32>
    %306 = arith.addf %300, %305 : vector<4x16xf32>
    %307 = arith.addf %196, %306 : vector<4x16xf32>
    %c2_130 = arith.constant 2 : index
    %c0_131 = arith.constant 0 : index
    %c0_132 = arith.constant 0 : index
    %308 = vector.load %arg1[%c2_130, %c0_131, %c0_132] : memref<6x4x16xf32, #tpu.memory_space<vmem>>, vector<1x4x16xf32>
    %309 = vector.shape_cast %308 : vector<1x4x16xf32> to vector<4x16xf32>
    %310 = arith.mulf %309, %294 : vector<4x16xf32>
    %311 = arith.addf %310, %292 : vector<4x16xf32>
    %c0_133 = arith.constant 0 : index
    %c0_134 = arith.constant 0 : index
    %312 = vector.load %arg11[%c0_133, %c0_134] : memref<16x32xf32, #tpu.memory_space<vmem>>, vector<16x32xf32>
    %cst_135 = arith.constant dense<0.000000e+00> : vector<4x32xf32>
    %313 = tpu.matmul %311, %312, %cst_135 {dimension_numbers = #tpu.dot_dimension_numbers<[1], [0], [0], [1], [0, 0, 1, 1], [], []>} : vector<4x16xf32>, vector<16x32xf32>, vector<4x32xf32> -> vector<4x32xf32>
    %314 = arith.addf %313, %22 : vector<4x32xf32>
    %cst_136 = arith.constant 0.000000e+00 : f32
    %315 = vector.broadcast %cst_136 : f32 to vector<4x32xf32>
    %316 = arith.maximumf %314, %315 : vector<4x32xf32>
    %c0_137 = arith.constant 0 : index
    %c0_138 = arith.constant 0 : index
    %c0_139 = arith.constant 0 : index
    %317 = vector.load %arg18[%c0_137, %c0_138, %c0_139] : memref<3x32x96xf32, #tpu.memory_space<vmem>>, vector<1x32x96xf32>
    %318 = vector.shape_cast %317 : vector<1x32x96xf32> to vector<32x96xf32>
    %cst_140 = arith.constant dense<0.000000e+00> : vector<4x96xf32>
    %319 = tpu.matmul %266, %318, %cst_140 {dimension_numbers = #tpu.dot_dimension_numbers<[1], [0], [0], [1], [0, 0, 1, 1], [], []>} : vector<4x32xf32>, vector<32x96xf32>, vector<4x96xf32> -> vector<4x96xf32>
    %c1_141 = arith.constant 1 : index
    %c0_142 = arith.constant 0 : index
    %c0_143 = arith.constant 0 : index
    %320 = vector.load %arg18[%c1_141, %c0_142, %c0_143] : memref<3x32x96xf32, #tpu.memory_space<vmem>>, vector<1x32x96xf32>
    %321 = vector.shape_cast %320 : vector<1x32x96xf32> to vector<32x96xf32>
    %cst_144 = arith.constant dense<0.000000e+00> : vector<4x96xf32>
    %322 = tpu.matmul %316, %321, %cst_144 {dimension_numbers = #tpu.dot_dimension_numbers<[1], [0], [0], [1], [0, 0, 1, 1], [], []>} : vector<4x32xf32>, vector<32x96xf32>, vector<4x96xf32> -> vector<4x96xf32>
    %323 = arith.addf %319, %322 : vector<4x96xf32>
    %324 = arith.addf %323, %26 : vector<4x96xf32>
    %c0_145 = arith.constant 0 : index
    %c0_146 = arith.constant 0 : index
    %c0_147 = arith.constant 0 : index
    %325 = vector.load %arg19[%c0_145, %c0_146, %c0_147] : memref<2x32x96xf32, #tpu.memory_space<vmem>>, vector<1x32x96xf32>
    %326 = vector.shape_cast %325 : vector<1x32x96xf32> to vector<32x96xf32>
    %cst_148 = arith.constant dense<0.000000e+00> : vector<4x96xf32>
    %327 = tpu.matmul %237, %326, %cst_148 {dimension_numbers = #tpu.dot_dimension_numbers<[1], [0], [0], [1], [0, 0, 1, 1], [], []>} : vector<4x32xf32>, vector<32x96xf32>, vector<4x96xf32> -> vector<4x96xf32>
    %328 = arith.addf %327, %34 : vector<4x96xf32>
    %329 = vector.extract_strided_slice %324 {offsets = [0, 0], sizes = [4, 64], strides = [1, 1]} : vector<4x96xf32> to vector<4x64xf32>
    %330 = vector.extract_strided_slice %328 {offsets = [0, 0], sizes = [4, 64], strides = [1, 1]} : vector<4x96xf32> to vector<4x64xf32>
    %331 = arith.addf %329, %330 : vector<4x64xf32>
    %332 = arith.negf %331 : vector<4x64xf32>
    %333 = math.exp %332 : vector<4x64xf32>
    %cst_149 = arith.constant 1.000000e+00 : f32
    %334 = vector.broadcast %cst_149 : f32 to vector<4x64xf32>
    %335 = arith.addf %334, %333 : vector<4x64xf32>
    %336 = arith.divf %334, %335 : vector<4x64xf32>
    %337 = vector.extract_strided_slice %336 {offsets = [0, 0], sizes = [4, 32], strides = [1, 1]} : vector<4x64xf32> to vector<4x32xf32>
    %338 = vector.extract_strided_slice %336 {offsets = [0, 32], sizes = [4, 32], strides = [1, 1]} : vector<4x64xf32> to vector<4x32xf32>
    %339 = vector.extract_strided_slice %324 {offsets = [0, 64], sizes = [4, 32], strides = [1, 1]} : vector<4x96xf32> to vector<4x32xf32>
    %340 = vector.extract_strided_slice %328 {offsets = [0, 64], sizes = [4, 32], strides = [1, 1]} : vector<4x96xf32> to vector<4x32xf32>
    %341 = arith.mulf %337, %340 : vector<4x32xf32>
    %342 = arith.addf %339, %341 : vector<4x32xf32>
    %343 = math.tanh %342 : vector<4x32xf32>
    %cst_150 = arith.constant 1.000000e+00 : f32
    %344 = vector.broadcast %cst_150 : f32 to vector<4x32xf32>
    %345 = arith.subf %344, %338 : vector<4x32xf32>
    %346 = arith.mulf %345, %343 : vector<4x32xf32>
    %347 = arith.mulf %338, %237 : vector<4x32xf32>
    %348 = arith.addf %346, %347 : vector<4x32xf32>
    %c2_151 = arith.constant 2 : index
    %c0_152 = arith.constant 0 : index
    %c0_153 = arith.constant 0 : index
    %349 = vector.load %arg18[%c2_151, %c0_152, %c0_153] : memref<3x32x96xf32, #tpu.memory_space<vmem>>, vector<1x32x96xf32>
    %350 = vector.shape_cast %349 : vector<1x32x96xf32> to vector<32x96xf32>
    %cst_154 = arith.constant dense<0.000000e+00> : vector<4x96xf32>
    %351 = tpu.matmul %348, %350, %cst_154 {dimension_numbers = #tpu.dot_dimension_numbers<[1], [0], [0], [1], [0, 0, 1, 1], [], []>} : vector<4x32xf32>, vector<32x96xf32>, vector<4x96xf32> -> vector<4x96xf32>
    %352 = arith.addf %351, %30 : vector<4x96xf32>
    %c1_155 = arith.constant 1 : index
    %c0_156 = arith.constant 0 : index
    %c0_157 = arith.constant 0 : index
    %353 = vector.load %arg19[%c1_155, %c0_156, %c0_157] : memref<2x32x96xf32, #tpu.memory_space<vmem>>, vector<1x32x96xf32>
    %354 = vector.shape_cast %353 : vector<1x32x96xf32> to vector<32x96xf32>
    %cst_158 = arith.constant dense<0.000000e+00> : vector<4x96xf32>
    %355 = tpu.matmul %265, %354, %cst_158 {dimension_numbers = #tpu.dot_dimension_numbers<[1], [0], [0], [1], [0, 0, 1, 1], [], []>} : vector<4x32xf32>, vector<32x96xf32>, vector<4x96xf32> -> vector<4x96xf32>
    %356 = arith.addf %355, %38 : vector<4x96xf32>
    %357 = vector.extract_strided_slice %352 {offsets = [0, 0], sizes = [4, 64], strides = [1, 1]} : vector<4x96xf32> to vector<4x64xf32>
    %358 = vector.extract_strided_slice %356 {offsets = [0, 0], sizes = [4, 64], strides = [1, 1]} : vector<4x96xf32> to vector<4x64xf32>
    %359 = arith.addf %357, %358 : vector<4x64xf32>
    %360 = arith.negf %359 : vector<4x64xf32>
    %361 = math.exp %360 : vector<4x64xf32>
    %cst_159 = arith.constant 1.000000e+00 : f32
    %362 = vector.broadcast %cst_159 : f32 to vector<4x64xf32>
    %363 = arith.addf %362, %361 : vector<4x64xf32>
    %364 = arith.divf %362, %363 : vector<4x64xf32>
    %365 = vector.extract_strided_slice %364 {offsets = [0, 0], sizes = [4, 32], strides = [1, 1]} : vector<4x64xf32> to vector<4x32xf32>
    %366 = vector.extract_strided_slice %364 {offsets = [0, 32], sizes = [4, 32], strides = [1, 1]} : vector<4x64xf32> to vector<4x32xf32>
    %367 = vector.extract_strided_slice %352 {offsets = [0, 64], sizes = [4, 32], strides = [1, 1]} : vector<4x96xf32> to vector<4x32xf32>
    %368 = vector.extract_strided_slice %356 {offsets = [0, 64], sizes = [4, 32], strides = [1, 1]} : vector<4x96xf32> to vector<4x32xf32>
    %369 = arith.mulf %365, %368 : vector<4x32xf32>
    %370 = arith.addf %367, %369 : vector<4x32xf32>
    %371 = math.tanh %370 : vector<4x32xf32>
    %cst_160 = arith.constant 1.000000e+00 : f32
    %372 = vector.broadcast %cst_160 : f32 to vector<4x32xf32>
    %373 = arith.subf %372, %366 : vector<4x32xf32>
    %374 = arith.mulf %373, %371 : vector<4x32xf32>
    %375 = arith.mulf %366, %265 : vector<4x32xf32>
    %376 = arith.addf %374, %375 : vector<4x32xf32>
    %377 = vector.extract_strided_slice %13 {offsets = [12, 0], sizes = [4, 32], strides = [1, 1]} : vector<24x32xf32> to vector<4x32xf32>
    %c0_161 = arith.constant 0 : index
    %c0_162 = arith.constant 0 : index
    %378 = vector.load %arg6[%c0_161, %c0_162] : memref<32x64xf32, #tpu.memory_space<vmem>>, vector<32x64xf32>
    %cst_163 = arith.constant dense<0.000000e+00> : vector<4x64xf32>
    %379 = tpu.matmul %377, %378, %cst_163 {dimension_numbers = #tpu.dot_dimension_numbers<[1], [0], [0], [1], [0, 0, 1, 1], [], []>} : vector<4x32xf32>, vector<32x64xf32>, vector<4x64xf32> -> vector<4x64xf32>
    %c0_164 = arith.constant 0 : index
    %c0_165 = arith.constant 0 : index
    %380 = vector.load %arg7[%c0_164, %c0_165] : memref<32x64xf32, #tpu.memory_space<vmem>>, vector<32x64xf32>
    %cst_166 = arith.constant dense<0.000000e+00> : vector<4x64xf32>
    %381 = tpu.matmul %376, %380, %cst_166 {dimension_numbers = #tpu.dot_dimension_numbers<[1], [0], [0], [1], [0, 0, 1, 1], [], []>} : vector<4x32xf32>, vector<32x64xf32>, vector<4x64xf32> -> vector<4x64xf32>
    %382 = arith.addf %379, %381 : vector<4x64xf32>
    %383 = arith.addf %382, %16 : vector<4x64xf32>
    %cst_167 = arith.constant 0.000000e+00 : f32
    %384 = vector.broadcast %cst_167 : f32 to vector<4x64xf32>
    %385 = arith.maximumf %383, %384 : vector<4x64xf32>
    %c0_168 = arith.constant 0 : index
    %c0_169 = arith.constant 0 : index
    %386 = vector.load %arg9[%c0_168, %c0_169] : memref<64x32xf32, #tpu.memory_space<vmem>>, vector<64x32xf32>
    %cst_170 = arith.constant dense<0.000000e+00> : vector<4x32xf32>
    %387 = tpu.matmul %385, %386, %cst_170 {dimension_numbers = #tpu.dot_dimension_numbers<[1], [0], [0], [1], [0, 0, 1, 1], [], []>} : vector<4x64xf32>, vector<64x32xf32>, vector<4x32xf32> -> vector<4x32xf32>
    %388 = arith.addf %387, %19 : vector<4x32xf32>
    %cst_171 = arith.constant 0.000000e+00 : f32
    %389 = vector.broadcast %cst_171 : f32 to vector<4x32xf32>
    %390 = arith.maximumf %388, %389 : vector<4x32xf32>
    %391 = vector.broadcast %cst_171 : f32 to vector<4x32xf32>
    %392 = arith.subf %388, %391 : vector<4x32xf32>
    %393 = arith.cmpf one, %392, %392 : vector<4x32xf32>
    %394 = vector.broadcast %cst_171 : f32 to vector<4x32xf32>
    %395 = arith.addf %388, %394 : vector<4x32xf32>
    %396 = math.absf %392 : vector<4x32xf32>
    %cst_172 = arith.constant 0.000000e+00 : f32
    %397 = vector.broadcast %cst_172 : f32 to vector<4x32xf32>
    %398 = arith.subf %397, %396 : vector<4x32xf32>
    %399 = math.exp %398 : vector<4x32xf32>
    %400 = math.log1p %399 : vector<4x32xf32>
    %401 = arith.addf %390, %400 : vector<4x32xf32>
    %402 = arith.select %393, %395, %401 : vector<4x32xi1>, vector<4x32xf32>
    %403 = vector.extract_strided_slice %388 {offsets = [0, 0], sizes = [4, 16], strides = [1, 1]} : vector<4x32xf32> to vector<4x16xf32>
    %404 = vector.extract_strided_slice %388 {offsets = [0, 16], sizes = [4, 16], strides = [1, 1]} : vector<4x32xf32> to vector<4x16xf32>
    %405 = vector.extract_strided_slice %402 {offsets = [0, 0], sizes = [4, 16], strides = [1, 1]} : vector<4x32xf32> to vector<4x16xf32>
    %406 = vector.extract_strided_slice %402 {offsets = [0, 16], sizes = [4, 16], strides = [1, 1]} : vector<4x32xf32> to vector<4x16xf32>
    %407 = arith.subf %403, %404 : vector<4x16xf32>
    %408 = arith.divf %406, %405 : vector<4x16xf32>
    %409 = math.log %408 : vector<4x16xf32>
    %cst_173 = arith.constant 2.000000e+00 : f32
    %410 = vector.broadcast %cst_173 : f32 to vector<4x16xf32>
    %411 = arith.mulf %410, %409 : vector<4x16xf32>
    %412 = arith.mulf %405, %405 : vector<4x16xf32>
    %413 = arith.mulf %407, %407 : vector<4x16xf32>
    %414 = arith.addf %412, %413 : vector<4x16xf32>
    %415 = arith.mulf %406, %406 : vector<4x16xf32>
    %416 = arith.divf %414, %415 : vector<4x16xf32>
    %417 = arith.addf %411, %416 : vector<4x16xf32>
    %418 = arith.addf %307, %417 : vector<4x16xf32>
    %c3 = arith.constant 3 : index
    %c0_174 = arith.constant 0 : index
    %c0_175 = arith.constant 0 : index
    %419 = vector.load %arg1[%c3, %c0_174, %c0_175] : memref<6x4x16xf32, #tpu.memory_space<vmem>>, vector<1x4x16xf32>
    %420 = vector.shape_cast %419 : vector<1x4x16xf32> to vector<4x16xf32>
    %421 = arith.mulf %420, %405 : vector<4x16xf32>
    %422 = arith.addf %421, %403 : vector<4x16xf32>
    %c0_176 = arith.constant 0 : index
    %c0_177 = arith.constant 0 : index
    %423 = vector.load %arg11[%c0_176, %c0_177] : memref<16x32xf32, #tpu.memory_space<vmem>>, vector<16x32xf32>
    %cst_178 = arith.constant dense<0.000000e+00> : vector<4x32xf32>
    %424 = tpu.matmul %422, %423, %cst_178 {dimension_numbers = #tpu.dot_dimension_numbers<[1], [0], [0], [1], [0, 0, 1, 1], [], []>} : vector<4x16xf32>, vector<16x32xf32>, vector<4x32xf32> -> vector<4x32xf32>
    %425 = arith.addf %424, %22 : vector<4x32xf32>
    %cst_179 = arith.constant 0.000000e+00 : f32
    %426 = vector.broadcast %cst_179 : f32 to vector<4x32xf32>
    %427 = arith.maximumf %425, %426 : vector<4x32xf32>
    %c0_180 = arith.constant 0 : index
    %c0_181 = arith.constant 0 : index
    %c0_182 = arith.constant 0 : index
    %428 = vector.load %arg18[%c0_180, %c0_181, %c0_182] : memref<3x32x96xf32, #tpu.memory_space<vmem>>, vector<1x32x96xf32>
    %429 = vector.shape_cast %428 : vector<1x32x96xf32> to vector<32x96xf32>
    %cst_183 = arith.constant dense<0.000000e+00> : vector<4x96xf32>
    %430 = tpu.matmul %377, %429, %cst_183 {dimension_numbers = #tpu.dot_dimension_numbers<[1], [0], [0], [1], [0, 0, 1, 1], [], []>} : vector<4x32xf32>, vector<32x96xf32>, vector<4x96xf32> -> vector<4x96xf32>
    %c1_184 = arith.constant 1 : index
    %c0_185 = arith.constant 0 : index
    %c0_186 = arith.constant 0 : index
    %431 = vector.load %arg18[%c1_184, %c0_185, %c0_186] : memref<3x32x96xf32, #tpu.memory_space<vmem>>, vector<1x32x96xf32>
    %432 = vector.shape_cast %431 : vector<1x32x96xf32> to vector<32x96xf32>
    %cst_187 = arith.constant dense<0.000000e+00> : vector<4x96xf32>
    %433 = tpu.matmul %427, %432, %cst_187 {dimension_numbers = #tpu.dot_dimension_numbers<[1], [0], [0], [1], [0, 0, 1, 1], [], []>} : vector<4x32xf32>, vector<32x96xf32>, vector<4x96xf32> -> vector<4x96xf32>
    %434 = arith.addf %430, %433 : vector<4x96xf32>
    %435 = arith.addf %434, %26 : vector<4x96xf32>
    %c0_188 = arith.constant 0 : index
    %c0_189 = arith.constant 0 : index
    %c0_190 = arith.constant 0 : index
    %436 = vector.load %arg19[%c0_188, %c0_189, %c0_190] : memref<2x32x96xf32, #tpu.memory_space<vmem>>, vector<1x32x96xf32>
    %437 = vector.shape_cast %436 : vector<1x32x96xf32> to vector<32x96xf32>
    %cst_191 = arith.constant dense<0.000000e+00> : vector<4x96xf32>
    %438 = tpu.matmul %348, %437, %cst_191 {dimension_numbers = #tpu.dot_dimension_numbers<[1], [0], [0], [1], [0, 0, 1, 1], [], []>} : vector<4x32xf32>, vector<32x96xf32>, vector<4x96xf32> -> vector<4x96xf32>
    %439 = arith.addf %438, %34 : vector<4x96xf32>
    %440 = vector.extract_strided_slice %435 {offsets = [0, 0], sizes = [4, 64], strides = [1, 1]} : vector<4x96xf32> to vector<4x64xf32>
    %441 = vector.extract_strided_slice %439 {offsets = [0, 0], sizes = [4, 64], strides = [1, 1]} : vector<4x96xf32> to vector<4x64xf32>
    %442 = arith.addf %440, %441 : vector<4x64xf32>
    %443 = arith.negf %442 : vector<4x64xf32>
    %444 = math.exp %443 : vector<4x64xf32>
    %cst_192 = arith.constant 1.000000e+00 : f32
    %445 = vector.broadcast %cst_192 : f32 to vector<4x64xf32>
    %446 = arith.addf %445, %444 : vector<4x64xf32>
    %447 = arith.divf %445, %446 : vector<4x64xf32>
    %448 = vector.extract_strided_slice %447 {offsets = [0, 0], sizes = [4, 32], strides = [1, 1]} : vector<4x64xf32> to vector<4x32xf32>
    %449 = vector.extract_strided_slice %447 {offsets = [0, 32], sizes = [4, 32], strides = [1, 1]} : vector<4x64xf32> to vector<4x32xf32>
    %450 = vector.extract_strided_slice %435 {offsets = [0, 64], sizes = [4, 32], strides = [1, 1]} : vector<4x96xf32> to vector<4x32xf32>
    %451 = vector.extract_strided_slice %439 {offsets = [0, 64], sizes = [4, 32], strides = [1, 1]} : vector<4x96xf32> to vector<4x32xf32>
    %452 = arith.mulf %448, %451 : vector<4x32xf32>
    %453 = arith.addf %450, %452 : vector<4x32xf32>
    %454 = math.tanh %453 : vector<4x32xf32>
    %cst_193 = arith.constant 1.000000e+00 : f32
    %455 = vector.broadcast %cst_193 : f32 to vector<4x32xf32>
    %456 = arith.subf %455, %449 : vector<4x32xf32>
    %457 = arith.mulf %456, %454 : vector<4x32xf32>
    %458 = arith.mulf %449, %348 : vector<4x32xf32>
    %459 = arith.addf %457, %458 : vector<4x32xf32>
    %c2_194 = arith.constant 2 : index
    %c0_195 = arith.constant 0 : index
    %c0_196 = arith.constant 0 : index
    %460 = vector.load %arg18[%c2_194, %c0_195, %c0_196] : memref<3x32x96xf32, #tpu.memory_space<vmem>>, vector<1x32x96xf32>
    %461 = vector.shape_cast %460 : vector<1x32x96xf32> to vector<32x96xf32>
    %cst_197 = arith.constant dense<0.000000e+00> : vector<4x96xf32>
    %462 = tpu.matmul %459, %461, %cst_197 {dimension_numbers = #tpu.dot_dimension_numbers<[1], [0], [0], [1], [0, 0, 1, 1], [], []>} : vector<4x32xf32>, vector<32x96xf32>, vector<4x96xf32> -> vector<4x96xf32>
    %463 = arith.addf %462, %30 : vector<4x96xf32>
    %c1_198 = arith.constant 1 : index
    %c0_199 = arith.constant 0 : index
    %c0_200 = arith.constant 0 : index
    %464 = vector.load %arg19[%c1_198, %c0_199, %c0_200] : memref<2x32x96xf32, #tpu.memory_space<vmem>>, vector<1x32x96xf32>
    %465 = vector.shape_cast %464 : vector<1x32x96xf32> to vector<32x96xf32>
    %cst_201 = arith.constant dense<0.000000e+00> : vector<4x96xf32>
    %466 = tpu.matmul %376, %465, %cst_201 {dimension_numbers = #tpu.dot_dimension_numbers<[1], [0], [0], [1], [0, 0, 1, 1], [], []>} : vector<4x32xf32>, vector<32x96xf32>, vector<4x96xf32> -> vector<4x96xf32>
    %467 = arith.addf %466, %38 : vector<4x96xf32>
    %468 = vector.extract_strided_slice %463 {offsets = [0, 0], sizes = [4, 64], strides = [1, 1]} : vector<4x96xf32> to vector<4x64xf32>
    %469 = vector.extract_strided_slice %467 {offsets = [0, 0], sizes = [4, 64], strides = [1, 1]} : vector<4x96xf32> to vector<4x64xf32>
    %470 = arith.addf %468, %469 : vector<4x64xf32>
    %471 = arith.negf %470 : vector<4x64xf32>
    %472 = math.exp %471 : vector<4x64xf32>
    %cst_202 = arith.constant 1.000000e+00 : f32
    %473 = vector.broadcast %cst_202 : f32 to vector<4x64xf32>
    %474 = arith.addf %473, %472 : vector<4x64xf32>
    %475 = arith.divf %473, %474 : vector<4x64xf32>
    %476 = vector.extract_strided_slice %475 {offsets = [0, 0], sizes = [4, 32], strides = [1, 1]} : vector<4x64xf32> to vector<4x32xf32>
    %477 = vector.extract_strided_slice %475 {offsets = [0, 32], sizes = [4, 32], strides = [1, 1]} : vector<4x64xf32> to vector<4x32xf32>
    %478 = vector.extract_strided_slice %463 {offsets = [0, 64], sizes = [4, 32], strides = [1, 1]} : vector<4x96xf32> to vector<4x32xf32>
    %479 = vector.extract_strided_slice %467 {offsets = [0, 64], sizes = [4, 32], strides = [1, 1]} : vector<4x96xf32> to vector<4x32xf32>
    %480 = arith.mulf %476, %479 : vector<4x32xf32>
    %481 = arith.addf %478, %480 : vector<4x32xf32>
    %482 = math.tanh %481 : vector<4x32xf32>
    %cst_203 = arith.constant 1.000000e+00 : f32
    %483 = vector.broadcast %cst_203 : f32 to vector<4x32xf32>
    %484 = arith.subf %483, %477 : vector<4x32xf32>
    %485 = arith.mulf %484, %482 : vector<4x32xf32>
    %486 = arith.mulf %477, %376 : vector<4x32xf32>
    %487 = arith.addf %485, %486 : vector<4x32xf32>
    %488 = vector.extract_strided_slice %13 {offsets = [16, 0], sizes = [4, 32], strides = [1, 1]} : vector<24x32xf32> to vector<4x32xf32>
    %c0_204 = arith.constant 0 : index
    %c0_205 = arith.constant 0 : index
    %489 = vector.load %arg6[%c0_204, %c0_205] : memref<32x64xf32, #tpu.memory_space<vmem>>, vector<32x64xf32>
    %cst_206 = arith.constant dense<0.000000e+00> : vector<4x64xf32>
    %490 = tpu.matmul %488, %489, %cst_206 {dimension_numbers = #tpu.dot_dimension_numbers<[1], [0], [0], [1], [0, 0, 1, 1], [], []>} : vector<4x32xf32>, vector<32x64xf32>, vector<4x64xf32> -> vector<4x64xf32>
    %c0_207 = arith.constant 0 : index
    %c0_208 = arith.constant 0 : index
    %491 = vector.load %arg7[%c0_207, %c0_208] : memref<32x64xf32, #tpu.memory_space<vmem>>, vector<32x64xf32>
    %cst_209 = arith.constant dense<0.000000e+00> : vector<4x64xf32>
    %492 = tpu.matmul %487, %491, %cst_209 {dimension_numbers = #tpu.dot_dimension_numbers<[1], [0], [0], [1], [0, 0, 1, 1], [], []>} : vector<4x32xf32>, vector<32x64xf32>, vector<4x64xf32> -> vector<4x64xf32>
    %493 = arith.addf %490, %492 : vector<4x64xf32>
    %494 = arith.addf %493, %16 : vector<4x64xf32>
    %cst_210 = arith.constant 0.000000e+00 : f32
    %495 = vector.broadcast %cst_210 : f32 to vector<4x64xf32>
    %496 = arith.maximumf %494, %495 : vector<4x64xf32>
    %c0_211 = arith.constant 0 : index
    %c0_212 = arith.constant 0 : index
    %497 = vector.load %arg9[%c0_211, %c0_212] : memref<64x32xf32, #tpu.memory_space<vmem>>, vector<64x32xf32>
    %cst_213 = arith.constant dense<0.000000e+00> : vector<4x32xf32>
    %498 = tpu.matmul %496, %497, %cst_213 {dimension_numbers = #tpu.dot_dimension_numbers<[1], [0], [0], [1], [0, 0, 1, 1], [], []>} : vector<4x64xf32>, vector<64x32xf32>, vector<4x32xf32> -> vector<4x32xf32>
    %499 = arith.addf %498, %19 : vector<4x32xf32>
    %cst_214 = arith.constant 0.000000e+00 : f32
    %500 = vector.broadcast %cst_214 : f32 to vector<4x32xf32>
    %501 = arith.maximumf %499, %500 : vector<4x32xf32>
    %502 = vector.broadcast %cst_214 : f32 to vector<4x32xf32>
    %503 = arith.subf %499, %502 : vector<4x32xf32>
    %504 = arith.cmpf one, %503, %503 : vector<4x32xf32>
    %505 = vector.broadcast %cst_214 : f32 to vector<4x32xf32>
    %506 = arith.addf %499, %505 : vector<4x32xf32>
    %507 = math.absf %503 : vector<4x32xf32>
    %cst_215 = arith.constant 0.000000e+00 : f32
    %508 = vector.broadcast %cst_215 : f32 to vector<4x32xf32>
    %509 = arith.subf %508, %507 : vector<4x32xf32>
    %510 = math.exp %509 : vector<4x32xf32>
    %511 = math.log1p %510 : vector<4x32xf32>
    %512 = arith.addf %501, %511 : vector<4x32xf32>
    %513 = arith.select %504, %506, %512 : vector<4x32xi1>, vector<4x32xf32>
    %514 = vector.extract_strided_slice %499 {offsets = [0, 0], sizes = [4, 16], strides = [1, 1]} : vector<4x32xf32> to vector<4x16xf32>
    %515 = vector.extract_strided_slice %499 {offsets = [0, 16], sizes = [4, 16], strides = [1, 1]} : vector<4x32xf32> to vector<4x16xf32>
    %516 = vector.extract_strided_slice %513 {offsets = [0, 0], sizes = [4, 16], strides = [1, 1]} : vector<4x32xf32> to vector<4x16xf32>
    %517 = vector.extract_strided_slice %513 {offsets = [0, 16], sizes = [4, 16], strides = [1, 1]} : vector<4x32xf32> to vector<4x16xf32>
    %518 = arith.subf %514, %515 : vector<4x16xf32>
    %519 = arith.divf %517, %516 : vector<4x16xf32>
    %520 = math.log %519 : vector<4x16xf32>
    %cst_216 = arith.constant 2.000000e+00 : f32
    %521 = vector.broadcast %cst_216 : f32 to vector<4x16xf32>
    %522 = arith.mulf %521, %520 : vector<4x16xf32>
    %523 = arith.mulf %516, %516 : vector<4x16xf32>
    %524 = arith.mulf %518, %518 : vector<4x16xf32>
    %525 = arith.addf %523, %524 : vector<4x16xf32>
    %526 = arith.mulf %517, %517 : vector<4x16xf32>
    %527 = arith.divf %525, %526 : vector<4x16xf32>
    %528 = arith.addf %522, %527 : vector<4x16xf32>
    %529 = arith.addf %418, %528 : vector<4x16xf32>
    %c4 = arith.constant 4 : index
    %c0_217 = arith.constant 0 : index
    %c0_218 = arith.constant 0 : index
    %530 = vector.load %arg1[%c4, %c0_217, %c0_218] : memref<6x4x16xf32, #tpu.memory_space<vmem>>, vector<1x4x16xf32>
    %531 = vector.shape_cast %530 : vector<1x4x16xf32> to vector<4x16xf32>
    %532 = arith.mulf %531, %516 : vector<4x16xf32>
    %533 = arith.addf %532, %514 : vector<4x16xf32>
    %c0_219 = arith.constant 0 : index
    %c0_220 = arith.constant 0 : index
    %534 = vector.load %arg11[%c0_219, %c0_220] : memref<16x32xf32, #tpu.memory_space<vmem>>, vector<16x32xf32>
    %cst_221 = arith.constant dense<0.000000e+00> : vector<4x32xf32>
    %535 = tpu.matmul %533, %534, %cst_221 {dimension_numbers = #tpu.dot_dimension_numbers<[1], [0], [0], [1], [0, 0, 1, 1], [], []>} : vector<4x16xf32>, vector<16x32xf32>, vector<4x32xf32> -> vector<4x32xf32>
    %536 = arith.addf %535, %22 : vector<4x32xf32>
    %cst_222 = arith.constant 0.000000e+00 : f32
    %537 = vector.broadcast %cst_222 : f32 to vector<4x32xf32>
    %538 = arith.maximumf %536, %537 : vector<4x32xf32>
    %c0_223 = arith.constant 0 : index
    %c0_224 = arith.constant 0 : index
    %c0_225 = arith.constant 0 : index
    %539 = vector.load %arg18[%c0_223, %c0_224, %c0_225] : memref<3x32x96xf32, #tpu.memory_space<vmem>>, vector<1x32x96xf32>
    %540 = vector.shape_cast %539 : vector<1x32x96xf32> to vector<32x96xf32>
    %cst_226 = arith.constant dense<0.000000e+00> : vector<4x96xf32>
    %541 = tpu.matmul %488, %540, %cst_226 {dimension_numbers = #tpu.dot_dimension_numbers<[1], [0], [0], [1], [0, 0, 1, 1], [], []>} : vector<4x32xf32>, vector<32x96xf32>, vector<4x96xf32> -> vector<4x96xf32>
    %c1_227 = arith.constant 1 : index
    %c0_228 = arith.constant 0 : index
    %c0_229 = arith.constant 0 : index
    %542 = vector.load %arg18[%c1_227, %c0_228, %c0_229] : memref<3x32x96xf32, #tpu.memory_space<vmem>>, vector<1x32x96xf32>
    %543 = vector.shape_cast %542 : vector<1x32x96xf32> to vector<32x96xf32>
    %cst_230 = arith.constant dense<0.000000e+00> : vector<4x96xf32>
    %544 = tpu.matmul %538, %543, %cst_230 {dimension_numbers = #tpu.dot_dimension_numbers<[1], [0], [0], [1], [0, 0, 1, 1], [], []>} : vector<4x32xf32>, vector<32x96xf32>, vector<4x96xf32> -> vector<4x96xf32>
    %545 = arith.addf %541, %544 : vector<4x96xf32>
    %546 = arith.addf %545, %26 : vector<4x96xf32>
    %c0_231 = arith.constant 0 : index
    %c0_232 = arith.constant 0 : index
    %c0_233 = arith.constant 0 : index
    %547 = vector.load %arg19[%c0_231, %c0_232, %c0_233] : memref<2x32x96xf32, #tpu.memory_space<vmem>>, vector<1x32x96xf32>
    %548 = vector.shape_cast %547 : vector<1x32x96xf32> to vector<32x96xf32>
    %cst_234 = arith.constant dense<0.000000e+00> : vector<4x96xf32>
    %549 = tpu.matmul %459, %548, %cst_234 {dimension_numbers = #tpu.dot_dimension_numbers<[1], [0], [0], [1], [0, 0, 1, 1], [], []>} : vector<4x32xf32>, vector<32x96xf32>, vector<4x96xf32> -> vector<4x96xf32>
    %550 = arith.addf %549, %34 : vector<4x96xf32>
    %551 = vector.extract_strided_slice %546 {offsets = [0, 0], sizes = [4, 64], strides = [1, 1]} : vector<4x96xf32> to vector<4x64xf32>
    %552 = vector.extract_strided_slice %550 {offsets = [0, 0], sizes = [4, 64], strides = [1, 1]} : vector<4x96xf32> to vector<4x64xf32>
    %553 = arith.addf %551, %552 : vector<4x64xf32>
    %554 = arith.negf %553 : vector<4x64xf32>
    %555 = math.exp %554 : vector<4x64xf32>
    %cst_235 = arith.constant 1.000000e+00 : f32
    %556 = vector.broadcast %cst_235 : f32 to vector<4x64xf32>
    %557 = arith.addf %556, %555 : vector<4x64xf32>
    %558 = arith.divf %556, %557 : vector<4x64xf32>
    %559 = vector.extract_strided_slice %558 {offsets = [0, 0], sizes = [4, 32], strides = [1, 1]} : vector<4x64xf32> to vector<4x32xf32>
    %560 = vector.extract_strided_slice %558 {offsets = [0, 32], sizes = [4, 32], strides = [1, 1]} : vector<4x64xf32> to vector<4x32xf32>
    %561 = vector.extract_strided_slice %546 {offsets = [0, 64], sizes = [4, 32], strides = [1, 1]} : vector<4x96xf32> to vector<4x32xf32>
    %562 = vector.extract_strided_slice %550 {offsets = [0, 64], sizes = [4, 32], strides = [1, 1]} : vector<4x96xf32> to vector<4x32xf32>
    %563 = arith.mulf %559, %562 : vector<4x32xf32>
    %564 = arith.addf %561, %563 : vector<4x32xf32>
    %565 = math.tanh %564 : vector<4x32xf32>
    %cst_236 = arith.constant 1.000000e+00 : f32
    %566 = vector.broadcast %cst_236 : f32 to vector<4x32xf32>
    %567 = arith.subf %566, %560 : vector<4x32xf32>
    %568 = arith.mulf %567, %565 : vector<4x32xf32>
    %569 = arith.mulf %560, %459 : vector<4x32xf32>
    %570 = arith.addf %568, %569 : vector<4x32xf32>
    %c2_237 = arith.constant 2 : index
    %c0_238 = arith.constant 0 : index
    %c0_239 = arith.constant 0 : index
    %571 = vector.load %arg18[%c2_237, %c0_238, %c0_239] : memref<3x32x96xf32, #tpu.memory_space<vmem>>, vector<1x32x96xf32>
    %572 = vector.shape_cast %571 : vector<1x32x96xf32> to vector<32x96xf32>
    %cst_240 = arith.constant dense<0.000000e+00> : vector<4x96xf32>
    %573 = tpu.matmul %570, %572, %cst_240 {dimension_numbers = #tpu.dot_dimension_numbers<[1], [0], [0], [1], [0, 0, 1, 1], [], []>} : vector<4x32xf32>, vector<32x96xf32>, vector<4x96xf32> -> vector<4x96xf32>
    %574 = arith.addf %573, %30 : vector<4x96xf32>
    %c1_241 = arith.constant 1 : index
    %c0_242 = arith.constant 0 : index
    %c0_243 = arith.constant 0 : index
    %575 = vector.load %arg19[%c1_241, %c0_242, %c0_243] : memref<2x32x96xf32, #tpu.memory_space<vmem>>, vector<1x32x96xf32>
    %576 = vector.shape_cast %575 : vector<1x32x96xf32> to vector<32x96xf32>
    %cst_244 = arith.constant dense<0.000000e+00> : vector<4x96xf32>
    %577 = tpu.matmul %487, %576, %cst_244 {dimension_numbers = #tpu.dot_dimension_numbers<[1], [0], [0], [1], [0, 0, 1, 1], [], []>} : vector<4x32xf32>, vector<32x96xf32>, vector<4x96xf32> -> vector<4x96xf32>
    %578 = arith.addf %577, %38 : vector<4x96xf32>
    %579 = vector.extract_strided_slice %574 {offsets = [0, 0], sizes = [4, 64], strides = [1, 1]} : vector<4x96xf32> to vector<4x64xf32>
    %580 = vector.extract_strided_slice %578 {offsets = [0, 0], sizes = [4, 64], strides = [1, 1]} : vector<4x96xf32> to vector<4x64xf32>
    %581 = arith.addf %579, %580 : vector<4x64xf32>
    %582 = arith.negf %581 : vector<4x64xf32>
    %583 = math.exp %582 : vector<4x64xf32>
    %cst_245 = arith.constant 1.000000e+00 : f32
    %584 = vector.broadcast %cst_245 : f32 to vector<4x64xf32>
    %585 = arith.addf %584, %583 : vector<4x64xf32>
    %586 = arith.divf %584, %585 : vector<4x64xf32>
    %587 = vector.extract_strided_slice %586 {offsets = [0, 0], sizes = [4, 32], strides = [1, 1]} : vector<4x64xf32> to vector<4x32xf32>
    %588 = vector.extract_strided_slice %586 {offsets = [0, 32], sizes = [4, 32], strides = [1, 1]} : vector<4x64xf32> to vector<4x32xf32>
    %589 = vector.extract_strided_slice %574 {offsets = [0, 64], sizes = [4, 32], strides = [1, 1]} : vector<4x96xf32> to vector<4x32xf32>
    %590 = vector.extract_strided_slice %578 {offsets = [0, 64], sizes = [4, 32], strides = [1, 1]} : vector<4x96xf32> to vector<4x32xf32>
    %591 = arith.mulf %587, %590 : vector<4x32xf32>
    %592 = arith.addf %589, %591 : vector<4x32xf32>
    %593 = math.tanh %592 : vector<4x32xf32>
    %cst_246 = arith.constant 1.000000e+00 : f32
    %594 = vector.broadcast %cst_246 : f32 to vector<4x32xf32>
    %595 = arith.subf %594, %588 : vector<4x32xf32>
    %596 = arith.mulf %595, %593 : vector<4x32xf32>
    %597 = arith.mulf %588, %487 : vector<4x32xf32>
    %598 = arith.addf %596, %597 : vector<4x32xf32>
    %599 = vector.extract_strided_slice %13 {offsets = [20, 0], sizes = [4, 32], strides = [1, 1]} : vector<24x32xf32> to vector<4x32xf32>
    %c0_247 = arith.constant 0 : index
    %c0_248 = arith.constant 0 : index
    %600 = vector.load %arg6[%c0_247, %c0_248] : memref<32x64xf32, #tpu.memory_space<vmem>>, vector<32x64xf32>
    %cst_249 = arith.constant dense<0.000000e+00> : vector<4x64xf32>
    %601 = tpu.matmul %599, %600, %cst_249 {dimension_numbers = #tpu.dot_dimension_numbers<[1], [0], [0], [1], [0, 0, 1, 1], [], []>} : vector<4x32xf32>, vector<32x64xf32>, vector<4x64xf32> -> vector<4x64xf32>
    %c0_250 = arith.constant 0 : index
    %c0_251 = arith.constant 0 : index
    %602 = vector.load %arg7[%c0_250, %c0_251] : memref<32x64xf32, #tpu.memory_space<vmem>>, vector<32x64xf32>
    %cst_252 = arith.constant dense<0.000000e+00> : vector<4x64xf32>
    %603 = tpu.matmul %598, %602, %cst_252 {dimension_numbers = #tpu.dot_dimension_numbers<[1], [0], [0], [1], [0, 0, 1, 1], [], []>} : vector<4x32xf32>, vector<32x64xf32>, vector<4x64xf32> -> vector<4x64xf32>
    %604 = arith.addf %601, %603 : vector<4x64xf32>
    %605 = arith.addf %604, %16 : vector<4x64xf32>
    %cst_253 = arith.constant 0.000000e+00 : f32
    %606 = vector.broadcast %cst_253 : f32 to vector<4x64xf32>
    %607 = arith.maximumf %605, %606 : vector<4x64xf32>
    %c0_254 = arith.constant 0 : index
    %c0_255 = arith.constant 0 : index
    %608 = vector.load %arg9[%c0_254, %c0_255] : memref<64x32xf32, #tpu.memory_space<vmem>>, vector<64x32xf32>
    %cst_256 = arith.constant dense<0.000000e+00> : vector<4x32xf32>
    %609 = tpu.matmul %607, %608, %cst_256 {dimension_numbers = #tpu.dot_dimension_numbers<[1], [0], [0], [1], [0, 0, 1, 1], [], []>} : vector<4x64xf32>, vector<64x32xf32>, vector<4x32xf32> -> vector<4x32xf32>
    %610 = arith.addf %609, %19 : vector<4x32xf32>
    %cst_257 = arith.constant 0.000000e+00 : f32
    %611 = vector.broadcast %cst_257 : f32 to vector<4x32xf32>
    %612 = arith.maximumf %610, %611 : vector<4x32xf32>
    %613 = vector.broadcast %cst_257 : f32 to vector<4x32xf32>
    %614 = arith.subf %610, %613 : vector<4x32xf32>
    %615 = arith.cmpf one, %614, %614 : vector<4x32xf32>
    %616 = vector.broadcast %cst_257 : f32 to vector<4x32xf32>
    %617 = arith.addf %610, %616 : vector<4x32xf32>
    %618 = math.absf %614 : vector<4x32xf32>
    %cst_258 = arith.constant 0.000000e+00 : f32
    %619 = vector.broadcast %cst_258 : f32 to vector<4x32xf32>
    %620 = arith.subf %619, %618 : vector<4x32xf32>
    %621 = math.exp %620 : vector<4x32xf32>
    %622 = math.log1p %621 : vector<4x32xf32>
    %623 = arith.addf %612, %622 : vector<4x32xf32>
    %624 = arith.select %615, %617, %623 : vector<4x32xi1>, vector<4x32xf32>
    %625 = vector.extract_strided_slice %610 {offsets = [0, 0], sizes = [4, 16], strides = [1, 1]} : vector<4x32xf32> to vector<4x16xf32>
    %626 = vector.extract_strided_slice %610 {offsets = [0, 16], sizes = [4, 16], strides = [1, 1]} : vector<4x32xf32> to vector<4x16xf32>
    %627 = vector.extract_strided_slice %624 {offsets = [0, 0], sizes = [4, 16], strides = [1, 1]} : vector<4x32xf32> to vector<4x16xf32>
    %628 = vector.extract_strided_slice %624 {offsets = [0, 16], sizes = [4, 16], strides = [1, 1]} : vector<4x32xf32> to vector<4x16xf32>
    %629 = arith.subf %625, %626 : vector<4x16xf32>
    %630 = arith.divf %628, %627 : vector<4x16xf32>
    %631 = math.log %630 : vector<4x16xf32>
    %cst_259 = arith.constant 2.000000e+00 : f32
    %632 = vector.broadcast %cst_259 : f32 to vector<4x16xf32>
    %633 = arith.mulf %632, %631 : vector<4x16xf32>
    %634 = arith.mulf %627, %627 : vector<4x16xf32>
    %635 = arith.mulf %629, %629 : vector<4x16xf32>
    %636 = arith.addf %634, %635 : vector<4x16xf32>
    %637 = arith.mulf %628, %628 : vector<4x16xf32>
    %638 = arith.divf %636, %637 : vector<4x16xf32>
    %639 = arith.addf %633, %638 : vector<4x16xf32>
    %640 = arith.addf %529, %639 : vector<4x16xf32>
    %c5 = arith.constant 5 : index
    %c0_260 = arith.constant 0 : index
    %c0_261 = arith.constant 0 : index
    %641 = vector.load %arg1[%c5, %c0_260, %c0_261] : memref<6x4x16xf32, #tpu.memory_space<vmem>>, vector<1x4x16xf32>
    %642 = vector.shape_cast %641 : vector<1x4x16xf32> to vector<4x16xf32>
    %643 = arith.mulf %642, %627 : vector<4x16xf32>
    %644 = arith.addf %643, %625 : vector<4x16xf32>
    %c0_262 = arith.constant 0 : index
    %c0_263 = arith.constant 0 : index
    %645 = vector.load %arg11[%c0_262, %c0_263] : memref<16x32xf32, #tpu.memory_space<vmem>>, vector<16x32xf32>
    %cst_264 = arith.constant dense<0.000000e+00> : vector<4x32xf32>
    %646 = tpu.matmul %644, %645, %cst_264 {dimension_numbers = #tpu.dot_dimension_numbers<[1], [0], [0], [1], [0, 0, 1, 1], [], []>} : vector<4x16xf32>, vector<16x32xf32>, vector<4x32xf32> -> vector<4x32xf32>
    %647 = arith.addf %646, %22 : vector<4x32xf32>
    %cst_265 = arith.constant 0.000000e+00 : f32
    %648 = vector.broadcast %cst_265 : f32 to vector<4x32xf32>
    %649 = arith.maximumf %647, %648 : vector<4x32xf32>
    %c0_266 = arith.constant 0 : index
    %c0_267 = arith.constant 0 : index
    %c0_268 = arith.constant 0 : index
    %650 = vector.load %arg18[%c0_266, %c0_267, %c0_268] : memref<3x32x96xf32, #tpu.memory_space<vmem>>, vector<1x32x96xf32>
    %651 = vector.shape_cast %650 : vector<1x32x96xf32> to vector<32x96xf32>
    %cst_269 = arith.constant dense<0.000000e+00> : vector<4x96xf32>
    %652 = tpu.matmul %599, %651, %cst_269 {dimension_numbers = #tpu.dot_dimension_numbers<[1], [0], [0], [1], [0, 0, 1, 1], [], []>} : vector<4x32xf32>, vector<32x96xf32>, vector<4x96xf32> -> vector<4x96xf32>
    %c1_270 = arith.constant 1 : index
    %c0_271 = arith.constant 0 : index
    %c0_272 = arith.constant 0 : index
    %653 = vector.load %arg18[%c1_270, %c0_271, %c0_272] : memref<3x32x96xf32, #tpu.memory_space<vmem>>, vector<1x32x96xf32>
    %654 = vector.shape_cast %653 : vector<1x32x96xf32> to vector<32x96xf32>
    %cst_273 = arith.constant dense<0.000000e+00> : vector<4x96xf32>
    %655 = tpu.matmul %649, %654, %cst_273 {dimension_numbers = #tpu.dot_dimension_numbers<[1], [0], [0], [1], [0, 0, 1, 1], [], []>} : vector<4x32xf32>, vector<32x96xf32>, vector<4x96xf32> -> vector<4x96xf32>
    %656 = arith.addf %652, %655 : vector<4x96xf32>
    %657 = arith.addf %656, %26 : vector<4x96xf32>
    %c0_274 = arith.constant 0 : index
    %c0_275 = arith.constant 0 : index
    %c0_276 = arith.constant 0 : index
    %658 = vector.load %arg19[%c0_274, %c0_275, %c0_276] : memref<2x32x96xf32, #tpu.memory_space<vmem>>, vector<1x32x96xf32>
    %659 = vector.shape_cast %658 : vector<1x32x96xf32> to vector<32x96xf32>
    %cst_277 = arith.constant dense<0.000000e+00> : vector<4x96xf32>
    %660 = tpu.matmul %570, %659, %cst_277 {dimension_numbers = #tpu.dot_dimension_numbers<[1], [0], [0], [1], [0, 0, 1, 1], [], []>} : vector<4x32xf32>, vector<32x96xf32>, vector<4x96xf32> -> vector<4x96xf32>
    %661 = arith.addf %660, %34 : vector<4x96xf32>
    %662 = vector.extract_strided_slice %657 {offsets = [0, 0], sizes = [4, 64], strides = [1, 1]} : vector<4x96xf32> to vector<4x64xf32>
    %663 = vector.extract_strided_slice %661 {offsets = [0, 0], sizes = [4, 64], strides = [1, 1]} : vector<4x96xf32> to vector<4x64xf32>
    %664 = arith.addf %662, %663 : vector<4x64xf32>
    %665 = arith.negf %664 : vector<4x64xf32>
    %666 = math.exp %665 : vector<4x64xf32>
    %cst_278 = arith.constant 1.000000e+00 : f32
    %667 = vector.broadcast %cst_278 : f32 to vector<4x64xf32>
    %668 = arith.addf %667, %666 : vector<4x64xf32>
    %669 = arith.divf %667, %668 : vector<4x64xf32>
    %670 = vector.extract_strided_slice %669 {offsets = [0, 0], sizes = [4, 32], strides = [1, 1]} : vector<4x64xf32> to vector<4x32xf32>
    %671 = vector.extract_strided_slice %669 {offsets = [0, 32], sizes = [4, 32], strides = [1, 1]} : vector<4x64xf32> to vector<4x32xf32>
    %672 = vector.extract_strided_slice %657 {offsets = [0, 64], sizes = [4, 32], strides = [1, 1]} : vector<4x96xf32> to vector<4x32xf32>
    %673 = vector.extract_strided_slice %661 {offsets = [0, 64], sizes = [4, 32], strides = [1, 1]} : vector<4x96xf32> to vector<4x32xf32>
    %674 = arith.mulf %670, %673 : vector<4x32xf32>
    %675 = arith.addf %672, %674 : vector<4x32xf32>
    %676 = math.tanh %675 : vector<4x32xf32>
    %cst_279 = arith.constant 1.000000e+00 : f32
    %677 = vector.broadcast %cst_279 : f32 to vector<4x32xf32>
    %678 = arith.subf %677, %671 : vector<4x32xf32>
    %679 = arith.mulf %678, %676 : vector<4x32xf32>
    %680 = arith.mulf %671, %570 : vector<4x32xf32>
    %681 = arith.addf %679, %680 : vector<4x32xf32>
    %c2_280 = arith.constant 2 : index
    %c0_281 = arith.constant 0 : index
    %c0_282 = arith.constant 0 : index
    %682 = vector.load %arg18[%c2_280, %c0_281, %c0_282] : memref<3x32x96xf32, #tpu.memory_space<vmem>>, vector<1x32x96xf32>
    %683 = vector.shape_cast %682 : vector<1x32x96xf32> to vector<32x96xf32>
    %cst_283 = arith.constant dense<0.000000e+00> : vector<4x96xf32>
    %684 = tpu.matmul %681, %683, %cst_283 {dimension_numbers = #tpu.dot_dimension_numbers<[1], [0], [0], [1], [0, 0, 1, 1], [], []>} : vector<4x32xf32>, vector<32x96xf32>, vector<4x96xf32> -> vector<4x96xf32>
    %685 = arith.addf %684, %30 : vector<4x96xf32>
    %c1_284 = arith.constant 1 : index
    %c0_285 = arith.constant 0 : index
    %c0_286 = arith.constant 0 : index
    %686 = vector.load %arg19[%c1_284, %c0_285, %c0_286] : memref<2x32x96xf32, #tpu.memory_space<vmem>>, vector<1x32x96xf32>
    %687 = vector.shape_cast %686 : vector<1x32x96xf32> to vector<32x96xf32>
    %cst_287 = arith.constant dense<0.000000e+00> : vector<4x96xf32>
    %688 = tpu.matmul %598, %687, %cst_287 {dimension_numbers = #tpu.dot_dimension_numbers<[1], [0], [0], [1], [0, 0, 1, 1], [], []>} : vector<4x32xf32>, vector<32x96xf32>, vector<4x96xf32> -> vector<4x96xf32>
    %689 = arith.addf %688, %38 : vector<4x96xf32>
    %690 = vector.extract_strided_slice %685 {offsets = [0, 0], sizes = [4, 64], strides = [1, 1]} : vector<4x96xf32> to vector<4x64xf32>
    %691 = vector.extract_strided_slice %689 {offsets = [0, 0], sizes = [4, 64], strides = [1, 1]} : vector<4x96xf32> to vector<4x64xf32>
    %692 = arith.addf %690, %691 : vector<4x64xf32>
    %693 = arith.negf %692 : vector<4x64xf32>
    %694 = math.exp %693 : vector<4x64xf32>
    %cst_288 = arith.constant 1.000000e+00 : f32
    %695 = vector.broadcast %cst_288 : f32 to vector<4x64xf32>
    %696 = arith.addf %695, %694 : vector<4x64xf32>
    %697 = arith.divf %695, %696 : vector<4x64xf32>
    %698 = vector.extract_strided_slice %697 {offsets = [0, 0], sizes = [4, 32], strides = [1, 1]} : vector<4x64xf32> to vector<4x32xf32>
    %699 = vector.extract_strided_slice %697 {offsets = [0, 32], sizes = [4, 32], strides = [1, 1]} : vector<4x64xf32> to vector<4x32xf32>
    %700 = vector.extract_strided_slice %685 {offsets = [0, 64], sizes = [4, 32], strides = [1, 1]} : vector<4x96xf32> to vector<4x32xf32>
    %701 = vector.extract_strided_slice %689 {offsets = [0, 64], sizes = [4, 32], strides = [1, 1]} : vector<4x96xf32> to vector<4x32xf32>
    %702 = arith.mulf %698, %701 : vector<4x32xf32>
    %703 = arith.addf %700, %702 : vector<4x32xf32>
    %704 = math.tanh %703 : vector<4x32xf32>
    %cst_289 = arith.constant 1.000000e+00 : f32
    %705 = vector.broadcast %cst_289 : f32 to vector<4x32xf32>
    %706 = arith.subf %705, %699 : vector<4x32xf32>
    %707 = arith.mulf %706, %704 : vector<4x32xf32>
    %708 = arith.mulf %699, %598 : vector<4x32xf32>
    %709 = arith.addf %707, %708 : vector<4x32xf32>
    %c0_290 = arith.constant 0 : index
    %c0_291 = arith.constant 0 : index
    %710 = vector.load %arg7[%c0_290, %c0_291] : memref<32x64xf32, #tpu.memory_space<vmem>>, vector<32x64xf32>
    %cst_292 = arith.constant dense<0.000000e+00> : vector<4x64xf32>
    %711 = tpu.matmul %709, %710, %cst_292 {dimension_numbers = #tpu.dot_dimension_numbers<[1], [0], [0], [1], [0, 0, 1, 1], [], []>} : vector<4x32xf32>, vector<32x64xf32>, vector<4x64xf32> -> vector<4x64xf32>
    %712 = arith.addf %711, %16 : vector<4x64xf32>
    %cst_293 = arith.constant 0.000000e+00 : f32
    %713 = vector.broadcast %cst_293 : f32 to vector<4x64xf32>
    %714 = arith.maximumf %712, %713 : vector<4x64xf32>
    %c0_294 = arith.constant 0 : index
    %c0_295 = arith.constant 0 : index
    %715 = vector.load %arg9[%c0_294, %c0_295] : memref<64x32xf32, #tpu.memory_space<vmem>>, vector<64x32xf32>
    %cst_296 = arith.constant dense<0.000000e+00> : vector<4x32xf32>
    %716 = tpu.matmul %714, %715, %cst_296 {dimension_numbers = #tpu.dot_dimension_numbers<[1], [0], [0], [1], [0, 0, 1, 1], [], []>} : vector<4x64xf32>, vector<64x32xf32>, vector<4x32xf32> -> vector<4x32xf32>
    %717 = arith.addf %716, %19 : vector<4x32xf32>
    %718 = vector.extract_strided_slice %717 {offsets = [0, 16], sizes = [4, 16], strides = [1, 1]} : vector<4x32xf32> to vector<4x16xf32>
    %cst_297 = arith.constant 0.000000e+00 : f32
    %719 = vector.broadcast %cst_297 : f32 to vector<4x16xf32>
    %720 = arith.maximumf %718, %719 : vector<4x16xf32>
    %721 = vector.broadcast %cst_297 : f32 to vector<4x16xf32>
    %722 = arith.subf %718, %721 : vector<4x16xf32>
    %723 = arith.cmpf one, %722, %722 : vector<4x16xf32>
    %724 = vector.broadcast %cst_297 : f32 to vector<4x16xf32>
    %725 = arith.addf %718, %724 : vector<4x16xf32>
    %726 = math.absf %722 : vector<4x16xf32>
    %cst_298 = arith.constant 0.000000e+00 : f32
    %727 = vector.broadcast %cst_298 : f32 to vector<4x16xf32>
    %728 = arith.subf %727, %726 : vector<4x16xf32>
    %729 = math.exp %728 : vector<4x16xf32>
    %730 = math.log1p %729 : vector<4x16xf32>
    %731 = arith.addf %720, %730 : vector<4x16xf32>
    %732 = arith.select %723, %725, %731 : vector<4x16xi1>, vector<4x16xf32>
    %c0_299 = arith.constant 0 : index
    %c0_300 = arith.constant 0 : index
    %733 = vector.load %arg2[%c0_299, %c0_300] : memref<4x16xf32, #tpu.memory_space<vmem>>, vector<4x16xf32>
    %734 = arith.mulf %733, %732 : vector<4x16xf32>
    %735 = arith.addf %734, %718 : vector<4x16xf32>
    %c0_301 = arith.constant 0 : index
    %c0_302 = arith.constant 0 : index
    %736 = vector.load %arg11[%c0_301, %c0_302] : memref<16x32xf32, #tpu.memory_space<vmem>>, vector<16x32xf32>
    %cst_303 = arith.constant dense<0.000000e+00> : vector<4x32xf32>
    %737 = tpu.matmul %735, %736, %cst_303 {dimension_numbers = #tpu.dot_dimension_numbers<[1], [0], [0], [1], [0, 0, 1, 1], [], []>} : vector<4x16xf32>, vector<16x32xf32>, vector<4x32xf32> -> vector<4x32xf32>
    %738 = arith.addf %737, %22 : vector<4x32xf32>
    %cst_304 = arith.constant 0.000000e+00 : f32
    %739 = vector.broadcast %cst_304 : f32 to vector<4x32xf32>
    %740 = arith.maximumf %738, %739 : vector<4x32xf32>
    %c0_305 = arith.constant 0 : index
    %c0_306 = arith.constant 0 : index
    %741 = vector.load %arg13[%c0_305, %c0_306] : memref<32x32xf32, #tpu.memory_space<vmem>>, vector<32x32xf32>
    %cst_307 = arith.constant dense<0.000000e+00> : vector<4x32xf32>
    %742 = tpu.matmul %740, %741, %cst_307 {dimension_numbers = #tpu.dot_dimension_numbers<[1], [0], [0], [1], [0, 0, 1, 1], [], []>} : vector<4x32xf32>, vector<32x32xf32>, vector<4x32xf32> -> vector<4x32xf32>
    %c0_308 = arith.constant 0 : index
    %c0_309 = arith.constant 0 : index
    %743 = vector.load %arg14[%c0_308, %c0_309] : memref<32x32xf32, #tpu.memory_space<vmem>>, vector<32x32xf32>
    %cst_310 = arith.constant dense<0.000000e+00> : vector<4x32xf32>
    %744 = tpu.matmul %709, %743, %cst_310 {dimension_numbers = #tpu.dot_dimension_numbers<[1], [0], [0], [1], [0, 0, 1, 1], [], []>} : vector<4x32xf32>, vector<32x32xf32>, vector<4x32xf32> -> vector<4x32xf32>
    %745 = arith.addf %742, %744 : vector<4x32xf32>
    %c0_311 = arith.constant 0 : index
    %c0_312 = arith.constant 0 : index
    %746 = vector.load %arg15[%c0_311, %c0_312] : memref<1x32xf32, #tpu.memory_space<vmem>>, vector<1x32xf32>
    %747 = vector.shape_cast %746 : vector<1x32xf32> to vector<1x32xf32>
    %748 = vector.broadcast %747 : vector<1x32xf32> to vector<4x32xf32>
    %749 = arith.addf %745, %748 : vector<4x32xf32>
    %cst_313 = arith.constant 0.000000e+00 : f32
    %750 = vector.broadcast %cst_313 : f32 to vector<4x32xf32>
    %751 = arith.maximumf %749, %750 : vector<4x32xf32>
    %c0_314 = arith.constant 0 : index
    %c0_315 = arith.constant 0 : index
    %752 = vector.load %arg16[%c0_314, %c0_315] : memref<32x8xf32, #tpu.memory_space<vmem>>, vector<32x8xf32>
    %cst_316 = arith.constant dense<0.000000e+00> : vector<4x8xf32>
    %753 = tpu.matmul %751, %752, %cst_316 {dimension_numbers = #tpu.dot_dimension_numbers<[1], [0], [0], [1], [0, 0, 1, 1], [], []>} : vector<4x32xf32>, vector<32x8xf32>, vector<4x8xf32> -> vector<4x8xf32>
    %c0_317 = arith.constant 0 : index
    %c0_318 = arith.constant 0 : index
    %754 = vector.load %arg17[%c0_317, %c0_318] : memref<1x8xf32, #tpu.memory_space<vmem>>, vector<1x8xf32>
    %755 = vector.shape_cast %754 : vector<1x8xf32> to vector<1x8xf32>
    %756 = vector.broadcast %755 : vector<1x8xf32> to vector<4x8xf32>
    %757 = arith.addf %753, %756 : vector<4x8xf32>
    %c0_319 = arith.constant 0 : index
    %c0_320 = arith.constant 0 : index
    %758 = vector.load %arg22[%c0_319, %c0_320] : memref<4x8xf32, #tpu.memory_space<vmem>>, vector<4x8xf32>
    tpu.vector_store %arg22[%c0_319, %c0_320], %757 {strides = array<i32>} : memref<4x8xf32, #tpu.memory_space<vmem>>, vector<4x8xf32>,
    %759 = vector.shape_cast %640 : vector<4x16xf32> to vector<1x4x16xf32>
    %cst_321 = arith.constant dense<0.000000e+00> : vector<1xf32>
    %760 = vector.multi_reduction <add>, %759, %cst_321 [1, 2] : vector<1x4x16xf32> to vector<1xf32>
    %761 = vector.shape_cast %760 : vector<1xf32> to vector<1x1x1xf32>
    %762 = vector.extract %761[0, 0, 0] : f32 from vector<1x1x1xf32>
    %763 = vector.broadcast %762 : f32 to vector<1x1xf32>
    %cst_322 = arith.constant 3.840000e+02 : f32
    %764 = vector.broadcast %cst_322 : f32 to vector<1x1xf32>
    %765 = arith.subf %763, %764 : vector<1x1xf32>
    %cst_323 = arith.constant 5.000000e-01 : f32
    %766 = vector.broadcast %cst_323 : f32 to vector<1x1xf32>
    %767 = arith.mulf %766, %765 : vector<1x1xf32>
    %c0_324 = arith.constant 0 : index
    %c0_325 = arith.constant 0 : index
    %768 = vector.load %arg23[%c0_324, %c0_325] : memref<1x1xf32, #tpu.memory_space<vmem>>, vector<1x1xf32>
    tpu.vector_store %arg23[%c0_324, %c0_325], %767 {strides = array<i32>} : memref<1x1xf32, #tpu.memory_space<vmem>>, vector<1x1xf32>,
    return
  }
}

</mosaic_0001>

<llo_original>
// kernel: cvrae_next_action.1
$region0: #{cvrae_next_action.1}
  #allocation0 [shape = 'u32[]', space=smem, size = 0x4, offset = 0x4, fixed_abs, tag = 'smem constant byte address 0x4 - core index']
  #allocation1 [shape = 'u32[144,128]{1,0:T(1,128)}', space=vmem, size = 0x12000, scoped, tag = 'internal scratch']
  %s0 = inlined_call_operand.vmem [shape: s32[24,1], index: 0, kind: input, shape index: {}]
  %s1 = inlined_call_operand.vmem [shape: f32[6,4,16], index: 1, kind: input, shape index: {}]
  %s2 = inlined_call_operand.vmem [shape: f32[4,16], index: 2, kind: input, shape index: {}]
  %s3 = inlined_call_operand.hbm [shape: f32[2,4,32], index: 3, kind: input, shape index: {}]
  %s4 = inlined_call_operand.hbm [shape: f32[8,32], index: 4, kind: input, shape index: {}]
  %s5 = inlined_call_operand.hbm [shape: f32[1,32], index: 5, kind: input, shape index: {}]
  %s6 = inlined_call_operand.hbm [shape: f32[32,64], index: 6, kind: input, shape index: {}]
  %s7 = inlined_call_operand.hbm [shape: f32[32,64], index: 7, kind: input, shape index: {}]
  %s8 = inlined_call_operand.hbm [shape: f32[1,64], index: 8, kind: input, shape index: {}]
  %s9 = inlined_call_operand.vmem [shape: f32[64,32], index: 9, kind: input, shape index: {}]
  %s10 = inlined_call_operand.hbm [shape: f32[1,32], index: 10, kind: input, shape index: {}]
  %s11 = inlined_call_operand.hbm [shape: f32[16,32], index: 11, kind: input, shape index: {}]
  %s12 = inlined_call_operand.hbm [shape: f32[1,32], index: 12, kind: input, shape index: {}]
  %s13 = inlined_call_operand.hbm [shape: f32[32,32], index: 13, kind: input, shape index: {}]
  %s14 = inlined_call_operand.vmem [shape: f32[32,32], index: 14, kind: input, shape index: {}]
  %s15 = inlined_call_operand.hbm [shape: f32[1,32], index: 15, kind: input, shape index: {}]
  %s16 = inlined_call_operand.vmem [shape: f32[32,8], index: 16, kind: input, shape index: {}]
  %s17 = inlined_call_operand.hbm [shape: f32[1,8], index: 17, kind: input, shape index: {}]
  %s18 = inlined_call_operand.vmem [shape: f32[3,32,96], index: 18, kind: input, shape index: {}]
  %s19 = inlined_call_operand.vmem [shape: f32[2,32,96], index: 19, kind: input, shape index: {}]
  %s20 = inlined_call_operand.hbm [shape: f32[2,1,96], index: 20, kind: input, shape index: {}]
  %s21 = inlined_call_operand.vmem [shape: f32[2,1,96], index: 21, kind: input, shape index: {}]
  %s22 = inlined_call_operand.hbm [shape: f32[4,8], index: 22, kind: output, shape index: {0}]
  %s23 = inlined_call_operand.hbm [shape: f32[1,1], index: 23, kind: output, shape index: {1}]
  %24 = xla_tuple %s22, %s23
  %s25 = sld [smem:[#allocation0]]
  $region158: #{cvrae_next_action.1} parent=0
    _
  %s27 = ssub.s32 1, %s25
  %s28 = scalar_select 0, %s27, %s25
  $region1: #{cvrae_next_action.1} parent=0
    #allocation2 [shape = 'u8[4096]{0}', space=vmem, size = 0x1000, scoped, tag = 'input window, operand 3, single buffered']
    #allocation3 [shape = 's32[1]{0}', space=sflag, size = 0x4, scoped, tag = 'scoped memory for cvrae_next_action.1']
    #allocation4 [shape = 's32[1]{0}', space=sflag, size = 0x4, scoped, tag = 'scoped memory for cvrae_next_action.1']
    #allocation5 [shape = 'u8[4096]{0}', space=vmem, size = 0x1000, scoped, tag = 'input window, operand 4, single buffered']
    #allocation6 [shape = 's32[1]{0}', space=sflag, size = 0x4, scoped, tag = 'scoped memory for cvrae_next_action.1']
    #allocation7 [shape = 'u8[512]{0}', space=vmem, size = 0x400, scoped, tag = 'input window, operand 5, single buffered']
    #allocation8 [shape = 'u8[16384]{0}', space=vmem, size = 0x4000, scoped, tag = 'input window, operand 6, single buffered']
    #allocation9 [shape = 's32[1]{0}', space=sflag, size = 0x4, scoped, tag = 'scoped memory for cvrae_next_action.1']
    #allocation10 [shape = 'u8[16384]{0}', space=vmem, size = 0x4000, scoped, tag = 'input window, operand 7, single buffered']
    #allocation11 [shape = 'u8[512]{0}', space=vmem, size = 0x400, scoped, tag = 'input window, operand 8, single buffered']
    #allocation12 [shape = 's32[1]{0}', space=sflag, size = 0x4, scoped, tag = 'scoped memory for cvrae_next_action.1']
    #allocation13 [shape = 'u8[512]{0}', space=vmem, size = 0x400, scoped, tag = 'input window, operand 10, single buffered']
    #allocation14 [shape = 'u8[8192]{0}', space=vmem, size = 0x2000, scoped, tag = 'input window, operand 11, single buffered']
    #allocation15 [shape = 's32[1]{0}', space=sflag, size = 0x4, scoped, tag = 'scoped memory for cvrae_next_action.1']
    #allocation16 [shape = 'u8[512]{0}', space=vmem, size = 0x400, scoped, tag = 'input window, operand 12, single buffered']
    #allocation17 [shape = 'u8[16384]{0}', space=vmem, size = 0x4000, scoped, tag = 'input window, operand 13, single buffered']
    #allocation18 [shape = 's32[1]{0}', space=sflag, size = 0x4, scoped, tag = 'scoped memory for cvrae_next_action.1']
    #allocation19 [shape = 'u8[512]{0}', space=vmem, size = 0x400, scoped, tag = 'input window, operand 15, single buffered']
    #allocation20 [shape = 'u8[512]{0}', space=vmem, size = 0x400, scoped, tag = 'input window, operand 17, single buffered']
    #allocation21 [shape = 's32[1]{0}', space=sflag, size = 0x4, scoped, tag = 'scoped memory for cvrae_next_action.1']
    #allocation22 [shape = 'u8[1024]{0}', space=vmem, size = 0x400, scoped, tag = 'input window, operand 20, single buffered']
    #allocation23 [shape = 'u8[2048]{0}', space=vmem, size = 0x800, scoped, tag = 'output window, operand 0, single buffered']
    #allocation24 [shape = 'u8[512]{0}', space=vmem, size = 0x400, scoped, tag = 'output window, operand 1, single buffered']
    #allocation25 [shape = 's32[1]{0}', space=sflag, size = 0x4, scoped, tag = 'scoped memory for cvrae_next_action.1']
    %29 = vsyncpa [#allocation3], 0
    %30 = vsyncpa [#allocation6], 0
    %31 = vsyncpa [#allocation9], 0
    %32 = vsyncpa [#allocation12], 0
    %33 = vsyncpa [#allocation15], 0
    %34 = vsyncpa [#allocation18], 0
    %35 = vsyncpa [#allocation21], 0
    %36 = vsyncpa [#allocation4], 0
    %37 = vsyncpa [#allocation25], 0
    // Predicated region
    $region2: #{cvrae_next_action.1} parent=1 // pred_check
      _
    $region3: #{cvrae_next_action.1} parent=1 // pred_check_branch
      %39 = sbr.rel (0) target = $region5
    $region4: #{cvrae_next_action.1} parent=1 // pred_region
      _
    $region5: #{cvrae_next_action.1} parent=1 // pred_fallthru
      _
    // Predicated region
    $region6: #{cvrae_next_action.1} parent=1 // pred_check
      _
    $region7: #{cvrae_next_action.1} parent=1 // pred_check_branch
      %41 = sbr.rel (0) target = $region9
    $region8: #{cvrae_next_action.1} parent=1 // pred_region
      _
    $region9: #{cvrae_next_action.1} parent=1 // pred_fallthru
      _
    // Predicated region
    $region10: #{cvrae_next_action.1} parent=1 // pred_check
      _
    $region11: #{cvrae_next_action.1} parent=1 // pred_check_branch
      %43 = sbr.rel (0) target = $region13
    $region12: #{cvrae_next_action.1} parent=1 // pred_region
      _
    $region13: #{cvrae_next_action.1} parent=1 // pred_fallthru
      _
    // Predicated region
    $region14: #{cvrae_next_action.1} parent=1 // pred_check
      _
    $region15: #{cvrae_next_action.1} parent=1 // pred_check_branch
      %45 = sbr.rel (0) target = $region17
    $region16: #{cvrae_next_action.1} parent=1 // pred_region
      %s47 = ssub.s32 128, 128
      %48 = vsyncadd [#allocation3], %s47
      %s49 = sshll.u32 [#allocation2], 4
      %s50 = int_to_ptr.vmem [resolvable:$true] %s49
      %55 = dma.hbm_to_vmem [thread:$0]  %s3, 128, %s50, [#allocation3], 64, 64, 4
    $region17: #{cvrae_next_action.1} parent=1 // pred_fallthru
      _
    // Predicated region
    $region18: #{cvrae_next_action.1} parent=1 // pred_check
      _
    $region19: #{cvrae_next_action.1} parent=1 // pred_check_branch
      %57 = sbr.rel (0) target = $region21
    $region20: #{cvrae_next_action.1} parent=1 // pred_region
      %s59 = ssub.s32 128, 128
      %60 = vsyncadd [#allocation6], %s59
      %s62 = sshll.u32 [#allocation5], 4
      %s63 = int_to_ptr.vmem [resolvable:$true] %s62
      %65 = dma.hbm_to_vmem [thread:$0]  %s4, 128, %s63, [#allocation6]
    $region21: #{cvrae_next_action.1} parent=1 // pred_fallthru
      _
    // Predicated region
    $region22: #{cvrae_next_action.1} parent=1 // pred_check
      _
    $region23: #{cvrae_next_action.1} parent=1 // pred_check_branch
      %67 = sbr.rel (0) target = $region25
    $region24: #{cvrae_next_action.1} parent=1 // pred_region
      %s69 = ssub.s32 16, 16
      %70 = vsyncadd [#allocation6], %s69
      %s72 = sshll.u32 [#allocation7], 4
      %s73 = int_to_ptr.vmem [resolvable:$true] %s72
      %75 = dma.hbm_to_vmem [thread:$0]  %s5, 16, %s73, [#allocation6]
    $region25: #{cvrae_next_action.1} parent=1 // pred_fallthru
      _
    // Predicated region
    $region26: #{cvrae_next_action.1} parent=1 // pred_check
      _
    $region27: #{cvrae_next_action.1} parent=1 // pred_check_branch
      %77 = sbr.rel (0) target = $region29
    $region28: #{cvrae_next_action.1} parent=1 // pred_region
      %s79 = ssub.s32 512, 512
      %80 = vsyncadd [#allocation9], %s79
      %s81 = sshll.u32 [#allocation8], 4
      %s82 = int_to_ptr.vmem [resolvable:$true] %s81
      %87 = dma.hbm_to_vmem [thread:$0]  %s6, 512, %s82, [#allocation9], 128, 128, 8
    $region29: #{cvrae_next_action.1} parent=1 // pred_fallthru
      _
    // Predicated region
    $region30: #{cvrae_next_action.1} parent=1 // pred_check
      _
    $region31: #{cvrae_next_action.1} parent=1 // pred_check_branch
      %89 = sbr.rel (0) target = $region33
    $region32: #{cvrae_next_action.1} parent=1 // pred_region
      %s91 = ssub.s32 512, 512
      %92 = vsyncadd [#allocation9], %s91
      %s93 = sshll.u32 [#allocation10], 4
      %s94 = int_to_ptr.vmem [resolvable:$true] %s93
      %99 = dma.hbm_to_vmem [thread:$0]  %s7, 512, %s94, [#allocation9], 128, 128, 8
    $region33: #{cvrae_next_action.1} parent=1 // pred_fallthru
      _
    // Predicated region
    $region34: #{cvrae_next_action.1} parent=1 // pred_check
      _
    $region35: #{cvrae_next_action.1} parent=1 // pred_check_branch
      %101 = sbr.rel (0) target = $region37
    $region36: #{cvrae_next_action.1} parent=1 // pred_region
      %s103 = ssub.s32 16, 16
      %104 = vsyncadd [#allocation12], %s103
      %s106 = sshll.u32 [#allocation11], 4
      %s107 = int_to_ptr.vmem [resolvable:$true] %s106
      %109 = dma.hbm_to_vmem [thread:$0]  %s8, 16, %s107, [#allocation12]
    $region37: #{cvrae_next_action.1} parent=1 // pred_fallthru
      _
    // Predicated region
    $region38: #{cvrae_next_action.1} parent=1 // pred_check
      _
    $region39: #{cvrae_next_action.1} parent=1 // pred_check_branch
      %111 = sbr.rel (0) target = $region41
    $region40: #{cvrae_next_action.1} parent=1 // pred_region
      _
    $region41: #{cvrae_next_action.1} parent=1 // pred_fallthru
      _
    // Predicated region
    $region42: #{cvrae_next_action.1} parent=1 // pred_check
      _
    $region43: #{cvrae_next_action.1} parent=1 // pred_check_branch
      %113 = sbr.rel (0) target = $region45
    $region44: #{cvrae_next_action.1} parent=1 // pred_region
      %s115 = ssub.s32 16, 16
      %116 = vsyncadd [#allocation12], %s115
      %s118 = sshll.u32 [#allocation13], 4
      %s119 = int_to_ptr.vmem [resolvable:$true] %s118
      %121 = dma.hbm_to_vmem [thread:$0]  %s10, 16, %s119, [#allocation12]
    $region45: #{cvrae_next_action.1} parent=1 // pred_fallthru
      _
    // Predicated region
    $region46: #{cvrae_next_action.1} parent=1 // pred_check
      _
    $region47: #{cvrae_next_action.1} parent=1 // pred_check_branch
      %123 = sbr.rel (0) target = $region49
    $region48: #{cvrae_next_action.1} parent=1 // pred_region
      %s125 = ssub.s32 256, 256
      %126 = vsyncadd [#allocation15], %s125
      %s127 = sshll.u32 [#allocation14], 4
      %s128 = int_to_ptr.vmem [resolvable:$true] %s127
      %133 = dma.hbm_to_vmem [thread:$0]  %s11, 256, %s128, [#allocation15], 128, 128, 8
    $region49: #{cvrae_next_action.1} parent=1 // pred_fallthru
      _
    // Predicated region
    $region50: #{cvrae_next_action.1} parent=1 // pred_check
      _
    $region51: #{cvrae_next_action.1} parent=1 // pred_check_branch
      %135 = sbr.rel (0) target = $region53
    $region52: #{cvrae_next_action.1} parent=1 // pred_region
      %s137 = ssub.s32 16, 16
      %138 = vsyncadd [#allocation15], %s137
      %s140 = sshll.u32 [#allocation16], 4
      %s141 = int_to_ptr.vmem [resolvable:$true] %s140
      %143 = dma.hbm_to_vmem [thread:$0]  %s12, 16, %s141, [#allocation15]
    $region53: #{cvrae_next_action.1} parent=1 // pred_fallthru
      _
    // Predicated region
    $region54: #{cvrae_next_action.1} parent=1 // pred_check
      _
    $region55: #{cvrae_next_action.1} parent=1 // pred_check_branch
      %145 = sbr.rel (0) target = $region57
    $region56: #{cvrae_next_action.1} parent=1 // pred_region
      %s147 = ssub.s32 512, 512
      %148 = vsyncadd [#allocation18], %s147
      %s149 = sshll.u32 [#allocation17], 4
      %s150 = int_to_ptr.vmem [resolvable:$true] %s149
      %155 = dma.hbm_to_vmem [thread:$0]  %s13, 512, %s150, [#allocation18], 128, 128, 8
    $region57: #{cvrae_next_action.1} parent=1 // pred_fallthru
      _
    // Predicated region
    $region58: #{cvrae_next_action.1} parent=1 // pred_check
      _
    $region59: #{cvrae_next_action.1} parent=1 // pred_check_branch
      %157 = sbr.rel (0) target = $region61
    $region60: #{cvrae_next_action.1} parent=1 // pred_region
      _
    $region61: #{cvrae_next_action.1} parent=1 // pred_fallthru
      _
    // Predicated region
    $region62: #{cvrae_next_action.1} parent=1 // pred_check
      _
    $region63: #{cvrae_next_action.1} parent=1 // pred_check_branch
      %159 = sbr.rel (0) target = $region65
    $region64: #{cvrae_next_action.1} parent=1 // pred_region
      %s161 = ssub.s32 16, 16
      %162 = vsyncadd [#allocation18], %s161
      %s164 = sshll.u32 [#allocation19], 4
      %s165 = int_to_ptr.vmem [resolvable:$true] %s164
      %167 = dma.hbm_to_vmem [thread:$0]  %s15, 16, %s165, [#allocation18]
    $region65: #{cvrae_next_action.1} parent=1 // pred_fallthru
      _
    // Predicated region
    $region66: #{cvrae_next_action.1} parent=1 // pred_check
      _
    $region67: #{cvrae_next_action.1} parent=1 // pred_check_branch
      %169 = sbr.rel (0) target = $region69
    $region68: #{cvrae_next_action.1} parent=1 // pred_region
      _
    $region69: #{cvrae_next_action.1} parent=1 // pred_fallthru
      _
    // Predicated region
    $region70: #{cvrae_next_action.1} parent=1 // pred_check
      _
    $region71: #{cvrae_next_action.1} parent=1 // pred_check_branch
      %171 = sbr.rel (0) target = $region73
    $region72: #{cvrae_next_action.1} parent=1 // pred_region
      %s173 = ssub.s32 16, 16
      %174 = vsyncadd [#allocation21], %s173
      %s176 = sshll.u32 [#allocation20], 4
      %s177 = int_to_ptr.vmem [resolvable:$true] %s176
      %179 = dma.hbm_to_vmem [thread:$0]  %s17, 16, %s177, [#allocation21]
    $region73: #{cvrae_next_action.1} parent=1 // pred_fallthru
      _
    // Predicated region
    $region74: #{cvrae_next_action.1} parent=1 // pred_check
      _
    $region75: #{cvrae_next_action.1} parent=1 // pred_check_branch
      %181 = sbr.rel (0) target = $region77
    $region76: #{cvrae_next_action.1} parent=1 // pred_region
      _
    $region77: #{cvrae_next_action.1} parent=1 // pred_fallthru
      _
    // Predicated region
    $region78: #{cvrae_next_action.1} parent=1 // pred_check
      _
    $region79: #{cvrae_next_action.1} parent=1 // pred_check_branch
      %183 = sbr.rel (0) target = $region81
    $region80: #{cvrae_next_action.1} parent=1 // pred_region
      _
    $region81: #{cvrae_next_action.1} parent=1 // pred_fallthru
      _
    // Predicated region
    $region82: #{cvrae_next_action.1} parent=1 // pred_check
      _
    $region83: #{cvrae_next_action.1} parent=1 // pred_check_branch
      %185 = sbr.rel (0) target = $region85
    $region84: #{cvrae_next_action.1} parent=1 // pred_region
      %s187 = ssub.s32 32, 32
      %188 = vsyncadd [#allocation21], %s187
      %s189 = sshll.u32 [#allocation22], 4
      %s190 = int_to_ptr.vmem [resolvable:$true] %s189
      %195 = dma.hbm_to_vmem [thread:$0]  %s20, 32, %s190, [#allocation21], 16, 16, 1
    $region85: #{cvrae_next_action.1} parent=1 // pred_fallthru
      _
    // Predicated region
    $region86: #{cvrae_next_action.1} parent=1 // pred_check
      _
    $region87: #{cvrae_next_action.1} parent=1 // pred_check_branch
      %197 = sbr.rel (0) target = $region89
    $region88: #{cvrae_next_action.1} parent=1 // pred_region
      _
    $region89: #{cvrae_next_action.1} parent=1 // pred_fallthru
      _
    // Predicated region
    $region90: #{cvrae_next_action.1} parent=1 // pred_check
      _
    $region91: #{cvrae_next_action.1} parent=1 // pred_check_branch
      %199 = sbr.rel (0) target = $region93
    $region92: #{cvrae_next_action.1} parent=1 // pred_region
      %200 = dma.done [#allocation3], 128
    $region93: #{cvrae_next_action.1} parent=1 // pred_fallthru
      _
    // Predicated region
    $region94: #{cvrae_next_action.1} parent=1 // pred_check
      _
    $region95: #{cvrae_next_action.1} parent=1 // pred_check_branch
      %202 = sbr.rel (0) target = $region97
    $region96: #{cvrae_next_action.1} parent=1 // pred_region
      %203 = dma.done [#allocation6], 128
    $region97: #{cvrae_next_action.1} parent=1 // pred_fallthru
      _
    // Predicated region
    $region98: #{cvrae_next_action.1} parent=1 // pred_check
      _
    $region99: #{cvrae_next_action.1} parent=1 // pred_check_branch
      %205 = sbr.rel (0) target = $region101
    $region100: #{cvrae_next_action.1} parent=1 // pred_region
      %206 = dma.done [#allocation6], 16
    $region101: #{cvrae_next_action.1} parent=1 // pred_fallthru
      _
    // Predicated region
    $region102: #{cvrae_next_action.1} parent=1 // pred_check
      _
    $region103: #{cvrae_next_action.1} parent=1 // pred_check_branch
      %208 = sbr.rel (0) target = $region105
    $region104: #{cvrae_next_action.1} parent=1 // pred_region
      %209 = dma.done [#allocation9], 512
    $region105: #{cvrae_next_action.1} parent=1 // pred_fallthru
      _
    // Predicated region
    $region106: #{cvrae_next_action.1} parent=1 // pred_check
      _
    $region107: #{cvrae_next_action.1} parent=1 // pred_check_branch
      %211 = sbr.rel (0) target = $region109
    $region108: #{cvrae_next_action.1} parent=1 // pred_region
      %212 = dma.done [#allocation9], 512
    $region109: #{cvrae_next_action.1} parent=1 // pred_fallthru
      _
    // Predicated region
    $region110: #{cvrae_next_action.1} parent=1 // pred_check
      _
    $region111: #{cvrae_next_action.1} parent=1 // pred_check_branch
      %214 = sbr.rel (0) target = $region113
    $region112: #{cvrae_next_action.1} parent=1 // pred_region
      %215 = dma.done [#allocation12], 16
    $region113: #{cvrae_next_action.1} parent=1 // pred_fallthru
      _
    // Predicated region
    $region114: #{cvrae_next_action.1} parent=1 // pred_check
      _
    $region115: #{cvrae_next_action.1} parent=1 // pred_check_branch
      %217 = sbr.rel (0) target = $region117
    $region116: #{cvrae_next_action.1} parent=1 // pred_region
      %218 = dma.done [#allocation12], 16
    $region117: #{cvrae_next_action.1} parent=1 // pred_fallthru
      _
    // Predicated region
    $region118: #{cvrae_next_action.1} parent=1 // pred_check
      _
    $region119: #{cvrae_next_action.1} parent=1 // pred_check_branch
      %220 = sbr.rel (0) target = $region121
    $region120: #{cvrae_next_action.1} parent=1 // pred_region
      %221 = dma.done [#allocation15], 256
    $region121: #{cvrae_next_action.1} parent=1 // pred_fallthru
      _
    // Predicated region
    $region122: #{cvrae_next_action.1} parent=1 // pred_check
      _
    $region123: #{cvrae_next_action.1} parent=1 // pred_check_branch
      %223 = sbr.rel (0) target = $region125
    $region124: #{cvrae_next_action.1} parent=1 // pred_region
      %224 = dma.done [#allocation15], 16
    $region125: #{cvrae_next_action.1} parent=1 // pred_fallthru
      _
    // Predicated region
    $region126: #{cvrae_next_action.1} parent=1 // pred_check
      _
    $region127: #{cvrae_next_action.1} parent=1 // pred_check_branch
      %226 = sbr.rel (0) target = $region129
    $region128: #{cvrae_next_action.1} parent=1 // pred_region
      %227 = dma.done [#allocation18], 512
    $region129: #{cvrae_next_action.1} parent=1 // pred_fallthru
      _
    // Predicated region
    $region130: #{cvrae_next_action.1} parent=1 // pred_check
      _
    $region131: #{cvrae_next_action.1} parent=1 // pred_check_branch
      %229 = sbr.rel (0) target = $region133
    $region132: #{cvrae_next_action.1} parent=1 // pred_region
      %230 = dma.done [#allocation18], 16
    $region133: #{cvrae_next_action.1} parent=1 // pred_fallthru
      _
    // Predicated region
    $region134: #{cvrae_next_action.1} parent=1 // pred_check
      _
    $region135: #{cvrae_next_action.1} parent=1 // pred_check_branch
      %232 = sbr.rel (0) target = $region137
    $region136: #{cvrae_next_action.1} parent=1 // pred_region
      %233 = dma.done [#allocation21], 16
    $region137: #{cvrae_next_action.1} parent=1 // pred_fallthru
      _
    // Predicated region
    $region138: #{cvrae_next_action.1} parent=1 // pred_check
      _
    $region139: #{cvrae_next_action.1} parent=1 // pred_check_branch
      %235 = sbr.rel (0) target = $region141
    $region140: #{cvrae_next_action.1} parent=1 // pred_region
      %236 = dma.done [#allocation21], 32
    $region141: #{cvrae_next_action.1} parent=1 // pred_fallthru
      _
    %v237 = vld [vmem:[%s0] sm:$0xff]
    %v238 = vld [vmem:[%s0 + $0x8] sm:$0xff]
    %v239 = vld [vmem:[%s0 + $0x10] sm:$0xff]
    %v240 = vlaneseq
    %v241 = vand.u32 %v240, 127
    %242 = vset.pattern.permute.xlu0 0
    %243 = vperm.xlu0 %242, %v237
    %v244 = vpop.permute.xlu0 %243
    %245 = vset.pattern.permute.xlu0 0
    %246 = vperm.xlu0 %245, %v238
    %v247 = vpop.permute.xlu0 %246
    %248 = vset.pattern.permute.xlu0 0
    %249 = vperm.xlu0 %248, %v239
    %v250 = vpop.permute.xlu0 %249
    %vm251 = vcmp.eq.s32.totalorder %v244, %v241
    %vm252 = vcmp.eq.s32.totalorder %v247, %v241
    %vm253 = vcmp.eq.s32.totalorder %v250, %v241
    %v254 = vsel %vm251, 1, 0
    %v255 = vsel %vm252, 1, 0
    %v256 = vsel %vm253, 1, 0
    %v257 = vcvt.s32.f32 %v254
    %v258 = vcvt.s32.f32 %v255
    %v259 = vcvt.s32.f32 %v256
    %v260 = vld [vmem:[#allocation5] sm:$0xff]
    %v261 = vld [vmem:[#allocation7] sm:$0x1]
    %v263 = vlaneseq
    %v264 = vshrl.u32 %v263, 7
    %v265 = vsub.s32 0, %v264
    %v266 = vrot.slane %v261, %v265
    %vm268 = vcmask 64512
    %v270 = vsel %vm268, %v257, 0
    %v273 = vsel %vm268, %v258, 0
    %v276 = vsel %vm268, %v259, 0
    %278 = vmatprep.subr.mxu0 0.0
    %279 = vmatpush1.msra.mxu0 %v260
    %280 = vmatprep.subr.mxu0 0.0
    %281 = vmatpush1.msra.mxu0 0.0
    %282 = vmatprep.subr.mxu0 0.0
    %283 = vmatpush1.msra.mxu0 0.0
    %284 = vmatprep.subr.mxu0 0.0
    %285 = vmatpush1.msra.mxu0 0.0
    %286 = vmatprep.subr.mxu0 0.0
    %287 = vmatpush1.msra.mxu0 0.0
    %288 = vmatprep.subr.mxu0 0.0
    %289 = vmatpush1.msra.mxu0 0.0
    %290 = vmatprep.subr.mxu0 0.0
    %291 = vmatpush1.msra.mxu0 0.0
    %292 = vmatprep.subr.mxu0 0.0
    %293 = vmatpush1.msra.mxu0 0.0
    %294 = vmatprep.subr.mxu0 0.0
    %295 = vmatpush1.msra.mxu0 0.0
    %296 = vmatprep.subr.mxu0 0.0
    %297 = vmatpush1.msra.mxu0 0.0
    %298 = vmatprep.subr.mxu0 0.0
    %299 = vmatpush1.msra.mxu0 0.0
    %300 = vmatprep.subr.mxu0 0.0
    %301 = vmatpush1.msra.mxu0 0.0
    %302 = vmatprep.subr.mxu0 0.0
    %303 = vmatpush1.msra.mxu0 0.0
    %304 = vmatprep.subr.mxu0 0.0
    %305 = vmatpush1.msra.mxu0 0.0
    %306 = vmatprep.subr.mxu0 0.0
    %307 = vmatpush1.msra.mxu0 0.0
    %308 = vmatprep.subr.mxu0 0.0
    %309 = vmatpush1.msra.mxu0 0.0
    %310 = vmatprep.subr.mxu0 0.0
    %311 = vmatpush1.msra.mxu0 0.0
    %312 = vmatprep.subr.mxu0 0.0
    %313 = vmatpush1.msra.mxu0 0.0
    %314 = vmatprep.subr.mxu0 0.0
    %315 = vmatpush1.msra.mxu0 0.0
    %316 = vmatprep.subr.mxu0 0.0
    %317 = vmatpush1.msra.mxu0 0.0
    %318 = vmatprep.subr.mxu0 0.0
    %319 = vmatpush1.msra.mxu0 0.0
    %320 = vmatprep.subr.mxu0 0.0
    %321 = vmatpush1.msra.mxu0 0.0
    %322 = vmatprep.subr.mxu0 0.0
    %323 = vmatpush1.msra.mxu0 0.0
    %324 = vmatprep.subr.mxu0 0.0
    %325 = vmatpush1.msra.mxu0 0.0
    %326 = vmatprep.subr.mxu0 0.0
    %327 = vmatpush1.msra.mxu0 0.0
    %328 = vmatprep.subr.mxu0 0.0
    %329 = vmatpush1.msra.mxu0 0.0
    %330 = vmatprep.subr.mxu0 0.0
    %331 = vmatpush1.msra.mxu0 0.0
    %332 = vmatprep.subr.mxu0 0.0
    %333 = vmatpush1.msra.mxu0 0.0
    %334 = vmatprep.subr.mxu0 0.0
    %335 = vmatpush1.msra.mxu0 0.0
    %336 = vmatprep.subr.mxu0 0.0
    %337 = vmatpush1.msra.mxu0 0.0
    %338 = vmatprep.subr.mxu0 0.0
    %339 = vmatpush1.msra.mxu0 0.0
    %340 = vmatprep.subr.mxu0 0.0
    %341 = vmatpush1.msra.mxu0 0.0
    %342 = vmatprep.mubr.f32.mxu0 0.0
    %343 = vmatmul.mubr.f32.gmra.mrb[0].mxu0 %v270
    %v344 = vpop.f32.mrb[0].mxu0
    %v345 = vadd.f32 %v266, %v344
    %v346 = vpop.f32.mrb[0].mxu0
    %347 = vmatprep.mubr.f32.mxu0 0.0
    %348 = vmatmul.mubr.f32.gmra.mrb[0].mxu0 %v273
    %v349 = vpop.f32.mrb[0].mxu0
    %v350 = vadd.f32 %v266, %v349
    %v351 = vpop.f32.mrb[0].mxu0
    %352 = vmatprep.mubr.f32.mxu0 0.0
    %353 = vmatmul.mubr.f32.gmra.mrb[0].mxu0 %v276
    %v354 = vpop.f32.mrb[0].mxu0
    %v355 = vadd.f32 %v266, %v354
    %v356 = vpop.f32.mrb[0].mxu0
    %357 = vdwg.mxu0
    %v358 = vmax.f32 %v345, 0.0
    %v359 = vmax.f32 %v350, 0.0
    %v360 = vmax.f32 %v355, 0.0
    %v361 = vld [vmem:[#allocation11] sm:$0x1]
    %v363 = vlaneseq
    %v364 = vshrl.u32 %v363, 7
    %v365 = vsub.s32 0, %v364
    %v366 = vrot.slane %v361, %v365
    %v368 = vld [vmem:[#allocation13] sm:$0x1]
    %v370 = vlaneseq
    %v371 = vshrl.u32 %v370, 7
    %v372 = vsub.s32 0, %v371
    %v373 = vrot.slane %v368, %v372
    %v375 = vld [vmem:[#allocation16] sm:$0x1]
    %v377 = vlaneseq
    %v378 = vshrl.u32 %v377, 7
    %v379 = vsub.s32 0, %v378
    %v380 = vrot.slane %v375, %v379
    %v382 = vld [vmem:[#allocation22] sm:$0x1]
    %v384 = vlaneseq
    %v385 = vshrl.u32 %v384, 7
    %v386 = vsub.s32 0, %v385
    %v387 = vrot.slane %v382, %v386
    %s389 = scalar_lea.vmem [#allocation22], 1
    %v390 = vld [vmem:[%s389] sm:$0x1]
    %v392 = vlaneseq
    %v393 = vshrl.u32 %v392, 7
    %v394 = vsub.s32 0, %v393
    %v395 = vrot.slane %v390, %v394
    %v397 = vld [vmem:[%s21] sm:$0x1]
    %v399 = vlaneseq
    %v400 = vshrl.u32 %v399, 7
    %v401 = vsub.s32 0, %v400
    %v402 = vrot.slane %v397, %v401
    %s404 = scalar_lea.vmem %s21, 1
    %v405 = vld [vmem:[%s404] sm:$0x1]
    %v407 = vlaneseq
    %v408 = vshrl.u32 %v407, 7
    %v409 = vsub.s32 0, %v408
    %v410 = vrot.slane %v405, %v409
    %v412 = vld [vmem:[#allocation2] sm:$0xf]
    %s413 = scalar_lea.vmem [#allocation2], 4
    %v414 = vld [vmem:[%s413] sm:$0xf]
    %v415 = vld [vmem:[#allocation8] sm:$0xff]
    %v416 = vld [vmem:[#allocation8 + $0x8] sm:$0xff]
    %v417 = vld [vmem:[#allocation8 + $0x10] sm:$0xff]
    %v418 = vld [vmem:[#allocation8 + $0x18] sm:$0xff]
    %v419 = vld [vmem:[#allocation10] sm:$0xff]
    %v420 = vld [vmem:[#allocation10 + $0x8] sm:$0xff]
    %v421 = vld [vmem:[#allocation10 + $0x10] sm:$0xff]
    %v422 = vld [vmem:[#allocation10 + $0x18] sm:$0xff]
    %vm423 = vcmask 261120
    %v425 = vsel %vm423, %v414, 0
    %427 = vmatprep.subr.mxu0 0.0
    %428 = vmatpush1.msra.mxu0 %v419
    %429 = vmatprep.subr.mxu0 0.0
    %430 = vmatpush1.msra.mxu0 %v420
    %431 = vmatprep.subr.mxu0 0.0
    %432 = vmatpush1.msra.mxu0 %v421
    %433 = vmatprep.subr.mxu0 0.0
    %434 = vmatpush1.msra.mxu0 %v422
    %435 = vmatprep.subr.mxu0 0.0
    %436 = vmatpush1.msra.mxu0 0.0
    %437 = vmatprep.subr.mxu0 0.0
    %438 = vmatpush1.msra.mxu0 0.0
    %439 = vmatprep.subr.mxu0 0.0
    %440 = vmatpush1.msra.mxu0 0.0
    %441 = vmatprep.subr.mxu0 0.0
    %442 = vmatpush1.msra.mxu0 0.0
    %443 = vmatprep.subr.mxu0 0.0
    %444 = vmatpush1.msra.mxu0 0.0
    %445 = vmatprep.subr.mxu0 0.0
    %446 = vmatpush1.msra.mxu0 0.0
    %447 = vmatprep.subr.mxu0 0.0
    %448 = vmatpush1.msra.mxu0 0.0
    %449 = vmatprep.subr.mxu0 0.0
    %450 = vmatpush1.msra.mxu0 0.0
    %451 = vmatprep.subr.mxu0 0.0
    %452 = vmatpush1.msra.mxu0 0.0
    %453 = vmatprep.subr.mxu0 0.0
    %454 = vmatpush1.msra.mxu0 0.0
    %455 = vmatprep.subr.mxu0 0.0
    %456 = vmatpush1.msra.mxu0 0.0
    %457 = vmatprep.subr.mxu0 0.0
    %458 = vmatpush1.msra.mxu0 0.0
    %459 = vmatprep.subr.mxu0 0.0
    %460 = vmatpush1.msra.mxu0 0.0
    %461 = vmatprep.subr.mxu0 0.0
    %462 = vmatpush1.msra.mxu0 0.0
    %463 = vmatprep.subr.mxu0 0.0
    %464 = vmatpush1.msra.mxu0 0.0
    %465 = vmatprep.subr.mxu0 0.0
    %466 = vmatpush1.msra.mxu0 0.0
    %467 = vmatprep.subr.mxu0 0.0
    %468 = vmatpush1.msra.mxu0 0.0
    %469 = vmatprep.subr.mxu0 0.0
    %470 = vmatpush1.msra.mxu0 0.0
    %471 = vmatprep.subr.mxu0 0.0
    %472 = vmatpush1.msra.mxu0 0.0
    %473 = vmatprep.subr.mxu0 0.0
    %474 = vmatpush1.msra.mxu0 0.0
    %475 = vmatprep.subr.mxu0 0.0
    %476 = vmatpush1.msra.mxu0 0.0
    %477 = vmatprep.subr.mxu0 0.0
    %478 = vmatpush1.msra.mxu0 0.0
    %479 = vmatprep.subr.mxu0 0.0
    %480 = vmatpush1.msra.mxu0 0.0
    %481 = vmatprep.subr.mxu0 0.0
    %482 = vmatpush1.msra.mxu0 0.0
    %483 = vmatprep.subr.mxu0 0.0
    %484 = vmatpush1.msra.mxu0 0.0
    %485 = vmatprep.subr.mxu0 0.0
    %486 = vmatpush1.msra.mxu0 0.0
    %487 = vmatprep.subr.mxu0 0.0
    %488 = vmatpush1.msra.mxu0 0.0
    %489 = vmatprep.subr.mxu0 0.0
    %490 = vmatpush1.msra.mxu0 0.0
    %491 = vmatprep.mubr.f32.mxu0 0.0
    %492 = vmatmul.mubr.f32.gmra.mrb[0].mxu0 %v425
    %v493 = vpop.f32.mrb[0].mxu0
    %v494 = vadd.f32 0.0, %v493
    %v495 = vpop.f32.mrb[0].mxu0
    %496 = vdwg.mxu0
    %v498 = vsel %vm423, %v358, 0
    %500 = vmatprep.subr.mxu0 0.0
    %501 = vmatpush1.msra.mxu0 %v415
    %502 = vmatprep.subr.mxu0 0.0
    %503 = vmatpush1.msra.mxu0 %v416
    %504 = vmatprep.subr.mxu0 0.0
    %505 = vmatpush1.msra.mxu0 %v417
    %506 = vmatprep.subr.mxu0 0.0
    %507 = vmatpush1.msra.mxu0 %v418
    %508 = vmatprep.subr.mxu0 0.0
    %509 = vmatpush1.msra.mxu0 0.0
    %510 = vmatprep.subr.mxu0 0.0
    %511 = vmatpush1.msra.mxu0 0.0
    %512 = vmatprep.subr.mxu0 0.0
    %513 = vmatpush1.msra.mxu0 0.0
    %514 = vmatprep.subr.mxu0 0.0
    %515 = vmatpush1.msra.mxu0 0.0
    %516 = vmatprep.subr.mxu0 0.0
    %517 = vmatpush1.msra.mxu0 0.0
    %518 = vmatprep.subr.mxu0 0.0
    %519 = vmatpush1.msra.mxu0 0.0
    %520 = vmatprep.subr.mxu0 0.0
    %521 = vmatpush1.msra.mxu0 0.0
    %522 = vmatprep.subr.mxu0 0.0
    %523 = vmatpush1.msra.mxu0 0.0
    %524 = vmatprep.subr.mxu0 0.0
    %525 = vmatpush1.msra.mxu0 0.0
    %526 = vmatprep.subr.mxu0 0.0
    %527 = vmatpush1.msra.mxu0 0.0
    %528 = vmatprep.subr.mxu0 0.0
    %529 = vmatpush1.msra.mxu0 0.0
    %530 = vmatprep.subr.mxu0 0.0
    %531 = vmatpush1.msra.mxu0 0.0
    %532 = vmatprep.subr.mxu0 0.0
    %533 = vmatpush1.msra.mxu0 0.0
    %534 = vmatprep.subr.mxu0 0.0
    %535 = vmatpush1.msra.mxu0 0.0
    %536 = vmatprep.subr.mxu0 0.0
    %537 = vmatpush1.msra.mxu0 0.0
    %538 = vmatprep.subr.mxu0 0.0
    %539 = vmatpush1.msra.mxu0 0.0
    %540 = vmatprep.subr.mxu0 0.0
    %541 = vmatpush1.msra.mxu0 0.0
    %542 = vmatprep.subr.mxu0 0.0
    %543 = vmatpush1.msra.mxu0 0.0
    %544 = vmatprep.subr.mxu0 0.0
    %545 = vmatpush1.msra.mxu0 0.0
    %546 = vmatprep.subr.mxu0 0.0
    %547 = vmatpush1.msra.mxu0 0.0
    %548 = vmatprep.subr.mxu0 0.0
    %549 = vmatpush1.msra.mxu0 0.0
    %550 = vmatprep.subr.mxu0 0.0
    %551 = vmatpush1.msra.mxu0 0.0
    %552 = vmatprep.subr.mxu0 0.0
    %553 = vmatpush1.msra.mxu0 0.0
    %554 = vmatprep.subr.mxu0 0.0
    %555 = vmatpush1.msra.mxu0 0.0
    %556 = vmatprep.subr.mxu0 0.0
    %557 = vmatpush1.msra.mxu0 0.0
    %558 = vmatprep.subr.mxu0 0.0
    %559 = vmatpush1.msra.mxu0 0.0
    %560 = vmatprep.subr.mxu0 0.0
    %561 = vmatpush1.msra.mxu0 0.0
    %562 = vmatprep.subr.mxu0 0.0
    %563 = vmatpush1.msra.mxu0 0.0
    %564 = vmatprep.mubr.f32.mxu0 0.0
    %565 = vmatmul.mubr.f32.gmra.mrb[0].mxu0 %v498
    %v566 = vpop.f32.mrb[0].mxu0
    %v567 = vadd.f32 %v494, %v566
    %v568 = vpop.f32.mrb[0].mxu0
    %569 = vdwg.mxu0
    %v570 = vadd.f32 %v567, %v366
    %v571 = vmax.f32 %v570, 0.0
    %v572 = vld [vmem:[%s9] sm:$0xff]
    %v573 = vld [vmem:[%s9 + $0x8] sm:$0xff]
    %v574 = vld [vmem:[%s9 + $0x10] sm:$0xff]
    %v575 = vld [vmem:[%s9 + $0x18] sm:$0xff]
    %v576 = vld [vmem:[%s9 + $0x20] sm:$0xff]
    %v577 = vld [vmem:[%s9 + $0x28] sm:$0xff]
    %v578 = vld [vmem:[%s9 + $0x30] sm:$0xff]
    %v579 = vld [vmem:[%s9 + $0x38] sm:$0xff]
    %vm580 = vcmask 523264
    %v582 = vsel %vm580, %v571, 0
    %584 = vmatprep.subr.mxu0 0.0
    %585 = vmatpush1.msra.mxu0 %v572
    %586 = vmatprep.subr.mxu0 0.0
    %587 = vmatpush1.msra.mxu0 %v573
    %588 = vmatprep.subr.mxu0 0.0
    %589 = vmatpush1.msra.mxu0 %v574
    %590 = vmatprep.subr.mxu0 0.0
    %591 = vmatpush1.msra.mxu0 %v575
    %592 = vmatprep.subr.mxu0 0.0
    %593 = vmatpush1.msra.mxu0 %v576
    %594 = vmatprep.subr.mxu0 0.0
    %595 = vmatpush1.msra.mxu0 %v577
    %596 = vmatprep.subr.mxu0 0.0
    %597 = vmatpush1.msra.mxu0 %v578
    %598 = vmatprep.subr.mxu0 0.0
    %599 = vmatpush1.msra.mxu0 %v579
    %600 = vmatprep.subr.mxu0 0.0
    %601 = vmatpush1.msra.mxu0 0.0
    %602 = vmatprep.subr.mxu0 0.0
    %603 = vmatpush1.msra.mxu0 0.0
    %604 = vmatprep.subr.mxu0 0.0
    %605 = vmatpush1.msra.mxu0 0.0
    %606 = vmatprep.subr.mxu0 0.0
    %607 = vmatpush1.msra.mxu0 0.0
    %608 = vmatprep.subr.mxu0 0.0
    %609 = vmatpush1.msra.mxu0 0.0
    %610 = vmatprep.subr.mxu0 0.0
    %611 = vmatpush1.msra.mxu0 0.0
    %612 = vmatprep.subr.mxu0 0.0
    %613 = vmatpush1.msra.mxu0 0.0
    %614 = vmatprep.subr.mxu0 0.0
    %615 = vmatpush1.msra.mxu0 0.0
    %616 = vmatprep.subr.mxu0 0.0
    %617 = vmatpush1.msra.mxu0 0.0
    %618 = vmatprep.subr.mxu0 0.0
    %619 = vmatpush1.msra.mxu0 0.0
    %620 = vmatprep.subr.mxu0 0.0
    %621 = vmatpush1.msra.mxu0 0.0
    %622 = vmatprep.subr.mxu0 0.0
    %623 = vmatpush1.msra.mxu0 0.0
    %624 = vmatprep.subr.mxu0 0.0
    %625 = vmatpush1.msra.mxu0 0.0
    %626 = vmatprep.subr.mxu0 0.0
    %627 = vmatpush1.msra.mxu0 0.0
    %628 = vmatprep.subr.mxu0 0.0
    %629 = vmatpush1.msra.mxu0 0.0
    %630 = vmatprep.subr.mxu0 0.0
    %631 = vmatpush1.msra.mxu0 0.0
    %632 = vmatprep.subr.mxu0 0.0
    %633 = vmatpush1.msra.mxu0 0.0
    %634 = vmatprep.subr.mxu0 0.0
    %635 = vmatpush1.msra.mxu0 0.0
    %636 = vmatprep.subr.mxu0 0.0
    %637 = vmatpush1.msra.mxu0 0.0
    %638 = vmatprep.subr.mxu0 0.0
    %639 = vmatpush1.msra.mxu0 0.0
    %640 = vmatprep.subr.mxu0 0.0
    %641 = vmatpush1.msra.mxu0 0.0
    %642 = vmatprep.subr.mxu0 0.0
    %643 = vmatpush1.msra.mxu0 0.0
    %644 = vmatprep.subr.mxu0 0.0
    %645 = vmatpush1.msra.mxu0 0.0
    %646 = vmatprep.subr.mxu0 0.0
    %647 = vmatpush1.msra.mxu0 0.0
    %648 = vmatprep.mubr.f32.mxu0 0.0
    %649 = vmatmul.mubr.f32.gmra.mrb[0].mxu0 %v582
    %v650 = vpop.f32.mrb[0].mxu0
    %v651 = vadd.f32 %v373, %v650
    %v652 = vpop.f32.mrb[0].mxu0
    %653 = vdwg.mxu0
    %v654 = vmax.f32 %v651, 0.0
    %vm655 = vcmp.ne.f32.partialorder %v651, %v651
    %v656 = vadd.f32 %v651, 0.0
    %v657 = vand.u32 2147483647, %v651
    %v658 = vsub.f32 0.0, %v657
    %v659 = vmul.f32 %v658, 1.442695
    %v660 = vpow.pop %v659
    %v661 = vadd.f32 %v660, 1.0
    %v662 = vlog2.pop %v661
    %v663 = vmul.f32 %v662, 0.6931472
    %v664 = vmul.f32 -0.5, %v660
    %v665 = vadd.f32 %v664, 1.0
    %v666 = vmul.f32 %v665, %v660
    %v667 = vand.u32 2147483647, %v660
    %vm668 = vcmp.lt.f32.partialorder %v667, 0.0004427343
    %v669 = vsel %vm668, %v666, %v663
    %v670 = vadd.f32 %v654, %v669
    %v671 = vsel %vm655, %v656, %v670
    %673 = vrot.lane.b32.xlu0 %v651, 112
    %v674 = vpop.permute.xlu0 %673
    %v676 = vsub.f32 %v651, %v674
    %678 = vrot.lane.b32.xlu0 %v671, 16
    %v679 = vpop.permute.xlu0 %678
    %v681 = vrcp.pop %v679
    %v682 = vmul.f32 %v671, %v681
    %v683 = vlog2.pop %v682
    %v684 = vmul.f32 %v683, 0.6931472
    %v685 = vmul.f32 %v684, 2.0
    %v686 = vmul.f32 %v671, %v671
    %v687 = vmul.f32 %v676, %v676
    %v688 = vadd.f32 %v686, %v687
    %690 = vrot.lane.b32.xlu0 %v686, 112
    %v691 = vpop.permute.xlu0 %690
    %v693 = vrcp.pop %v691
    %v694 = vmul.f32 %v688, %v693
    %696 = vrot.lane.b32.xlu0 %v694, 16
    %v697 = vpop.permute.xlu0 %696
    %v699 = vadd.f32 %v685, %v697
    %v700 = vadd.f32 %v699, 0.0
    %v701 = vld [vmem:[%s1] sm:$0xf]
    %v702 = vmul.f32 %v701, %v671
    %v703 = vadd.f32 %v702, %v651
    %v704 = vld [vmem:[#allocation14] sm:$0xff]
    %v705 = vld [vmem:[#allocation14 + $0x8] sm:$0xff]
    %vm706 = vcmask 130048
    %v708 = vsel %vm706, %v703, 0
    %710 = vmatprep.subr.mxu0 0.0
    %711 = vmatpush1.msra.mxu0 %v704
    %712 = vmatprep.subr.mxu0 0.0
    %713 = vmatpush1.msra.mxu0 %v705
    %714 = vmatprep.subr.mxu0 0.0
    %715 = vmatpush1.msra.mxu0 0.0
    %716 = vmatprep.subr.mxu0 0.0
    %717 = vmatpush1.msra.mxu0 0.0
    %718 = vmatprep.subr.mxu0 0.0
    %719 = vmatpush1.msra.mxu0 0.0
    %720 = vmatprep.subr.mxu0 0.0
    %721 = vmatpush1.msra.mxu0 0.0
    %722 = vmatprep.subr.mxu0 0.0
    %723 = vmatpush1.msra.mxu0 0.0
    %724 = vmatprep.subr.mxu0 0.0
    %725 = vmatpush1.msra.mxu0 0.0
    %726 = vmatprep.subr.mxu0 0.0
    %727 = vmatpush1.msra.mxu0 0.0
    %728 = vmatprep.subr.mxu0 0.0
    %729 = vmatpush1.msra.mxu0 0.0
    %730 = vmatprep.subr.mxu0 0.0
    %731 = vmatpush1.msra.mxu0 0.0
    %732 = vmatprep.subr.mxu0 0.0
    %733 = vmatpush1.msra.mxu0 0.0
    %734 = vmatprep.subr.mxu0 0.0
    %735 = vmatpush1.msra.mxu0 0.0
    %736 = vmatprep.subr.mxu0 0.0
    %737 = vmatpush1.msra.mxu0 0.0
    %738 = vmatprep.subr.mxu0 0.0
    %739 = vmatpush1.msra.mxu0 0.0
    %740 = vmatprep.subr.mxu0 0.0
    %741 = vmatpush1.msra.mxu0 0.0
    %742 = vmatprep.subr.mxu0 0.0
    %743 = vmatpush1.msra.mxu0 0.0
    %744 = vmatprep.subr.mxu0 0.0
    %745 = vmatpush1.msra.mxu0 0.0
    %746 = vmatprep.subr.mxu0 0.0
    %747 = vmatpush1.msra.mxu0 0.0
    %748 = vmatprep.subr.mxu0 0.0
    %749 = vmatpush1.msra.mxu0 0.0
    %750 = vmatprep.subr.mxu0 0.0
    %751 = vmatpush1.msra.mxu0 0.0
    %752 = vmatprep.subr.mxu0 0.0
    %753 = vmatpush1.msra.mxu0 0.0
    %754 = vmatprep.subr.mxu0 0.0
    %755 = vmatpush1.msra.mxu0 0.0
    %756 = vmatprep.subr.mxu0 0.0
    %757 = vmatpush1.msra.mxu0 0.0
    %758 = vmatprep.subr.mxu0 0.0
    %759 = vmatpush1.msra.mxu0 0.0
    %760 = vmatprep.subr.mxu0 0.0
    %761 = vmatpush1.msra.mxu0 0.0
    %762 = vmatprep.subr.mxu0 0.0
    %763 = vmatpush1.msra.mxu0 0.0
    %764 = vmatprep.subr.mxu0 0.0
    %765 = vmatpush1.msra.mxu0 0.0
    %766 = vmatprep.subr.mxu0 0.0
    %767 = vmatpush1.msra.mxu0 0.0
    %768 = vmatprep.subr.mxu0 0.0
    %769 = vmatpush1.msra.mxu0 0.0
    %770 = vmatprep.subr.mxu0 0.0
    %771 = vmatpush1.msra.mxu0 0.0
    %772 = vmatprep.subr.mxu0 0.0
    %773 = vmatpush1.msra.mxu0 0.0
    %774 = vmatprep.mubr.f32.mxu0 0.0
    %775 = vmatmul.mubr.f32.gmra.mrb[0].mxu0 %v708
    %v776 = vpop.f32.mrb[0].mxu0
    %v777 = vadd.f32 %v380, %v776
    %v778 = vpop.f32.mrb[0].mxu0
    %779 = vdwg.mxu0
    %v780 = vmax.f32 %v777, 0.0
    %v781 = vld [vmem:[%s18] sm:$0xff]
    %v782 = vld [vmem:[%s18 + $0x8] sm:$0xff]
    %v783 = vld [vmem:[%s18 + $0x10] sm:$0xff]
    %v784 = vld [vmem:[%s18 + $0x18] sm:$0xff]
    %s785 = scalar_lea.vmem %s18, 32
    %v786 = vld [vmem:[%s785] sm:$0xff]
    %v787 = vld [vmem:[%s785 + $0x8] sm:$0xff]
    %v788 = vld [vmem:[%s785 + $0x10] sm:$0xff]
    %v789 = vld [vmem:[%s785 + $0x18] sm:$0xff]
    %v791 = vsel %vm423, %v780, 0
    %793 = vmatprep.subr.mxu0 0.0
    %794 = vmatpush1.msra.mxu0 %v786
    %795 = vmatprep.subr.mxu0 0.0
    %796 = vmatpush1.msra.mxu0 %v787
    %797 = vmatprep.subr.mxu0 0.0
    %798 = vmatpush1.msra.mxu0 %v788
    %799 = vmatprep.subr.mxu0 0.0
    %800 = vmatpush1.msra.mxu0 %v789
    %801 = vmatprep.subr.mxu0 0.0
    %802 = vmatpush1.msra.mxu0 0.0
    %803 = vmatprep.subr.mxu0 0.0
    %804 = vmatpush1.msra.mxu0 0.0
    %805 = vmatprep.subr.mxu0 0.0
    %806 = vmatpush1.msra.mxu0 0.0
    %807 = vmatprep.subr.mxu0 0.0
    %808 = vmatpush1.msra.mxu0 0.0
    %809 = vmatprep.subr.mxu0 0.0
    %810 = vmatpush1.msra.mxu0 0.0
    %811 = vmatprep.subr.mxu0 0.0
    %812 = vmatpush1.msra.mxu0 0.0
    %813 = vmatprep.subr.mxu0 0.0
    %814 = vmatpush1.msra.mxu0 0.0
    %815 = vmatprep.subr.mxu0 0.0
    %816 = vmatpush1.msra.mxu0 0.0
    %817 = vmatprep.subr.mxu0 0.0
    %818 = vmatpush1.msra.mxu0 0.0
    %819 = vmatprep.subr.mxu0 0.0
    %820 = vmatpush1.msra.mxu0 0.0
    %821 = vmatprep.subr.mxu0 0.0
    %822 = vmatpush1.msra.mxu0 0.0
    %823 = vmatprep.subr.mxu0 0.0
    %824 = vmatpush1.msra.mxu0 0.0
    %825 = vmatprep.subr.mxu0 0.0
    %826 = vmatpush1.msra.mxu0 0.0
    %827 = vmatprep.subr.mxu0 0.0
    %828 = vmatpush1.msra.mxu0 0.0
    %829 = vmatprep.subr.mxu0 0.0
    %830 = vmatpush1.msra.mxu0 0.0
    %831 = vmatprep.subr.mxu0 0.0
    %832 = vmatpush1.msra.mxu0 0.0
    %833 = vmatprep.subr.mxu0 0.0
    %834 = vmatpush1.msra.mxu0 0.0
    %835 = vmatprep.subr.mxu0 0.0
    %836 = vmatpush1.msra.mxu0 0.0
    %837 = vmatprep.subr.mxu0 0.0
    %838 = vmatpush1.msra.mxu0 0.0
    %839 = vmatprep.subr.mxu0 0.0
    %840 = vmatpush1.msra.mxu0 0.0
    %841 = vmatprep.subr.mxu0 0.0
    %842 = vmatpush1.msra.mxu0 0.0
    %843 = vmatprep.subr.mxu0 0.0
    %844 = vmatpush1.msra.mxu0 0.0
    %845 = vmatprep.subr.mxu0 0.0
    %846 = vmatpush1.msra.mxu0 0.0
    %847 = vmatprep.subr.mxu0 0.0
    %848 = vmatpush1.msra.mxu0 0.0
    %849 = vmatprep.subr.mxu0 0.0
    %850 = vmatpush1.msra.mxu0 0.0
    %851 = vmatprep.subr.mxu0 0.0
    %852 = vmatpush1.msra.mxu0 0.0
    %853 = vmatprep.subr.mxu0 0.0
    %854 = vmatpush1.msra.mxu0 0.0
    %855 = vmatprep.subr.mxu0 0.0
    %856 = vmatpush1.msra.mxu0 0.0
    %857 = vmatprep.mubr.f32.mxu0 0.0
    %858 = vmatmul.mubr.f32.gmra.mrb[0].mxu0 %v791
    %v859 = vpop.f32.mrb[0].mxu0
    %v860 = vadd.f32 0.0, %v859
    %v861 = vpop.f32.mrb[0].mxu0
    %862 = vdwg.mxu0
    %863 = vmatprep.subr.mxu0 0.0
    %864 = vmatpush1.msra.mxu0 %v781
    %865 = vmatprep.subr.mxu0 0.0
    %866 = vmatpush1.msra.mxu0 %v782
    %867 = vmatprep.subr.mxu0 0.0
    %868 = vmatpush1.msra.mxu0 %v783
    %869 = vmatprep.subr.mxu0 0.0
    %870 = vmatpush1.msra.mxu0 %v784
    %871 = vmatprep.subr.mxu0 0.0
    %872 = vmatpush1.msra.mxu0 0.0
    %873 = vmatprep.subr.mxu0 0.0
    %874 = vmatpush1.msra.mxu0 0.0
    %875 = vmatprep.subr.mxu0 0.0
    %876 = vmatpush1.msra.mxu0 0.0
    %877 = vmatprep.subr.mxu0 0.0
    %878 = vmatpush1.msra.mxu0 0.0
    %879 = vmatprep.subr.mxu0 0.0
    %880 = vmatpush1.msra.mxu0 0.0
    %881 = vmatprep.subr.mxu0 0.0
    %882 = vmatpush1.msra.mxu0 0.0
    %883 = vmatprep.subr.mxu0 0.0
    %884 = vmatpush1.msra.mxu0 0.0
    %885 = vmatprep.subr.mxu0 0.0
    %886 = vmatpush1.msra.mxu0 0.0
    %887 = vmatprep.subr.mxu0 0.0
    %888 = vmatpush1.msra.mxu0 0.0
    %889 = vmatprep.subr.mxu0 0.0
    %890 = vmatpush1.msra.mxu0 0.0
    %891 = vmatprep.subr.mxu0 0.0
    %892 = vmatpush1.msra.mxu0 0.0
    %893 = vmatprep.subr.mxu0 0.0
    %894 = vmatpush1.msra.mxu0 0.0
    %895 = vmatprep.subr.mxu0 0.0
    %896 = vmatpush1.msra.mxu0 0.0
    %897 = vmatprep.subr.mxu0 0.0
    %898 = vmatpush1.msra.mxu0 0.0
    %899 = vmatprep.subr.mxu0 0.0
    %900 = vmatpush1.msra.mxu0 0.0
    %901 = vmatprep.subr.mxu0 0.0
    %902 = vmatpush1.msra.mxu0 0.0
    %903 = vmatprep.subr.mxu0 0.0
    %904 = vmatpush1.msra.mxu0 0.0
    %905 = vmatprep.subr.mxu0 0.0
    %906 = vmatpush1.msra.mxu0 0.0
    %907 = vmatprep.subr.mxu0 0.0
    %908 = vmatpush1.msra.mxu0 0.0
    %909 = vmatprep.subr.mxu0 0.0
    %910 = vmatpush1.msra.mxu0 0.0
    %911 = vmatprep.subr.mxu0 0.0
    %912 = vmatpush1.msra.mxu0 0.0
    %913 = vmatprep.subr.mxu0 0.0
    %914 = vmatpush1.msra.mxu0 0.0
    %915 = vmatprep.subr.mxu0 0.0
    %916 = vmatpush1.msra.mxu0 0.0
    %917 = vmatprep.subr.mxu0 0.0
    %918 = vmatpush1.msra.mxu0 0.0
    %919 = vmatprep.subr.mxu0 0.0
    %920 = vmatpush1.msra.mxu0 0.0
    %921 = vmatprep.subr.mxu0 0.0
    %922 = vmatpush1.msra.mxu0 0.0
    %923 = vmatprep.subr.mxu0 0.0
    %924 = vmatpush1.msra.mxu0 0.0
    %925 = vmatprep.subr.mxu0 0.0
    %926 = vmatpush1.msra.mxu0 0.0
    %927 = vmatprep.mubr.f32.mxu0 0.0
    %928 = vmatmul.mubr.f32.gmra.mrb[0].mxu0 %v498
    %v929 = vpop.f32.mrb[0].mxu0
    %v930 = vadd.f32 %v860, %v929
    %v931 = vpop.f32.mrb[0].mxu0
    %932 = vdwg.mxu0
    %v933 = vadd.f32 %v930, %v387
    %v934 = vld [vmem:[%s19] sm:$0xff]
    %v935 = vld [vmem:[%s19 + $0x8] sm:$0xff]
    %v936 = vld [vmem:[%s19 + $0x10] sm:$0xff]
    %v937 = vld [vmem:[%s19 + $0x18] sm:$0xff]
    %v939 = vsel %vm423, %v412, 0
    %941 = vmatprep.subr.mxu0 0.0
    %942 = vmatpush1.msra.mxu0 %v934
    %943 = vmatprep.subr.mxu0 0.0
    %944 = vmatpush1.msra.mxu0 %v935
    %945 = vmatprep.subr.mxu0 0.0
    %946 = vmatpush1.msra.mxu0 %v936
    %947 = vmatprep.subr.mxu0 0.0
    %948 = vmatpush1.msra.mxu0 %v937
    %949 = vmatprep.subr.mxu0 0.0
    %950 = vmatpush1.msra.mxu0 0.0
    %951 = vmatprep.subr.mxu0 0.0
    %952 = vmatpush1.msra.mxu0 0.0
    %953 = vmatprep.subr.mxu0 0.0
    %954 = vmatpush1.msra.mxu0 0.0
    %955 = vmatprep.subr.mxu0 0.0
    %956 = vmatpush1.msra.mxu0 0.0
    %957 = vmatprep.subr.mxu0 0.0
    %958 = vmatpush1.msra.mxu0 0.0
    %959 = vmatprep.subr.mxu0 0.0
    %960 = vmatpush1.msra.mxu0 0.0
    %961 = vmatprep.subr.mxu0 0.0
    %962 = vmatpush1.msra.mxu0 0.0
    %963 = vmatprep.subr.mxu0 0.0
    %964 = vmatpush1.msra.mxu0 0.0
    %965 = vmatprep.subr.mxu0 0.0
    %966 = vmatpush1.msra.mxu0 0.0
    %967 = vmatprep.subr.mxu0 0.0
    %968 = vmatpush1.msra.mxu0 0.0
    %969 = vmatprep.subr.mxu0 0.0
    %970 = vmatpush1.msra.mxu0 0.0
    %971 = vmatprep.subr.mxu0 0.0
    %972 = vmatpush1.msra.mxu0 0.0
    %973 = vmatprep.subr.mxu0 0.0
    %974 = vmatpush1.msra.mxu0 0.0
    %975 = vmatprep.subr.mxu0 0.0
    %976 = vmatpush1.msra.mxu0 0.0
    %977 = vmatprep.subr.mxu0 0.0
    %978 = vmatpush1.msra.mxu0 0.0
    %979 = vmatprep.subr.mxu0 0.0
    %980 = vmatpush1.msra.mxu0 0.0
    %981 = vmatprep.subr.mxu0 0.0
    %982 = vmatpush1.msra.mxu0 0.0
    %983 = vmatprep.subr.mxu0 0.0
    %984 = vmatpush1.msra.mxu0 0.0
    %985 = vmatprep.subr.mxu0 0.0
    %986 = vmatpush1.msra.mxu0 0.0
    %987 = vmatprep.subr.mxu0 0.0
    %988 = vmatpush1.msra.mxu0 0.0
    %989 = vmatprep.subr.mxu0 0.0
    %990 = vmatpush1.msra.mxu0 0.0
    %991 = vmatprep.subr.mxu0 0.0
    %992 = vmatpush1.msra.mxu0 0.0
    %993 = vmatprep.subr.mxu0 0.0
    %994 = vmatpush1.msra.mxu0 0.0
    %995 = vmatprep.subr.mxu0 0.0
    %996 = vmatpush1.msra.mxu0 0.0
    %997 = vmatprep.subr.mxu0 0.0
    %998 = vmatpush1.msra.mxu0 0.0
    %999 = vmatprep.subr.mxu0 0.0
    %1000 = vmatpush1.msra.mxu0 0.0
    %1001 = vmatprep.subr.mxu0 0.0
    %1002 = vmatpush1.msra.mxu0 0.0
    %1003 = vmatprep.subr.mxu0 0.0
    %1004 = vmatpush1.msra.mxu0 0.0
    %1005 = vmatprep.mubr.f32.mxu0 0.0
    %1006 = vmatmul.mubr.f32.gmra.mrb[0].mxu0 %v939
    %v1007 = vpop.f32.mrb[0].mxu0
    %v1008 = vadd.f32 %v402, %v1007
    %v1009 = vpop.f32.mrb[0].mxu0
    %1010 = vdwg.mxu0
    %v1011 = vadd.f32 %v933, %v1008
    %v1012 = vxor.u32 %v1011, 2147483648
    %v1013 = vmul.f32 %v1012, 1.442695
    %v1014 = vpow.pop %v1013
    %v1015 = vadd.f32 %v1014, 1.0
    %v1016 = vrcp.pop %v1015
    %v1017 = vmul.f32 1.0, %v1016
    %1019 = vrot.lane.b32.xlu0 %v1008, 64
    %v1020 = vpop.permute.xlu0 %1019
    %v1022 = vmul.f32 %v1017, %v1020
    %1024 = vrot.lane.b32.xlu0 %v1022, 64
    %v1025 = vpop.permute.xlu0 %1024
    %v1027 = vadd.f32 %v933, %v1025
    %v1028 = vtanh.pop %v1027
    %v1029 = vsub.f32 1.0, %v1017
    %1031 = vrot.lane.b32.xlu0 %v1028, 96
    %v1032 = vpop.permute.xlu0 %1031
    %v1034 = vmul.f32 %v1029, %v1032
    %1035 = vrot.lane.b32.xlu0 %v412, 32
    %v1036 = vpop.permute.xlu0 %1035
    %v1038 = vmul.f32 %v1017, %v1036
    %v1039 = vadd.f32 %v1034, %v1038
    %s1040 = scalar_lea.vmem %s18, 64
    %v1041 = vld [vmem:[%s1040] sm:$0xff]
    %v1042 = vld [vmem:[%s1040 + $0x8] sm:$0xff]
    %v1043 = vld [vmem:[%s1040 + $0x10] sm:$0xff]
    %v1044 = vld [vmem:[%s1040 + $0x18] sm:$0xff]
    %1046 = vrot.lane.b32.xlu0 %v1039, 96
    %v1047 = vpop.permute.xlu0 %1046
    %v1048 = vsel %vm423, %v1047, 0
    %1050 = vmatprep.subr.mxu0 0.0
    %1051 = vmatpush1.msra.mxu0 %v1041
    %1052 = vmatprep.subr.mxu0 0.0
    %1053 = vmatpush1.msra.mxu0 %v1042
    %1054 = vmatprep.subr.mxu0 0.0
    %1055 = vmatpush1.msra.mxu0 %v1043
    %1056 = vmatprep.subr.mxu0 0.0
    %1057 = vmatpush1.msra.mxu0 %v1044
    %1058 = vmatprep.subr.mxu0 0.0
    %1059 = vmatpush1.msra.mxu0 0.0
    %1060 = vmatprep.subr.mxu0 0.0
    %1061 = vmatpush1.msra.mxu0 0.0
    %1062 = vmatprep.subr.mxu0 0.0
    %1063 = vmatpush1.msra.mxu0 0.0
    %1064 = vmatprep.subr.mxu0 0.0
    %1065 = vmatpush1.msra.mxu0 0.0
    %1066 = vmatprep.subr.mxu0 0.0
    %1067 = vmatpush1.msra.mxu0 0.0
    %1068 = vmatprep.subr.mxu0 0.0
    %1069 = vmatpush1.msra.mxu0 0.0
    %1070 = vmatprep.subr.mxu0 0.0
    %1071 = vmatpush1.msra.mxu0 0.0
    %1072 = vmatprep.subr.mxu0 0.0
    %1073 = vmatpush1.msra.mxu0 0.0
    %1074 = vmatprep.subr.mxu0 0.0
    %1075 = vmatpush1.msra.mxu0 0.0
    %1076 = vmatprep.subr.mxu0 0.0
    %1077 = vmatpush1.msra.mxu0 0.0
    %1078 = vmatprep.subr.mxu0 0.0
    %1079 = vmatpush1.msra.mxu0 0.0
    %1080 = vmatprep.subr.mxu0 0.0
    %1081 = vmatpush1.msra.mxu0 0.0
    %1082 = vmatprep.subr.mxu0 0.0
    %1083 = vmatpush1.msra.mxu0 0.0
    %1084 = vmatprep.subr.mxu0 0.0
    %1085 = vmatpush1.msra.mxu0 0.0
    %1086 = vmatprep.subr.mxu0 0.0
    %1087 = vmatpush1.msra.mxu0 0.0
    %1088 = vmatprep.subr.mxu0 0.0
    %1089 = vmatpush1.msra.mxu0 0.0
    %1090 = vmatprep.subr.mxu0 0.0
    %1091 = vmatpush1.msra.mxu0 0.0
    %1092 = vmatprep.subr.mxu0 0.0
    %1093 = vmatpush1.msra.mxu0 0.0
    %1094 = vmatprep.subr.mxu0 0.0
    %1095 = vmatpush1.msra.mxu0 0.0
    %1096 = vmatprep.subr.mxu0 0.0
    %1097 = vmatpush1.msra.mxu0 0.0
    %1098 = vmatprep.subr.mxu0 0.0
    %1099 = vmatpush1.msra.mxu0 0.0
    %1100 = vmatprep.subr.mxu0 0.0
    %1101 = vmatpush1.msra.mxu0 0.0
    %1102 = vmatprep.subr.mxu0 0.0
    %1103 = vmatpush1.msra.mxu0 0.0
    %1104 = vmatprep.subr.mxu0 0.0
    %1105 = vmatpush1.msra.mxu0 0.0
    %1106 = vmatprep.subr.mxu0 0.0
    %1107 = vmatpush1.msra.mxu0 0.0
    %1108 = vmatprep.subr.mxu0 0.0
    %1109 = vmatpush1.msra.mxu0 0.0
    %1110 = vmatprep.subr.mxu0 0.0
    %1111 = vmatpush1.msra.mxu0 0.0
    %1112 = vmatprep.subr.mxu0 0.0
    %1113 = vmatpush1.msra.mxu0 0.0
    %1114 = vmatprep.mubr.f32.mxu0 0.0
    %1115 = vmatmul.mubr.f32.gmra.mrb[0].mxu0 %v1048
    %v1116 = vpop.f32.mrb[0].mxu0
    %v1117 = vadd.f32 %v395, %v1116
    %v1118 = vpop.f32.mrb[0].mxu0
    %1119 = vdwg.mxu0
    %s1120 = scalar_lea.vmem %s19, 32
    %v1121 = vld [vmem:[%s1120] sm:$0xff]
    %v1122 = vld [vmem:[%s1120 + $0x8] sm:$0xff]
    %v1123 = vld [vmem:[%s1120 + $0x10] sm:$0xff]
    %v1124 = vld [vmem:[%s1120 + $0x18] sm:$0xff]
    %1125 = vmatprep.subr.mxu0 0.0
    %1126 = vmatpush1.msra.mxu0 %v1121
    %1127 = vmatprep.subr.mxu0 0.0
    %1128 = vmatpush1.msra.mxu0 %v1122
    %1129 = vmatprep.subr.mxu0 0.0
    %1130 = vmatpush1.msra.mxu0 %v1123
    %1131 = vmatprep.subr.mxu0 0.0
    %1132 = vmatpush1.msra.mxu0 %v1124
    %1133 = vmatprep.subr.mxu0 0.0
    %1134 = vmatpush1.msra.mxu0 0.0
    %1135 = vmatprep.subr.mxu0 0.0
    %1136 = vmatpush1.msra.mxu0 0.0
    %1137 = vmatprep.subr.mxu0 0.0
    %1138 = vmatpush1.msra.mxu0 0.0
    %1139 = vmatprep.subr.mxu0 0.0
    %1140 = vmatpush1.msra.mxu0 0.0
    %1141 = vmatprep.subr.mxu0 0.0
    %1142 = vmatpush1.msra.mxu0 0.0
    %1143 = vmatprep.subr.mxu0 0.0
    %1144 = vmatpush1.msra.mxu0 0.0
    %1145 = vmatprep.subr.mxu0 0.0
    %1146 = vmatpush1.msra.mxu0 0.0
    %1147 = vmatprep.subr.mxu0 0.0
    %1148 = vmatpush1.msra.mxu0 0.0
    %1149 = vmatprep.subr.mxu0 0.0
    %1150 = vmatpush1.msra.mxu0 0.0
    %1151 = vmatprep.subr.mxu0 0.0
    %1152 = vmatpush1.msra.mxu0 0.0
    %1153 = vmatprep.subr.mxu0 0.0
    %1154 = vmatpush1.msra.mxu0 0.0
    %1155 = vmatprep.subr.mxu0 0.0
    %1156 = vmatpush1.msra.mxu0 0.0
    %1157 = vmatprep.subr.mxu0 0.0
    %1158 = vmatpush1.msra.mxu0 0.0
    %1159 = vmatprep.subr.mxu0 0.0
    %1160 = vmatpush1.msra.mxu0 0.0
    %1161 = vmatprep.subr.mxu0 0.0
    %1162 = vmatpush1.msra.mxu0 0.0
    %1163 = vmatprep.subr.mxu0 0.0
    %1164 = vmatpush1.msra.mxu0 0.0
    %1165 = vmatprep.subr.mxu0 0.0
    %1166 = vmatpush1.msra.mxu0 0.0
    %1167 = vmatprep.subr.mxu0 0.0
    %1168 = vmatpush1.msra.mxu0 0.0
    %1169 = vmatprep.subr.mxu0 0.0
    %1170 = vmatpush1.msra.mxu0 0.0
    %1171 = vmatprep.subr.mxu0 0.0
    %1172 = vmatpush1.msra.mxu0 0.0
    %1173 = vmatprep.subr.mxu0 0.0
    %1174 = vmatpush1.msra.mxu0 0.0
    %1175 = vmatprep.subr.mxu0 0.0
    %1176 = vmatpush1.msra.mxu0 0.0
    %1177 = vmatprep.subr.mxu0 0.0
    %1178 = vmatpush1.msra.mxu0 0.0
    %1179 = vmatprep.subr.mxu0 0.0
    %1180 = vmatpush1.msra.mxu0 0.0
    %1181 = vmatprep.subr.mxu0 0.0
    %1182 = vmatpush1.msra.mxu0 0.0
    %1183 = vmatprep.subr.mxu0 0.0
    %1184 = vmatpush1.msra.mxu0 0.0
    %1185 = vmatprep.subr.mxu0 0.0
    %1186 = vmatpush1.msra.mxu0 0.0
    %1187 = vmatprep.subr.mxu0 0.0
    %1188 = vmatpush1.msra.mxu0 0.0
    %1189 = vmatprep.mubr.f32.mxu0 0.0
    %1190 = vmatmul.mubr.f32.gmra.mrb[0].mxu0 %v425
    %v1191 = vpop.f32.mrb[0].mxu0
    %v1192 = vadd.f32 %v410, %v1191
    %v1193 = vpop.f32.mrb[0].mxu0
    %1194 = vdwg.mxu0
    %v1195 = vadd.f32 %v1117, %v1192
    %v1196 = vxor.u32 %v1195, 2147483648
    %v1197 = vmul.f32 %v1196, 1.442695
    %v1198 = vpow.pop %v1197
    %v1199 = vadd.f32 %v1198, 1.0
    %v1200 = vrcp.pop %v1199
    %v1201 = vmul.f32 1.0, %v1200
    %1203 = vrot.lane.b32.xlu0 %v1192, 64
    %v1204 = vpop.permute.xlu0 %1203
    %v1206 = vmul.f32 %v1201, %v1204
    %1208 = vrot.lane.b32.xlu0 %v1206, 64
    %v1209 = vpop.permute.xlu0 %1208
    %v1211 = vadd.f32 %v1117, %v1209
    %v1212 = vtanh.pop %v1211
    %v1213 = vsub.f32 1.0, %v1201
    %1215 = vrot.lane.b32.xlu0 %v1212, 96
    %v1216 = vpop.permute.xlu0 %1215
    %v1218 = vmul.f32 %v1213, %v1216
    %1219 = vrot.lane.b32.xlu0 %v414, 32
    %v1220 = vpop.permute.xlu0 %1219
    %v1222 = vmul.f32 %v1201, %v1220
    %v1223 = vadd.f32 %v1218, %v1222
    %1225 = vrot.lane.b32.xlu0 %v1223, 96
    %v1226 = vpop.permute.xlu0 %1225
    %v1227 = vsel %vm423, %v1226, 0
    %1229 = vmatprep.subr.mxu0 0.0
    %1230 = vmatpush1.msra.mxu0 %v419
    %1231 = vmatprep.subr.mxu0 0.0
    %1232 = vmatpush1.msra.mxu0 %v420
    %1233 = vmatprep.subr.mxu0 0.0
    %1234 = vmatpush1.msra.mxu0 %v421
    %1235 = vmatprep.subr.mxu0 0.0
    %1236 = vmatpush1.msra.mxu0 %v422
    %1237 = vmatprep.subr.mxu0 0.0
    %1238 = vmatpush1.msra.mxu0 0.0
    %1239 = vmatprep.subr.mxu0 0.0
    %1240 = vmatpush1.msra.mxu0 0.0
    %1241 = vmatprep.subr.mxu0 0.0
    %1242 = vmatpush1.msra.mxu0 0.0
    %1243 = vmatprep.subr.mxu0 0.0
    %1244 = vmatpush1.msra.mxu0 0.0
    %1245 = vmatprep.subr.mxu0 0.0
    %1246 = vmatpush1.msra.mxu0 0.0
    %1247 = vmatprep.subr.mxu0 0.0
    %1248 = vmatpush1.msra.mxu0 0.0
    %1249 = vmatprep.subr.mxu0 0.0
    %1250 = vmatpush1.msra.mxu0 0.0
    %1251 = vmatprep.subr.mxu0 0.0
    %1252 = vmatpush1.msra.mxu0 0.0
    %1253 = vmatprep.subr.mxu0 0.0
    %1254 = vmatpush1.msra.mxu0 0.0
    %1255 = vmatprep.subr.mxu0 0.0
    %1256 = vmatpush1.msra.mxu0 0.0
    %1257 = vmatprep.subr.mxu0 0.0
    %1258 = vmatpush1.msra.mxu0 0.0
    %1259 = vmatprep.subr.mxu0 0.0
    %1260 = vmatpush1.msra.mxu0 0.0
    %1261 = vmatprep.subr.mxu0 0.0
    %1262 = vmatpush1.msra.mxu0 0.0
    %1263 = vmatprep.subr.mxu0 0.0
    %1264 = vmatpush1.msra.mxu0 0.0
    %1265 = vmatprep.subr.mxu0 0.0
    %1266 = vmatpush1.msra.mxu0 0.0
    %1267 = vmatprep.subr.mxu0 0.0
    %1268 = vmatpush1.msra.mxu0 0.0
    %1269 = vmatprep.subr.mxu0 0.0
    %1270 = vmatpush1.msra.mxu0 0.0
    %1271 = vmatprep.subr.mxu0 0.0
    %1272 = vmatpush1.msra.mxu0 0.0
    %1273 = vmatprep.subr.mxu0 0.0
    %1274 = vmatpush1.msra.mxu0 0.0
    %1275 = vmatprep.subr.mxu0 0.0
    %1276 = vmatpush1.msra.mxu0 0.0
    %1277 = vmatprep.subr.mxu0 0.0
    %1278 = vmatpush1.msra.mxu0 0.0
    %1279 = vmatprep.subr.mxu0 0.0
    %1280 = vmatpush1.msra.mxu0 0.0
    %1281 = vmatprep.subr.mxu0 0.0
    %1282 = vmatpush1.msra.mxu0 0.0
    %1283 = vmatprep.subr.mxu0 0.0
    %1284 = vmatpush1.msra.mxu0 0.0
    %1285 = vmatprep.subr.mxu0 0.0
    %1286 = vmatpush1.msra.mxu0 0.0
    %1287 = vmatprep.subr.mxu0 0.0
    %1288 = vmatpush1.msra.mxu0 0.0
    %1289 = vmatprep.subr.mxu0 0.0
    %1290 = vmatpush1.msra.mxu0 0.0
    %1291 = vmatprep.subr.mxu0 0.0
    %1292 = vmatpush1.msra.mxu0 0.0
    %1293 = vmatprep.mubr.f32.mxu0 0.0
    %1294 = vmatmul.mubr.f32.gmra.mrb[0].mxu0 %v1227
    %v1295 = vpop.f32.mrb[0].mxu0
    %v1296 = vadd.f32 0.0, %v1295
    %v1297 = vpop.f32.mrb[0].mxu0
    %1298 = vdwg.mxu0
    %v1299 = vrot.slane %v358, 4
    %v1300 = vsel %vm423, %v1299, 0
    %1302 = vmatprep.subr.mxu0 0.0
    %1303 = vmatpush1.msra.mxu0 %v415
    %1304 = vmatprep.subr.mxu0 0.0
    %1305 = vmatpush1.msra.mxu0 %v416
    %1306 = vmatprep.subr.mxu0 0.0
    %1307 = vmatpush1.msra.mxu0 %v417
    %1308 = vmatprep.subr.mxu0 0.0
    %1309 = vmatpush1.msra.mxu0 %v418
    %1310 = vmatprep.subr.mxu0 0.0
    %1311 = vmatpush1.msra.mxu0 0.0
    %1312 = vmatprep.subr.mxu0 0.0
    %1313 = vmatpush1.msra.mxu0 0.0
    %1314 = vmatprep.subr.mxu0 0.0
    %1315 = vmatpush1.msra.mxu0 0.0
    %1316 = vmatprep.subr.mxu0 0.0
    %1317 = vmatpush1.msra.mxu0 0.0
    %1318 = vmatprep.subr.mxu0 0.0
    %1319 = vmatpush1.msra.mxu0 0.0
    %1320 = vmatprep.subr.mxu0 0.0
    %1321 = vmatpush1.msra.mxu0 0.0
    %1322 = vmatprep.subr.mxu0 0.0
    %1323 = vmatpush1.msra.mxu0 0.0
    %1324 = vmatprep.subr.mxu0 0.0
    %1325 = vmatpush1.msra.mxu0 0.0
    %1326 = vmatprep.subr.mxu0 0.0
    %1327 = vmatpush1.msra.mxu0 0.0
    %1328 = vmatprep.subr.mxu0 0.0
    %1329 = vmatpush1.msra.mxu0 0.0
    %1330 = vmatprep.subr.mxu0 0.0
    %1331 = vmatpush1.msra.mxu0 0.0
    %1332 = vmatprep.subr.mxu0 0.0
    %1333 = vmatpush1.msra.mxu0 0.0
    %1334 = vmatprep.subr.mxu0 0.0
    %1335 = vmatpush1.msra.mxu0 0.0
    %1336 = vmatprep.subr.mxu0 0.0
    %1337 = vmatpush1.msra.mxu0 0.0
    %1338 = vmatprep.subr.mxu0 0.0
    %1339 = vmatpush1.msra.mxu0 0.0
    %1340 = vmatprep.subr.mxu0 0.0
    %1341 = vmatpush1.msra.mxu0 0.0
    %1342 = vmatprep.subr.mxu0 0.0
    %1343 = vmatpush1.msra.mxu0 0.0
    %1344 = vmatprep.subr.mxu0 0.0
    %1345 = vmatpush1.msra.mxu0 0.0
    %1346 = vmatprep.subr.mxu0 0.0
    %1347 = vmatpush1.msra.mxu0 0.0
    %1348 = vmatprep.subr.mxu0 0.0
    %1349 = vmatpush1.msra.mxu0 0.0
    %1350 = vmatprep.subr.mxu0 0.0
    %1351 = vmatpush1.msra.mxu0 0.0
    %1352 = vmatprep.subr.mxu0 0.0
    %1353 = vmatpush1.msra.mxu0 0.0
    %1354 = vmatprep.subr.mxu0 0.0
    %1355 = vmatpush1.msra.mxu0 0.0
    %1356 = vmatprep.subr.mxu0 0.0
    %1357 = vmatpush1.msra.mxu0 0.0
    %1358 = vmatprep.subr.mxu0 0.0
    %1359 = vmatpush1.msra.mxu0 0.0
    %1360 = vmatprep.subr.mxu0 0.0
    %1361 = vmatpush1.msra.mxu0 0.0
    %1362 = vmatprep.subr.mxu0 0.0
    %1363 = vmatpush1.msra.mxu0 0.0
    %1364 = vmatprep.subr.mxu0 0.0
    %1365 = vmatpush1.msra.mxu0 0.0
    %1366 = vmatprep.mubr.f32.mxu0 0.0
    %1367 = vmatmul.mubr.f32.gmra.mrb[0].mxu0 %v1300
    %v1368 = vpop.f32.mrb[0].mxu0
    %v1369 = vadd.f32 %v1296, %v1368
    %v1370 = vpop.f32.mrb[0].mxu0
    %1371 = vdwg.mxu0
    %v1372 = vadd.f32 %v1369, %v366
    %v1373 = vmax.f32 %v1372, 0.0
    %v1375 = vsel %vm580, %v1373, 0
    %1377 = vmatprep.subr.mxu0 0.0
    %1378 = vmatpush1.msra.mxu0 %v572
    %1379 = vmatprep.subr.mxu0 0.0
    %1380 = vmatpush1.msra.mxu0 %v573
    %1381 = vmatprep.subr.mxu0 0.0
    %1382 = vmatpush1.msra.mxu0 %v574
    %1383 = vmatprep.subr.mxu0 0.0
    %1384 = vmatpush1.msra.mxu0 %v575
    %1385 = vmatprep.subr.mxu0 0.0
    %1386 = vmatpush1.msra.mxu0 %v576
    %1387 = vmatprep.subr.mxu0 0.0
    %1388 = vmatpush1.msra.mxu0 %v577
    %1389 = vmatprep.subr.mxu0 0.0
    %1390 = vmatpush1.msra.mxu0 %v578
    %1391 = vmatprep.subr.mxu0 0.0
    %1392 = vmatpush1.msra.mxu0 %v579
    %1393 = vmatprep.subr.mxu0 0.0
    %1394 = vmatpush1.msra.mxu0 0.0
    %1395 = vmatprep.subr.mxu0 0.0
    %1396 = vmatpush1.msra.mxu0 0.0
    %1397 = vmatprep.subr.mxu0 0.0
    %1398 = vmatpush1.msra.mxu0 0.0
    %1399 = vmatprep.subr.mxu0 0.0
    %1400 = vmatpush1.msra.mxu0 0.0
    %1401 = vmatprep.subr.mxu0 0.0
    %1402 = vmatpush1.msra.mxu0 0.0
    %1403 = vmatprep.subr.mxu0 0.0
    %1404 = vmatpush1.msra.mxu0 0.0
    %1405 = vmatprep.subr.mxu0 0.0
    %1406 = vmatpush1.msra.mxu0 0.0
    %1407 = vmatprep.subr.mxu0 0.0
    %1408 = vmatpush1.msra.mxu0 0.0
    %1409 = vmatprep.subr.mxu0 0.0
    %1410 = vmatpush1.msra.mxu0 0.0
    %1411 = vmatprep.subr.mxu0 0.0
    %1412 = vmatpush1.msra.mxu0 0.0
    %1413 = vmatprep.subr.mxu0 0.0
    %1414 = vmatpush1.msra.mxu0 0.0
    %1415 = vmatprep.subr.mxu0 0.0
    %1416 = vmatpush1.msra.mxu0 0.0
    %1417 = vmatprep.subr.mxu0 0.0
    %1418 = vmatpush1.msra.mxu0 0.0
    %1419 = vmatprep.subr.mxu0 0.0
    %1420 = vmatpush1.msra.mxu0 0.0
    %1421 = vmatprep.subr.mxu0 0.0
    %1422 = vmatpush1.msra.mxu0 0.0
    %1423 = vmatprep.subr.mxu0 0.0
    %1424 = vmatpush1.msra.mxu0 0.0
    %1425 = vmatprep.subr.mxu0 0.0
    %1426 = vmatpush1.msra.mxu0 0.0
    %1427 = vmatprep.subr.mxu0 0.0
    %1428 = vmatpush1.msra.mxu0 0.0
    %1429 = vmatprep.subr.mxu0 0.0
    %1430 = vmatpush1.msra.mxu0 0.0
    %1431 = vmatprep.subr.mxu0 0.0
    %1432 = vmatpush1.msra.mxu0 0.0
    %1433 = vmatprep.subr.mxu0 0.0
    %1434 = vmatpush1.msra.mxu0 0.0
    %1435 = vmatprep.subr.mxu0 0.0
    %1436 = vmatpush1.msra.mxu0 0.0
    %1437 = vmatprep.subr.mxu0 0.0
    %1438 = vmatpush1.msra.mxu0 0.0
    %1439 = vmatprep.subr.mxu0 0.0
    %1440 = vmatpush1.msra.mxu0 0.0
    %1441 = vmatprep.mubr.f32.mxu0 0.0
    %1442 = vmatmul.mubr.f32.gmra.mrb[0].mxu0 %v1375
    %v1443 = vpop.f32.mrb[0].mxu0
    %v1444 = vadd.f32 %v373, %v1443
    %v1445 = vpop.f32.mrb[0].mxu0
    %1446 = vdwg.mxu0
    %v1447 = vmax.f32 %v1444, 0.0
    %vm1448 = vcmp.ne.f32.partialorder %v1444, %v1444
    %v1449 = vadd.f32 %v1444, 0.0
    %v1450 = vand.u32 2147483647, %v1444
    %v1451 = vsub.f32 0.0, %v1450
    %v1452 = vmul.f32 %v1451, 1.442695
    %v1453 = vpow.pop %v1452
    %v1454 = vadd.f32 %v1453, 1.0
    %v1455 = vlog2.pop %v1454
    %v1456 = vmul.f32 %v1455, 0.6931472
    %v1457 = vmul.f32 -0.5, %v1453
    %v1458 = vadd.f32 %v1457, 1.0
    %v1459 = vmul.f32 %v1458, %v1453
    %v1460 = vand.u32 2147483647, %v1453
    %vm1461 = vcmp.lt.f32.partialorder %v1460, 0.0004427343
    %v1462 = vsel %vm1461, %v1459, %v1456
    %v1463 = vadd.f32 %v1447, %v1462
    %v1464 = vsel %vm1448, %v1449, %v1463
    %1466 = vrot.lane.b32.xlu0 %v1444, 112
    %v1467 = vpop.permute.xlu0 %1466
    %v1469 = vsub.f32 %v1444, %v1467
    %1471 = vrot.lane.b32.xlu0 %v1464, 16
    %v1472 = vpop.permute.xlu0 %1471
    %v1474 = vrcp.pop %v1472
    %v1475 = vmul.f32 %v1464, %v1474
    %v1476 = vlog2.pop %v1475
    %v1477 = vmul.f32 %v1476, 0.6931472
    %v1478 = vmul.f32 %v1477, 2.0
    %v1479 = vmul.f32 %v1464, %v1464
    %v1480 = vmul.f32 %v1469, %v1469
    %v1481 = vadd.f32 %v1479, %v1480
    %1483 = vrot.lane.b32.xlu0 %v1479, 112
    %v1484 = vpop.permute.xlu0 %1483
    %v1486 = vrcp.pop %v1484
    %v1487 = vmul.f32 %v1481, %v1486
    %1489 = vrot.lane.b32.xlu0 %v1487, 16
    %v1490 = vpop.permute.xlu0 %1489
    %v1492 = vadd.f32 %v1478, %v1490
    %v1493 = vadd.f32 %v700, %v1492
    %s1494 = scalar_lea.vmem %s1, 4
    %v1495 = vld [vmem:[%s1494] sm:$0xf]
    %v1496 = vmul.f32 %v1495, %v1464
    %v1497 = vadd.f32 %v1496, %v1444
    %v1499 = vsel %vm706, %v1497, 0
    %1501 = vmatprep.subr.mxu0 0.0
    %1502 = vmatpush1.msra.mxu0 %v704
    %1503 = vmatprep.subr.mxu0 0.0
    %1504 = vmatpush1.msra.mxu0 %v705
    %1505 = vmatprep.subr.mxu0 0.0
    %1506 = vmatpush1.msra.mxu0 0.0
    %1507 = vmatprep.subr.mxu0 0.0
    %1508 = vmatpush1.msra.mxu0 0.0
    %1509 = vmatprep.subr.mxu0 0.0
    %1510 = vmatpush1.msra.mxu0 0.0
    %1511 = vmatprep.subr.mxu0 0.0
    %1512 = vmatpush1.msra.mxu0 0.0
    %1513 = vmatprep.subr.mxu0 0.0
    %1514 = vmatpush1.msra.mxu0 0.0
    %1515 = vmatprep.subr.mxu0 0.0
    %1516 = vmatpush1.msra.mxu0 0.0
    %1517 = vmatprep.subr.mxu0 0.0
    %1518 = vmatpush1.msra.mxu0 0.0
    %1519 = vmatprep.subr.mxu0 0.0
    %1520 = vmatpush1.msra.mxu0 0.0
    %1521 = vmatprep.subr.mxu0 0.0
    %1522 = vmatpush1.msra.mxu0 0.0
    %1523 = vmatprep.subr.mxu0 0.0
    %1524 = vmatpush1.msra.mxu0 0.0
    %1525 = vmatprep.subr.mxu0 0.0
    %1526 = vmatpush1.msra.mxu0 0.0
    %1527 = vmatprep.subr.mxu0 0.0
    %1528 = vmatpush1.msra.mxu0 0.0
    %1529 = vmatprep.subr.mxu0 0.0
    %1530 = vmatpush1.msra.mxu0 0.0
    %1531 = vmatprep.subr.mxu0 0.0
    %1532 = vmatpush1.msra.mxu0 0.0
    %1533 = vmatprep.subr.mxu0 0.0
    %1534 = vmatpush1.msra.mxu0 0.0
    %1535 = vmatprep.subr.mxu0 0.0
    %1536 = vmatpush1.msra.mxu0 0.0
    %1537 = vmatprep.subr.mxu0 0.0
    %1538 = vmatpush1.msra.mxu0 0.0
    %1539 = vmatprep.subr.mxu0 0.0
    %1540 = vmatpush1.msra.mxu0 0.0
    %1541 = vmatprep.subr.mxu0 0.0
    %1542 = vmatpush1.msra.mxu0 0.0
    %1543 = vmatprep.subr.mxu0 0.0
    %1544 = vmatpush1.msra.mxu0 0.0
    %1545 = vmatprep.subr.mxu0 0.0
    %1546 = vmatpush1.msra.mxu0 0.0
    %1547 = vmatprep.subr.mxu0 0.0
    %1548 = vmatpush1.msra.mxu0 0.0
    %1549 = vmatprep.subr.mxu0 0.0
    %1550 = vmatpush1.msra.mxu0 0.0
    %1551 = vmatprep.subr.mxu0 0.0
    %1552 = vmatpush1.msra.mxu0 0.0
    %1553 = vmatprep.subr.mxu0 0.0
    %1554 = vmatpush1.msra.mxu0 0.0
    %1555 = vmatprep.subr.mxu0 0.0
    %1556 = vmatpush1.msra.mxu0 0.0
    %1557 = vmatprep.subr.mxu0 0.0
    %1558 = vmatpush1.msra.mxu0 0.0
    %1559 = vmatprep.subr.mxu0 0.0
    %1560 = vmatpush1.msra.mxu0 0.0
    %1561 = vmatprep.subr.mxu0 0.0
    %1562 = vmatpush1.msra.mxu0 0.0
    %1563 = vmatprep.subr.mxu0 0.0
    %1564 = vmatpush1.msra.mxu0 0.0
    %1565 = vmatprep.mubr.f32.mxu0 0.0
    %1566 = vmatmul.mubr.f32.gmra.mrb[0].mxu0 %v1499
    %v1567 = vpop.f32.mrb[0].mxu0
    %v1568 = vadd.f32 %v380, %v1567
    %v1569 = vpop.f32.mrb[0].mxu0
    %1570 = vdwg.mxu0
    %v1571 = vmax.f32 %v1568, 0.0
    %v1573 = vsel %vm423, %v1571, 0
    %1575 = vmatprep.subr.mxu0 0.0
    %1576 = vmatpush1.msra.mxu0 %v786
    %1577 = vmatprep.subr.mxu0 0.0
    %1578 = vmatpush1.msra.mxu0 %v787
    %1579 = vmatprep.subr.mxu0 0.0
    %1580 = vmatpush1.msra.mxu0 %v788
    %1581 = vmatprep.subr.mxu0 0.0
    %1582 = vmatpush1.msra.mxu0 %v789
    %1583 = vmatprep.subr.mxu0 0.0
    %1584 = vmatpush1.msra.mxu0 0.0
    %1585 = vmatprep.subr.mxu0 0.0
    %1586 = vmatpush1.msra.mxu0 0.0
    %1587 = vmatprep.subr.mxu0 0.0
    %1588 = vmatpush1.msra.mxu0 0.0
    %1589 = vmatprep.subr.mxu0 0.0
    %1590 = vmatpush1.msra.mxu0 0.0
    %1591 = vmatprep.subr.mxu0 0.0
    %1592 = vmatpush1.msra.mxu0 0.0
    %1593 = vmatprep.subr.mxu0 0.0
    %1594 = vmatpush1.msra.mxu0 0.0
    %1595 = vmatprep.subr.mxu0 0.0
    %1596 = vmatpush1.msra.mxu0 0.0
    %1597 = vmatprep.subr.mxu0 0.0
    %1598 = vmatpush1.msra.mxu0 0.0
    %1599 = vmatprep.subr.mxu0 0.0
    %1600 = vmatpush1.msra.mxu0 0.0
    %1601 = vmatprep.subr.mxu0 0.0
    %1602 = vmatpush1.msra.mxu0 0.0
    %1603 = vmatprep.subr.mxu0 0.0
    %1604 = vmatpush1.msra.mxu0 0.0
    %1605 = vmatprep.subr.mxu0 0.0
    %1606 = vmatpush1.msra.mxu0 0.0
    %1607 = vmatprep.subr.mxu0 0.0
    %1608 = vmatpush1.msra.mxu0 0.0
    %1609 = vmatprep.subr.mxu0 0.0
    %1610 = vmatpush1.msra.mxu0 0.0
    %1611 = vmatprep.subr.mxu0 0.0
    %1612 = vmatpush1.msra.mxu0 0.0
    %1613 = vmatprep.subr.mxu0 0.0
    %1614 = vmatpush1.msra.mxu0 0.0
    %1615 = vmatprep.subr.mxu0 0.0
    %1616 = vmatpush1.msra.mxu0 0.0
    %1617 = vmatprep.subr.mxu0 0.0
    %1618 = vmatpush1.msra.mxu0 0.0
    %1619 = vmatprep.subr.mxu0 0.0
    %1620 = vmatpush1.msra.mxu0 0.0
    %1621 = vmatprep.subr.mxu0 0.0
    %1622 = vmatpush1.msra.mxu0 0.0
    %1623 = vmatprep.subr.mxu0 0.0
    %1624 = vmatpush1.msra.mxu0 0.0
    %1625 = vmatprep.subr.mxu0 0.0
    %1626 = vmatpush1.msra.mxu0 0.0
    %1627 = vmatprep.subr.mxu0 0.0
    %1628 = vmatpush1.msra.mxu0 0.0
    %1629 = vmatprep.subr.mxu0 0.0
    %1630 = vmatpush1.msra.mxu0 0.0
    %1631 = vmatprep.subr.mxu0 0.0
    %1632 = vmatpush1.msra.mxu0 0.0
    %1633 = vmatprep.subr.mxu0 0.0
    %1634 = vmatpush1.msra.mxu0 0.0
    %1635 = vmatprep.subr.mxu0 0.0
    %1636 = vmatpush1.msra.mxu0 0.0
    %1637 = vmatprep.subr.mxu0 0.0
    %1638 = vmatpush1.msra.mxu0 0.0
    %1639 = vmatprep.mubr.f32.mxu0 0.0
    %1640 = vmatmul.mubr.f32.gmra.mrb[0].mxu0 %v1573
    %v1641 = vpop.f32.mrb[0].mxu0
    %v1642 = vadd.f32 0.0, %v1641
    %v1643 = vpop.f32.mrb[0].mxu0
    %1644 = vdwg.mxu0
    %1645 = vmatprep.subr.mxu0 0.0
    %1646 = vmatpush1.msra.mxu0 %v781
    %1647 = vmatprep.subr.mxu0 0.0
    %1648 = vmatpush1.msra.mxu0 %v782
    %1649 = vmatprep.subr.mxu0 0.0
    %1650 = vmatpush1.msra.mxu0 %v783
    %1651 = vmatprep.subr.mxu0 0.0
    %1652 = vmatpush1.msra.mxu0 %v784
    %1653 = vmatprep.subr.mxu0 0.0
    %1654 = vmatpush1.msra.mxu0 0.0
    %1655 = vmatprep.subr.mxu0 0.0
    %1656 = vmatpush1.msra.mxu0 0.0
    %1657 = vmatprep.subr.mxu0 0.0
    %1658 = vmatpush1.msra.mxu0 0.0
    %1659 = vmatprep.subr.mxu0 0.0
    %1660 = vmatpush1.msra.mxu0 0.0
    %1661 = vmatprep.subr.mxu0 0.0
    %1662 = vmatpush1.msra.mxu0 0.0
    %1663 = vmatprep.subr.mxu0 0.0
    %1664 = vmatpush1.msra.mxu0 0.0
    %1665 = vmatprep.subr.mxu0 0.0
    %1666 = vmatpush1.msra.mxu0 0.0
    %1667 = vmatprep.subr.mxu0 0.0
    %1668 = vmatpush1.msra.mxu0 0.0
    %1669 = vmatprep.subr.mxu0 0.0
    %1670 = vmatpush1.msra.mxu0 0.0
    %1671 = vmatprep.subr.mxu0 0.0
    %1672 = vmatpush1.msra.mxu0 0.0
    %1673 = vmatprep.subr.mxu0 0.0
    %1674 = vmatpush1.msra.mxu0 0.0
    %1675 = vmatprep.subr.mxu0 0.0
    %1676 = vmatpush1.msra.mxu0 0.0
    %1677 = vmatprep.subr.mxu0 0.0
    %1678 = vmatpush1.msra.mxu0 0.0
    %1679 = vmatprep.subr.mxu0 0.0
    %1680 = vmatpush1.msra.mxu0 0.0
    %1681 = vmatprep.subr.mxu0 0.0
    %1682 = vmatpush1.msra.mxu0 0.0
    %1683 = vmatprep.subr.mxu0 0.0
    %1684 = vmatpush1.msra.mxu0 0.0
    %1685 = vmatprep.subr.mxu0 0.0
    %1686 = vmatpush1.msra.mxu0 0.0
    %1687 = vmatprep.subr.mxu0 0.0
    %1688 = vmatpush1.msra.mxu0 0.0
    %1689 = vmatprep.subr.mxu0 0.0
    %1690 = vmatpush1.msra.mxu0 0.0
    %1691 = vmatprep.subr.mxu0 0.0
    %1692 = vmatpush1.msra.mxu0 0.0
    %1693 = vmatprep.subr.mxu0 0.0
    %1694 = vmatpush1.msra.mxu0 0.0
    %1695 = vmatprep.subr.mxu0 0.0
    %1696 = vmatpush1.msra.mxu0 0.0
    %1697 = vmatprep.subr.mxu0 0.0
    %1698 = vmatpush1.msra.mxu0 0.0
    %1699 = vmatprep.subr.mxu0 0.0
    %1700 = vmatpush1.msra.mxu0 0.0
    %1701 = vmatprep.subr.mxu0 0.0
    %1702 = vmatpush1.msra.mxu0 0.0
    %1703 = vmatprep.subr.mxu0 0.0
    %1704 = vmatpush1.msra.mxu0 0.0
    %1705 = vmatprep.subr.mxu0 0.0
    %1706 = vmatpush1.msra.mxu0 0.0
    %1707 = vmatprep.subr.mxu0 0.0
    %1708 = vmatpush1.msra.mxu0 0.0
    %1709 = vmatprep.mubr.f32.mxu0 0.0
    %1710 = vmatmul.mubr.f32.gmra.mrb[0].mxu0 %v1300
    %v1711 = vpop.f32.mrb[0].mxu0
    %v1712 = vadd.f32 %v1642, %v1711
    %v1713 = vpop.f32.mrb[0].mxu0
    %1714 = vdwg.mxu0
    %v1715 = vadd.f32 %v1712, %v387
    %1716 = vmatprep.subr.mxu0 0.0
    %1717 = vmatpush1.msra.mxu0 %v934
    %1718 = vmatprep.subr.mxu0 0.0
    %1719 = vmatpush1.msra.mxu0 %v935
    %1720 = vmatprep.subr.mxu0 0.0
    %1721 = vmatpush1.msra.mxu0 %v936
    %1722 = vmatprep.subr.mxu0 0.0
    %1723 = vmatpush1.msra.mxu0 %v937
    %1724 = vmatprep.subr.mxu0 0.0
    %1725 = vmatpush1.msra.mxu0 0.0
    %1726 = vmatprep.subr.mxu0 0.0
    %1727 = vmatpush1.msra.mxu0 0.0
    %1728 = vmatprep.subr.mxu0 0.0
    %1729 = vmatpush1.msra.mxu0 0.0
    %1730 = vmatprep.subr.mxu0 0.0
    %1731 = vmatpush1.msra.mxu0 0.0
    %1732 = vmatprep.subr.mxu0 0.0
    %1733 = vmatpush1.msra.mxu0 0.0
    %1734 = vmatprep.subr.mxu0 0.0
    %1735 = vmatpush1.msra.mxu0 0.0
    %1736 = vmatprep.subr.mxu0 0.0
    %1737 = vmatpush1.msra.mxu0 0.0
    %1738 = vmatprep.subr.mxu0 0.0
    %1739 = vmatpush1.msra.mxu0 0.0
    %1740 = vmatprep.subr.mxu0 0.0
    %1741 = vmatpush1.msra.mxu0 0.0
    %1742 = vmatprep.subr.mxu0 0.0
    %1743 = vmatpush1.msra.mxu0 0.0
    %1744 = vmatprep.subr.mxu0 0.0
    %1745 = vmatpush1.msra.mxu0 0.0
    %1746 = vmatprep.subr.mxu0 0.0
    %1747 = vmatpush1.msra.mxu0 0.0
    %1748 = vmatprep.subr.mxu0 0.0
    %1749 = vmatpush1.msra.mxu0 0.0
    %1750 = vmatprep.subr.mxu0 0.0
    %1751 = vmatpush1.msra.mxu0 0.0
    %1752 = vmatprep.subr.mxu0 0.0
    %1753 = vmatpush1.msra.mxu0 0.0
    %1754 = vmatprep.subr.mxu0 0.0
    %1755 = vmatpush1.msra.mxu0 0.0
    %1756 = vmatprep.subr.mxu0 0.0
    %1757 = vmatpush1.msra.mxu0 0.0
    %1758 = vmatprep.subr.mxu0 0.0
    %1759 = vmatpush1.msra.mxu0 0.0
    %1760 = vmatprep.subr.mxu0 0.0
    %1761 = vmatpush1.msra.mxu0 0.0
    %1762 = vmatprep.subr.mxu0 0.0
    %1763 = vmatpush1.msra.mxu0 0.0
    %1764 = vmatprep.subr.mxu0 0.0
    %1765 = vmatpush1.msra.mxu0 0.0
    %1766 = vmatprep.subr.mxu0 0.0
    %1767 = vmatpush1.msra.mxu0 0.0
    %1768 = vmatprep.subr.mxu0 0.0
    %1769 = vmatpush1.msra.mxu0 0.0
    %1770 = vmatprep.subr.mxu0 0.0
    %1771 = vmatpush1.msra.mxu0 0.0
    %1772 = vmatprep.subr.mxu0 0.0
    %1773 = vmatpush1.msra.mxu0 0.0
    %1774 = vmatprep.subr.mxu0 0.0
    %1775 = vmatpush1.msra.mxu0 0.0
    %1776 = vmatprep.subr.mxu0 0.0
    %1777 = vmatpush1.msra.mxu0 0.0
    %1778 = vmatprep.subr.mxu0 0.0
    %1779 = vmatpush1.msra.mxu0 0.0
    %1780 = vmatprep.mubr.f32.mxu0 0.0
    %1781 = vmatmul.mubr.f32.gmra.mrb[0].mxu0 %v1048
    %v1782 = vpop.f32.mrb[0].mxu0
    %v1783 = vadd.f32 %v402, %v1782
    %v1784 = vpop.f32.mrb[0].mxu0
    %1785 = vdwg.mxu0
    %v1786 = vadd.f32 %v1715, %v1783
    %v1787 = vxor.u32 %v1786, 2147483648
    %v1788 = vmul.f32 %v1787, 1.442695
    %v1789 = vpow.pop %v1788
    %v1790 = vadd.f32 %v1789, 1.0
    %v1791 = vrcp.pop %v1790
    %v1792 = vmul.f32 1.0, %v1791
    %1794 = vrot.lane.b32.xlu0 %v1783, 64
    %v1795 = vpop.permute.xlu0 %1794
    %v1797 = vmul.f32 %v1792, %v1795
    %1799 = vrot.lane.b32.xlu0 %v1797, 64
    %v1800 = vpop.permute.xlu0 %1799
    %v1802 = vadd.f32 %v1715, %v1800
    %v1803 = vtanh.pop %v1802
    %v1804 = vsub.f32 1.0, %v1792
    %1806 = vrot.lane.b32.xlu0 %v1803, 96
    %v1807 = vpop.permute.xlu0 %1806
    %v1809 = vmul.f32 %v1804, %v1807
    %v1810 = vmul.f32 %v1792, %v1039
    %v1811 = vadd.f32 %v1809, %v1810
    %1813 = vrot.lane.b32.xlu0 %v1811, 96
    %v1814 = vpop.permute.xlu0 %1813
    %v1815 = vsel %vm423, %v1814, 0
    %1817 = vmatprep.subr.mxu0 0.0
    %1818 = vmatpush1.msra.mxu0 %v1041
    %1819 = vmatprep.subr.mxu0 0.0
    %1820 = vmatpush1.msra.mxu0 %v1042
    %1821 = vmatprep.subr.mxu0 0.0
    %1822 = vmatpush1.msra.mxu0 %v1043
    %1823 = vmatprep.subr.mxu0 0.0
    %1824 = vmatpush1.msra.mxu0 %v1044
    %1825 = vmatprep.subr.mxu0 0.0
    %1826 = vmatpush1.msra.mxu0 0.0
    %1827 = vmatprep.subr.mxu0 0.0
    %1828 = vmatpush1.msra.mxu0 0.0
    %1829 = vmatprep.subr.mxu0 0.0
    %1830 = vmatpush1.msra.mxu0 0.0
    %1831 = vmatprep.subr.mxu0 0.0
    %1832 = vmatpush1.msra.mxu0 0.0
    %1833 = vmatprep.subr.mxu0 0.0
    %1834 = vmatpush1.msra.mxu0 0.0
    %1835 = vmatprep.subr.mxu0 0.0
    %1836 = vmatpush1.msra.mxu0 0.0
    %1837 = vmatprep.subr.mxu0 0.0
    %1838 = vmatpush1.msra.mxu0 0.0
    %1839 = vmatprep.subr.mxu0 0.0
    %1840 = vmatpush1.msra.mxu0 0.0
    %1841 = vmatprep.subr.mxu0 0.0
    %1842 = vmatpush1.msra.mxu0 0.0
    %1843 = vmatprep.subr.mxu0 0.0
    %1844 = vmatpush1.msra.mxu0 0.0
    %1845 = vmatprep.subr.mxu0 0.0
    %1846 = vmatpush1.msra.mxu0 0.0
    %1847 = vmatprep.subr.mxu0 0.0
    %1848 = vmatpush1.msra.mxu0 0.0
    %1849 = vmatprep.subr.mxu0 0.0
    %1850 = vmatpush1.msra.mxu0 0.0
    %1851 = vmatprep.subr.mxu0 0.0
    %1852 = vmatpush1.msra.mxu0 0.0
    %1853 = vmatprep.subr.mxu0 0.0
    %1854 = vmatpush1.msra.mxu0 0.0
    %1855 = vmatprep.subr.mxu0 0.0
    %1856 = vmatpush1.msra.mxu0 0.0
    %1857 = vmatprep.subr.mxu0 0.0
    %1858 = vmatpush1.msra.mxu0 0.0
    %1859 = vmatprep.subr.mxu0 0.0
    %1860 = vmatpush1.msra.mxu0 0.0
    %1861 = vmatprep.subr.mxu0 0.0
    %1862 = vmatpush1.msra.mxu0 0.0
    %1863 = vmatprep.subr.mxu0 0.0
    %1864 = vmatpush1.msra.mxu0 0.0
    %1865 = vmatprep.subr.mxu0 0.0
    %1866 = vmatpush1.msra.mxu0 0.0
    %1867 = vmatprep.subr.mxu0 0.0
    %1868 = vmatpush1.msra.mxu0 0.0
    %1869 = vmatprep.subr.mxu0 0.0
    %1870 = vmatpush1.msra.mxu0 0.0
    %1871 = vmatprep.subr.mxu0 0.0
    %1872 = vmatpush1.msra.mxu0 0.0
    %1873 = vmatprep.subr.mxu0 0.0
    %1874 = vmatpush1.msra.mxu0 0.0
    %1875 = vmatprep.subr.mxu0 0.0
    %1876 = vmatpush1.msra.mxu0 0.0
    %1877 = vmatprep.subr.mxu0 0.0
    %1878 = vmatpush1.msra.mxu0 0.0
    %1879 = vmatprep.subr.mxu0 0.0
    %1880 = vmatpush1.msra.mxu0 0.0
    %1881 = vmatprep.mubr.f32.mxu0 0.0
    %1882 = vmatmul.mubr.f32.gmra.mrb[0].mxu0 %v1815
    %v1883 = vpop.f32.mrb[0].mxu0
    %v1884 = vadd.f32 %v395, %v1883
    %v1885 = vpop.f32.mrb[0].mxu0
    %1886 = vdwg.mxu0
    %1887 = vmatprep.subr.mxu0 0.0
    %1888 = vmatpush1.msra.mxu0 %v1121
    %1889 = vmatprep.subr.mxu0 0.0
    %1890 = vmatpush1.msra.mxu0 %v1122
    %1891 = vmatprep.subr.mxu0 0.0
    %1892 = vmatpush1.msra.mxu0 %v1123
    %1893 = vmatprep.subr.mxu0 0.0
    %1894 = vmatpush1.msra.mxu0 %v1124
    %1895 = vmatprep.subr.mxu0 0.0
    %1896 = vmatpush1.msra.mxu0 0.0
    %1897 = vmatprep.subr.mxu0 0.0
    %1898 = vmatpush1.msra.mxu0 0.0
    %1899 = vmatprep.subr.mxu0 0.0
    %1900 = vmatpush1.msra.mxu0 0.0
    %1901 = vmatprep.subr.mxu0 0.0
    %1902 = vmatpush1.msra.mxu0 0.0
    %1903 = vmatprep.subr.mxu0 0.0
    %1904 = vmatpush1.msra.mxu0 0.0
    %1905 = vmatprep.subr.mxu0 0.0
    %1906 = vmatpush1.msra.mxu0 0.0
    %1907 = vmatprep.subr.mxu0 0.0
    %1908 = vmatpush1.msra.mxu0 0.0
    %1909 = vmatprep.subr.mxu0 0.0
    %1910 = vmatpush1.msra.mxu0 0.0
    %1911 = vmatprep.subr.mxu0 0.0
    %1912 = vmatpush1.msra.mxu0 0.0
    %1913 = vmatprep.subr.mxu0 0.0
    %1914 = vmatpush1.msra.mxu0 0.0
    %1915 = vmatprep.subr.mxu0 0.0
    %1916 = vmatpush1.msra.mxu0 0.0
    %1917 = vmatprep.subr.mxu0 0.0
    %1918 = vmatpush1.msra.mxu0 0.0
    %1919 = vmatprep.subr.mxu0 0.0
    %1920 = vmatpush1.msra.mxu0 0.0
    %1921 = vmatprep.subr.mxu0 0.0
    %1922 = vmatpush1.msra.mxu0 0.0
    %1923 = vmatprep.subr.mxu0 0.0
    %1924 = vmatpush1.msra.mxu0 0.0
    %1925 = vmatprep.subr.mxu0 0.0
    %1926 = vmatpush1.msra.mxu0 0.0
    %1927 = vmatprep.subr.mxu0 0.0
    %1928 = vmatpush1.msra.mxu0 0.0
    %1929 = vmatprep.subr.mxu0 0.0
    %1930 = vmatpush1.msra.mxu0 0.0
    %1931 = vmatprep.subr.mxu0 0.0
    %1932 = vmatpush1.msra.mxu0 0.0
    %1933 = vmatprep.subr.mxu0 0.0
    %1934 = vmatpush1.msra.mxu0 0.0
    %1935 = vmatprep.subr.mxu0 0.0
    %1936 = vmatpush1.msra.mxu0 0.0
    %1937 = vmatprep.subr.mxu0 0.0
    %1938 = vmatpush1.msra.mxu0 0.0
    %1939 = vmatprep.subr.mxu0 0.0
    %1940 = vmatpush1.msra.mxu0 0.0
    %1941 = vmatprep.subr.mxu0 0.0
    %1942 = vmatpush1.msra.mxu0 0.0
    %1943 = vmatprep.subr.mxu0 0.0
    %1944 = vmatpush1.msra.mxu0 0.0
    %1945 = vmatprep.subr.mxu0 0.0
    %1946 = vmatpush1.msra.mxu0 0.0
    %1947 = vmatprep.subr.mxu0 0.0
    %1948 = vmatpush1.msra.mxu0 0.0
    %1949 = vmatprep.subr.mxu0 0.0
    %1950 = vmatpush1.msra.mxu0 0.0
    %1951 = vmatprep.mubr.f32.mxu0 0.0
    %1952 = vmatmul.mubr.f32.gmra.mrb[0].mxu0 %v1227
    %v1953 = vpop.f32.mrb[0].mxu0
    %v1954 = vadd.f32 %v410, %v1953
    %v1955 = vpop.f32.mrb[0].mxu0
    %1956 = vdwg.mxu0
    %v1957 = vadd.f32 %v1884, %v1954
    %v1958 = vxor.u32 %v1957, 2147483648
    %v1959 = vmul.f32 %v1958, 1.442695
    %v1960 = vpow.pop %v1959
    %v1961 = vadd.f32 %v1960, 1.0
    %v1962 = vrcp.pop %v1961
    %v1963 = vmul.f32 1.0, %v1962
    %1965 = vrot.lane.b32.xlu0 %v1954, 64
    %v1966 = vpop.permute.xlu0 %1965
    %v1968 = vmul.f32 %v1963, %v1966
    %1970 = vrot.lane.b32.xlu0 %v1968, 64
    %v1971 = vpop.permute.xlu0 %1970
    %v1973 = vadd.f32 %v1884, %v1971
    %v1974 = vtanh.pop %v1973
    %v1975 = vsub.f32 1.0, %v1963
    %1977 = vrot.lane.b32.xlu0 %v1974, 96
    %v1978 = vpop.permute.xlu0 %1977
    %v1980 = vmul.f32 %v1975, %v1978
    %v1981 = vmul.f32 %v1963, %v1223
    %v1982 = vadd.f32 %v1980, %v1981
    %1984 = vrot.lane.b32.xlu0 %v1982, 96
    %v1985 = vpop.permute.xlu0 %1984
    %v1986 = vsel %vm423, %v1985, 0
    %1988 = vmatprep.subr.mxu0 0.0
    %1989 = vmatpush1.msra.mxu0 %v419
    %1990 = vmatprep.subr.mxu0 0.0
    %1991 = vmatpush1.msra.mxu0 %v420
    %1992 = vmatprep.subr.mxu0 0.0
    %1993 = vmatpush1.msra.mxu0 %v421
    %1994 = vmatprep.subr.mxu0 0.0
    %1995 = vmatpush1.msra.mxu0 %v422
    %1996 = vmatprep.subr.mxu0 0.0
    %1997 = vmatpush1.msra.mxu0 0.0
    %1998 = vmatprep.subr.mxu0 0.0
    %1999 = vmatpush1.msra.mxu0 0.0
    %2000 = vmatprep.subr.mxu0 0.0
    %2001 = vmatpush1.msra.mxu0 0.0
    %2002 = vmatprep.subr.mxu0 0.0
    %2003 = vmatpush1.msra.mxu0 0.0
    %2004 = vmatprep.subr.mxu0 0.0
    %2005 = vmatpush1.msra.mxu0 0.0
    %2006 = vmatprep.subr.mxu0 0.0
    %2007 = vmatpush1.msra.mxu0 0.0
    %2008 = vmatprep.subr.mxu0 0.0
    %2009 = vmatpush1.msra.mxu0 0.0
    %2010 = vmatprep.subr.mxu0 0.0
    %2011 = vmatpush1.msra.mxu0 0.0
    %2012 = vmatprep.subr.mxu0 0.0
    %2013 = vmatpush1.msra.mxu0 0.0
    %2014 = vmatprep.subr.mxu0 0.0
    %2015 = vmatpush1.msra.mxu0 0.0
    %2016 = vmatprep.subr.mxu0 0.0
    %2017 = vmatpush1.msra.mxu0 0.0
    %2018 = vmatprep.subr.mxu0 0.0
    %2019 = vmatpush1.msra.mxu0 0.0
    %2020 = vmatprep.subr.mxu0 0.0
    %2021 = vmatpush1.msra.mxu0 0.0
    %2022 = vmatprep.subr.mxu0 0.0
    %2023 = vmatpush1.msra.mxu0 0.0
    %2024 = vmatprep.subr.mxu0 0.0
    %2025 = vmatpush1.msra.mxu0 0.0
    %2026 = vmatprep.subr.mxu0 0.0
    %2027 = vmatpush1.msra.mxu0 0.0
    %2028 = vmatprep.subr.mxu0 0.0
    %2029 = vmatpush1.msra.mxu0 0.0
    %2030 = vmatprep.subr.mxu0 0.0
    %2031 = vmatpush1.msra.mxu0 0.0
    %2032 = vmatprep.subr.mxu0 0.0
    %2033 = vmatpush1.msra.mxu0 0.0
    %2034 = vmatprep.subr.mxu0 0.0
    %2035 = vmatpush1.msra.mxu0 0.0
    %2036 = vmatprep.subr.mxu0 0.0
    %2037 = vmatpush1.msra.mxu0 0.0
    %2038 = vmatprep.subr.mxu0 0.0
    %2039 = vmatpush1.msra.mxu0 0.0
    %2040 = vmatprep.subr.mxu0 0.0
    %2041 = vmatpush1.msra.mxu0 0.0
    %2042 = vmatprep.subr.mxu0 0.0
    %2043 = vmatpush1.msra.mxu0 0.0
    %2044 = vmatprep.subr.mxu0 0.0
    %2045 = vmatpush1.msra.mxu0 0.0
    %2046 = vmatprep.subr.mxu0 0.0
    %2047 = vmatpush1.msra.mxu0 0.0
    %2048 = vmatprep.subr.mxu0 0.0
    %2049 = vmatpush1.msra.mxu0 0.0
    %2050 = vmatprep.subr.mxu0 0.0
    %2051 = vmatpush1.msra.mxu0 0.0
    %2052 = vmatprep.mubr.f32.mxu0 0.0
    %2053 = vmatmul.mubr.f32.gmra.mrb[0].mxu0 %v1986
    %v2054 = vpop.f32.mrb[0].mxu0
    %v2055 = vadd.f32 0.0, %v2054
    %v2056 = vpop.f32.mrb[0].mxu0
    %2057 = vdwg.mxu0
    %v2059 = vsel %vm423, %v359, 0
    %2061 = vmatprep.subr.mxu0 0.0
    %2062 = vmatpush1.msra.mxu0 %v415
    %2063 = vmatprep.subr.mxu0 0.0
    %2064 = vmatpush1.msra.mxu0 %v416
    %2065 = vmatprep.subr.mxu0 0.0
    %2066 = vmatpush1.msra.mxu0 %v417
    %2067 = vmatprep.subr.mxu0 0.0
    %2068 = vmatpush1.msra.mxu0 %v418
    %2069 = vmatprep.subr.mxu0 0.0
    %2070 = vmatpush1.msra.mxu0 0.0
    %2071 = vmatprep.subr.mxu0 0.0
    %2072 = vmatpush1.msra.mxu0 0.0
    %2073 = vmatprep.subr.mxu0 0.0
    %2074 = vmatpush1.msra.mxu0 0.0
    %2075 = vmatprep.subr.mxu0 0.0
    %2076 = vmatpush1.msra.mxu0 0.0
    %2077 = vmatprep.subr.mxu0 0.0
    %2078 = vmatpush1.msra.mxu0 0.0
    %2079 = vmatprep.subr.mxu0 0.0
    %2080 = vmatpush1.msra.mxu0 0.0
    %2081 = vmatprep.subr.mxu0 0.0
    %2082 = vmatpush1.msra.mxu0 0.0
    %2083 = vmatprep.subr.mxu0 0.0
    %2084 = vmatpush1.msra.mxu0 0.0
    %2085 = vmatprep.subr.mxu0 0.0
    %2086 = vmatpush1.msra.mxu0 0.0
    %2087 = vmatprep.subr.mxu0 0.0
    %2088 = vmatpush1.msra.mxu0 0.0
    %2089 = vmatprep.subr.mxu0 0.0
    %2090 = vmatpush1.msra.mxu0 0.0
    %2091 = vmatprep.subr.mxu0 0.0
    %2092 = vmatpush1.msra.mxu0 0.0
    %2093 = vmatprep.subr.mxu0 0.0
    %2094 = vmatpush1.msra.mxu0 0.0
    %2095 = vmatprep.subr.mxu0 0.0
    %2096 = vmatpush1.msra.mxu0 0.0
    %2097 = vmatprep.subr.mxu0 0.0
    %2098 = vmatpush1.msra.mxu0 0.0
    %2099 = vmatprep.subr.mxu0 0.0
    %2100 = vmatpush1.msra.mxu0 0.0
    %2101 = vmatprep.subr.mxu0 0.0
    %2102 = vmatpush1.msra.mxu0 0.0
    %2103 = vmatprep.subr.mxu0 0.0
    %2104 = vmatpush1.msra.mxu0 0.0
    %2105 = vmatprep.subr.mxu0 0.0
    %2106 = vmatpush1.msra.mxu0 0.0
    %2107 = vmatprep.subr.mxu0 0.0
    %2108 = vmatpush1.msra.mxu0 0.0
    %2109 = vmatprep.subr.mxu0 0.0
    %2110 = vmatpush1.msra.mxu0 0.0
    %2111 = vmatprep.subr.mxu0 0.0
    %2112 = vmatpush1.msra.mxu0 0.0
    %2113 = vmatprep.subr.mxu0 0.0
    %2114 = vmatpush1.msra.mxu0 0.0
    %2115 = vmatprep.subr.mxu0 0.0
    %2116 = vmatpush1.msra.mxu0 0.0
    %2117 = vmatprep.subr.mxu0 0.0
    %2118 = vmatpush1.msra.mxu0 0.0
    %2119 = vmatprep.subr.mxu0 0.0
    %2120 = vmatpush1.msra.mxu0 0.0
    %2121 = vmatprep.subr.mxu0 0.0
    %2122 = vmatpush1.msra.mxu0 0.0
    %2123 = vmatprep.subr.mxu0 0.0
    %2124 = vmatpush1.msra.mxu0 0.0
    %2125 = vmatprep.mubr.f32.mxu0 0.0
    %2126 = vmatmul.mubr.f32.gmra.mrb[0].mxu0 %v2059
    %v2127 = vpop.f32.mrb[0].mxu0
    %v2128 = vadd.f32 %v2055, %v2127
    %v2129 = vpop.f32.mrb[0].mxu0
    %2130 = vdwg.mxu0
    %v2131 = vadd.f32 %v2128, %v366
    %v2132 = vmax.f32 %v2131, 0.0
    %v2134 = vsel %vm580, %v2132, 0
    %2136 = vmatprep.subr.mxu0 0.0
    %2137 = vmatpush1.msra.mxu0 %v572
    %2138 = vmatprep.subr.mxu0 0.0
    %2139 = vmatpush1.msra.mxu0 %v573
    %2140 = vmatprep.subr.mxu0 0.0
    %2141 = vmatpush1.msra.mxu0 %v574
    %2142 = vmatprep.subr.mxu0 0.0
    %2143 = vmatpush1.msra.mxu0 %v575
    %2144 = vmatprep.subr.mxu0 0.0
    %2145 = vmatpush1.msra.mxu0 %v576
    %2146 = vmatprep.subr.mxu0 0.0
    %2147 = vmatpush1.msra.mxu0 %v577
    %2148 = vmatprep.subr.mxu0 0.0
    %2149 = vmatpush1.msra.mxu0 %v578
    %2150 = vmatprep.subr.mxu0 0.0
    %2151 = vmatpush1.msra.mxu0 %v579
    %2152 = vmatprep.subr.mxu0 0.0
    %2153 = vmatpush1.msra.mxu0 0.0
    %2154 = vmatprep.subr.mxu0 0.0
    %2155 = vmatpush1.msra.mxu0 0.0
    %2156 = vmatprep.subr.mxu0 0.0
    %2157 = vmatpush1.msra.mxu0 0.0
    %2158 = vmatprep.subr.mxu0 0.0
    %2159 = vmatpush1.msra.mxu0 0.0
    %2160 = vmatprep.subr.mxu0 0.0
    %2161 = vmatpush1.msra.mxu0 0.0
    %2162 = vmatprep.subr.mxu0 0.0
    %2163 = vmatpush1.msra.mxu0 0.0
    %2164 = vmatprep.subr.mxu0 0.0
    %2165 = vmatpush1.msra.mxu0 0.0
    %2166 = vmatprep.subr.mxu0 0.0
    %2167 = vmatpush1.msra.mxu0 0.0
    %2168 = vmatprep.subr.mxu0 0.0
    %2169 = vmatpush1.msra.mxu0 0.0
    %2170 = vmatprep.subr.mxu0 0.0
    %2171 = vmatpush1.msra.mxu0 0.0
    %2172 = vmatprep.subr.mxu0 0.0
    %2173 = vmatpush1.msra.mxu0 0.0
    %2174 = vmatprep.subr.mxu0 0.0
    %2175 = vmatpush1.msra.mxu0 0.0
    %2176 = vmatprep.subr.mxu0 0.0
    %2177 = vmatpush1.msra.mxu0 0.0
    %2178 = vmatprep.subr.mxu0 0.0
    %2179 = vmatpush1.msra.mxu0 0.0
    %2180 = vmatprep.subr.mxu0 0.0
    %2181 = vmatpush1.msra.mxu0 0.0
    %2182 = vmatprep.subr.mxu0 0.0
    %2183 = vmatpush1.msra.mxu0 0.0
    %2184 = vmatprep.subr.mxu0 0.0
    %2185 = vmatpush1.msra.mxu0 0.0
    %2186 = vmatprep.subr.mxu0 0.0
    %2187 = vmatpush1.msra.mxu0 0.0
    %2188 = vmatprep.subr.mxu0 0.0
    %2189 = vmatpush1.msra.mxu0 0.0
    %2190 = vmatprep.subr.mxu0 0.0
    %2191 = vmatpush1.msra.mxu0 0.0
    %2192 = vmatprep.subr.mxu0 0.0
    %2193 = vmatpush1.msra.mxu0 0.0
    %2194 = vmatprep.subr.mxu0 0.0
    %2195 = vmatpush1.msra.mxu0 0.0
    %2196 = vmatprep.subr.mxu0 0.0
    %2197 = vmatpush1.msra.mxu0 0.0
    %2198 = vmatprep.subr.mxu0 0.0
    %2199 = vmatpush1.msra.mxu0 0.0
    %2200 = vmatprep.mubr.f32.mxu0 0.0
    %2201 = vmatmul.mubr.f32.gmra.mrb[0].mxu0 %v2134
    %v2202 = vpop.f32.mrb[0].mxu0
    %v2203 = vadd.f32 %v373, %v2202
    %v2204 = vpop.f32.mrb[0].mxu0
    %2205 = vdwg.mxu0
    %v2206 = vmax.f32 %v2203, 0.0
    %vm2207 = vcmp.ne.f32.partialorder %v2203, %v2203
    %v2208 = vadd.f32 %v2203, 0.0
    %v2209 = vand.u32 2147483647, %v2203
    %v2210 = vsub.f32 0.0, %v2209
    %v2211 = vmul.f32 %v2210, 1.442695
    %v2212 = vpow.pop %v2211
    %v2213 = vadd.f32 %v2212, 1.0
    %v2214 = vlog2.pop %v2213
    %v2215 = vmul.f32 %v2214, 0.6931472
    %v2216 = vmul.f32 -0.5, %v2212
    %v2217 = vadd.f32 %v2216, 1.0
    %v2218 = vmul.f32 %v2217, %v2212
    %v2219 = vand.u32 2147483647, %v2212
    %vm2220 = vcmp.lt.f32.partialorder %v2219, 0.0004427343
    %v2221 = vsel %vm2220, %v2218, %v2215
    %v2222 = vadd.f32 %v2206, %v2221
    %v2223 = vsel %vm2207, %v2208, %v2222
    %2225 = vrot.lane.b32.xlu0 %v2203, 112
    %v2226 = vpop.permute.xlu0 %2225
    %v2228 = vsub.f32 %v2203, %v2226
    %2230 = vrot.lane.b32.xlu0 %v2223, 16
    %v2231 = vpop.permute.xlu0 %2230
    %v2233 = vrcp.pop %v2231
    %v2234 = vmul.f32 %v2223, %v2233
    %v2235 = vlog2.pop %v2234
    %v2236 = vmul.f32 %v2235, 0.6931472
    %v2237 = vmul.f32 %v2236, 2.0
    %v2238 = vmul.f32 %v2223, %v2223
    %v2239 = vmul.f32 %v2228, %v2228
    %v2240 = vadd.f32 %v2238, %v2239
    %2242 = vrot.lane.b32.xlu0 %v2238, 112
    %v2243 = vpop.permute.xlu0 %2242
    %v2245 = vrcp.pop %v2243
    %v2246 = vmul.f32 %v2240, %v2245
    %2248 = vrot.lane.b32.xlu0 %v2246, 16
    %v2249 = vpop.permute.xlu0 %2248
    %v2251 = vadd.f32 %v2237, %v2249
    %v2252 = vadd.f32 %v1493, %v2251
    %s2253 = scalar_lea.vmem %s1, 8
    %v2254 = vld [vmem:[%s2253] sm:$0xf]
    %v2255 = vmul.f32 %v2254, %v2223
    %v2256 = vadd.f32 %v2255, %v2203
    %v2258 = vsel %vm706, %v2256, 0
    %2260 = vmatprep.subr.mxu0 0.0
    %2261 = vmatpush1.msra.mxu0 %v704
    %2262 = vmatprep.subr.mxu0 0.0
    %2263 = vmatpush1.msra.mxu0 %v705
    %2264 = vmatprep.subr.mxu0 0.0
    %2265 = vmatpush1.msra.mxu0 0.0
    %2266 = vmatprep.subr.mxu0 0.0
    %2267 = vmatpush1.msra.mxu0 0.0
    %2268 = vmatprep.subr.mxu0 0.0
    %2269 = vmatpush1.msra.mxu0 0.0
    %2270 = vmatprep.subr.mxu0 0.0
    %2271 = vmatpush1.msra.mxu0 0.0
    %2272 = vmatprep.subr.mxu0 0.0
    %2273 = vmatpush1.msra.mxu0 0.0
    %2274 = vmatprep.subr.mxu0 0.0
    %2275 = vmatpush1.msra.mxu0 0.0
    %2276 = vmatprep.subr.mxu0 0.0
    %2277 = vmatpush1.msra.mxu0 0.0
    %2278 = vmatprep.subr.mxu0 0.0
    %2279 = vmatpush1.msra.mxu0 0.0
    %2280 = vmatprep.subr.mxu0 0.0
    %2281 = vmatpush1.msra.mxu0 0.0
    %2282 = vmatprep.subr.mxu0 0.0
    %2283 = vmatpush1.msra.mxu0 0.0
    %2284 = vmatprep.subr.mxu0 0.0
    %2285 = vmatpush1.msra.mxu0 0.0
    %2286 = vmatprep.subr.mxu0 0.0
    %2287 = vmatpush1.msra.mxu0 0.0
    %2288 = vmatprep.subr.mxu0 0.0
    %2289 = vmatpush1.msra.mxu0 0.0
    %2290 = vmatprep.subr.mxu0 0.0
    %2291 = vmatpush1.msra.mxu0 0.0
    %2292 = vmatprep.subr.mxu0 0.0
    %2293 = vmatpush1.msra.mxu0 0.0
    %2294 = vmatprep.subr.mxu0 0.0
    %2295 = vmatpush1.msra.mxu0 0.0
    %2296 = vmatprep.subr.mxu0 0.0
    %2297 = vmatpush1.msra.mxu0 0.0
    %2298 = vmatprep.subr.mxu0 0.0
    %2299 = vmatpush1.msra.mxu0 0.0
    %2300 = vmatprep.subr.mxu0 0.0
    %2301 = vmatpush1.msra.mxu0 0.0
    %2302 = vmatprep.subr.mxu0 0.0
    %2303 = vmatpush1.msra.mxu0 0.0
    %2304 = vmatprep.subr.mxu0 0.0
    %2305 = vmatpush1.msra.mxu0 0.0
    %2306 = vmatprep.subr.mxu0 0.0
    %2307 = vmatpush1.msra.mxu0 0.0
    %2308 = vmatprep.subr.mxu0 0.0
    %2309 = vmatpush1.msra.mxu0 0.0
    %2310 = vmatprep.subr.mxu0 0.0
    %2311 = vmatpush1.msra.mxu0 0.0
    %2312 = vmatprep.subr.mxu0 0.0
    %2313 = vmatpush1.msra.mxu0 0.0
    %2314 = vmatprep.subr.mxu0 0.0
    %2315 = vmatpush1.msra.mxu0 0.0
    %2316 = vmatprep.subr.mxu0 0.0
    %2317 = vmatpush1.msra.mxu0 0.0
    %2318 = vmatprep.subr.mxu0 0.0
    %2319 = vmatpush1.msra.mxu0 0.0
    %2320 = vmatprep.subr.mxu0 0.0
    %2321 = vmatpush1.msra.mxu0 0.0
    %2322 = vmatprep.subr.mxu0 0.0
    %2323 = vmatpush1.msra.mxu0 0.0
    %2324 = vmatprep.mubr.f32.mxu0 0.0
    %2325 = vmatmul.mubr.f32.gmra.mrb[0].mxu0 %v2258
    %v2326 = vpop.f32.mrb[0].mxu0
    %v2327 = vadd.f32 %v380, %v2326
    %v2328 = vpop.f32.mrb[0].mxu0
    %2329 = vdwg.mxu0
    %v2330 = vmax.f32 %v2327, 0.0
    %v2332 = vsel %vm423, %v2330, 0
    %2334 = vmatprep.subr.mxu0 0.0
    %2335 = vmatpush1.msra.mxu0 %v786
    %2336 = vmatprep.subr.mxu0 0.0
    %2337 = vmatpush1.msra.mxu0 %v787
    %2338 = vmatprep.subr.mxu0 0.0
    %2339 = vmatpush1.msra.mxu0 %v788
    %2340 = vmatprep.subr.mxu0 0.0
    %2341 = vmatpush1.msra.mxu0 %v789
    %2342 = vmatprep.subr.mxu0 0.0
    %2343 = vmatpush1.msra.mxu0 0.0
    %2344 = vmatprep.subr.mxu0 0.0
    %2345 = vmatpush1.msra.mxu0 0.0
    %2346 = vmatprep.subr.mxu0 0.0
    %2347 = vmatpush1.msra.mxu0 0.0
    %2348 = vmatprep.subr.mxu0 0.0
    %2349 = vmatpush1.msra.mxu0 0.0
    %2350 = vmatprep.subr.mxu0 0.0
    %2351 = vmatpush1.msra.mxu0 0.0
    %2352 = vmatprep.subr.mxu0 0.0
    %2353 = vmatpush1.msra.mxu0 0.0
    %2354 = vmatprep.subr.mxu0 0.0
    %2355 = vmatpush1.msra.mxu0 0.0
    %2356 = vmatprep.subr.mxu0 0.0
    %2357 = vmatpush1.msra.mxu0 0.0
    %2358 = vmatprep.subr.mxu0 0.0
    %2359 = vmatpush1.msra.mxu0 0.0
    %2360 = vmatprep.subr.mxu0 0.0
    %2361 = vmatpush1.msra.mxu0 0.0
    %2362 = vmatprep.subr.mxu0 0.0
    %2363 = vmatpush1.msra.mxu0 0.0
    %2364 = vmatprep.subr.mxu0 0.0
    %2365 = vmatpush1.msra.mxu0 0.0
    %2366 = vmatprep.subr.mxu0 0.0
    %2367 = vmatpush1.msra.mxu0 0.0
    %2368 = vmatprep.subr.mxu0 0.0
    %2369 = vmatpush1.msra.mxu0 0.0
    %2370 = vmatprep.subr.mxu0 0.0
    %2371 = vmatpush1.msra.mxu0 0.0
    %2372 = vmatprep.subr.mxu0 0.0
    %2373 = vmatpush1.msra.mxu0 0.0
    %2374 = vmatprep.subr.mxu0 0.0
    %2375 = vmatpush1.msra.mxu0 0.0
    %2376 = vmatprep.subr.mxu0 0.0
    %2377 = vmatpush1.msra.mxu0 0.0
    %2378 = vmatprep.subr.mxu0 0.0
    %2379 = vmatpush1.msra.mxu0 0.0
    %2380 = vmatprep.subr.mxu0 0.0
    %2381 = vmatpush1.msra.mxu0 0.0
    %2382 = vmatprep.subr.mxu0 0.0
    %2383 = vmatpush1.msra.mxu0 0.0
    %2384 = vmatprep.subr.mxu0 0.0
    %2385 = vmatpush1.msra.mxu0 0.0
    %2386 = vmatprep.subr.mxu0 0.0
    %2387 = vmatpush1.msra.mxu0 0.0
    %2388 = vmatprep.subr.mxu0 0.0
    %2389 = vmatpush1.msra.mxu0 0.0
    %2390 = vmatprep.subr.mxu0 0.0
    %2391 = vmatpush1.msra.mxu0 0.0
    %2392 = vmatprep.subr.mxu0 0.0
    %2393 = vmatpush1.msra.mxu0 0.0
    %2394 = vmatprep.subr.mxu0 0.0
    %2395 = vmatpush1.msra.mxu0 0.0
    %2396 = vmatprep.subr.mxu0 0.0
    %2397 = vmatpush1.msra.mxu0 0.0
    %2398 = vmatprep.mubr.f32.mxu0 0.0
    %2399 = vmatmul.mubr.f32.gmra.mrb[0].mxu0 %v2332
    %v2400 = vpop.f32.mrb[0].mxu0
    %v2401 = vadd.f32 0.0, %v2400
    %v2402 = vpop.f32.mrb[0].mxu0
    %2403 = vdwg.mxu0
    %2404 = vmatprep.subr.mxu0 0.0
    %2405 = vmatpush1.msra.mxu0 %v781
    %2406 = vmatprep.subr.mxu0 0.0
    %2407 = vmatpush1.msra.mxu0 %v782
    %2408 = vmatprep.subr.mxu0 0.0
    %2409 = vmatpush1.msra.mxu0 %v783
    %2410 = vmatprep.subr.mxu0 0.0
    %2411 = vmatpush1.msra.mxu0 %v784
    %2412 = vmatprep.subr.mxu0 0.0
    %2413 = vmatpush1.msra.mxu0 0.0
    %2414 = vmatprep.subr.mxu0 0.0
    %2415 = vmatpush1.msra.mxu0 0.0
    %2416 = vmatprep.subr.mxu0 0.0
    %2417 = vmatpush1.msra.mxu0 0.0
    %2418 = vmatprep.subr.mxu0 0.0
    %2419 = vmatpush1.msra.mxu0 0.0
    %2420 = vmatprep.subr.mxu0 0.0
    %2421 = vmatpush1.msra.mxu0 0.0
    %2422 = vmatprep.subr.mxu0 0.0
    %2423 = vmatpush1.msra.mxu0 0.0
    %2424 = vmatprep.subr.mxu0 0.0
    %2425 = vmatpush1.msra.mxu0 0.0
    %2426 = vmatprep.subr.mxu0 0.0
    %2427 = vmatpush1.msra.mxu0 0.0
    %2428 = vmatprep.subr.mxu0 0.0
    %2429 = vmatpush1.msra.mxu0 0.0
    %2430 = vmatprep.subr.mxu0 0.0
    %2431 = vmatpush1.msra.mxu0 0.0
    %2432 = vmatprep.subr.mxu0 0.0
    %2433 = vmatpush1.msra.mxu0 0.0
    %2434 = vmatprep.subr.mxu0 0.0
    %2435 = vmatpush1.msra.mxu0 0.0
    %2436 = vmatprep.subr.mxu0 0.0
    %2437 = vmatpush1.msra.mxu0 0.0
    %2438 = vmatprep.subr.mxu0 0.0
    %2439 = vmatpush1.msra.mxu0 0.0
    %2440 = vmatprep.subr.mxu0 0.0
    %2441 = vmatpush1.msra.mxu0 0.0
    %2442 = vmatprep.subr.mxu0 0.0
    %2443 = vmatpush1.msra.mxu0 0.0
    %2444 = vmatprep.subr.mxu0 0.0
    %2445 = vmatpush1.msra.mxu0 0.0
    %2446 = vmatprep.subr.mxu0 0.0
    %2447 = vmatpush1.msra.mxu0 0.0
    %2448 = vmatprep.subr.mxu0 0.0
    %2449 = vmatpush1.msra.mxu0 0.0
    %2450 = vmatprep.subr.mxu0 0.0
    %2451 = vmatpush1.msra.mxu0 0.0
    %2452 = vmatprep.subr.mxu0 0.0
    %2453 = vmatpush1.msra.mxu0 0.0
    %2454 = vmatprep.subr.mxu0 0.0
    %2455 = vmatpush1.msra.mxu0 0.0
    %2456 = vmatprep.subr.mxu0 0.0
    %2457 = vmatpush1.msra.mxu0 0.0
    %2458 = vmatprep.subr.mxu0 0.0
    %2459 = vmatpush1.msra.mxu0 0.0
    %2460 = vmatprep.subr.mxu0 0.0
    %2461 = vmatpush1.msra.mxu0 0.0
    %2462 = vmatprep.subr.mxu0 0.0
    %2463 = vmatpush1.msra.mxu0 0.0
    %2464 = vmatprep.subr.mxu0 0.0
    %2465 = vmatpush1.msra.mxu0 0.0
    %2466 = vmatprep.subr.mxu0 0.0
    %2467 = vmatpush1.msra.mxu0 0.0
    %2468 = vmatprep.mubr.f32.mxu0 0.0
    %2469 = vmatmul.mubr.f32.gmra.mrb[0].mxu0 %v2059
    %v2470 = vpop.f32.mrb[0].mxu0
    %v2471 = vadd.f32 %v2401, %v2470
    %v2472 = vpop.f32.mrb[0].mxu0
    %2473 = vdwg.mxu0
    %v2474 = vadd.f32 %v2471, %v387
    %2475 = vmatprep.subr.mxu0 0.0
    %2476 = vmatpush1.msra.mxu0 %v934
    %2477 = vmatprep.subr.mxu0 0.0
    %2478 = vmatpush1.msra.mxu0 %v935
    %2479 = vmatprep.subr.mxu0 0.0
    %2480 = vmatpush1.msra.mxu0 %v936
    %2481 = vmatprep.subr.mxu0 0.0
    %2482 = vmatpush1.msra.mxu0 %v937
    %2483 = vmatprep.subr.mxu0 0.0
    %2484 = vmatpush1.msra.mxu0 0.0
    %2485 = vmatprep.subr.mxu0 0.0
    %2486 = vmatpush1.msra.mxu0 0.0
    %2487 = vmatprep.subr.mxu0 0.0
    %2488 = vmatpush1.msra.mxu0 0.0
    %2489 = vmatprep.subr.mxu0 0.0
    %2490 = vmatpush1.msra.mxu0 0.0
    %2491 = vmatprep.subr.mxu0 0.0
    %2492 = vmatpush1.msra.mxu0 0.0
    %2493 = vmatprep.subr.mxu0 0.0
    %2494 = vmatpush1.msra.mxu0 0.0
    %2495 = vmatprep.subr.mxu0 0.0
    %2496 = vmatpush1.msra.mxu0 0.0
    %2497 = vmatprep.subr.mxu0 0.0
    %2498 = vmatpush1.msra.mxu0 0.0
    %2499 = vmatprep.subr.mxu0 0.0
    %2500 = vmatpush1.msra.mxu0 0.0
    %2501 = vmatprep.subr.mxu0 0.0
    %2502 = vmatpush1.msra.mxu0 0.0
    %2503 = vmatprep.subr.mxu0 0.0
    %2504 = vmatpush1.msra.mxu0 0.0
    %2505 = vmatprep.subr.mxu0 0.0
    %2506 = vmatpush1.msra.mxu0 0.0
    %2507 = vmatprep.subr.mxu0 0.0
    %2508 = vmatpush1.msra.mxu0 0.0
    %2509 = vmatprep.subr.mxu0 0.0
    %2510 = vmatpush1.msra.mxu0 0.0
    %2511 = vmatprep.subr.mxu0 0.0
    %2512 = vmatpush1.msra.mxu0 0.0
    %2513 = vmatprep.subr.mxu0 0.0
    %2514 = vmatpush1.msra.mxu0 0.0
    %2515 = vmatprep.subr.mxu0 0.0
    %2516 = vmatpush1.msra.mxu0 0.0
    %2517 = vmatprep.subr.mxu0 0.0
    %2518 = vmatpush1.msra.mxu0 0.0
    %2519 = vmatprep.subr.mxu0 0.0
    %2520 = vmatpush1.msra.mxu0 0.0
    %2521 = vmatprep.subr.mxu0 0.0
    %2522 = vmatpush1.msra.mxu0 0.0
    %2523 = vmatprep.subr.mxu0 0.0
    %2524 = vmatpush1.msra.mxu0 0.0
    %2525 = vmatprep.subr.mxu0 0.0
    %2526 = vmatpush1.msra.mxu0 0.0
    %2527 = vmatprep.subr.mxu0 0.0
    %2528 = vmatpush1.msra.mxu0 0.0
    %2529 = vmatprep.subr.mxu0 0.0
    %2530 = vmatpush1.msra.mxu0 0.0
    %2531 = vmatprep.subr.mxu0 0.0
    %2532 = vmatpush1.msra.mxu0 0.0
    %2533 = vmatprep.subr.mxu0 0.0
    %2534 = vmatpush1.msra.mxu0 0.0
    %2535 = vmatprep.subr.mxu0 0.0
    %2536 = vmatpush1.msra.mxu0 0.0
    %2537 = vmatprep.subr.mxu0 0.0
    %2538 = vmatpush1.msra.mxu0 0.0
    %2539 = vmatprep.mubr.f32.mxu0 0.0
    %2540 = vmatmul.mubr.f32.gmra.mrb[0].mxu0 %v1815
    %v2541 = vpop.f32.mrb[0].mxu0
    %v2542 = vadd.f32 %v402, %v2541
    %v2543 = vpop.f32.mrb[0].mxu0
    %2544 = vdwg.mxu0
    %v2545 = vadd.f32 %v2474, %v2542
    %v2546 = vxor.u32 %v2545, 2147483648
    %v2547 = vmul.f32 %v2546, 1.442695
    %v2548 = vpow.pop %v2547
    %v2549 = vadd.f32 %v2548, 1.0
    %v2550 = vrcp.pop %v2549
    %v2551 = vmul.f32 1.0, %v2550
    %2553 = vrot.lane.b32.xlu0 %v2542, 64
    %v2554 = vpop.permute.xlu0 %2553
    %v2556 = vmul.f32 %v2551, %v2554
    %2558 = vrot.lane.b32.xlu0 %v2556, 64
    %v2559 = vpop.permute.xlu0 %2558
    %v2561 = vadd.f32 %v2474, %v2559
    %v2562 = vtanh.pop %v2561
    %v2563 = vsub.f32 1.0, %v2551
    %2565 = vrot.lane.b32.xlu0 %v2562, 96
    %v2566 = vpop.permute.xlu0 %2565
    %v2568 = vmul.f32 %v2563, %v2566
    %v2569 = vmul.f32 %v2551, %v1811
    %v2570 = vadd.f32 %v2568, %v2569
    %2572 = vrot.lane.b32.xlu0 %v2570, 96
    %v2573 = vpop.permute.xlu0 %2572
    %v2574 = vsel %vm423, %v2573, 0
    %2576 = vmatprep.subr.mxu0 0.0
    %2577 = vmatpush1.msra.mxu0 %v1041
    %2578 = vmatprep.subr.mxu0 0.0
    %2579 = vmatpush1.msra.mxu0 %v1042
    %2580 = vmatprep.subr.mxu0 0.0
    %2581 = vmatpush1.msra.mxu0 %v1043
    %2582 = vmatprep.subr.mxu0 0.0
    %2583 = vmatpush1.msra.mxu0 %v1044
    %2584 = vmatprep.subr.mxu0 0.0
    %2585 = vmatpush1.msra.mxu0 0.0
    %2586 = vmatprep.subr.mxu0 0.0
    %2587 = vmatpush1.msra.mxu0 0.0
    %2588 = vmatprep.subr.mxu0 0.0
    %2589 = vmatpush1.msra.mxu0 0.0
    %2590 = vmatprep.subr.mxu0 0.0
    %2591 = vmatpush1.msra.mxu0 0.0
    %2592 = vmatprep.subr.mxu0 0.0
    %2593 = vmatpush1.msra.mxu0 0.0
    %2594 = vmatprep.subr.mxu0 0.0
    %2595 = vmatpush1.msra.mxu0 0.0
    %2596 = vmatprep.subr.mxu0 0.0
    %2597 = vmatpush1.msra.mxu0 0.0
    %2598 = vmatprep.subr.mxu0 0.0
    %2599 = vmatpush1.msra.mxu0 0.0
    %2600 = vmatprep.subr.mxu0 0.0
    %2601 = vmatpush1.msra.mxu0 0.0
    %2602 = vmatprep.subr.mxu0 0.0
    %2603 = vmatpush1.msra.mxu0 0.0
    %2604 = vmatprep.subr.mxu0 0.0
    %2605 = vmatpush1.msra.mxu0 0.0
    %2606 = vmatprep.subr.mxu0 0.0
    %2607 = vmatpush1.msra.mxu0 0.0
    %2608 = vmatprep.subr.mxu0 0.0
    %2609 = vmatpush1.msra.mxu0 0.0
    %2610 = vmatprep.subr.mxu0 0.0
    %2611 = vmatpush1.msra.mxu0 0.0
    %2612 = vmatprep.subr.mxu0 0.0
    %2613 = vmatpush1.msra.mxu0 0.0
    %2614 = vmatprep.subr.mxu0 0.0
    %2615 = vmatpush1.msra.mxu0 0.0
    %2616 = vmatprep.subr.mxu0 0.0
    %2617 = vmatpush1.msra.mxu0 0.0
    %2618 = vmatprep.subr.mxu0 0.0
    %2619 = vmatpush1.msra.mxu0 0.0
    %2620 = vmatprep.subr.mxu0 0.0
    %2621 = vmatpush1.msra.mxu0 0.0
    %2622 = vmatprep.subr.mxu0 0.0
    %2623 = vmatpush1.msra.mxu0 0.0
    %2624 = vmatprep.subr.mxu0 0.0
    %2625 = vmatpush1.msra.mxu0 0.0
    %2626 = vmatprep.subr.mxu0 0.0
    %2627 = vmatpush1.msra.mxu0 0.0
    %2628 = vmatprep.subr.mxu0 0.0
    %2629 = vmatpush1.msra.mxu0 0.0
    %2630 = vmatprep.subr.mxu0 0.0
    %2631 = vmatpush1.msra.mxu0 0.0
    %2632 = vmatprep.subr.mxu0 0.0
    %2633 = vmatpush1.msra.mxu0 0.0
    %2634 = vmatprep.subr.mxu0 0.0
    %2635 = vmatpush1.msra.mxu0 0.0
    %2636 = vmatprep.subr.mxu0 0.0
    %2637 = vmatpush1.msra.mxu0 0.0
    %2638 = vmatprep.subr.mxu0 0.0
    %2639 = vmatpush1.msra.mxu0 0.0
    %2640 = vmatprep.mubr.f32.mxu0 0.0
    %2641 = vmatmul.mubr.f32.gmra.mrb[0].mxu0 %v2574
    %v2642 = vpop.f32.mrb[0].mxu0
    %v2643 = vadd.f32 %v395, %v2642
    %v2644 = vpop.f32.mrb[0].mxu0
    %2645 = vdwg.mxu0
    %2646 = vmatprep.subr.mxu0 0.0
    %2647 = vmatpush1.msra.mxu0 %v1121
    %2648 = vmatprep.subr.mxu0 0.0
    %2649 = vmatpush1.msra.mxu0 %v1122
    %2650 = vmatprep.subr.mxu0 0.0
    %2651 = vmatpush1.msra.mxu0 %v1123
    %2652 = vmatprep.subr.mxu0 0.0
    %2653 = vmatpush1.msra.mxu0 %v1124
    %2654 = vmatprep.subr.mxu0 0.0
    %2655 = vmatpush1.msra.mxu0 0.0
    %2656 = vmatprep.subr.mxu0 0.0
    %2657 = vmatpush1.msra.mxu0 0.0
    %2658 = vmatprep.subr.mxu0 0.0
    %2659 = vmatpush1.msra.mxu0 0.0
    %2660 = vmatprep.subr.mxu0 0.0
    %2661 = vmatpush1.msra.mxu0 0.0
    %2662 = vmatprep.subr.mxu0 0.0
    %2663 = vmatpush1.msra.mxu0 0.0
    %2664 = vmatprep.subr.mxu0 0.0
    %2665 = vmatpush1.msra.mxu0 0.0
    %2666 = vmatprep.subr.mxu0 0.0
    %2667 = vmatpush1.msra.mxu0 0.0
    %2668 = vmatprep.subr.mxu0 0.0
    %2669 = vmatpush1.msra.mxu0 0.0
    %2670 = vmatprep.subr.mxu0 0.0
    %2671 = vmatpush1.msra.mxu0 0.0
    %2672 = vmatprep.subr.mxu0 0.0
    %2673 = vmatpush1.msra.mxu0 0.0
    %2674 = vmatprep.subr.mxu0 0.0
    %2675 = vmatpush1.msra.mxu0 0.0
    %2676 = vmatprep.subr.mxu0 0.0
    %2677 = vmatpush1.msra.mxu0 0.0
    %2678 = vmatprep.subr.mxu0 0.0
    %2679 = vmatpush1.msra.mxu0 0.0
    %2680 = vmatprep.subr.mxu0 0.0
    %2681 = vmatpush1.msra.mxu0 0.0
    %2682 = vmatprep.subr.mxu0 0.0
    %2683 = vmatpush1.msra.mxu0 0.0
    %2684 = vmatprep.subr.mxu0 0.0
    %2685 = vmatpush1.msra.mxu0 0.0
    %2686 = vmatprep.subr.mxu0 0.0
    %2687 = vmatpush1.msra.mxu0 0.0
    %2688 = vmatprep.subr.mxu0 0.0
    %2689 = vmatpush1.msra.mxu0 0.0
    %2690 = vmatprep.subr.mxu0 0.0
    %2691 = vmatpush1.msra.mxu0 0.0
    %2692 = vmatprep.subr.mxu0 0.0
    %2693 = vmatpush1.msra.mxu0 0.0
    %2694 = vmatprep.subr.mxu0 0.0
    %2695 = vmatpush1.msra.mxu0 0.0
    %2696 = vmatprep.subr.mxu0 0.0
    %2697 = vmatpush1.msra.mxu0 0.0
    %2698 = vmatprep.subr.mxu0 0.0
    %2699 = vmatpush1.msra.mxu0 0.0
    %2700 = vmatprep.subr.mxu0 0.0
    %2701 = vmatpush1.msra.mxu0 0.0
    %2702 = vmatprep.subr.mxu0 0.0
    %2703 = vmatpush1.msra.mxu0 0.0
    %2704 = vmatprep.subr.mxu0 0.0
    %2705 = vmatpush1.msra.mxu0 0.0
    %2706 = vmatprep.subr.mxu0 0.0
    %2707 = vmatpush1.msra.mxu0 0.0
    %2708 = vmatprep.subr.mxu0 0.0
    %2709 = vmatpush1.msra.mxu0 0.0
    %2710 = vmatprep.mubr.f32.mxu0 0.0
    %2711 = vmatmul.mubr.f32.gmra.mrb[0].mxu0 %v1986
    %v2712 = vpop.f32.mrb[0].mxu0
    %v2713 = vadd.f32 %v410, %v2712
    %v2714 = vpop.f32.mrb[0].mxu0
    %2715 = vdwg.mxu0
    %v2716 = vadd.f32 %v2643, %v2713
    %v2717 = vxor.u32 %v2716, 2147483648
    %v2718 = vmul.f32 %v2717, 1.442695
    %v2719 = vpow.pop %v2718
    %v2720 = vadd.f32 %v2719, 1.0
    %v2721 = vrcp.pop %v2720
    %v2722 = vmul.f32 1.0, %v2721
    %2724 = vrot.lane.b32.xlu0 %v2713, 64
    %v2725 = vpop.permute.xlu0 %2724
    %v2727 = vmul.f32 %v2722, %v2725
    %2729 = vrot.lane.b32.xlu0 %v2727, 64
    %v2730 = vpop.permute.xlu0 %2729
    %v2732 = vadd.f32 %v2643, %v2730
    %v2733 = vtanh.pop %v2732
    %v2734 = vsub.f32 1.0, %v2722
    %2736 = vrot.lane.b32.xlu0 %v2733, 96
    %v2737 = vpop.permute.xlu0 %2736
    %v2739 = vmul.f32 %v2734, %v2737
    %v2740 = vmul.f32 %v2722, %v1982
    %v2741 = vadd.f32 %v2739, %v2740
    %2743 = vrot.lane.b32.xlu0 %v2741, 96
    %v2744 = vpop.permute.xlu0 %2743
    %v2745 = vsel %vm423, %v2744, 0
    %2747 = vmatprep.subr.mxu0 0.0
    %2748 = vmatpush1.msra.mxu0 %v419
    %2749 = vmatprep.subr.mxu0 0.0
    %2750 = vmatpush1.msra.mxu0 %v420
    %2751 = vmatprep.subr.mxu0 0.0
    %2752 = vmatpush1.msra.mxu0 %v421
    %2753 = vmatprep.subr.mxu0 0.0
    %2754 = vmatpush1.msra.mxu0 %v422
    %2755 = vmatprep.subr.mxu0 0.0
    %2756 = vmatpush1.msra.mxu0 0.0
    %2757 = vmatprep.subr.mxu0 0.0
    %2758 = vmatpush1.msra.mxu0 0.0
    %2759 = vmatprep.subr.mxu0 0.0
    %2760 = vmatpush1.msra.mxu0 0.0
    %2761 = vmatprep.subr.mxu0 0.0
    %2762 = vmatpush1.msra.mxu0 0.0
    %2763 = vmatprep.subr.mxu0 0.0
    %2764 = vmatpush1.msra.mxu0 0.0
    %2765 = vmatprep.subr.mxu0 0.0
    %2766 = vmatpush1.msra.mxu0 0.0
    %2767 = vmatprep.subr.mxu0 0.0
    %2768 = vmatpush1.msra.mxu0 0.0
    %2769 = vmatprep.subr.mxu0 0.0
    %2770 = vmatpush1.msra.mxu0 0.0
    %2771 = vmatprep.subr.mxu0 0.0
    %2772 = vmatpush1.msra.mxu0 0.0
    %2773 = vmatprep.subr.mxu0 0.0
    %2774 = vmatpush1.msra.mxu0 0.0
    %2775 = vmatprep.subr.mxu0 0.0
    %2776 = vmatpush1.msra.mxu0 0.0
    %2777 = vmatprep.subr.mxu0 0.0
    %2778 = vmatpush1.msra.mxu0 0.0
    %2779 = vmatprep.subr.mxu0 0.0
    %2780 = vmatpush1.msra.mxu0 0.0
    %2781 = vmatprep.subr.mxu0 0.0
    %2782 = vmatpush1.msra.mxu0 0.0
    %2783 = vmatprep.subr.mxu0 0.0
    %2784 = vmatpush1.msra.mxu0 0.0
    %2785 = vmatprep.subr.mxu0 0.0
    %2786 = vmatpush1.msra.mxu0 0.0
    %2787 = vmatprep.subr.mxu0 0.0
    %2788 = vmatpush1.msra.mxu0 0.0
    %2789 = vmatprep.subr.mxu0 0.0
    %2790 = vmatpush1.msra.mxu0 0.0
    %2791 = vmatprep.subr.mxu0 0.0
    %2792 = vmatpush1.msra.mxu0 0.0
    %2793 = vmatprep.subr.mxu0 0.0
    %2794 = vmatpush1.msra.mxu0 0.0
    %2795 = vmatprep.subr.mxu0 0.0
    %2796 = vmatpush1.msra.mxu0 0.0
    %2797 = vmatprep.subr.mxu0 0.0
    %2798 = vmatpush1.msra.mxu0 0.0
    %2799 = vmatprep.subr.mxu0 0.0
    %2800 = vmatpush1.msra.mxu0 0.0
    %2801 = vmatprep.subr.mxu0 0.0
    %2802 = vmatpush1.msra.mxu0 0.0
    %2803 = vmatprep.subr.mxu0 0.0
    %2804 = vmatpush1.msra.mxu0 0.0
    %2805 = vmatprep.subr.mxu0 0.0
    %2806 = vmatpush1.msra.mxu0 0.0
    %2807 = vmatprep.subr.mxu0 0.0
    %2808 = vmatpush1.msra.mxu0 0.0
    %2809 = vmatprep.subr.mxu0 0.0
    %2810 = vmatpush1.msra.mxu0 0.0
    %2811 = vmatprep.mubr.f32.mxu0 0.0
    %2812 = vmatmul.mubr.f32.gmra.mrb[0].mxu0 %v2745
    %v2813 = vpop.f32.mrb[0].mxu0
    %v2814 = vadd.f32 0.0, %v2813
    %v2815 = vpop.f32.mrb[0].mxu0
    %2816 = vdwg.mxu0
    %v2817 = vrot.slane %v359, 4
    %v2818 = vsel %vm423, %v2817, 0
    %2820 = vmatprep.subr.mxu0 0.0
    %2821 = vmatpush1.msra.mxu0 %v415
    %2822 = vmatprep.subr.mxu0 0.0
    %2823 = vmatpush1.msra.mxu0 %v416
    %2824 = vmatprep.subr.mxu0 0.0
    %2825 = vmatpush1.msra.mxu0 %v417
    %2826 = vmatprep.subr.mxu0 0.0
    %2827 = vmatpush1.msra.mxu0 %v418
    %2828 = vmatprep.subr.mxu0 0.0
    %2829 = vmatpush1.msra.mxu0 0.0
    %2830 = vmatprep.subr.mxu0 0.0
    %2831 = vmatpush1.msra.mxu0 0.0
    %2832 = vmatprep.subr.mxu0 0.0
    %2833 = vmatpush1.msra.mxu0 0.0
    %2834 = vmatprep.subr.mxu0 0.0
    %2835 = vmatpush1.msra.mxu0 0.0
    %2836 = vmatprep.subr.mxu0 0.0
    %2837 = vmatpush1.msra.mxu0 0.0
    %2838 = vmatprep.subr.mxu0 0.0
    %2839 = vmatpush1.msra.mxu0 0.0
    %2840 = vmatprep.subr.mxu0 0.0
    %2841 = vmatpush1.msra.mxu0 0.0
    %2842 = vmatprep.subr.mxu0 0.0
    %2843 = vmatpush1.msra.mxu0 0.0
    %2844 = vmatprep.subr.mxu0 0.0
    %2845 = vmatpush1.msra.mxu0 0.0
    %2846 = vmatprep.subr.mxu0 0.0
    %2847 = vmatpush1.msra.mxu0 0.0
    %2848 = vmatprep.subr.mxu0 0.0
    %2849 = vmatpush1.msra.mxu0 0.0
    %2850 = vmatprep.subr.mxu0 0.0
    %2851 = vmatpush1.msra.mxu0 0.0
    %2852 = vmatprep.subr.mxu0 0.0
    %2853 = vmatpush1.msra.mxu0 0.0
    %2854 = vmatprep.subr.mxu0 0.0
    %2855 = vmatpush1.msra.mxu0 0.0
    %2856 = vmatprep.subr.mxu0 0.0
    %2857 = vmatpush1.msra.mxu0 0.0
    %2858 = vmatprep.subr.mxu0 0.0
    %2859 = vmatpush1.msra.mxu0 0.0
    %2860 = vmatprep.subr.mxu0 0.0
    %2861 = vmatpush1.msra.mxu0 0.0
    %2862 = vmatprep.subr.mxu0 0.0
    %2863 = vmatpush1.msra.mxu0 0.0
    %2864 = vmatprep.subr.mxu0 0.0
    %2865 = vmatpush1.msra.mxu0 0.0
    %2866 = vmatprep.subr.mxu0 0.0
    %2867 = vmatpush1.msra.mxu0 0.0
    %2868 = vmatprep.subr.mxu0 0.0
    %2869 = vmatpush1.msra.mxu0 0.0
    %2870 = vmatprep.subr.mxu0 0.0
    %2871 = vmatpush1.msra.mxu0 0.0
    %2872 = vmatprep.subr.mxu0 0.0
    %2873 = vmatpush1.msra.mxu0 0.0
    %2874 = vmatprep.subr.mxu0 0.0
    %2875 = vmatpush1.msra.mxu0 0.0
    %2876 = vmatprep.subr.mxu0 0.0
    %2877 = vmatpush1.msra.mxu0 0.0
    %2878 = vmatprep.subr.mxu0 0.0
    %2879 = vmatpush1.msra.mxu0 0.0
    %2880 = vmatprep.subr.mxu0 0.0
    %2881 = vmatpush1.msra.mxu0 0.0
    %2882 = vmatprep.subr.mxu0 0.0
    %2883 = vmatpush1.msra.mxu0 0.0
    %2884 = vmatprep.mubr.f32.mxu0 0.0
    %2885 = vmatmul.mubr.f32.gmra.mrb[0].mxu0 %v2818
    %v2886 = vpop.f32.mrb[0].mxu0
    %v2887 = vadd.f32 %v2814, %v2886
    %v2888 = vpop.f32.mrb[0].mxu0
    %2889 = vdwg.mxu0
    %v2890 = vadd.f32 %v2887, %v366
    %v2891 = vmax.f32 %v2890, 0.0
    %v2893 = vsel %vm580, %v2891, 0
    %2895 = vmatprep.subr.mxu0 0.0
    %2896 = vmatpush1.msra.mxu0 %v572
    %2897 = vmatprep.subr.mxu0 0.0
    %2898 = vmatpush1.msra.mxu0 %v573
    %2899 = vmatprep.subr.mxu0 0.0
    %2900 = vmatpush1.msra.mxu0 %v574
    %2901 = vmatprep.subr.mxu0 0.0
    %2902 = vmatpush1.msra.mxu0 %v575
    %2903 = vmatprep.subr.mxu0 0.0
    %2904 = vmatpush1.msra.mxu0 %v576
    %2905 = vmatprep.subr.mxu0 0.0
    %2906 = vmatpush1.msra.mxu0 %v577
    %2907 = vmatprep.subr.mxu0 0.0
    %2908 = vmatpush1.msra.mxu0 %v578
    %2909 = vmatprep.subr.mxu0 0.0
    %2910 = vmatpush1.msra.mxu0 %v579
    %2911 = vmatprep.subr.mxu0 0.0
    %2912 = vmatpush1.msra.mxu0 0.0
    %2913 = vmatprep.subr.mxu0 0.0
    %2914 = vmatpush1.msra.mxu0 0.0
    %2915 = vmatprep.subr.mxu0 0.0
    %2916 = vmatpush1.msra.mxu0 0.0
    %2917 = vmatprep.subr.mxu0 0.0
    %2918 = vmatpush1.msra.mxu0 0.0
    %2919 = vmatprep.subr.mxu0 0.0
    %2920 = vmatpush1.msra.mxu0 0.0
    %2921 = vmatprep.subr.mxu0 0.0
    %2922 = vmatpush1.msra.mxu0 0.0
    %2923 = vmatprep.subr.mxu0 0.0
    %2924 = vmatpush1.msra.mxu0 0.0
    %2925 = vmatprep.subr.mxu0 0.0
    %2926 = vmatpush1.msra.mxu0 0.0
    %2927 = vmatprep.subr.mxu0 0.0
    %2928 = vmatpush1.msra.mxu0 0.0
    %2929 = vmatprep.subr.mxu0 0.0
    %2930 = vmatpush1.msra.mxu0 0.0
    %2931 = vmatprep.subr.mxu0 0.0
    %2932 = vmatpush1.msra.mxu0 0.0
    %2933 = vmatprep.subr.mxu0 0.0
    %2934 = vmatpush1.msra.mxu0 0.0
    %2935 = vmatprep.subr.mxu0 0.0
    %2936 = vmatpush1.msra.mxu0 0.0
    %2937 = vmatprep.subr.mxu0 0.0
    %2938 = vmatpush1.msra.mxu0 0.0
    %2939 = vmatprep.subr.mxu0 0.0
    %2940 = vmatpush1.msra.mxu0 0.0
    %2941 = vmatprep.subr.mxu0 0.0
    %2942 = vmatpush1.msra.mxu0 0.0
    %2943 = vmatprep.subr.mxu0 0.0
    %2944 = vmatpush1.msra.mxu0 0.0
    %2945 = vmatprep.subr.mxu0 0.0
    %2946 = vmatpush1.msra.mxu0 0.0
    %2947 = vmatprep.subr.mxu0 0.0
    %2948 = vmatpush1.msra.mxu0 0.0
    %2949 = vmatprep.subr.mxu0 0.0
    %2950 = vmatpush1.msra.mxu0 0.0
    %2951 = vmatprep.subr.mxu0 0.0
    %2952 = vmatpush1.msra.mxu0 0.0
    %2953 = vmatprep.subr.mxu0 0.0
    %2954 = vmatpush1.msra.mxu0 0.0
    %2955 = vmatprep.subr.mxu0 0.0
    %2956 = vmatpush1.msra.mxu0 0.0
    %2957 = vmatprep.subr.mxu0 0.0
    %2958 = vmatpush1.msra.mxu0 0.0
    %2959 = vmatprep.mubr.f32.mxu0 0.0
    %2960 = vmatmul.mubr.f32.gmra.mrb[0].mxu0 %v2893
    %v2961 = vpop.f32.mrb[0].mxu0
    %v2962 = vadd.f32 %v373, %v2961
    %v2963 = vpop.f32.mrb[0].mxu0
    %2964 = vdwg.mxu0
    %v2965 = vmax.f32 %v2962, 0.0
    %vm2966 = vcmp.ne.f32.partialorder %v2962, %v2962
    %v2967 = vadd.f32 %v2962, 0.0
    %v2968 = vand.u32 2147483647, %v2962
    %v2969 = vsub.f32 0.0, %v2968
    %v2970 = vmul.f32 %v2969, 1.442695
    %v2971 = vpow.pop %v2970
    %v2972 = vadd.f32 %v2971, 1.0
    %v2973 = vlog2.pop %v2972
    %v2974 = vmul.f32 %v2973, 0.6931472
    %v2975 = vmul.f32 -0.5, %v2971
    %v2976 = vadd.f32 %v2975, 1.0
    %v2977 = vmul.f32 %v2976, %v2971
    %v2978 = vand.u32 2147483647, %v2971
    %vm2979 = vcmp.lt.f32.partialorder %v2978, 0.0004427343
    %v2980 = vsel %vm2979, %v2977, %v2974
    %v2981 = vadd.f32 %v2965, %v2980
    %v2982 = vsel %vm2966, %v2967, %v2981
    %2984 = vrot.lane.b32.xlu0 %v2962, 112
    %v2985 = vpop.permute.xlu0 %2984
    %v2987 = vsub.f32 %v2962, %v2985
    %2989 = vrot.lane.b32.xlu0 %v2982, 16
    %v2990 = vpop.permute.xlu0 %2989
    %v2992 = vrcp.pop %v2990
    %v2993 = vmul.f32 %v2982, %v2992
    %v2994 = vlog2.pop %v2993
    %v2995 = vmul.f32 %v2994, 0.6931472
    %v2996 = vmul.f32 %v2995, 2.0
    %v2997 = vmul.f32 %v2982, %v2982
    %v2998 = vmul.f32 %v2987, %v2987
    %v2999 = vadd.f32 %v2997, %v2998
    %3001 = vrot.lane.b32.xlu0 %v2997, 112
    %v3002 = vpop.permute.xlu0 %3001
    %v3004 = vrcp.pop %v3002
    %v3005 = vmul.f32 %v2999, %v3004
    %3007 = vrot.lane.b32.xlu0 %v3005, 16
    %v3008 = vpop.permute.xlu0 %3007
    %v3010 = vadd.f32 %v2996, %v3008
    %v3011 = vadd.f32 %v2252, %v3010
    %s3012 = scalar_lea.vmem %s1, 12
    %v3013 = vld [vmem:[%s3012] sm:$0xf]
    %v3014 = vmul.f32 %v3013, %v2982
    %v3015 = vadd.f32 %v3014, %v2962
    %v3017 = vsel %vm706, %v3015, 0
    %3019 = vmatprep.subr.mxu0 0.0
    %3020 = vmatpush1.msra.mxu0 %v704
    %3021 = vmatprep.subr.mxu0 0.0
    %3022 = vmatpush1.msra.mxu0 %v705
    %3023 = vmatprep.subr.mxu0 0.0
    %3024 = vmatpush1.msra.mxu0 0.0
    %3025 = vmatprep.subr.mxu0 0.0
    %3026 = vmatpush1.msra.mxu0 0.0
    %3027 = vmatprep.subr.mxu0 0.0
    %3028 = vmatpush1.msra.mxu0 0.0
    %3029 = vmatprep.subr.mxu0 0.0
    %3030 = vmatpush1.msra.mxu0 0.0
    %3031 = vmatprep.subr.mxu0 0.0
    %3032 = vmatpush1.msra.mxu0 0.0
    %3033 = vmatprep.subr.mxu0 0.0
    %3034 = vmatpush1.msra.mxu0 0.0
    %3035 = vmatprep.subr.mxu0 0.0
    %3036 = vmatpush1.msra.mxu0 0.0
    %3037 = vmatprep.subr.mxu0 0.0
    %3038 = vmatpush1.msra.mxu0 0.0
    %3039 = vmatprep.subr.mxu0 0.0
    %3040 = vmatpush1.msra.mxu0 0.0
    %3041 = vmatprep.subr.mxu0 0.0
    %3042 = vmatpush1.msra.mxu0 0.0
    %3043 = vmatprep.subr.mxu0 0.0
    %3044 = vmatpush1.msra.mxu0 0.0
    %3045 = vmatprep.subr.mxu0 0.0
    %3046 = vmatpush1.msra.mxu0 0.0
    %3047 = vmatprep.subr.mxu0 0.0
    %3048 = vmatpush1.msra.mxu0 0.0
    %3049 = vmatprep.subr.mxu0 0.0
    %3050 = vmatpush1.msra.mxu0 0.0
    %3051 = vmatprep.subr.mxu0 0.0
    %3052 = vmatpush1.msra.mxu0 0.0
    %3053 = vmatprep.subr.mxu0 0.0
    %3054 = vmatpush1.msra.mxu0 0.0
    %3055 = vmatprep.subr.mxu0 0.0
    %3056 = vmatpush1.msra.mxu0 0.0
    %3057 = vmatprep.subr.mxu0 0.0
    %3058 = vmatpush1.msra.mxu0 0.0
    %3059 = vmatprep.subr.mxu0 0.0
    %3060 = vmatpush1.msra.mxu0 0.0
    %3061 = vmatprep.subr.mxu0 0.0
    %3062 = vmatpush1.msra.mxu0 0.0
    %3063 = vmatprep.subr.mxu0 0.0
    %3064 = vmatpush1.msra.mxu0 0.0
    %3065 = vmatprep.subr.mxu0 0.0
    %3066 = vmatpush1.msra.mxu0 0.0
    %3067 = vmatprep.subr.mxu0 0.0
    %3068 = vmatpush1.msra.mxu0 0.0
    %3069 = vmatprep.subr.mxu0 0.0
    %3070 = vmatpush1.msra.mxu0 0.0
    %3071 = vmatprep.subr.mxu0 0.0
    %3072 = vmatpush1.msra.mxu0 0.0
    %3073 = vmatprep.subr.mxu0 0.0
    %3074 = vmatpush1.msra.mxu0 0.0
    %3075 = vmatprep.subr.mxu0 0.0
    %3076 = vmatpush1.msra.mxu0 0.0
    %3077 = vmatprep.subr.mxu0 0.0
    %3078 = vmatpush1.msra.mxu0 0.0
    %3079 = vmatprep.subr.mxu0 0.0
    %3080 = vmatpush1.msra.mxu0 0.0
    %3081 = vmatprep.subr.mxu0 0.0
    %3082 = vmatpush1.msra.mxu0 0.0
    %3083 = vmatprep.mubr.f32.mxu0 0.0
    %3084 = vmatmul.mubr.f32.gmra.mrb[0].mxu0 %v3017
    %v3085 = vpop.f32.mrb[0].mxu0
    %v3086 = vadd.f32 %v380, %v3085
    %v3087 = vpop.f32.mrb[0].mxu0
    %3088 = vdwg.mxu0
    %v3089 = vmax.f32 %v3086, 0.0
    %v3091 = vsel %vm423, %v3089, 0
    %3093 = vmatprep.subr.mxu0 0.0
    %3094 = vmatpush1.msra.mxu0 %v786
    %3095 = vmatprep.subr.mxu0 0.0
    %3096 = vmatpush1.msra.mxu0 %v787
    %3097 = vmatprep.subr.mxu0 0.0
    %3098 = vmatpush1.msra.mxu0 %v788
    %3099 = vmatprep.subr.mxu0 0.0
    %3100 = vmatpush1.msra.mxu0 %v789
    %3101 = vmatprep.subr.mxu0 0.0
    %3102 = vmatpush1.msra.mxu0 0.0
    %3103 = vmatprep.subr.mxu0 0.0
    %3104 = vmatpush1.msra.mxu0 0.0
    %3105 = vmatprep.subr.mxu0 0.0
    %3106 = vmatpush1.msra.mxu0 0.0
    %3107 = vmatprep.subr.mxu0 0.0
    %3108 = vmatpush1.msra.mxu0 0.0
    %3109 = vmatprep.subr.mxu0 0.0
    %3110 = vmatpush1.msra.mxu0 0.0
    %3111 = vmatprep.subr.mxu0 0.0
    %3112 = vmatpush1.msra.mxu0 0.0
    %3113 = vmatprep.subr.mxu0 0.0
    %3114 = vmatpush1.msra.mxu0 0.0
    %3115 = vmatprep.subr.mxu0 0.0
    %3116 = vmatpush1.msra.mxu0 0.0
    %3117 = vmatprep.subr.mxu0 0.0
    %3118 = vmatpush1.msra.mxu0 0.0
    %3119 = vmatprep.subr.mxu0 0.0
    %3120 = vmatpush1.msra.mxu0 0.0
    %3121 = vmatprep.subr.mxu0 0.0
    %3122 = vmatpush1.msra.mxu0 0.0
    %3123 = vmatprep.subr.mxu0 0.0
    %3124 = vmatpush1.msra.mxu0 0.0
    %3125 = vmatprep.subr.mxu0 0.0
    %3126 = vmatpush1.msra.mxu0 0.0
    %3127 = vmatprep.subr.mxu0 0.0
    %3128 = vmatpush1.msra.mxu0 0.0
    %3129 = vmatprep.subr.mxu0 0.0
    %3130 = vmatpush1.msra.mxu0 0.0
    %3131 = vmatprep.subr.mxu0 0.0
    %3132 = vmatpush1.msra.mxu0 0.0
    %3133 = vmatprep.subr.mxu0 0.0
    %3134 = vmatpush1.msra.mxu0 0.0
    %3135 = vmatprep.subr.mxu0 0.0
    %3136 = vmatpush1.msra.mxu0 0.0
    %3137 = vmatprep.subr.mxu0 0.0
    %3138 = vmatpush1.msra.mxu0 0.0
    %3139 = vmatprep.subr.mxu0 0.0
    %3140 = vmatpush1.msra.mxu0 0.0
    %3141 = vmatprep.subr.mxu0 0.0
    %3142 = vmatpush1.msra.mxu0 0.0
    %3143 = vmatprep.subr.mxu0 0.0
    %3144 = vmatpush1.msra.mxu0 0.0
    %3145 = vmatprep.subr.mxu0 0.0
    %3146 = vmatpush1.msra.mxu0 0.0
    %3147 = vmatprep.subr.mxu0 0.0
    %3148 = vmatpush1.msra.mxu0 0.0
    %3149 = vmatprep.subr.mxu0 0.0
    %3150 = vmatpush1.msra.mxu0 0.0
    %3151 = vmatprep.subr.mxu0 0.0
    %3152 = vmatpush1.msra.mxu0 0.0
    %3153 = vmatprep.subr.mxu0 0.0
    %3154 = vmatpush1.msra.mxu0 0.0
    %3155 = vmatprep.subr.mxu0 0.0
    %3156 = vmatpush1.msra.mxu0 0.0
    %3157 = vmatprep.mubr.f32.mxu0 0.0
    %3158 = vmatmul.mubr.f32.gmra.mrb[0].mxu0 %v3091
    %v3159 = vpop.f32.mrb[0].mxu0
    %v3160 = vadd.f32 0.0, %v3159
    %v3161 = vpop.f32.mrb[0].mxu0
    %3162 = vdwg.mxu0
    %3163 = vmatprep.subr.mxu0 0.0
    %3164 = vmatpush1.msra.mxu0 %v781
    %3165 = vmatprep.subr.mxu0 0.0
    %3166 = vmatpush1.msra.mxu0 %v782
    %3167 = vmatprep.subr.mxu0 0.0
    %3168 = vmatpush1.msra.mxu0 %v783
    %3169 = vmatprep.subr.mxu0 0.0
    %3170 = vmatpush1.msra.mxu0 %v784
    %3171 = vmatprep.subr.mxu0 0.0
    %3172 = vmatpush1.msra.mxu0 0.0
    %3173 = vmatprep.subr.mxu0 0.0
    %3174 = vmatpush1.msra.mxu0 0.0
    %3175 = vmatprep.subr.mxu0 0.0
    %3176 = vmatpush1.msra.mxu0 0.0
    %3177 = vmatprep.subr.mxu0 0.0
    %3178 = vmatpush1.msra.mxu0 0.0
    %3179 = vmatprep.subr.mxu0 0.0
    %3180 = vmatpush1.msra.mxu0 0.0
    %3181 = vmatprep.subr.mxu0 0.0
    %3182 = vmatpush1.msra.mxu0 0.0
    %3183 = vmatprep.subr.mxu0 0.0
    %3184 = vmatpush1.msra.mxu0 0.0
    %3185 = vmatprep.subr.mxu0 0.0
    %3186 = vmatpush1.msra.mxu0 0.0
    %3187 = vmatprep.subr.mxu0 0.0
    %3188 = vmatpush1.msra.mxu0 0.0
    %3189 = vmatprep.subr.mxu0 0.0
    %3190 = vmatpush1.msra.mxu0 0.0
    %3191 = vmatprep.subr.mxu0 0.0
    %3192 = vmatpush1.msra.mxu0 0.0
    %3193 = vmatprep.subr.mxu0 0.0
    %3194 = vmatpush1.msra.mxu0 0.0
    %3195 = vmatprep.subr.mxu0 0.0
    %3196 = vmatpush1.msra.mxu0 0.0
    %3197 = vmatprep.subr.mxu0 0.0
    %3198 = vmatpush1.msra.mxu0 0.0
    %3199 = vmatprep.subr.mxu0 0.0
    %3200 = vmatpush1.msra.mxu0 0.0
    %3201 = vmatprep.subr.mxu0 0.0
    %3202 = vmatpush1.msra.mxu0 0.0
    %3203 = vmatprep.subr.mxu0 0.0
    %3204 = vmatpush1.msra.mxu0 0.0
    %3205 = vmatprep.subr.mxu0 0.0
    %3206 = vmatpush1.msra.mxu0 0.0
    %3207 = vmatprep.subr.mxu0 0.0
    %3208 = vmatpush1.msra.mxu0 0.0
    %3209 = vmatprep.subr.mxu0 0.0
    %3210 = vmatpush1.msra.mxu0 0.0
    %3211 = vmatprep.subr.mxu0 0.0
    %3212 = vmatpush1.msra.mxu0 0.0
    %3213 = vmatprep.subr.mxu0 0.0
    %3214 = vmatpush1.msra.mxu0 0.0
    %3215 = vmatprep.subr.mxu0 0.0
    %3216 = vmatpush1.msra.mxu0 0.0
    %3217 = vmatprep.subr.mxu0 0.0
    %3218 = vmatpush1.msra.mxu0 0.0
    %3219 = vmatprep.subr.mxu0 0.0
    %3220 = vmatpush1.msra.mxu0 0.0
    %3221 = vmatprep.subr.mxu0 0.0
    %3222 = vmatpush1.msra.mxu0 0.0
    %3223 = vmatprep.subr.mxu0 0.0
    %3224 = vmatpush1.msra.mxu0 0.0
    %3225 = vmatprep.subr.mxu0 0.0
    %3226 = vmatpush1.msra.mxu0 0.0
    %3227 = vmatprep.mubr.f32.mxu0 0.0
    %3228 = vmatmul.mubr.f32.gmra.mrb[0].mxu0 %v2818
    %v3229 = vpop.f32.mrb[0].mxu0
    %v3230 = vadd.f32 %v3160, %v3229
    %v3231 = vpop.f32.mrb[0].mxu0
    %3232 = vdwg.mxu0
    %v3233 = vadd.f32 %v3230, %v387
    %3234 = vmatprep.subr.mxu0 0.0
    %3235 = vmatpush1.msra.mxu0 %v934
    %3236 = vmatprep.subr.mxu0 0.0
    %3237 = vmatpush1.msra.mxu0 %v935
    %3238 = vmatprep.subr.mxu0 0.0
    %3239 = vmatpush1.msra.mxu0 %v936
    %3240 = vmatprep.subr.mxu0 0.0
    %3241 = vmatpush1.msra.mxu0 %v937
    %3242 = vmatprep.subr.mxu0 0.0
    %3243 = vmatpush1.msra.mxu0 0.0
    %3244 = vmatprep.subr.mxu0 0.0
    %3245 = vmatpush1.msra.mxu0 0.0
    %3246 = vmatprep.subr.mxu0 0.0
    %3247 = vmatpush1.msra.mxu0 0.0
    %3248 = vmatprep.subr.mxu0 0.0
    %3249 = vmatpush1.msra.mxu0 0.0
    %3250 = vmatprep.subr.mxu0 0.0
    %3251 = vmatpush1.msra.mxu0 0.0
    %3252 = vmatprep.subr.mxu0 0.0
    %3253 = vmatpush1.msra.mxu0 0.0
    %3254 = vmatprep.subr.mxu0 0.0
    %3255 = vmatpush1.msra.mxu0 0.0
    %3256 = vmatprep.subr.mxu0 0.0
    %3257 = vmatpush1.msra.mxu0 0.0
    %3258 = vmatprep.subr.mxu0 0.0
    %3259 = vmatpush1.msra.mxu0 0.0
    %3260 = vmatprep.subr.mxu0 0.0
    %3261 = vmatpush1.msra.mxu0 0.0
    %3262 = vmatprep.subr.mxu0 0.0
    %3263 = vmatpush1.msra.mxu0 0.0
    %3264 = vmatprep.subr.mxu0 0.0
    %3265 = vmatpush1.msra.mxu0 0.0
    %3266 = vmatprep.subr.mxu0 0.0
    %3267 = vmatpush1.msra.mxu0 0.0
    %3268 = vmatprep.subr.mxu0 0.0
    %3269 = vmatpush1.msra.mxu0 0.0
    %3270 = vmatprep.subr.mxu0 0.0
    %3271 = vmatpush1.msra.mxu0 0.0
    %3272 = vmatprep.subr.mxu0 0.0
    %3273 = vmatpush1.msra.mxu0 0.0
    %3274 = vmatprep.subr.mxu0 0.0
    %3275 = vmatpush1.msra.mxu0 0.0
    %3276 = vmatprep.subr.mxu0 0.0
    %3277 = vmatpush1.msra.mxu0 0.0
    %3278 = vmatprep.subr.mxu0 0.0
    %3279 = vmatpush1.msra.mxu0 0.0
    %3280 = vmatprep.subr.mxu0 0.0
    %3281 = vmatpush1.msra.mxu0 0.0
    %3282 = vmatprep.subr.mxu0 0.0
    %3283 = vmatpush1.msra.mxu0 0.0
    %3284 = vmatprep.subr.mxu0 0.0
    %3285 = vmatpush1.msra.mxu0 0.0
    %3286 = vmatprep.subr.mxu0 0.0
    %3287 = vmatpush1.msra.mxu0 0.0
    %3288 = vmatprep.subr.mxu0 0.0
    %3289 = vmatpush1.msra.mxu0 0.0
    %3290 = vmatprep.subr.mxu0 0.0
    %3291 = vmatpush1.msra.mxu0 0.0
    %3292 = vmatprep.subr.mxu0 0.0
    %3293 = vmatpush1.msra.mxu0 0.0
    %3294 = vmatprep.subr.mxu0 0.0
    %3295 = vmatpush1.msra.mxu0 0.0
    %3296 = vmatprep.subr.mxu0 0.0
    %3297 = vmatpush1.msra.mxu0 0.0
    %3298 = vmatprep.mubr.f32.mxu0 0.0
    %3299 = vmatmul.mubr.f32.gmra.mrb[0].mxu0 %v2574
    %v3300 = vpop.f32.mrb[0].mxu0
    %v3301 = vadd.f32 %v402, %v3300
    %v3302 = vpop.f32.mrb[0].mxu0
    %3303 = vdwg.mxu0
    %v3304 = vadd.f32 %v3233, %v3301
    %v3305 = vxor.u32 %v3304, 2147483648
    %v3306 = vmul.f32 %v3305, 1.442695
    %v3307 = vpow.pop %v3306
    %v3308 = vadd.f32 %v3307, 1.0
    %v3309 = vrcp.pop %v3308
    %v3310 = vmul.f32 1.0, %v3309
    %3312 = vrot.lane.b32.xlu0 %v3301, 64
    %v3313 = vpop.permute.xlu0 %3312
    %v3315 = vmul.f32 %v3310, %v3313
    %3317 = vrot.lane.b32.xlu0 %v3315, 64
    %v3318 = vpop.permute.xlu0 %3317
    %v3320 = vadd.f32 %v3233, %v3318
    %v3321 = vtanh.pop %v3320
    %v3322 = vsub.f32 1.0, %v3310
    %3324 = vrot.lane.b32.xlu0 %v3321, 96
    %v3325 = vpop.permute.xlu0 %3324
    %v3327 = vmul.f32 %v3322, %v3325
    %v3328 = vmul.f32 %v3310, %v2570
    %v3329 = vadd.f32 %v3327, %v3328
    %3331 = vrot.lane.b32.xlu0 %v3329, 96
    %v3332 = vpop.permute.xlu0 %3331
    %v3333 = vsel %vm423, %v3332, 0
    %3335 = vmatprep.subr.mxu0 0.0
    %3336 = vmatpush1.msra.mxu0 %v1041
    %3337 = vmatprep.subr.mxu0 0.0
    %3338 = vmatpush1.msra.mxu0 %v1042
    %3339 = vmatprep.subr.mxu0 0.0
    %3340 = vmatpush1.msra.mxu0 %v1043
    %3341 = vmatprep.subr.mxu0 0.0
    %3342 = vmatpush1.msra.mxu0 %v1044
    %3343 = vmatprep.subr.mxu0 0.0
    %3344 = vmatpush1.msra.mxu0 0.0
    %3345 = vmatprep.subr.mxu0 0.0
    %3346 = vmatpush1.msra.mxu0 0.0
    %3347 = vmatprep.subr.mxu0 0.0
    %3348 = vmatpush1.msra.mxu0 0.0
    %3349 = vmatprep.subr.mxu0 0.0
    %3350 = vmatpush1.msra.mxu0 0.0
    %3351 = vmatprep.subr.mxu0 0.0
    %3352 = vmatpush1.msra.mxu0 0.0
    %3353 = vmatprep.subr.mxu0 0.0
    %3354 = vmatpush1.msra.mxu0 0.0
    %3355 = vmatprep.subr.mxu0 0.0
    %3356 = vmatpush1.msra.mxu0 0.0
    %3357 = vmatprep.subr.mxu0 0.0
    %3358 = vmatpush1.msra.mxu0 0.0
    %3359 = vmatprep.subr.mxu0 0.0
    %3360 = vmatpush1.msra.mxu0 0.0
    %3361 = vmatprep.subr.mxu0 0.0
    %3362 = vmatpush1.msra.mxu0 0.0
    %3363 = vmatprep.subr.mxu0 0.0
    %3364 = vmatpush1.msra.mxu0 0.0
    %3365 = vmatprep.subr.mxu0 0.0
    %3366 = vmatpush1.msra.mxu0 0.0
    %3367 = vmatprep.subr.mxu0 0.0
    %3368 = vmatpush1.msra.mxu0 0.0
    %3369 = vmatprep.subr.mxu0 0.0
    %3370 = vmatpush1.msra.mxu0 0.0
    %3371 = vmatprep.subr.mxu0 0.0
    %3372 = vmatpush1.msra.mxu0 0.0
    %3373 = vmatprep.subr.mxu0 0.0
    %3374 = vmatpush1.msra.mxu0 0.0
    %3375 = vmatprep.subr.mxu0 0.0
    %3376 = vmatpush1.msra.mxu0 0.0
    %3377 = vmatprep.subr.mxu0 0.0
    %3378 = vmatpush1.msra.mxu0 0.0
    %3379 = vmatprep.subr.mxu0 0.0
    %3380 = vmatpush1.msra.mxu0 0.0
    %3381 = vmatprep.subr.mxu0 0.0
    %3382 = vmatpush1.msra.mxu0 0.0
    %3383 = vmatprep.subr.mxu0 0.0
    %3384 = vmatpush1.msra.mxu0 0.0
    %3385 = vmatprep.subr.mxu0 0.0
    %3386 = vmatpush1.msra.mxu0 0.0
    %3387 = vmatprep.subr.mxu0 0.0
    %3388 = vmatpush1.msra.mxu0 0.0
    %3389 = vmatprep.subr.mxu0 0.0
    %3390 = vmatpush1.msra.mxu0 0.0
    %3391 = vmatprep.subr.mxu0 0.0
    %3392 = vmatpush1.msra.mxu0 0.0
    %3393 = vmatprep.subr.mxu0 0.0
    %3394 = vmatpush1.msra.mxu0 0.0
    %3395 = vmatprep.subr.mxu0 0.0
    %3396 = vmatpush1.msra.mxu0 0.0
    %3397 = vmatprep.subr.mxu0 0.0
    %3398 = vmatpush1.msra.mxu0 0.0
    %3399 = vmatprep.mubr.f32.mxu0 0.0
    %3400 = vmatmul.mubr.f32.gmra.mrb[0].mxu0 %v3333
    %v3401 = vpop.f32.mrb[0].mxu0
    %v3402 = vadd.f32 %v395, %v3401
    %v3403 = vpop.f32.mrb[0].mxu0
    %3404 = vdwg.mxu0
    %3405 = vmatprep.subr.mxu0 0.0
    %3406 = vmatpush1.msra.mxu0 %v1121
    %3407 = vmatprep.subr.mxu0 0.0
    %3408 = vmatpush1.msra.mxu0 %v1122
    %3409 = vmatprep.subr.mxu0 0.0
    %3410 = vmatpush1.msra.mxu0 %v1123
    %3411 = vmatprep.subr.mxu0 0.0
    %3412 = vmatpush1.msra.mxu0 %v1124
    %3413 = vmatprep.subr.mxu0 0.0
    %3414 = vmatpush1.msra.mxu0 0.0
    %3415 = vmatprep.subr.mxu0 0.0
    %3416 = vmatpush1.msra.mxu0 0.0
    %3417 = vmatprep.subr.mxu0 0.0
    %3418 = vmatpush1.msra.mxu0 0.0
    %3419 = vmatprep.subr.mxu0 0.0
    %3420 = vmatpush1.msra.mxu0 0.0
    %3421 = vmatprep.subr.mxu0 0.0
    %3422 = vmatpush1.msra.mxu0 0.0
    %3423 = vmatprep.subr.mxu0 0.0
    %3424 = vmatpush1.msra.mxu0 0.0
    %3425 = vmatprep.subr.mxu0 0.0
    %3426 = vmatpush1.msra.mxu0 0.0
    %3427 = vmatprep.subr.mxu0 0.0
    %3428 = vmatpush1.msra.mxu0 0.0
    %3429 = vmatprep.subr.mxu0 0.0
    %3430 = vmatpush1.msra.mxu0 0.0
    %3431 = vmatprep.subr.mxu0 0.0
    %3432 = vmatpush1.msra.mxu0 0.0
    %3433 = vmatprep.subr.mxu0 0.0
    %3434 = vmatpush1.msra.mxu0 0.0
    %3435 = vmatprep.subr.mxu0 0.0
    %3436 = vmatpush1.msra.mxu0 0.0
    %3437 = vmatprep.subr.mxu0 0.0
    %3438 = vmatpush1.msra.mxu0 0.0
    %3439 = vmatprep.subr.mxu0 0.0
    %3440 = vmatpush1.msra.mxu0 0.0
    %3441 = vmatprep.subr.mxu0 0.0
    %3442 = vmatpush1.msra.mxu0 0.0
    %3443 = vmatprep.subr.mxu0 0.0
    %3444 = vmatpush1.msra.mxu0 0.0
    %3445 = vmatprep.subr.mxu0 0.0
    %3446 = vmatpush1.msra.mxu0 0.0
    %3447 = vmatprep.subr.mxu0 0.0
    %3448 = vmatpush1.msra.mxu0 0.0
    %3449 = vmatprep.subr.mxu0 0.0
    %3450 = vmatpush1.msra.mxu0 0.0
    %3451 = vmatprep.subr.mxu0 0.0
    %3452 = vmatpush1.msra.mxu0 0.0
    %3453 = vmatprep.subr.mxu0 0.0
    %3454 = vmatpush1.msra.mxu0 0.0
    %3455 = vmatprep.subr.mxu0 0.0
    %3456 = vmatpush1.msra.mxu0 0.0
    %3457 = vmatprep.subr.mxu0 0.0
    %3458 = vmatpush1.msra.mxu0 0.0
    %3459 = vmatprep.subr.mxu0 0.0
    %3460 = vmatpush1.msra.mxu0 0.0
    %3461 = vmatprep.subr.mxu0 0.0
    %3462 = vmatpush1.msra.mxu0 0.0
    %3463 = vmatprep.subr.mxu0 0.0
    %3464 = vmatpush1.msra.mxu0 0.0
    %3465 = vmatprep.subr.mxu0 0.0
    %3466 = vmatpush1.msra.mxu0 0.0
    %3467 = vmatprep.subr.mxu0 0.0
    %3468 = vmatpush1.msra.mxu0 0.0
    %3469 = vmatprep.mubr.f32.mxu0 0.0
    %3470 = vmatmul.mubr.f32.gmra.mrb[0].mxu0 %v2745
    %v3471 = vpop.f32.mrb[0].mxu0
    %v3472 = vadd.f32 %v410, %v3471
    %v3473 = vpop.f32.mrb[0].mxu0
    %3474 = vdwg.mxu0
    %v3475 = vadd.f32 %v3402, %v3472
    %v3476 = vxor.u32 %v3475, 2147483648
    %v3477 = vmul.f32 %v3476, 1.442695
    %v3478 = vpow.pop %v3477
    %v3479 = vadd.f32 %v3478, 1.0
    %v3480 = vrcp.pop %v3479
    %v3481 = vmul.f32 1.0, %v3480
    %3483 = vrot.lane.b32.xlu0 %v3472, 64
    %v3484 = vpop.permute.xlu0 %3483
    %v3486 = vmul.f32 %v3481, %v3484
    %3488 = vrot.lane.b32.xlu0 %v3486, 64
    %v3489 = vpop.permute.xlu0 %3488
    %v3491 = vadd.f32 %v3402, %v3489
    %v3492 = vtanh.pop %v3491
    %v3493 = vsub.f32 1.0, %v3481
    %3495 = vrot.lane.b32.xlu0 %v3492, 96
    %v3496 = vpop.permute.xlu0 %3495
    %v3498 = vmul.f32 %v3493, %v3496
    %v3499 = vmul.f32 %v3481, %v2741
    %v3500 = vadd.f32 %v3498, %v3499
    %3502 = vrot.lane.b32.xlu0 %v3500, 96
    %v3503 = vpop.permute.xlu0 %3502
    %v3504 = vsel %vm423, %v3503, 0
    %3506 = vmatprep.subr.mxu0 0.0
    %3507 = vmatpush1.msra.mxu0 %v419
    %3508 = vmatprep.subr.mxu0 0.0
    %3509 = vmatpush1.msra.mxu0 %v420
    %3510 = vmatprep.subr.mxu0 0.0
    %3511 = vmatpush1.msra.mxu0 %v421
    %3512 = vmatprep.subr.mxu0 0.0
    %3513 = vmatpush1.msra.mxu0 %v422
    %3514 = vmatprep.subr.mxu0 0.0
    %3515 = vmatpush1.msra.mxu0 0.0
    %3516 = vmatprep.subr.mxu0 0.0
    %3517 = vmatpush1.msra.mxu0 0.0
    %3518 = vmatprep.subr.mxu0 0.0
    %3519 = vmatpush1.msra.mxu0 0.0
    %3520 = vmatprep.subr.mxu0 0.0
    %3521 = vmatpush1.msra.mxu0 0.0
    %3522 = vmatprep.subr.mxu0 0.0
    %3523 = vmatpush1.msra.mxu0 0.0
    %3524 = vmatprep.subr.mxu0 0.0
    %3525 = vmatpush1.msra.mxu0 0.0
    %3526 = vmatprep.subr.mxu0 0.0
    %3527 = vmatpush1.msra.mxu0 0.0
    %3528 = vmatprep.subr.mxu0 0.0
    %3529 = vmatpush1.msra.mxu0 0.0
    %3530 = vmatprep.subr.mxu0 0.0
    %3531 = vmatpush1.msra.mxu0 0.0
    %3532 = vmatprep.subr.mxu0 0.0
    %3533 = vmatpush1.msra.mxu0 0.0
    %3534 = vmatprep.subr.mxu0 0.0
    %3535 = vmatpush1.msra.mxu0 0.0
    %3536 = vmatprep.subr.mxu0 0.0
    %3537 = vmatpush1.msra.mxu0 0.0
    %3538 = vmatprep.subr.mxu0 0.0
    %3539 = vmatpush1.msra.mxu0 0.0
    %3540 = vmatprep.subr.mxu0 0.0
    %3541 = vmatpush1.msra.mxu0 0.0
    %3542 = vmatprep.subr.mxu0 0.0
    %3543 = vmatpush1.msra.mxu0 0.0
    %3544 = vmatprep.subr.mxu0 0.0
    %3545 = vmatpush1.msra.mxu0 0.0
    %3546 = vmatprep.subr.mxu0 0.0
    %3547 = vmatpush1.msra.mxu0 0.0
    %3548 = vmatprep.subr.mxu0 0.0
    %3549 = vmatpush1.msra.mxu0 0.0
    %3550 = vmatprep.subr.mxu0 0.0
    %3551 = vmatpush1.msra.mxu0 0.0
    %3552 = vmatprep.subr.mxu0 0.0
    %3553 = vmatpush1.msra.mxu0 0.0
    %3554 = vmatprep.subr.mxu0 0.0
    %3555 = vmatpush1.msra.mxu0 0.0
    %3556 = vmatprep.subr.mxu0 0.0
    %3557 = vmatpush1.msra.mxu0 0.0
    %3558 = vmatprep.subr.mxu0 0.0
    %3559 = vmatpush1.msra.mxu0 0.0
    %3560 = vmatprep.subr.mxu0 0.0
    %3561 = vmatpush1.msra.mxu0 0.0
    %3562 = vmatprep.subr.mxu0 0.0
    %3563 = vmatpush1.msra.mxu0 0.0
    %3564 = vmatprep.subr.mxu0 0.0
    %3565 = vmatpush1.msra.mxu0 0.0
    %3566 = vmatprep.subr.mxu0 0.0
    %3567 = vmatpush1.msra.mxu0 0.0
    %3568 = vmatprep.subr.mxu0 0.0
    %3569 = vmatpush1.msra.mxu0 0.0
    %3570 = vmatprep.mubr.f32.mxu0 0.0
    %3571 = vmatmul.mubr.f32.gmra.mrb[0].mxu0 %v3504
    %v3572 = vpop.f32.mrb[0].mxu0
    %v3573 = vadd.f32 0.0, %v3572
    %v3574 = vpop.f32.mrb[0].mxu0
    %3575 = vdwg.mxu0
    %v3577 = vsel %vm423, %v360, 0
    %3579 = vmatprep.subr.mxu0 0.0
    %3580 = vmatpush1.msra.mxu0 %v415
    %3581 = vmatprep.subr.mxu0 0.0
    %3582 = vmatpush1.msra.mxu0 %v416
    %3583 = vmatprep.subr.mxu0 0.0
    %3584 = vmatpush1.msra.mxu0 %v417
    %3585 = vmatprep.subr.mxu0 0.0
    %3586 = vmatpush1.msra.mxu0 %v418
    %3587 = vmatprep.subr.mxu0 0.0
    %3588 = vmatpush1.msra.mxu0 0.0
    %3589 = vmatprep.subr.mxu0 0.0
    %3590 = vmatpush1.msra.mxu0 0.0
    %3591 = vmatprep.subr.mxu0 0.0
    %3592 = vmatpush1.msra.mxu0 0.0
    %3593 = vmatprep.subr.mxu0 0.0
    %3594 = vmatpush1.msra.mxu0 0.0
    %3595 = vmatprep.subr.mxu0 0.0
    %3596 = vmatpush1.msra.mxu0 0.0
    %3597 = vmatprep.subr.mxu0 0.0
    %3598 = vmatpush1.msra.mxu0 0.0
    %3599 = vmatprep.subr.mxu0 0.0
    %3600 = vmatpush1.msra.mxu0 0.0
    %3601 = vmatprep.subr.mxu0 0.0
    %3602 = vmatpush1.msra.mxu0 0.0
    %3603 = vmatprep.subr.mxu0 0.0
    %3604 = vmatpush1.msra.mxu0 0.0
    %3605 = vmatprep.subr.mxu0 0.0
    %3606 = vmatpush1.msra.mxu0 0.0
    %3607 = vmatprep.subr.mxu0 0.0
    %3608 = vmatpush1.msra.mxu0 0.0
    %3609 = vmatprep.subr.mxu0 0.0
    %3610 = vmatpush1.msra.mxu0 0.0
    %3611 = vmatprep.subr.mxu0 0.0
    %3612 = vmatpush1.msra.mxu0 0.0
    %3613 = vmatprep.subr.mxu0 0.0
    %3614 = vmatpush1.msra.mxu0 0.0
    %3615 = vmatprep.subr.mxu0 0.0
    %3616 = vmatpush1.msra.mxu0 0.0
    %3617 = vmatprep.subr.mxu0 0.0
    %3618 = vmatpush1.msra.mxu0 0.0
    %3619 = vmatprep.subr.mxu0 0.0
    %3620 = vmatpush1.msra.mxu0 0.0
    %3621 = vmatprep.subr.mxu0 0.0
    %3622 = vmatpush1.msra.mxu0 0.0
    %3623 = vmatprep.subr.mxu0 0.0
    %3624 = vmatpush1.msra.mxu0 0.0
    %3625 = vmatprep.subr.mxu0 0.0
    %3626 = vmatpush1.msra.mxu0 0.0
    %3627 = vmatprep.subr.mxu0 0.0
    %3628 = vmatpush1.msra.mxu0 0.0
    %3629 = vmatprep.subr.mxu0 0.0
    %3630 = vmatpush1.msra.mxu0 0.0
    %3631 = vmatprep.subr.mxu0 0.0
    %3632 = vmatpush1.msra.mxu0 0.0
    %3633 = vmatprep.subr.mxu0 0.0
    %3634 = vmatpush1.msra.mxu0 0.0
    %3635 = vmatprep.subr.mxu0 0.0
    %3636 = vmatpush1.msra.mxu0 0.0
    %3637 = vmatprep.subr.mxu0 0.0
    %3638 = vmatpush1.msra.mxu0 0.0
    %3639 = vmatprep.subr.mxu0 0.0
    %3640 = vmatpush1.msra.mxu0 0.0
    %3641 = vmatprep.subr.mxu0 0.0
    %3642 = vmatpush1.msra.mxu0 0.0
    %3643 = vmatprep.mubr.f32.mxu0 0.0
    %3644 = vmatmul.mubr.f32.gmra.mrb[0].mxu0 %v3577
    %v3645 = vpop.f32.mrb[0].mxu0
    %v3646 = vadd.f32 %v3573, %v3645
    %v3647 = vpop.f32.mrb[0].mxu0
    %3648 = vdwg.mxu0
    %v3649 = vadd.f32 %v3646, %v366
    %v3650 = vmax.f32 %v3649, 0.0
    %v3652 = vsel %vm580, %v3650, 0
    %3654 = vmatprep.subr.mxu0 0.0
    %3655 = vmatpush1.msra.mxu0 %v572
    %3656 = vmatprep.subr.mxu0 0.0
    %3657 = vmatpush1.msra.mxu0 %v573
    %3658 = vmatprep.subr.mxu0 0.0
    %3659 = vmatpush1.msra.mxu0 %v574
    %3660 = vmatprep.subr.mxu0 0.0
    %3661 = vmatpush1.msra.mxu0 %v575
    %3662 = vmatprep.subr.mxu0 0.0
    %3663 = vmatpush1.msra.mxu0 %v576
    %3664 = vmatprep.subr.mxu0 0.0
    %3665 = vmatpush1.msra.mxu0 %v577
    %3666 = vmatprep.subr.mxu0 0.0
    %3667 = vmatpush1.msra.mxu0 %v578
    %3668 = vmatprep.subr.mxu0 0.0
    %3669 = vmatpush1.msra.mxu0 %v579
    %3670 = vmatprep.subr.mxu0 0.0
    %3671 = vmatpush1.msra.mxu0 0.0
    %3672 = vmatprep.subr.mxu0 0.0
    %3673 = vmatpush1.msra.mxu0 0.0
    %3674 = vmatprep.subr.mxu0 0.0
    %3675 = vmatpush1.msra.mxu0 0.0
    %3676 = vmatprep.subr.mxu0 0.0
    %3677 = vmatpush1.msra.mxu0 0.0
    %3678 = vmatprep.subr.mxu0 0.0
    %3679 = vmatpush1.msra.mxu0 0.0
    %3680 = vmatprep.subr.mxu0 0.0
    %3681 = vmatpush1.msra.mxu0 0.0
    %3682 = vmatprep.subr.mxu0 0.0
    %3683 = vmatpush1.msra.mxu0 0.0
    %3684 = vmatprep.subr.mxu0 0.0
    %3685 = vmatpush1.msra.mxu0 0.0
    %3686 = vmatprep.subr.mxu0 0.0
    %3687 = vmatpush1.msra.mxu0 0.0
    %3688 = vmatprep.subr.mxu0 0.0
    %3689 = vmatpush1.msra.mxu0 0.0
    %3690 = vmatprep.subr.mxu0 0.0
    %3691 = vmatpush1.msra.mxu0 0.0
    %3692 = vmatprep.subr.mxu0 0.0
    %3693 = vmatpush1.msra.mxu0 0.0
    %3694 = vmatprep.subr.mxu0 0.0
    %3695 = vmatpush1.msra.mxu0 0.0
    %3696 = vmatprep.subr.mxu0 0.0
    %3697 = vmatpush1.msra.mxu0 0.0
    %3698 = vmatprep.subr.mxu0 0.0
    %3699 = vmatpush1.msra.mxu0 0.0
    %3700 = vmatprep.subr.mxu0 0.0
    %3701 = vmatpush1.msra.mxu0 0.0
    %3702 = vmatprep.subr.mxu0 0.0
    %3703 = vmatpush1.msra.mxu0 0.0
    %3704 = vmatprep.subr.mxu0 0.0
    %3705 = vmatpush1.msra.mxu0 0.0
    %3706 = vmatprep.subr.mxu0 0.0
    %3707 = vmatpush1.msra.mxu0 0.0
    %3708 = vmatprep.subr.mxu0 0.0
    %3709 = vmatpush1.msra.mxu0 0.0
    %3710 = vmatprep.subr.mxu0 0.0
    %3711 = vmatpush1.msra.mxu0 0.0
    %3712 = vmatprep.subr.mxu0 0.0
    %3713 = vmatpush1.msra.mxu0 0.0
    %3714 = vmatprep.subr.mxu0 0.0
    %3715 = vmatpush1.msra.mxu0 0.0
    %3716 = vmatprep.subr.mxu0 0.0
    %3717 = vmatpush1.msra.mxu0 0.0
    %3718 = vmatprep.mubr.f32.mxu0 0.0
    %3719 = vmatmul.mubr.f32.gmra.mrb[0].mxu0 %v3652
    %v3720 = vpop.f32.mrb[0].mxu0
    %v3721 = vadd.f32 %v373, %v3720
    %v3722 = vpop.f32.mrb[0].mxu0
    %3723 = vdwg.mxu0
    %v3724 = vmax.f32 %v3721, 0.0
    %vm3725 = vcmp.ne.f32.partialorder %v3721, %v3721
    %v3726 = vadd.f32 %v3721, 0.0
    %v3727 = vand.u32 2147483647, %v3721
    %v3728 = vsub.f32 0.0, %v3727
    %v3729 = vmul.f32 %v3728, 1.442695
    %v3730 = vpow.pop %v3729
    %v3731 = vadd.f32 %v3730, 1.0
    %v3732 = vlog2.pop %v3731
    %v3733 = vmul.f32 %v3732, 0.6931472
    %v3734 = vmul.f32 -0.5, %v3730
    %v3735 = vadd.f32 %v3734, 1.0
    %v3736 = vmul.f32 %v3735, %v3730
    %v3737 = vand.u32 2147483647, %v3730
    %vm3738 = vcmp.lt.f32.partialorder %v3737, 0.0004427343
    %v3739 = vsel %vm3738, %v3736, %v3733
    %v3740 = vadd.f32 %v3724, %v3739
    %v3741 = vsel %vm3725, %v3726, %v3740
    %3743 = vrot.lane.b32.xlu0 %v3721, 112
    %v3744 = vpop.permute.xlu0 %3743
    %v3746 = vsub.f32 %v3721, %v3744
    %3748 = vrot.lane.b32.xlu0 %v3741, 16
    %v3749 = vpop.permute.xlu0 %3748
    %v3751 = vrcp.pop %v3749
    %v3752 = vmul.f32 %v3741, %v3751
    %v3753 = vlog2.pop %v3752
    %v3754 = vmul.f32 %v3753, 0.6931472
    %v3755 = vmul.f32 %v3754, 2.0
    %v3756 = vmul.f32 %v3741, %v3741
    %v3757 = vmul.f32 %v3746, %v3746
    %v3758 = vadd.f32 %v3756, %v3757
    %3760 = vrot.lane.b32.xlu0 %v3756, 112
    %v3761 = vpop.permute.xlu0 %3760
    %v3763 = vrcp.pop %v3761
    %v3764 = vmul.f32 %v3758, %v3763
    %3766 = vrot.lane.b32.xlu0 %v3764, 16
    %v3767 = vpop.permute.xlu0 %3766
    %v3769 = vadd.f32 %v3755, %v3767
    %v3770 = vadd.f32 %v3011, %v3769
    %s3771 = scalar_lea.vmem %s1, 16
    %v3772 = vld [vmem:[%s3771] sm:$0xf]
    %v3773 = vmul.f32 %v3772, %v3741
    %v3774 = vadd.f32 %v3773, %v3721
    %v3776 = vsel %vm706, %v3774, 0
    %3778 = vmatprep.subr.mxu0 0.0
    %3779 = vmatpush1.msra.mxu0 %v704
    %3780 = vmatprep.subr.mxu0 0.0
    %3781 = vmatpush1.msra.mxu0 %v705
    %3782 = vmatprep.subr.mxu0 0.0
    %3783 = vmatpush1.msra.mxu0 0.0
    %3784 = vmatprep.subr.mxu0 0.0
    %3785 = vmatpush1.msra.mxu0 0.0
    %3786 = vmatprep.subr.mxu0 0.0
    %3787 = vmatpush1.msra.mxu0 0.0
    %3788 = vmatprep.subr.mxu0 0.0
    %3789 = vmatpush1.msra.mxu0 0.0
    %3790 = vmatprep.subr.mxu0 0.0
    %3791 = vmatpush1.msra.mxu0 0.0
    %3792 = vmatprep.subr.mxu0 0.0
    %3793 = vmatpush1.msra.mxu0 0.0
    %3794 = vmatprep.subr.mxu0 0.0
    %3795 = vmatpush1.msra.mxu0 0.0
    %3796 = vmatprep.subr.mxu0 0.0
    %3797 = vmatpush1.msra.mxu0 0.0
    %3798 = vmatprep.subr.mxu0 0.0
    %3799 = vmatpush1.msra.mxu0 0.0
    %3800 = vmatprep.subr.mxu0 0.0
    %3801 = vmatpush1.msra.mxu0 0.0
    %3802 = vmatprep.subr.mxu0 0.0
    %3803 = vmatpush1.msra.mxu0 0.0
    %3804 = vmatprep.subr.mxu0 0.0
    %3805 = vmatpush1.msra.mxu0 0.0
    %3806 = vmatprep.subr.mxu0 0.0
    %3807 = vmatpush1.msra.mxu0 0.0
    %3808 = vmatprep.subr.mxu0 0.0
    %3809 = vmatpush1.msra.mxu0 0.0
    %3810 = vmatprep.subr.mxu0 0.0
    %3811 = vmatpush1.msra.mxu0 0.0
    %3812 = vmatprep.subr.mxu0 0.0
    %3813 = vmatpush1.msra.mxu0 0.0
    %3814 = vmatprep.subr.mxu0 0.0
    %3815 = vmatpush1.msra.mxu0 0.0
    %3816 = vmatprep.subr.mxu0 0.0
    %3817 = vmatpush1.msra.mxu0 0.0
    %3818 = vmatprep.subr.mxu0 0.0
    %3819 = vmatpush1.msra.mxu0 0.0
    %3820 = vmatprep.subr.mxu0 0.0
    %3821 = vmatpush1.msra.mxu0 0.0
    %3822 = vmatprep.subr.mxu0 0.0
    %3823 = vmatpush1.msra.mxu0 0.0
    %3824 = vmatprep.subr.mxu0 0.0
    %3825 = vmatpush1.msra.mxu0 0.0
    %3826 = vmatprep.subr.mxu0 0.0
    %3827 = vmatpush1.msra.mxu0 0.0
    %3828 = vmatprep.subr.mxu0 0.0
    %3829 = vmatpush1.msra.mxu0 0.0
    %3830 = vmatprep.subr.mxu0 0.0
    %3831 = vmatpush1.msra.mxu0 0.0
    %3832 = vmatprep.subr.mxu0 0.0
    %3833 = vmatpush1.msra.mxu0 0.0
    %3834 = vmatprep.subr.mxu0 0.0
    %3835 = vmatpush1.msra.mxu0 0.0
    %3836 = vmatprep.subr.mxu0 0.0
    %3837 = vmatpush1.msra.mxu0 0.0
    %3838 = vmatprep.subr.mxu0 0.0
    %3839 = vmatpush1.msra.mxu0 0.0
    %3840 = vmatprep.subr.mxu0 0.0
    %3841 = vmatpush1.msra.mxu0 0.0
    %3842 = vmatprep.mubr.f32.mxu0 0.0
    %3843 = vmatmul.mubr.f32.gmra.mrb[0].mxu0 %v3776
    %v3844 = vpop.f32.mrb[0].mxu0
    %v3845 = vadd.f32 %v380, %v3844
    %v3846 = vpop.f32.mrb[0].mxu0
    %3847 = vdwg.mxu0
    %v3848 = vmax.f32 %v3845, 0.0
    %v3850 = vsel %vm423, %v3848, 0
    %3852 = vmatprep.subr.mxu0 0.0
    %3853 = vmatpush1.msra.mxu0 %v786
    %3854 = vmatprep.subr.mxu0 0.0
    %3855 = vmatpush1.msra.mxu0 %v787
    %3856 = vmatprep.subr.mxu0 0.0
    %3857 = vmatpush1.msra.mxu0 %v788
    %3858 = vmatprep.subr.mxu0 0.0
    %3859 = vmatpush1.msra.mxu0 %v789
    %3860 = vmatprep.subr.mxu0 0.0
    %3861 = vmatpush1.msra.mxu0 0.0
    %3862 = vmatprep.subr.mxu0 0.0
    %3863 = vmatpush1.msra.mxu0 0.0
    %3864 = vmatprep.subr.mxu0 0.0
    %3865 = vmatpush1.msra.mxu0 0.0
    %3866 = vmatprep.subr.mxu0 0.0
    %3867 = vmatpush1.msra.mxu0 0.0
    %3868 = vmatprep.subr.mxu0 0.0
    %3869 = vmatpush1.msra.mxu0 0.0
    %3870 = vmatprep.subr.mxu0 0.0
    %3871 = vmatpush1.msra.mxu0 0.0
    %3872 = vmatprep.subr.mxu0 0.0
    %3873 = vmatpush1.msra.mxu0 0.0
    %3874 = vmatprep.subr.mxu0 0.0
    %3875 = vmatpush1.msra.mxu0 0.0
    %3876 = vmatprep.subr.mxu0 0.0
    %3877 = vmatpush1.msra.mxu0 0.0
    %3878 = vmatprep.subr.mxu0 0.0
    %3879 = vmatpush1.msra.mxu0 0.0
    %3880 = vmatprep.subr.mxu0 0.0
    %3881 = vmatpush1.msra.mxu0 0.0
    %3882 = vmatprep.subr.mxu0 0.0
    %3883 = vmatpush1.msra.mxu0 0.0
    %3884 = vmatprep.subr.mxu0 0.0
    %3885 = vmatpush1.msra.mxu0 0.0
    %3886 = vmatprep.subr.mxu0 0.0
    %3887 = vmatpush1.msra.mxu0 0.0
    %3888 = vmatprep.subr.mxu0 0.0
    %3889 = vmatpush1.msra.mxu0 0.0
    %3890 = vmatprep.subr.mxu0 0.0
    %3891 = vmatpush1.msra.mxu0 0.0
    %3892 = vmatprep.subr.mxu0 0.0
    %3893 = vmatpush1.msra.mxu0 0.0
    %3894 = vmatprep.subr.mxu0 0.0
    %3895 = vmatpush1.msra.mxu0 0.0
    %3896 = vmatprep.subr.mxu0 0.0
    %3897 = vmatpush1.msra.mxu0 0.0
    %3898 = vmatprep.subr.mxu0 0.0
    %3899 = vmatpush1.msra.mxu0 0.0
    %3900 = vmatprep.subr.mxu0 0.0
    %3901 = vmatpush1.msra.mxu0 0.0
    %3902 = vmatprep.subr.mxu0 0.0
    %3903 = vmatpush1.msra.mxu0 0.0
    %3904 = vmatprep.subr.mxu0 0.0
    %3905 = vmatpush1.msra.mxu0 0.0
    %3906 = vmatprep.subr.mxu0 0.0
    %3907 = vmatpush1.msra.mxu0 0.0
    %3908 = vmatprep.subr.mxu0 0.0
    %3909 = vmatpush1.msra.mxu0 0.0
    %3910 = vmatprep.subr.mxu0 0.0
    %3911 = vmatpush1.msra.mxu0 0.0
    %3912 = vmatprep.subr.mxu0 0.0
    %3913 = vmatpush1.msra.mxu0 0.0
    %3914 = vmatprep.subr.mxu0 0.0
    %3915 = vmatpush1.msra.mxu0 0.0
    %3916 = vmatprep.mubr.f32.mxu0 0.0
    %3917 = vmatmul.mubr.f32.gmra.mrb[0].mxu0 %v3850
    %v3918 = vpop.f32.mrb[0].mxu0
    %v3919 = vadd.f32 0.0, %v3918
    %v3920 = vpop.f32.mrb[0].mxu0
    %3921 = vdwg.mxu0
    %3922 = vmatprep.subr.mxu0 0.0
    %3923 = vmatpush1.msra.mxu0 %v781
    %3924 = vmatprep.subr.mxu0 0.0
    %3925 = vmatpush1.msra.mxu0 %v782
    %3926 = vmatprep.subr.mxu0 0.0
    %3927 = vmatpush1.msra.mxu0 %v783
    %3928 = vmatprep.subr.mxu0 0.0
    %3929 = vmatpush1.msra.mxu0 %v784
    %3930 = vmatprep.subr.mxu0 0.0
    %3931 = vmatpush1.msra.mxu0 0.0
    %3932 = vmatprep.subr.mxu0 0.0
    %3933 = vmatpush1.msra.mxu0 0.0
    %3934 = vmatprep.subr.mxu0 0.0
    %3935 = vmatpush1.msra.mxu0 0.0
    %3936 = vmatprep.subr.mxu0 0.0
    %3937 = vmatpush1.msra.mxu0 0.0
    %3938 = vmatprep.subr.mxu0 0.0
    %3939 = vmatpush1.msra.mxu0 0.0
    %3940 = vmatprep.subr.mxu0 0.0
    %3941 = vmatpush1.msra.mxu0 0.0
    %3942 = vmatprep.subr.mxu0 0.0
    %3943 = vmatpush1.msra.mxu0 0.0
    %3944 = vmatprep.subr.mxu0 0.0
    %3945 = vmatpush1.msra.mxu0 0.0
    %3946 = vmatprep.subr.mxu0 0.0
    %3947 = vmatpush1.msra.mxu0 0.0
    %3948 = vmatprep.subr.mxu0 0.0
    %3949 = vmatpush1.msra.mxu0 0.0
    %3950 = vmatprep.subr.mxu0 0.0
    %3951 = vmatpush1.msra.mxu0 0.0
    %3952 = vmatprep.subr.mxu0 0.0
    %3953 = vmatpush1.msra.mxu0 0.0
    %3954 = vmatprep.subr.mxu0 0.0
    %3955 = vmatpush1.msra.mxu0 0.0
    %3956 = vmatprep.subr.mxu0 0.0
    %3957 = vmatpush1.msra.mxu0 0.0
    %3958 = vmatprep.subr.mxu0 0.0
    %3959 = vmatpush1.msra.mxu0 0.0
    %3960 = vmatprep.subr.mxu0 0.0
    %3961 = vmatpush1.msra.mxu0 0.0
    %3962 = vmatprep.subr.mxu0 0.0
    %3963 = vmatpush1.msra.mxu0 0.0
    %3964 = vmatprep.subr.mxu0 0.0
    %3965 = vmatpush1.msra.mxu0 0.0
    %3966 = vmatprep.subr.mxu0 0.0
    %3967 = vmatpush1.msra.mxu0 0.0
    %3968 = vmatprep.subr.mxu0 0.0
    %3969 = vmatpush1.msra.mxu0 0.0
    %3970 = vmatprep.subr.mxu0 0.0
    %3971 = vmatpush1.msra.mxu0 0.0
    %3972 = vmatprep.subr.mxu0 0.0
    %3973 = vmatpush1.msra.mxu0 0.0
    %3974 = vmatprep.subr.mxu0 0.0
    %3975 = vmatpush1.msra.mxu0 0.0
    %3976 = vmatprep.subr.mxu0 0.0
    %3977 = vmatpush1.msra.mxu0 0.0
    %3978 = vmatprep.subr.mxu0 0.0
    %3979 = vmatpush1.msra.mxu0 0.0
    %3980 = vmatprep.subr.mxu0 0.0
    %3981 = vmatpush1.msra.mxu0 0.0
    %3982 = vmatprep.subr.mxu0 0.0
    %3983 = vmatpush1.msra.mxu0 0.0
    %3984 = vmatprep.subr.mxu0 0.0
    %3985 = vmatpush1.msra.mxu0 0.0
    %3986 = vmatprep.mubr.f32.mxu0 0.0
    %3987 = vmatmul.mubr.f32.gmra.mrb[0].mxu0 %v3577
    %v3988 = vpop.f32.mrb[0].mxu0
    %v3989 = vadd.f32 %v3919, %v3988
    %v3990 = vpop.f32.mrb[0].mxu0
    %3991 = vdwg.mxu0
    %v3992 = vadd.f32 %v3989, %v387
    %3993 = vmatprep.subr.mxu0 0.0
    %3994 = vmatpush1.msra.mxu0 %v934
    %3995 = vmatprep.subr.mxu0 0.0
    %3996 = vmatpush1.msra.mxu0 %v935
    %3997 = vmatprep.subr.mxu0 0.0
    %3998 = vmatpush1.msra.mxu0 %v936
    %3999 = vmatprep.subr.mxu0 0.0
    %4000 = vmatpush1.msra.mxu0 %v937
    %4001 = vmatprep.subr.mxu0 0.0
    %4002 = vmatpush1.msra.mxu0 0.0
    %4003 = vmatprep.subr.mxu0 0.0
    %4004 = vmatpush1.msra.mxu0 0.0
    %4005 = vmatprep.subr.mxu0 0.0
    %4006 = vmatpush1.msra.mxu0 0.0
    %4007 = vmatprep.subr.mxu0 0.0
    %4008 = vmatpush1.msra.mxu0 0.0
    %4009 = vmatprep.subr.mxu0 0.0
    %4010 = vmatpush1.msra.mxu0 0.0
    %4011 = vmatprep.subr.mxu0 0.0
    %4012 = vmatpush1.msra.mxu0 0.0
    %4013 = vmatprep.subr.mxu0 0.0
    %4014 = vmatpush1.msra.mxu0 0.0
    %4015 = vmatprep.subr.mxu0 0.0
    %4016 = vmatpush1.msra.mxu0 0.0
    %4017 = vmatprep.subr.mxu0 0.0
    %4018 = vmatpush1.msra.mxu0 0.0
    %4019 = vmatprep.subr.mxu0 0.0
    %4020 = vmatpush1.msra.mxu0 0.0
    %4021 = vmatprep.subr.mxu0 0.0
    %4022 = vmatpush1.msra.mxu0 0.0
    %4023 = vmatprep.subr.mxu0 0.0
    %4024 = vmatpush1.msra.mxu0 0.0
    %4025 = vmatprep.subr.mxu0 0.0
    %4026 = vmatpush1.msra.mxu0 0.0
    %4027 = vmatprep.subr.mxu0 0.0
    %4028 = vmatpush1.msra.mxu0 0.0
    %4029 = vmatprep.subr.mxu0 0.0
    %4030 = vmatpush1.msra.mxu0 0.0
    %4031 = vmatprep.subr.mxu0 0.0
    %4032 = vmatpush1.msra.mxu0 0.0
    %4033 = vmatprep.subr.mxu0 0.0
    %4034 = vmatpush1.msra.mxu0 0.0
    %4035 = vmatprep.subr.mxu0 0.0
    %4036 = vmatpush1.msra.mxu0 0.0
    %4037 = vmatprep.subr.mxu0 0.0
    %4038 = vmatpush1.msra.mxu0 0.0
    %4039 = vmatprep.subr.mxu0 0.0
    %4040 = vmatpush1.msra.mxu0 0.0
    %4041 = vmatprep.subr.mxu0 0.0
    %4042 = vmatpush1.msra.mxu0 0.0
    %4043 = vmatprep.subr.mxu0 0.0
    %4044 = vmatpush1.msra.mxu0 0.0
    %4045 = vmatprep.subr.mxu0 0.0
    %4046 = vmatpush1.msra.mxu0 0.0
    %4047 = vmatprep.subr.mxu0 0.0
    %4048 = vmatpush1.msra.mxu0 0.0
    %4049 = vmatprep.subr.mxu0 0.0
    %4050 = vmatpush1.msra.mxu0 0.0
    %4051 = vmatprep.subr.mxu0 0.0
    %4052 = vmatpush1.msra.mxu0 0.0
    %4053 = vmatprep.subr.mxu0 0.0
    %4054 = vmatpush1.msra.mxu0 0.0
    %4055 = vmatprep.subr.mxu0 0.0
    %4056 = vmatpush1.msra.mxu0 0.0
    %4057 = vmatprep.mubr.f32.mxu0 0.0
    %4058 = vmatmul.mubr.f32.gmra.mrb[0].mxu0 %v3333
    %v4059 = vpop.f32.mrb[0].mxu0
    %v4060 = vadd.f32 %v402, %v4059
    %v4061 = vpop.f32.mrb[0].mxu0
    %4062 = vdwg.mxu0
    %v4063 = vadd.f32 %v3992, %v4060
    %v4064 = vxor.u32 %v4063, 2147483648
    %v4065 = vmul.f32 %v4064, 1.442695
    %v4066 = vpow.pop %v4065
    %v4067 = vadd.f32 %v4066, 1.0
    %v4068 = vrcp.pop %v4067
    %v4069 = vmul.f32 1.0, %v4068
    %4071 = vrot.lane.b32.xlu0 %v4060, 64
    %v4072 = vpop.permute.xlu0 %4071
    %v4074 = vmul.f32 %v4069, %v4072
    %4076 = vrot.lane.b32.xlu0 %v4074, 64
    %v4077 = vpop.permute.xlu0 %4076
    %v4079 = vadd.f32 %v3992, %v4077
    %v4080 = vtanh.pop %v4079
    %v4081 = vsub.f32 1.0, %v4069
    %4083 = vrot.lane.b32.xlu0 %v4080, 96
    %v4084 = vpop.permute.xlu0 %4083
    %v4086 = vmul.f32 %v4081, %v4084
    %v4087 = vmul.f32 %v4069, %v3329
    %v4088 = vadd.f32 %v4086, %v4087
    %4090 = vrot.lane.b32.xlu0 %v4088, 96
    %v4091 = vpop.permute.xlu0 %4090
    %v4092 = vsel %vm423, %v4091, 0
    %4094 = vmatprep.subr.mxu0 0.0
    %4095 = vmatpush1.msra.mxu0 %v1041
    %4096 = vmatprep.subr.mxu0 0.0
    %4097 = vmatpush1.msra.mxu0 %v1042
    %4098 = vmatprep.subr.mxu0 0.0
    %4099 = vmatpush1.msra.mxu0 %v1043
    %4100 = vmatprep.subr.mxu0 0.0
    %4101 = vmatpush1.msra.mxu0 %v1044
    %4102 = vmatprep.subr.mxu0 0.0
    %4103 = vmatpush1.msra.mxu0 0.0
    %4104 = vmatprep.subr.mxu0 0.0
    %4105 = vmatpush1.msra.mxu0 0.0
    %4106 = vmatprep.subr.mxu0 0.0
    %4107 = vmatpush1.msra.mxu0 0.0
    %4108 = vmatprep.subr.mxu0 0.0
    %4109 = vmatpush1.msra.mxu0 0.0
    %4110 = vmatprep.subr.mxu0 0.0
    %4111 = vmatpush1.msra.mxu0 0.0
    %4112 = vmatprep.subr.mxu0 0.0
    %4113 = vmatpush1.msra.mxu0 0.0
    %4114 = vmatprep.subr.mxu0 0.0
    %4115 = vmatpush1.msra.mxu0 0.0
    %4116 = vmatprep.subr.mxu0 0.0
    %4117 = vmatpush1.msra.mxu0 0.0
    %4118 = vmatprep.subr.mxu0 0.0
    %4119 = vmatpush1.msra.mxu0 0.0
    %4120 = vmatprep.subr.mxu0 0.0
    %4121 = vmatpush1.msra.mxu0 0.0
    %4122 = vmatprep.subr.mxu0 0.0
    %4123 = vmatpush1.msra.mxu0 0.0
    %4124 = vmatprep.subr.mxu0 0.0
    %4125 = vmatpush1.msra.mxu0 0.0
    %4126 = vmatprep.subr.mxu0 0.0
    %4127 = vmatpush1.msra.mxu0 0.0
    %4128 = vmatprep.subr.mxu0 0.0
    %4129 = vmatpush1.msra.mxu0 0.0
    %4130 = vmatprep.subr.mxu0 0.0
    %4131 = vmatpush1.msra.mxu0 0.0
    %4132 = vmatprep.subr.mxu0 0.0
    %4133 = vmatpush1.msra.mxu0 0.0
    %4134 = vmatprep.subr.mxu0 0.0
    %4135 = vmatpush1.msra.mxu0 0.0
    %4136 = vmatprep.subr.mxu0 0.0
    %4137 = vmatpush1.msra.mxu0 0.0
    %4138 = vmatprep.subr.mxu0 0.0
    %4139 = vmatpush1.msra.mxu0 0.0
    %4140 = vmatprep.subr.mxu0 0.0
    %4141 = vmatpush1.msra.mxu0 0.0
    %4142 = vmatprep.subr.mxu0 0.0
    %4143 = vmatpush1.msra.mxu0 0.0
    %4144 = vmatprep.subr.mxu0 0.0
    %4145 = vmatpush1.msra.mxu0 0.0
    %4146 = vmatprep.subr.mxu0 0.0
    %4147 = vmatpush1.msra.mxu0 0.0
    %4148 = vmatprep.subr.mxu0 0.0
    %4149 = vmatpush1.msra.mxu0 0.0
    %4150 = vmatprep.subr.mxu0 0.0
    %4151 = vmatpush1.msra.mxu0 0.0
    %4152 = vmatprep.subr.mxu0 0.0
    %4153 = vmatpush1.msra.mxu0 0.0
    %4154 = vmatprep.subr.mxu0 0.0
    %4155 = vmatpush1.msra.mxu0 0.0
    %4156 = vmatprep.subr.mxu0 0.0
    %4157 = vmatpush1.msra.mxu0 0.0
    %4158 = vmatprep.mubr.f32.mxu0 0.0
    %4159 = vmatmul.mubr.f32.gmra.mrb[0].mxu0 %v4092
    %v4160 = vpop.f32.mrb[0].mxu0
    %v4161 = vadd.f32 %v395, %v4160
    %v4162 = vpop.f32.mrb[0].mxu0
    %4163 = vdwg.mxu0
    %4164 = vmatprep.subr.mxu0 0.0
    %4165 = vmatpush1.msra.mxu0 %v1121
    %4166 = vmatprep.subr.mxu0 0.0
    %4167 = vmatpush1.msra.mxu0 %v1122
    %4168 = vmatprep.subr.mxu0 0.0
    %4169 = vmatpush1.msra.mxu0 %v1123
    %4170 = vmatprep.subr.mxu0 0.0
    %4171 = vmatpush1.msra.mxu0 %v1124
    %4172 = vmatprep.subr.mxu0 0.0
    %4173 = vmatpush1.msra.mxu0 0.0
    %4174 = vmatprep.subr.mxu0 0.0
    %4175 = vmatpush1.msra.mxu0 0.0
    %4176 = vmatprep.subr.mxu0 0.0
    %4177 = vmatpush1.msra.mxu0 0.0
    %4178 = vmatprep.subr.mxu0 0.0
    %4179 = vmatpush1.msra.mxu0 0.0
    %4180 = vmatprep.subr.mxu0 0.0
    %4181 = vmatpush1.msra.mxu0 0.0
    %4182 = vmatprep.subr.mxu0 0.0
    %4183 = vmatpush1.msra.mxu0 0.0
    %4184 = vmatprep.subr.mxu0 0.0
    %4185 = vmatpush1.msra.mxu0 0.0
    %4186 = vmatprep.subr.mxu0 0.0
    %4187 = vmatpush1.msra.mxu0 0.0
    %4188 = vmatprep.subr.mxu0 0.0
    %4189 = vmatpush1.msra.mxu0 0.0
    %4190 = vmatprep.subr.mxu0 0.0
    %4191 = vmatpush1.msra.mxu0 0.0
    %4192 = vmatprep.subr.mxu0 0.0
    %4193 = vmatpush1.msra.mxu0 0.0
    %4194 = vmatprep.subr.mxu0 0.0
    %4195 = vmatpush1.msra.mxu0 0.0
    %4196 = vmatprep.subr.mxu0 0.0
    %4197 = vmatpush1.msra.mxu0 0.0
    %4198 = vmatprep.subr.mxu0 0.0
    %4199 = vmatpush1.msra.mxu0 0.0
    %4200 = vmatprep.subr.mxu0 0.0
    %4201 = vmatpush1.msra.mxu0 0.0
    %4202 = vmatprep.subr.mxu0 0.0
    %4203 = vmatpush1.msra.mxu0 0.0
    %4204 = vmatprep.subr.mxu0 0.0
    %4205 = vmatpush1.msra.mxu0 0.0
    %4206 = vmatprep.subr.mxu0 0.0
    %4207 = vmatpush1.msra.mxu0 0.0
    %4208 = vmatprep.subr.mxu0 0.0
    %4209 = vmatpush1.msra.mxu0 0.0
    %4210 = vmatprep.subr.mxu0 0.0
    %4211 = vmatpush1.msra.mxu0 0.0
    %4212 = vmatprep.subr.mxu0 0.0
    %4213 = vmatpush1.msra.mxu0 0.0
    %4214 = vmatprep.subr.mxu0 0.0
    %4215 = vmatpush1.msra.mxu0 0.0
    %4216 = vmatprep.subr.mxu0 0.0
    %4217 = vmatpush1.msra.mxu0 0.0
    %4218 = vmatprep.subr.mxu0 0.0
    %4219 = vmatpush1.msra.mxu0 0.0
    %4220 = vmatprep.subr.mxu0 0.0
    %4221 = vmatpush1.msra.mxu0 0.0
    %4222 = vmatprep.subr.mxu0 0.0
    %4223 = vmatpush1.msra.mxu0 0.0
    %4224 = vmatprep.subr.mxu0 0.0
    %4225 = vmatpush1.msra.mxu0 0.0
    %4226 = vmatprep.subr.mxu0 0.0
    %4227 = vmatpush1.msra.mxu0 0.0
    %4228 = vmatprep.mubr.f32.mxu0 0.0
    %4229 = vmatmul.mubr.f32.gmra.mrb[0].mxu0 %v3504
    %v4230 = vpop.f32.mrb[0].mxu0
    %v4231 = vadd.f32 %v410, %v4230
    %v4232 = vpop.f32.mrb[0].mxu0
    %4233 = vdwg.mxu0
    %v4234 = vadd.f32 %v4161, %v4231
    %v4235 = vxor.u32 %v4234, 2147483648
    %v4236 = vmul.f32 %v4235, 1.442695
    %v4237 = vpow.pop %v4236
    %v4238 = vadd.f32 %v4237, 1.0
    %v4239 = vrcp.pop %v4238
    %v4240 = vmul.f32 1.0, %v4239
    %4242 = vrot.lane.b32.xlu0 %v4231, 64
    %v4243 = vpop.permute.xlu0 %4242
    %v4245 = vmul.f32 %v4240, %v4243
    %4247 = vrot.lane.b32.xlu0 %v4245, 64
    %v4248 = vpop.permute.xlu0 %4247
    %v4250 = vadd.f32 %v4161, %v4248
    %v4251 = vtanh.pop %v4250
    %v4252 = vsub.f32 1.0, %v4240
    %4254 = vrot.lane.b32.xlu0 %v4251, 96
    %v4255 = vpop.permute.xlu0 %4254
    %v4257 = vmul.f32 %v4252, %v4255
    %v4258 = vmul.f32 %v4240, %v3500
    %v4259 = vadd.f32 %v4257, %v4258
    %4261 = vrot.lane.b32.xlu0 %v4259, 96
    %v4262 = vpop.permute.xlu0 %4261
    %v4263 = vsel %vm423, %v4262, 0
    %4265 = vmatprep.subr.mxu0 0.0
    %4266 = vmatpush1.msra.mxu0 %v419
    %4267 = vmatprep.subr.mxu0 0.0
    %4268 = vmatpush1.msra.mxu0 %v420
    %4269 = vmatprep.subr.mxu0 0.0
    %4270 = vmatpush1.msra.mxu0 %v421
    %4271 = vmatprep.subr.mxu0 0.0
    %4272 = vmatpush1.msra.mxu0 %v422
    %4273 = vmatprep.subr.mxu0 0.0
    %4274 = vmatpush1.msra.mxu0 0.0
    %4275 = vmatprep.subr.mxu0 0.0
    %4276 = vmatpush1.msra.mxu0 0.0
    %4277 = vmatprep.subr.mxu0 0.0
    %4278 = vmatpush1.msra.mxu0 0.0
    %4279 = vmatprep.subr.mxu0 0.0
    %4280 = vmatpush1.msra.mxu0 0.0
    %4281 = vmatprep.subr.mxu0 0.0
    %4282 = vmatpush1.msra.mxu0 0.0
    %4283 = vmatprep.subr.mxu0 0.0
    %4284 = vmatpush1.msra.mxu0 0.0
    %4285 = vmatprep.subr.mxu0 0.0
    %4286 = vmatpush1.msra.mxu0 0.0
    %4287 = vmatprep.subr.mxu0 0.0
    %4288 = vmatpush1.msra.mxu0 0.0
    %4289 = vmatprep.subr.mxu0 0.0
    %4290 = vmatpush1.msra.mxu0 0.0
    %4291 = vmatprep.subr.mxu0 0.0
    %4292 = vmatpush1.msra.mxu0 0.0
    %4293 = vmatprep.subr.mxu0 0.0
    %4294 = vmatpush1.msra.mxu0 0.0
    %4295 = vmatprep.subr.mxu0 0.0
    %4296 = vmatpush1.msra.mxu0 0.0
    %4297 = vmatprep.subr.mxu0 0.0
    %4298 = vmatpush1.msra.mxu0 0.0
    %4299 = vmatprep.subr.mxu0 0.0
    %4300 = vmatpush1.msra.mxu0 0.0
    %4301 = vmatprep.subr.mxu0 0.0
    %4302 = vmatpush1.msra.mxu0 0.0
    %4303 = vmatprep.subr.mxu0 0.0
    %4304 = vmatpush1.msra.mxu0 0.0
    %4305 = vmatprep.subr.mxu0 0.0
    %4306 = vmatpush1.msra.mxu0 0.0
    %4307 = vmatprep.subr.mxu0 0.0
    %4308 = vmatpush1.msra.mxu0 0.0
    %4309 = vmatprep.subr.mxu0 0.0
    %4310 = vmatpush1.msra.mxu0 0.0
    %4311 = vmatprep.subr.mxu0 0.0
    %4312 = vmatpush1.msra.mxu0 0.0
    %4313 = vmatprep.subr.mxu0 0.0
    %4314 = vmatpush1.msra.mxu0 0.0
    %4315 = vmatprep.subr.mxu0 0.0
    %4316 = vmatpush1.msra.mxu0 0.0
    %4317 = vmatprep.subr.mxu0 0.0
    %4318 = vmatpush1.msra.mxu0 0.0
    %4319 = vmatprep.subr.mxu0 0.0
    %4320 = vmatpush1.msra.mxu0 0.0
    %4321 = vmatprep.subr.mxu0 0.0
    %4322 = vmatpush1.msra.mxu0 0.0
    %4323 = vmatprep.subr.mxu0 0.0
    %4324 = vmatpush1.msra.mxu0 0.0
    %4325 = vmatprep.subr.mxu0 0.0
    %4326 = vmatpush1.msra.mxu0 0.0
    %4327 = vmatprep.subr.mxu0 0.0
    %4328 = vmatpush1.msra.mxu0 0.0
    %4329 = vmatprep.mubr.f32.mxu0 0.0
    %4330 = vmatmul.mubr.f32.gmra.mrb[0].mxu0 %v4263
    %v4331 = vpop.f32.mrb[0].mxu0
    %v4332 = vadd.f32 0.0, %v4331
    %v4333 = vpop.f32.mrb[0].mxu0
    %4334 = vdwg.mxu0
    %v4335 = vrot.slane %v360, 4
    %v4336 = vsel %vm423, %v4335, 0
    %4338 = vmatprep.subr.mxu0 0.0
    %4339 = vmatpush1.msra.mxu0 %v415
    %4340 = vmatprep.subr.mxu0 0.0
    %4341 = vmatpush1.msra.mxu0 %v416
    %4342 = vmatprep.subr.mxu0 0.0
    %4343 = vmatpush1.msra.mxu0 %v417
    %4344 = vmatprep.subr.mxu0 0.0
    %4345 = vmatpush1.msra.mxu0 %v418
    %4346 = vmatprep.subr.mxu0 0.0
    %4347 = vmatpush1.msra.mxu0 0.0
    %4348 = vmatprep.subr.mxu0 0.0
    %4349 = vmatpush1.msra.mxu0 0.0
    %4350 = vmatprep.subr.mxu0 0.0
    %4351 = vmatpush1.msra.mxu0 0.0
    %4352 = vmatprep.subr.mxu0 0.0
    %4353 = vmatpush1.msra.mxu0 0.0
    %4354 = vmatprep.subr.mxu0 0.0
    %4355 = vmatpush1.msra.mxu0 0.0
    %4356 = vmatprep.subr.mxu0 0.0
    %4357 = vmatpush1.msra.mxu0 0.0
    %4358 = vmatprep.subr.mxu0 0.0
    %4359 = vmatpush1.msra.mxu0 0.0
    %4360 = vmatprep.subr.mxu0 0.0
    %4361 = vmatpush1.msra.mxu0 0.0
    %4362 = vmatprep.subr.mxu0 0.0
    %4363 = vmatpush1.msra.mxu0 0.0
    %4364 = vmatprep.subr.mxu0 0.0
    %4365 = vmatpush1.msra.mxu0 0.0
    %4366 = vmatprep.subr.mxu0 0.0
    %4367 = vmatpush1.msra.mxu0 0.0
    %4368 = vmatprep.subr.mxu0 0.0
    %4369 = vmatpush1.msra.mxu0 0.0
    %4370 = vmatprep.subr.mxu0 0.0
    %4371 = vmatpush1.msra.mxu0 0.0
    %4372 = vmatprep.subr.mxu0 0.0
    %4373 = vmatpush1.msra.mxu0 0.0
    %4374 = vmatprep.subr.mxu0 0.0
    %4375 = vmatpush1.msra.mxu0 0.0
    %4376 = vmatprep.subr.mxu0 0.0
    %4377 = vmatpush1.msra.mxu0 0.0
    %4378 = vmatprep.subr.mxu0 0.0
    %4379 = vmatpush1.msra.mxu0 0.0
    %4380 = vmatprep.subr.mxu0 0.0
    %4381 = vmatpush1.msra.mxu0 0.0
    %4382 = vmatprep.subr.mxu0 0.0
    %4383 = vmatpush1.msra.mxu0 0.0
    %4384 = vmatprep.subr.mxu0 0.0
    %4385 = vmatpush1.msra.mxu0 0.0
    %4386 = vmatprep.subr.mxu0 0.0
    %4387 = vmatpush1.msra.mxu0 0.0
    %4388 = vmatprep.subr.mxu0 0.0
    %4389 = vmatpush1.msra.mxu0 0.0
    %4390 = vmatprep.subr.mxu0 0.0
    %4391 = vmatpush1.msra.mxu0 0.0
    %4392 = vmatprep.subr.mxu0 0.0
    %4393 = vmatpush1.msra.mxu0 0.0
    %4394 = vmatprep.subr.mxu0 0.0
    %4395 = vmatpush1.msra.mxu0 0.0
    %4396 = vmatprep.subr.mxu0 0.0
    %4397 = vmatpush1.msra.mxu0 0.0
    %4398 = vmatprep.subr.mxu0 0.0
    %4399 = vmatpush1.msra.mxu0 0.0
    %4400 = vmatprep.subr.mxu0 0.0
    %4401 = vmatpush1.msra.mxu0 0.0
    %4402 = vmatprep.mubr.f32.mxu0 0.0
    %4403 = vmatmul.mubr.f32.gmra.mrb[0].mxu0 %v4336
    %v4404 = vpop.f32.mrb[0].mxu0
    %v4405 = vadd.f32 %v4332, %v4404
    %v4406 = vpop.f32.mrb[0].mxu0
    %4407 = vdwg.mxu0
    %v4408 = vadd.f32 %v4405, %v366
    %v4409 = vmax.f32 %v4408, 0.0
    %v4411 = vsel %vm580, %v4409, 0
    %4413 = vmatprep.subr.mxu0 0.0
    %4414 = vmatpush1.msra.mxu0 %v572
    %4415 = vmatprep.subr.mxu0 0.0
    %4416 = vmatpush1.msra.mxu0 %v573
    %4417 = vmatprep.subr.mxu0 0.0
    %4418 = vmatpush1.msra.mxu0 %v574
    %4419 = vmatprep.subr.mxu0 0.0
    %4420 = vmatpush1.msra.mxu0 %v575
    %4421 = vmatprep.subr.mxu0 0.0
    %4422 = vmatpush1.msra.mxu0 %v576
    %4423 = vmatprep.subr.mxu0 0.0
    %4424 = vmatpush1.msra.mxu0 %v577
    %4425 = vmatprep.subr.mxu0 0.0
    %4426 = vmatpush1.msra.mxu0 %v578
    %4427 = vmatprep.subr.mxu0 0.0
    %4428 = vmatpush1.msra.mxu0 %v579
    %4429 = vmatprep.subr.mxu0 0.0
    %4430 = vmatpush1.msra.mxu0 0.0
    %4431 = vmatprep.subr.mxu0 0.0
    %4432 = vmatpush1.msra.mxu0 0.0
    %4433 = vmatprep.subr.mxu0 0.0
    %4434 = vmatpush1.msra.mxu0 0.0
    %4435 = vmatprep.subr.mxu0 0.0
    %4436 = vmatpush1.msra.mxu0 0.0
    %4437 = vmatprep.subr.mxu0 0.0
    %4438 = vmatpush1.msra.mxu0 0.0
    %4439 = vmatprep.subr.mxu0 0.0
    %4440 = vmatpush1.msra.mxu0 0.0
    %4441 = vmatprep.subr.mxu0 0.0
    %4442 = vmatpush1.msra.mxu0 0.0
    %4443 = vmatprep.subr.mxu0 0.0
    %4444 = vmatpush1.msra.mxu0 0.0
    %4445 = vmatprep.subr.mxu0 0.0
    %4446 = vmatpush1.msra.mxu0 0.0
    %4447 = vmatprep.subr.mxu0 0.0
    %4448 = vmatpush1.msra.mxu0 0.0
    %4449 = vmatprep.subr.mxu0 0.0
    %4450 = vmatpush1.msra.mxu0 0.0
    %4451 = vmatprep.subr.mxu0 0.0
    %4452 = vmatpush1.msra.mxu0 0.0
    %4453 = vmatprep.subr.mxu0 0.0
    %4454 = vmatpush1.msra.mxu0 0.0
    %4455 = vmatprep.subr.mxu0 0.0
    %4456 = vmatpush1.msra.mxu0 0.0
    %4457 = vmatprep.subr.mxu0 0.0
    %4458 = vmatpush1.msra.mxu0 0.0
    %4459 = vmatprep.subr.mxu0 0.0
    %4460 = vmatpush1.msra.mxu0 0.0
    %4461 = vmatprep.subr.mxu0 0.0
    %4462 = vmatpush1.msra.mxu0 0.0
    %4463 = vmatprep.subr.mxu0 0.0
    %4464 = vmatpush1.msra.mxu0 0.0
    %4465 = vmatprep.subr.mxu0 0.0
    %4466 = vmatpush1.msra.mxu0 0.0
    %4467 = vmatprep.subr.mxu0 0.0
    %4468 = vmatpush1.msra.mxu0 0.0
    %4469 = vmatprep.subr.mxu0 0.0
    %4470 = vmatpush1.msra.mxu0 0.0
    %4471 = vmatprep.subr.mxu0 0.0
    %4472 = vmatpush1.msra.mxu0 0.0
    %4473 = vmatprep.subr.mxu0 0.0
    %4474 = vmatpush1.msra.mxu0 0.0
    %4475 = vmatprep.subr.mxu0 0.0
    %4476 = vmatpush1.msra.mxu0 0.0
    %4477 = vmatprep.mubr.f32.mxu0 0.0
    %4478 = vmatmul.mubr.f32.gmra.mrb[0].mxu0 %v4411
    %v4479 = vpop.f32.mrb[0].mxu0
    %v4480 = vadd.f32 %v373, %v4479
    %v4481 = vpop.f32.mrb[0].mxu0
    %4482 = vdwg.mxu0
    %v4483 = vmax.f32 %v4480, 0.0
    %vm4484 = vcmp.ne.f32.partialorder %v4480, %v4480
    %v4485 = vadd.f32 %v4480, 0.0
    %v4486 = vand.u32 2147483647, %v4480
    %v4487 = vsub.f32 0.0, %v4486
    %v4488 = vmul.f32 %v4487, 1.442695
    %v4489 = vpow.pop %v4488
    %v4490 = vadd.f32 %v4489, 1.0
    %v4491 = vlog2.pop %v4490
    %v4492 = vmul.f32 %v4491, 0.6931472
    %v4493 = vmul.f32 -0.5, %v4489
    %v4494 = vadd.f32 %v4493, 1.0
    %v4495 = vmul.f32 %v4494, %v4489
    %v4496 = vand.u32 2147483647, %v4489
    %vm4497 = vcmp.lt.f32.partialorder %v4496, 0.0004427343
    %v4498 = vsel %vm4497, %v4495, %v4492
    %v4499 = vadd.f32 %v4483, %v4498
    %v4500 = vsel %vm4484, %v4485, %v4499
    %4502 = vrot.lane.b32.xlu0 %v4480, 112
    %v4503 = vpop.permute.xlu0 %4502
    %v4505 = vsub.f32 %v4480, %v4503
    %4507 = vrot.lane.b32.xlu0 %v4500, 16
    %v4508 = vpop.permute.xlu0 %4507
    %v4510 = vrcp.pop %v4508
    %v4511 = vmul.f32 %v4500, %v4510
    %v4512 = vlog2.pop %v4511
    %v4513 = vmul.f32 %v4512, 0.6931472
    %v4514 = vmul.f32 %v4513, 2.0
    %v4515 = vmul.f32 %v4500, %v4500
    %v4516 = vmul.f32 %v4505, %v4505
    %v4517 = vadd.f32 %v4515, %v4516
    %4519 = vrot.lane.b32.xlu0 %v4515, 112
    %v4520 = vpop.permute.xlu0 %4519
    %v4522 = vrcp.pop %v4520
    %v4523 = vmul.f32 %v4517, %v4522
    %4525 = vrot.lane.b32.xlu0 %v4523, 16
    %v4526 = vpop.permute.xlu0 %4525
    %v4528 = vadd.f32 %v4514, %v4526
    %v4529 = vadd.f32 %v3770, %v4528
    %s4530 = scalar_lea.vmem %s1, 20
    %v4531 = vld [vmem:[%s4530] sm:$0xf]
    %v4532 = vmul.f32 %v4531, %v4500
    %v4533 = vadd.f32 %v4532, %v4480
    %v4535 = vsel %vm706, %v4533, 0
    %4537 = vmatprep.subr.mxu0 0.0
    %4538 = vmatpush1.msra.mxu0 %v704
    %4539 = vmatprep.subr.mxu0 0.0
    %4540 = vmatpush1.msra.mxu0 %v705
    %4541 = vmatprep.subr.mxu0 0.0
    %4542 = vmatpush1.msra.mxu0 0.0
    %4543 = vmatprep.subr.mxu0 0.0
    %4544 = vmatpush1.msra.mxu0 0.0
    %4545 = vmatprep.subr.mxu0 0.0
    %4546 = vmatpush1.msra.mxu0 0.0
    %4547 = vmatprep.subr.mxu0 0.0
    %4548 = vmatpush1.msra.mxu0 0.0
    %4549 = vmatprep.subr.mxu0 0.0
    %4550 = vmatpush1.msra.mxu0 0.0
    %4551 = vmatprep.subr.mxu0 0.0
    %4552 = vmatpush1.msra.mxu0 0.0
    %4553 = vmatprep.subr.mxu0 0.0
    %4554 = vmatpush1.msra.mxu0 0.0
    %4555 = vmatprep.subr.mxu0 0.0
    %4556 = vmatpush1.msra.mxu0 0.0
    %4557 = vmatprep.subr.mxu0 0.0
    %4558 = vmatpush1.msra.mxu0 0.0
    %4559 = vmatprep.subr.mxu0 0.0
    %4560 = vmatpush1.msra.mxu0 0.0
    %4561 = vmatprep.subr.mxu0 0.0
    %4562 = vmatpush1.msra.mxu0 0.0
    %4563 = vmatprep.subr.mxu0 0.0
    %4564 = vmatpush1.msra.mxu0 0.0
    %4565 = vmatprep.subr.mxu0 0.0
    %4566 = vmatpush1.msra.mxu0 0.0
    %4567 = vmatprep.subr.mxu0 0.0
    %4568 = vmatpush1.msra.mxu0 0.0
    %4569 = vmatprep.subr.mxu0 0.0
    %4570 = vmatpush1.msra.mxu0 0.0
    %4571 = vmatprep.subr.mxu0 0.0
    %4572 = vmatpush1.msra.mxu0 0.0
    %4573 = vmatprep.subr.mxu0 0.0
    %4574 = vmatpush1.msra.mxu0 0.0
    %4575 = vmatprep.subr.mxu0 0.0
    %4576 = vmatpush1.msra.mxu0 0.0
    %4577 = vmatprep.subr.mxu0 0.0
    %4578 = vmatpush1.msra.mxu0 0.0
    %4579 = vmatprep.subr.mxu0 0.0
    %4580 = vmatpush1.msra.mxu0 0.0
    %4581 = vmatprep.subr.mxu0 0.0
    %4582 = vmatpush1.msra.mxu0 0.0
    %4583 = vmatprep.subr.mxu0 0.0
    %4584 = vmatpush1.msra.mxu0 0.0
    %4585 = vmatprep.subr.mxu0 0.0
    %4586 = vmatpush1.msra.mxu0 0.0
    %4587 = vmatprep.subr.mxu0 0.0
    %4588 = vmatpush1.msra.mxu0 0.0
    %4589 = vmatprep.subr.mxu0 0.0
    %4590 = vmatpush1.msra.mxu0 0.0
    %4591 = vmatprep.subr.mxu0 0.0
    %4592 = vmatpush1.msra.mxu0 0.0
    %4593 = vmatprep.subr.mxu0 0.0
    %4594 = vmatpush1.msra.mxu0 0.0
    %4595 = vmatprep.subr.mxu0 0.0
    %4596 = vmatpush1.msra.mxu0 0.0
    %4597 = vmatprep.subr.mxu0 0.0
    %4598 = vmatpush1.msra.mxu0 0.0
    %4599 = vmatprep.subr.mxu0 0.0
    %4600 = vmatpush1.msra.mxu0 0.0
    %4601 = vmatprep.mubr.f32.mxu0 0.0
    %4602 = vmatmul.mubr.f32.gmra.mrb[0].mxu0 %v4535
    %v4603 = vpop.f32.mrb[0].mxu0
    %v4604 = vadd.f32 %v380, %v4603
    %v4605 = vpop.f32.mrb[0].mxu0
    %4606 = vdwg.mxu0
    %v4607 = vmax.f32 %v4604, 0.0
    %v4609 = vsel %vm423, %v4607, 0
    %4611 = vmatprep.subr.mxu0 0.0
    %4612 = vmatpush1.msra.mxu0 %v786
    %4613 = vmatprep.subr.mxu0 0.0
    %4614 = vmatpush1.msra.mxu0 %v787
    %4615 = vmatprep.subr.mxu0 0.0
    %4616 = vmatpush1.msra.mxu0 %v788
    %4617 = vmatprep.subr.mxu0 0.0
    %4618 = vmatpush1.msra.mxu0 %v789
    %4619 = vmatprep.subr.mxu0 0.0
    %4620 = vmatpush1.msra.mxu0 0.0
    %4621 = vmatprep.subr.mxu0 0.0
    %4622 = vmatpush1.msra.mxu0 0.0
    %4623 = vmatprep.subr.mxu0 0.0
    %4624 = vmatpush1.msra.mxu0 0.0
    %4625 = vmatprep.subr.mxu0 0.0
    %4626 = vmatpush1.msra.mxu0 0.0
    %4627 = vmatprep.subr.mxu0 0.0
    %4628 = vmatpush1.msra.mxu0 0.0
    %4629 = vmatprep.subr.mxu0 0.0
    %4630 = vmatpush1.msra.mxu0 0.0
    %4631 = vmatprep.subr.mxu0 0.0
    %4632 = vmatpush1.msra.mxu0 0.0
    %4633 = vmatprep.subr.mxu0 0.0
    %4634 = vmatpush1.msra.mxu0 0.0
    %4635 = vmatprep.subr.mxu0 0.0
    %4636 = vmatpush1.msra.mxu0 0.0
    %4637 = vmatprep.subr.mxu0 0.0
    %4638 = vmatpush1.msra.mxu0 0.0
    %4639 = vmatprep.subr.mxu0 0.0
    %4640 = vmatpush1.msra.mxu0 0.0
    %4641 = vmatprep.subr.mxu0 0.0
    %4642 = vmatpush1.msra.mxu0 0.0
    %4643 = vmatprep.subr.mxu0 0.0
    %4644 = vmatpush1.msra.mxu0 0.0
    %4645 = vmatprep.subr.mxu0 0.0
    %4646 = vmatpush1.msra.mxu0 0.0
    %4647 = vmatprep.subr.mxu0 0.0
    %4648 = vmatpush1.msra.mxu0 0.0
    %4649 = vmatprep.subr.mxu0 0.0
    %4650 = vmatpush1.msra.mxu0 0.0
    %4651 = vmatprep.subr.mxu0 0.0
    %4652 = vmatpush1.msra.mxu0 0.0
    %4653 = vmatprep.subr.mxu0 0.0
    %4654 = vmatpush1.msra.mxu0 0.0
    %4655 = vmatprep.subr.mxu0 0.0
    %4656 = vmatpush1.msra.mxu0 0.0
    %4657 = vmatprep.subr.mxu0 0.0
    %4658 = vmatpush1.msra.mxu0 0.0
    %4659 = vmatprep.subr.mxu0 0.0
    %4660 = vmatpush1.msra.mxu0 0.0
    %4661 = vmatprep.subr.mxu0 0.0
    %4662 = vmatpush1.msra.mxu0 0.0
    %4663 = vmatprep.subr.mxu0 0.0
    %4664 = vmatpush1.msra.mxu0 0.0
    %4665 = vmatprep.subr.mxu0 0.0
    %4666 = vmatpush1.msra.mxu0 0.0
    %4667 = vmatprep.subr.mxu0 0.0
    %4668 = vmatpush1.msra.mxu0 0.0
    %4669 = vmatprep.subr.mxu0 0.0
    %4670 = vmatpush1.msra.mxu0 0.0
    %4671 = vmatprep.subr.mxu0 0.0
    %4672 = vmatpush1.msra.mxu0 0.0
    %4673 = vmatprep.subr.mxu0 0.0
    %4674 = vmatpush1.msra.mxu0 0.0
    %4675 = vmatprep.mubr.f32.mxu0 0.0
    %4676 = vmatmul.mubr.f32.gmra.mrb[0].mxu0 %v4609
    %v4677 = vpop.f32.mrb[0].mxu0
    %v4678 = vadd.f32 0.0, %v4677
    %v4679 = vpop.f32.mrb[0].mxu0
    %4680 = vdwg.mxu0
    %4681 = vmatprep.subr.mxu0 0.0
    %4682 = vmatpush1.msra.mxu0 %v781
    %4683 = vmatprep.subr.mxu0 0.0
    %4684 = vmatpush1.msra.mxu0 %v782
    %4685 = vmatprep.subr.mxu0 0.0
    %4686 = vmatpush1.msra.mxu0 %v783
    %4687 = vmatprep.subr.mxu0 0.0
    %4688 = vmatpush1.msra.mxu0 %v784
    %4689 = vmatprep.subr.mxu0 0.0
    %4690 = vmatpush1.msra.mxu0 0.0
    %4691 = vmatprep.subr.mxu0 0.0
    %4692 = vmatpush1.msra.mxu0 0.0
    %4693 = vmatprep.subr.mxu0 0.0
    %4694 = vmatpush1.msra.mxu0 0.0
    %4695 = vmatprep.subr.mxu0 0.0
    %4696 = vmatpush1.msra.mxu0 0.0
    %4697 = vmatprep.subr.mxu0 0.0
    %4698 = vmatpush1.msra.mxu0 0.0
    %4699 = vmatprep.subr.mxu0 0.0
    %4700 = vmatpush1.msra.mxu0 0.0
    %4701 = vmatprep.subr.mxu0 0.0
    %4702 = vmatpush1.msra.mxu0 0.0
    %4703 = vmatprep.subr.mxu0 0.0
    %4704 = vmatpush1.msra.mxu0 0.0
    %4705 = vmatprep.subr.mxu0 0.0
    %4706 = vmatpush1.msra.mxu0 0.0
    %4707 = vmatprep.subr.mxu0 0.0
    %4708 = vmatpush1.msra.mxu0 0.0
    %4709 = vmatprep.subr.mxu0 0.0
    %4710 = vmatpush1.msra.mxu0 0.0
    %4711 = vmatprep.subr.mxu0 0.0
    %4712 = vmatpush1.msra.mxu0 0.0
    %4713 = vmatprep.subr.mxu0 0.0
    %4714 = vmatpush1.msra.mxu0 0.0
    %4715 = vmatprep.subr.mxu0 0.0
    %4716 = vmatpush1.msra.mxu0 0.0
    %4717 = vmatprep.subr.mxu0 0.0
    %4718 = vmatpush1.msra.mxu0 0.0
    %4719 = vmatprep.subr.mxu0 0.0
    %4720 = vmatpush1.msra.mxu0 0.0
    %4721 = vmatprep.subr.mxu0 0.0
    %4722 = vmatpush1.msra.mxu0 0.0
    %4723 = vmatprep.subr.mxu0 0.0
    %4724 = vmatpush1.msra.mxu0 0.0
    %4725 = vmatprep.subr.mxu0 0.0
    %4726 = vmatpush1.msra.mxu0 0.0
    %4727 = vmatprep.subr.mxu0 0.0
    %4728 = vmatpush1.msra.mxu0 0.0
    %4729 = vmatprep.subr.mxu0 0.0
    %4730 = vmatpush1.msra.mxu0 0.0
    %4731 = vmatprep.subr.mxu0 0.0
    %4732 = vmatpush1.msra.mxu0 0.0
    %4733 = vmatprep.subr.mxu0 0.0
    %4734 = vmatpush1.msra.mxu0 0.0
    %4735 = vmatprep.subr.mxu0 0.0
    %4736 = vmatpush1.msra.mxu0 0.0
    %4737 = vmatprep.subr.mxu0 0.0
    %4738 = vmatpush1.msra.mxu0 0.0
    %4739 = vmatprep.subr.mxu0 0.0
    %4740 = vmatpush1.msra.mxu0 0.0
    %4741 = vmatprep.subr.mxu0 0.0
    %4742 = vmatpush1.msra.mxu0 0.0
    %4743 = vmatprep.subr.mxu0 0.0
    %4744 = vmatpush1.msra.mxu0 0.0
    %4745 = vmatprep.mubr.f32.mxu0 0.0
    %4746 = vmatmul.mubr.f32.gmra.mrb[0].mxu0 %v4336
    %v4747 = vpop.f32.mrb[0].mxu0
    %v4748 = vadd.f32 %v4678, %v4747
    %v4749 = vpop.f32.mrb[0].mxu0
    %4750 = vdwg.mxu0
    %v4751 = vadd.f32 %v4748, %v387
    %4752 = vmatprep.subr.mxu0 0.0
    %4753 = vmatpush1.msra.mxu0 %v934
    %4754 = vmatprep.subr.mxu0 0.0
    %4755 = vmatpush1.msra.mxu0 %v935
    %4756 = vmatprep.subr.mxu0 0.0
    %4757 = vmatpush1.msra.mxu0 %v936
    %4758 = vmatprep.subr.mxu0 0.0
    %4759 = vmatpush1.msra.mxu0 %v937
    %4760 = vmatprep.subr.mxu0 0.0
    %4761 = vmatpush1.msra.mxu0 0.0
    %4762 = vmatprep.subr.mxu0 0.0
    %4763 = vmatpush1.msra.mxu0 0.0
    %4764 = vmatprep.subr.mxu0 0.0
    %4765 = vmatpush1.msra.mxu0 0.0
    %4766 = vmatprep.subr.mxu0 0.0
    %4767 = vmatpush1.msra.mxu0 0.0
    %4768 = vmatprep.subr.mxu0 0.0
    %4769 = vmatpush1.msra.mxu0 0.0
    %4770 = vmatprep.subr.mxu0 0.0
    %4771 = vmatpush1.msra.mxu0 0.0
    %4772 = vmatprep.subr.mxu0 0.0
    %4773 = vmatpush1.msra.mxu0 0.0
    %4774 = vmatprep.subr.mxu0 0.0
    %4775 = vmatpush1.msra.mxu0 0.0
    %4776 = vmatprep.subr.mxu0 0.0
    %4777 = vmatpush1.msra.mxu0 0.0
    %4778 = vmatprep.subr.mxu0 0.0
    %4779 = vmatpush1.msra.mxu0 0.0
    %4780 = vmatprep.subr.mxu0 0.0
    %4781 = vmatpush1.msra.mxu0 0.0
    %4782 = vmatprep.subr.mxu0 0.0
    %4783 = vmatpush1.msra.mxu0 0.0
    %4784 = vmatprep.subr.mxu0 0.0
    %4785 = vmatpush1.msra.mxu0 0.0
    %4786 = vmatprep.subr.mxu0 0.0
    %4787 = vmatpush1.msra.mxu0 0.0
    %4788 = vmatprep.subr.mxu0 0.0
    %4789 = vmatpush1.msra.mxu0 0.0
    %4790 = vmatprep.subr.mxu0 0.0
    %4791 = vmatpush1.msra.mxu0 0.0
    %4792 = vmatprep.subr.mxu0 0.0
    %4793 = vmatpush1.msra.mxu0 0.0
    %4794 = vmatprep.subr.mxu0 0.0
    %4795 = vmatpush1.msra.mxu0 0.0
    %4796 = vmatprep.subr.mxu0 0.0
    %4797 = vmatpush1.msra.mxu0 0.0
    %4798 = vmatprep.subr.mxu0 0.0
    %4799 = vmatpush1.msra.mxu0 0.0
    %4800 = vmatprep.subr.mxu0 0.0
    %4801 = vmatpush1.msra.mxu0 0.0
    %4802 = vmatprep.subr.mxu0 0.0
    %4803 = vmatpush1.msra.mxu0 0.0
    %4804 = vmatprep.subr.mxu0 0.0
    %4805 = vmatpush1.msra.mxu0 0.0
    %4806 = vmatprep.subr.mxu0 0.0
    %4807 = vmatpush1.msra.mxu0 0.0
    %4808 = vmatprep.subr.mxu0 0.0
    %4809 = vmatpush1.msra.mxu0 0.0
    %4810 = vmatprep.subr.mxu0 0.0
    %4811 = vmatpush1.msra.mxu0 0.0
    %4812 = vmatprep.subr.mxu0 0.0
    %4813 = vmatpush1.msra.mxu0 0.0
    %4814 = vmatprep.subr.mxu0 0.0
    %4815 = vmatpush1.msra.mxu0 0.0
    %4816 = vmatprep.mubr.f32.mxu0 0.0
    %4817 = vmatmul.mubr.f32.gmra.mrb[0].mxu0 %v4092
    %v4818 = vpop.f32.mrb[0].mxu0
    %v4819 = vadd.f32 %v402, %v4818
    %v4820 = vpop.f32.mrb[0].mxu0
    %4821 = vdwg.mxu0
    %v4822 = vadd.f32 %v4751, %v4819
    %v4823 = vxor.u32 %v4822, 2147483648
    %v4824 = vmul.f32 %v4823, 1.442695
    %v4825 = vpow.pop %v4824
    %v4826 = vadd.f32 %v4825, 1.0
    %v4827 = vrcp.pop %v4826
    %v4828 = vmul.f32 1.0, %v4827
    %4830 = vrot.lane.b32.xlu0 %v4819, 64
    %v4831 = vpop.permute.xlu0 %4830
    %v4833 = vmul.f32 %v4828, %v4831
    %4835 = vrot.lane.b32.xlu0 %v4833, 64
    %v4836 = vpop.permute.xlu0 %4835
    %v4838 = vadd.f32 %v4751, %v4836
    %v4839 = vtanh.pop %v4838
    %v4840 = vsub.f32 1.0, %v4828
    %4842 = vrot.lane.b32.xlu0 %v4839, 96
    %v4843 = vpop.permute.xlu0 %4842
    %v4845 = vmul.f32 %v4840, %v4843
    %v4846 = vmul.f32 %v4828, %v4088
    %v4847 = vadd.f32 %v4845, %v4846
    %4849 = vrot.lane.b32.xlu0 %v4847, 96
    %v4850 = vpop.permute.xlu0 %4849
    %v4851 = vsel %vm423, %v4850, 0
    %4853 = vmatprep.subr.mxu0 0.0
    %4854 = vmatpush1.msra.mxu0 %v1041
    %4855 = vmatprep.subr.mxu0 0.0
    %4856 = vmatpush1.msra.mxu0 %v1042
    %4857 = vmatprep.subr.mxu0 0.0
    %4858 = vmatpush1.msra.mxu0 %v1043
    %4859 = vmatprep.subr.mxu0 0.0
    %4860 = vmatpush1.msra.mxu0 %v1044
    %4861 = vmatprep.subr.mxu0 0.0
    %4862 = vmatpush1.msra.mxu0 0.0
    %4863 = vmatprep.subr.mxu0 0.0
    %4864 = vmatpush1.msra.mxu0 0.0
    %4865 = vmatprep.subr.mxu0 0.0
    %4866 = vmatpush1.msra.mxu0 0.0
    %4867 = vmatprep.subr.mxu0 0.0
    %4868 = vmatpush1.msra.mxu0 0.0
    %4869 = vmatprep.subr.mxu0 0.0
    %4870 = vmatpush1.msra.mxu0 0.0
    %4871 = vmatprep.subr.mxu0 0.0
    %4872 = vmatpush1.msra.mxu0 0.0
    %4873 = vmatprep.subr.mxu0 0.0
    %4874 = vmatpush1.msra.mxu0 0.0
    %4875 = vmatprep.subr.mxu0 0.0
    %4876 = vmatpush1.msra.mxu0 0.0
    %4877 = vmatprep.subr.mxu0 0.0
    %4878 = vmatpush1.msra.mxu0 0.0
    %4879 = vmatprep.subr.mxu0 0.0
    %4880 = vmatpush1.msra.mxu0 0.0
    %4881 = vmatprep.subr.mxu0 0.0
    %4882 = vmatpush1.msra.mxu0 0.0
    %4883 = vmatprep.subr.mxu0 0.0
    %4884 = vmatpush1.msra.mxu0 0.0
    %4885 = vmatprep.subr.mxu0 0.0
    %4886 = vmatpush1.msra.mxu0 0.0
    %4887 = vmatprep.subr.mxu0 0.0
    %4888 = vmatpush1.msra.mxu0 0.0
    %4889 = vmatprep.subr.mxu0 0.0
    %4890 = vmatpush1.msra.mxu0 0.0
    %4891 = vmatprep.subr.mxu0 0.0
    %4892 = vmatpush1.msra.mxu0 0.0
    %4893 = vmatprep.subr.mxu0 0.0
    %4894 = vmatpush1.msra.mxu0 0.0
    %4895 = vmatprep.subr.mxu0 0.0
    %4896 = vmatpush1.msra.mxu0 0.0
    %4897 = vmatprep.subr.mxu0 0.0
    %4898 = vmatpush1.msra.mxu0 0.0
    %4899 = vmatprep.subr.mxu0 0.0
    %4900 = vmatpush1.msra.mxu0 0.0
    %4901 = vmatprep.subr.mxu0 0.0
    %4902 = vmatpush1.msra.mxu0 0.0
    %4903 = vmatprep.subr.mxu0 0.0
    %4904 = vmatpush1.msra.mxu0 0.0
    %4905 = vmatprep.subr.mxu0 0.0
    %4906 = vmatpush1.msra.mxu0 0.0
    %4907 = vmatprep.subr.mxu0 0.0
    %4908 = vmatpush1.msra.mxu0 0.0
    %4909 = vmatprep.subr.mxu0 0.0
    %4910 = vmatpush1.msra.mxu0 0.0
    %4911 = vmatprep.subr.mxu0 0.0
    %4912 = vmatpush1.msra.mxu0 0.0
    %4913 = vmatprep.subr.mxu0 0.0
    %4914 = vmatpush1.msra.mxu0 0.0
    %4915 = vmatprep.subr.mxu0 0.0
    %4916 = vmatpush1.msra.mxu0 0.0
    %4917 = vmatprep.mubr.f32.mxu0 0.0
    %4918 = vmatmul.mubr.f32.gmra.mrb[0].mxu0 %v4851
    %v4919 = vpop.f32.mrb[0].mxu0
    %v4920 = vadd.f32 %v395, %v4919
    %v4921 = vpop.f32.mrb[0].mxu0
    %4922 = vdwg.mxu0
    %4923 = vmatprep.subr.mxu0 0.0
    %4924 = vmatpush1.msra.mxu0 %v1121
    %4925 = vmatprep.subr.mxu0 0.0
    %4926 = vmatpush1.msra.mxu0 %v1122
    %4927 = vmatprep.subr.mxu0 0.0
    %4928 = vmatpush1.msra.mxu0 %v1123
    %4929 = vmatprep.subr.mxu0 0.0
    %4930 = vmatpush1.msra.mxu0 %v1124
    %4931 = vmatprep.subr.mxu0 0.0
    %4932 = vmatpush1.msra.mxu0 0.0
    %4933 = vmatprep.subr.mxu0 0.0
    %4934 = vmatpush1.msra.mxu0 0.0
    %4935 = vmatprep.subr.mxu0 0.0
    %4936 = vmatpush1.msra.mxu0 0.0
    %4937 = vmatprep.subr.mxu0 0.0
    %4938 = vmatpush1.msra.mxu0 0.0
    %4939 = vmatprep.subr.mxu0 0.0
    %4940 = vmatpush1.msra.mxu0 0.0
    %4941 = vmatprep.subr.mxu0 0.0
    %4942 = vmatpush1.msra.mxu0 0.0
    %4943 = vmatprep.subr.mxu0 0.0
    %4944 = vmatpush1.msra.mxu0 0.0
    %4945 = vmatprep.subr.mxu0 0.0
    %4946 = vmatpush1.msra.mxu0 0.0
    %4947 = vmatprep.subr.mxu0 0.0
    %4948 = vmatpush1.msra.mxu0 0.0
    %4949 = vmatprep.subr.mxu0 0.0
    %4950 = vmatpush1.msra.mxu0 0.0
    %4951 = vmatprep.subr.mxu0 0.0
    %4952 = vmatpush1.msra.mxu0 0.0
    %4953 = vmatprep.subr.mxu0 0.0
    %4954 = vmatpush1.msra.mxu0 0.0
    %4955 = vmatprep.subr.mxu0 0.0
    %4956 = vmatpush1.msra.mxu0 0.0
    %4957 = vmatprep.subr.mxu0 0.0
    %4958 = vmatpush1.msra.mxu0 0.0
    %4959 = vmatprep.subr.mxu0 0.0
    %4960 = vmatpush1.msra.mxu0 0.0
    %4961 = vmatprep.subr.mxu0 0.0
    %4962 = vmatpush1.msra.mxu0 0.0
    %4963 = vmatprep.subr.mxu0 0.0
    %4964 = vmatpush1.msra.mxu0 0.0
    %4965 = vmatprep.subr.mxu0 0.0
    %4966 = vmatpush1.msra.mxu0 0.0
    %4967 = vmatprep.subr.mxu0 0.0
    %4968 = vmatpush1.msra.mxu0 0.0
    %4969 = vmatprep.subr.mxu0 0.0
    %4970 = vmatpush1.msra.mxu0 0.0
    %4971 = vmatprep.subr.mxu0 0.0
    %4972 = vmatpush1.msra.mxu0 0.0
    %4973 = vmatprep.subr.mxu0 0.0
    %4974 = vmatpush1.msra.mxu0 0.0
    %4975 = vmatprep.subr.mxu0 0.0
    %4976 = vmatpush1.msra.mxu0 0.0
    %4977 = vmatprep.subr.mxu0 0.0
    %4978 = vmatpush1.msra.mxu0 0.0
    %4979 = vmatprep.subr.mxu0 0.0
    %4980 = vmatpush1.msra.mxu0 0.0
    %4981 = vmatprep.subr.mxu0 0.0
    %4982 = vmatpush1.msra.mxu0 0.0
    %4983 = vmatprep.subr.mxu0 0.0
    %4984 = vmatpush1.msra.mxu0 0.0
    %4985 = vmatprep.subr.mxu0 0.0
    %4986 = vmatpush1.msra.mxu0 0.0
    %4987 = vmatprep.mubr.f32.mxu0 0.0
    %4988 = vmatmul.mubr.f32.gmra.mrb[0].mxu0 %v4263
    %v4989 = vpop.f32.mrb[0].mxu0
    %v4990 = vadd.f32 %v410, %v4989
    %v4991 = vpop.f32.mrb[0].mxu0
    %4992 = vdwg.mxu0
    %v4993 = vadd.f32 %v4920, %v4990
    %v4994 = vxor.u32 %v4993, 2147483648
    %v4995 = vmul.f32 %v4994, 1.442695
    %v4996 = vpow.pop %v4995
    %v4997 = vadd.f32 %v4996, 1.0
    %v4998 = vrcp.pop %v4997
    %v4999 = vmul.f32 1.0, %v4998
    %5001 = vrot.lane.b32.xlu0 %v4990, 64
    %v5002 = vpop.permute.xlu0 %5001
    %v5004 = vmul.f32 %v4999, %v5002
    %5006 = vrot.lane.b32.xlu0 %v5004, 64
    %v5007 = vpop.permute.xlu0 %5006
    %v5009 = vadd.f32 %v4920, %v5007
    %v5010 = vtanh.pop %v5009
    %v5011 = vsub.f32 1.0, %v4999
    %5013 = vrot.lane.b32.xlu0 %v5010, 96
    %v5014 = vpop.permute.xlu0 %5013
    %v5016 = vmul.f32 %v5011, %v5014
    %v5017 = vmul.f32 %v4999, %v4259
    %v5018 = vadd.f32 %v5016, %v5017
    %5020 = vrot.lane.b32.xlu0 %v5018, 96
    %v5021 = vpop.permute.xlu0 %5020
    %v5022 = vsel %vm423, %v5021, 0
    %5024 = vmatprep.subr.mxu0 0.0
    %5025 = vmatpush1.msra.mxu0 %v419
    %5026 = vmatprep.subr.mxu0 0.0
    %5027 = vmatpush1.msra.mxu0 %v420
    %5028 = vmatprep.subr.mxu0 0.0
    %5029 = vmatpush1.msra.mxu0 %v421
    %5030 = vmatprep.subr.mxu0 0.0
    %5031 = vmatpush1.msra.mxu0 %v422
    %5032 = vmatprep.subr.mxu0 0.0
    %5033 = vmatpush1.msra.mxu0 0.0
    %5034 = vmatprep.subr.mxu0 0.0
    %5035 = vmatpush1.msra.mxu0 0.0
    %5036 = vmatprep.subr.mxu0 0.0
    %5037 = vmatpush1.msra.mxu0 0.0
    %5038 = vmatprep.subr.mxu0 0.0
    %5039 = vmatpush1.msra.mxu0 0.0
    %5040 = vmatprep.subr.mxu0 0.0
    %5041 = vmatpush1.msra.mxu0 0.0
    %5042 = vmatprep.subr.mxu0 0.0
    %5043 = vmatpush1.msra.mxu0 0.0
    %5044 = vmatprep.subr.mxu0 0.0
    %5045 = vmatpush1.msra.mxu0 0.0
    %5046 = vmatprep.subr.mxu0 0.0
    %5047 = vmatpush1.msra.mxu0 0.0
    %5048 = vmatprep.subr.mxu0 0.0
    %5049 = vmatpush1.msra.mxu0 0.0
    %5050 = vmatprep.subr.mxu0 0.0
    %5051 = vmatpush1.msra.mxu0 0.0
    %5052 = vmatprep.subr.mxu0 0.0
    %5053 = vmatpush1.msra.mxu0 0.0
    %5054 = vmatprep.subr.mxu0 0.0
    %5055 = vmatpush1.msra.mxu0 0.0
    %5056 = vmatprep.subr.mxu0 0.0
    %5057 = vmatpush1.msra.mxu0 0.0
    %5058 = vmatprep.subr.mxu0 0.0
    %5059 = vmatpush1.msra.mxu0 0.0
    %5060 = vmatprep.subr.mxu0 0.0
    %5061 = vmatpush1.msra.mxu0 0.0
    %5062 = vmatprep.subr.mxu0 0.0
    %5063 = vmatpush1.msra.mxu0 0.0
    %5064 = vmatprep.subr.mxu0 0.0
    %5065 = vmatpush1.msra.mxu0 0.0
    %5066 = vmatprep.subr.mxu0 0.0
    %5067 = vmatpush1.msra.mxu0 0.0
    %5068 = vmatprep.subr.mxu0 0.0
    %5069 = vmatpush1.msra.mxu0 0.0
    %5070 = vmatprep.subr.mxu0 0.0
    %5071 = vmatpush1.msra.mxu0 0.0
    %5072 = vmatprep.subr.mxu0 0.0
    %5073 = vmatpush1.msra.mxu0 0.0
    %5074 = vmatprep.subr.mxu0 0.0
    %5075 = vmatpush1.msra.mxu0 0.0
    %5076 = vmatprep.subr.mxu0 0.0
    %5077 = vmatpush1.msra.mxu0 0.0
    %5078 = vmatprep.subr.mxu0 0.0
    %5079 = vmatpush1.msra.mxu0 0.0
    %5080 = vmatprep.subr.mxu0 0.0
    %5081 = vmatpush1.msra.mxu0 0.0
    %5082 = vmatprep.subr.mxu0 0.0
    %5083 = vmatpush1.msra.mxu0 0.0
    %5084 = vmatprep.subr.mxu0 0.0
    %5085 = vmatpush1.msra.mxu0 0.0
    %5086 = vmatprep.subr.mxu0 0.0
    %5087 = vmatpush1.msra.mxu0 0.0
    %5088 = vmatprep.mubr.f32.mxu0 0.0
    %5089 = vmatmul.mubr.f32.gmra.mrb[0].mxu0 %v5022
    %v5090 = vpop.f32.mrb[0].mxu0
    %v5091 = vadd.f32 %v366, %v5090
    %v5092 = vpop.f32.mrb[0].mxu0
    %5093 = vdwg.mxu0
    %v5094 = vmax.f32 %v5091, 0.0
    %v5096 = vsel %vm580, %v5094, 0
    %5098 = vmatprep.subr.mxu0 0.0
    %5099 = vmatpush1.msra.mxu0 %v572
    %5100 = vmatprep.subr.mxu0 0.0
    %5101 = vmatpush1.msra.mxu0 %v573
    %5102 = vmatprep.subr.mxu0 0.0
    %5103 = vmatpush1.msra.mxu0 %v574
    %5104 = vmatprep.subr.mxu0 0.0
    %5105 = vmatpush1.msra.mxu0 %v575
    %5106 = vmatprep.subr.mxu0 0.0
    %5107 = vmatpush1.msra.mxu0 %v576
    %5108 = vmatprep.subr.mxu0 0.0
    %5109 = vmatpush1.msra.mxu0 %v577
    %5110 = vmatprep.subr.mxu0 0.0
    %5111 = vmatpush1.msra.mxu0 %v578
    %5112 = vmatprep.subr.mxu0 0.0
    %5113 = vmatpush1.msra.mxu0 %v579
    %5114 = vmatprep.subr.mxu0 0.0
    %5115 = vmatpush1.msra.mxu0 0.0
    %5116 = vmatprep.subr.mxu0 0.0
    %5117 = vmatpush1.msra.mxu0 0.0
    %5118 = vmatprep.subr.mxu0 0.0
    %5119 = vmatpush1.msra.mxu0 0.0
    %5120 = vmatprep.subr.mxu0 0.0
    %5121 = vmatpush1.msra.mxu0 0.0
    %5122 = vmatprep.subr.mxu0 0.0
    %5123 = vmatpush1.msra.mxu0 0.0
    %5124 = vmatprep.subr.mxu0 0.0
    %5125 = vmatpush1.msra.mxu0 0.0
    %5126 = vmatprep.subr.mxu0 0.0
    %5127 = vmatpush1.msra.mxu0 0.0
    %5128 = vmatprep.subr.mxu0 0.0
    %5129 = vmatpush1.msra.mxu0 0.0
    %5130 = vmatprep.subr.mxu0 0.0
    %5131 = vmatpush1.msra.mxu0 0.0
    %5132 = vmatprep.subr.mxu0 0.0
    %5133 = vmatpush1.msra.mxu0 0.0
    %5134 = vmatprep.subr.mxu0 0.0
    %5135 = vmatpush1.msra.mxu0 0.0
    %5136 = vmatprep.subr.mxu0 0.0
    %5137 = vmatpush1.msra.mxu0 0.0
    %5138 = vmatprep.subr.mxu0 0.0
    %5139 = vmatpush1.msra.mxu0 0.0
    %5140 = vmatprep.subr.mxu0 0.0
    %5141 = vmatpush1.msra.mxu0 0.0
    %5142 = vmatprep.subr.mxu0 0.0
    %5143 = vmatpush1.msra.mxu0 0.0
    %5144 = vmatprep.subr.mxu0 0.0
    %5145 = vmatpush1.msra.mxu0 0.0
    %5146 = vmatprep.subr.mxu0 0.0
    %5147 = vmatpush1.msra.mxu0 0.0
    %5148 = vmatprep.subr.mxu0 0.0
    %5149 = vmatpush1.msra.mxu0 0.0
    %5150 = vmatprep.subr.mxu0 0.0
    %5151 = vmatpush1.msra.mxu0 0.0
    %5152 = vmatprep.subr.mxu0 0.0
    %5153 = vmatpush1.msra.mxu0 0.0
    %5154 = vmatprep.subr.mxu0 0.0
    %5155 = vmatpush1.msra.mxu0 0.0
    %5156 = vmatprep.subr.mxu0 0.0
    %5157 = vmatpush1.msra.mxu0 0.0
    %5158 = vmatprep.subr.mxu0 0.0
    %5159 = vmatpush1.msra.mxu0 0.0
    %5160 = vmatprep.subr.mxu0 0.0
    %5161 = vmatpush1.msra.mxu0 0.0
    %5162 = vmatprep.mubr.f32.mxu0 0.0
    %5163 = vmatmul.mubr.f32.gmra.mrb[0].mxu0 %v5096
    %v5164 = vpop.f32.mrb[0].mxu0
    %v5165 = vadd.f32 %v373, %v5164
    %v5166 = vpop.f32.mrb[0].mxu0
    %5167 = vdwg.mxu0
    %v5168 = vmax.f32 %v5165, 0.0
    %vm5169 = vcmp.ne.f32.partialorder %v5165, %v5165
    %v5170 = vadd.f32 %v5165, 0.0
    %v5171 = vand.u32 2147483647, %v5165
    %v5172 = vsub.f32 0.0, %v5171
    %v5173 = vmul.f32 %v5172, 1.442695
    %v5174 = vpow.pop %v5173
    %v5175 = vadd.f32 %v5174, 1.0
    %v5176 = vlog2.pop %v5175
    %v5177 = vmul.f32 %v5176, 0.6931472
    %v5178 = vmul.f32 -0.5, %v5174
    %v5179 = vadd.f32 %v5178, 1.0
    %v5180 = vmul.f32 %v5179, %v5174
    %v5181 = vand.u32 2147483647, %v5174
    %vm5182 = vcmp.lt.f32.partialorder %v5181, 0.0004427343
    %v5183 = vsel %vm5182, %v5180, %v5177
    %v5184 = vadd.f32 %v5168, %v5183
    %v5185 = vsel %vm5169, %v5170, %v5184
    %v5186 = vld [vmem:[%s2] sm:$0xf]
    %5188 = vrot.lane.b32.xlu0 %v5185, 112
    %v5189 = vpop.permute.xlu0 %5188
    %v5191 = vmul.f32 %v5186, %v5189
    %5193 = vrot.lane.b32.xlu0 %v5165, 112
    %v5194 = vpop.permute.xlu0 %5193
    %v5196 = vadd.f32 %v5191, %v5194
    %v5198 = vsel %vm706, %v5196, 0
    %5200 = vmatprep.subr.mxu0 0.0
    %5201 = vmatpush1.msra.mxu0 %v704
    %5202 = vmatprep.subr.mxu0 0.0
    %5203 = vmatpush1.msra.mxu0 %v705
    %5204 = vmatprep.subr.mxu0 0.0
    %5205 = vmatpush1.msra.mxu0 0.0
    %5206 = vmatprep.subr.mxu0 0.0
    %5207 = vmatpush1.msra.mxu0 0.0
    %5208 = vmatprep.subr.mxu0 0.0
    %5209 = vmatpush1.msra.mxu0 0.0
    %5210 = vmatprep.subr.mxu0 0.0
    %5211 = vmatpush1.msra.mxu0 0.0
    %5212 = vmatprep.subr.mxu0 0.0
    %5213 = vmatpush1.msra.mxu0 0.0
    %5214 = vmatprep.subr.mxu0 0.0
    %5215 = vmatpush1.msra.mxu0 0.0
    %5216 = vmatprep.subr.mxu0 0.0
    %5217 = vmatpush1.msra.mxu0 0.0
    %5218 = vmatprep.subr.mxu0 0.0
    %5219 = vmatpush1.msra.mxu0 0.0
    %5220 = vmatprep.subr.mxu0 0.0
    %5221 = vmatpush1.msra.mxu0 0.0
    %5222 = vmatprep.subr.mxu0 0.0
    %5223 = vmatpush1.msra.mxu0 0.0
    %5224 = vmatprep.subr.mxu0 0.0
    %5225 = vmatpush1.msra.mxu0 0.0
    %5226 = vmatprep.subr.mxu0 0.0
    %5227 = vmatpush1.msra.mxu0 0.0
    %5228 = vmatprep.subr.mxu0 0.0
    %5229 = vmatpush1.msra.mxu0 0.0
    %5230 = vmatprep.subr.mxu0 0.0
    %5231 = vmatpush1.msra.mxu0 0.0
    %5232 = vmatprep.subr.mxu0 0.0
    %5233 = vmatpush1.msra.mxu0 0.0
    %5234 = vmatprep.subr.mxu0 0.0
    %5235 = vmatpush1.msra.mxu0 0.0
    %5236 = vmatprep.subr.mxu0 0.0
    %5237 = vmatpush1.msra.mxu0 0.0
    %5238 = vmatprep.subr.mxu0 0.0
    %5239 = vmatpush1.msra.mxu0 0.0
    %5240 = vmatprep.subr.mxu0 0.0
    %5241 = vmatpush1.msra.mxu0 0.0
    %5242 = vmatprep.subr.mxu0 0.0
    %5243 = vmatpush1.msra.mxu0 0.0
    %5244 = vmatprep.subr.mxu0 0.0
    %5245 = vmatpush1.msra.mxu0 0.0
    %5246 = vmatprep.subr.mxu0 0.0
    %5247 = vmatpush1.msra.mxu0 0.0
    %5248 = vmatprep.subr.mxu0 0.0
    %5249 = vmatpush1.msra.mxu0 0.0
    %5250 = vmatprep.subr.mxu0 0.0
    %5251 = vmatpush1.msra.mxu0 0.0
    %5252 = vmatprep.subr.mxu0 0.0
    %5253 = vmatpush1.msra.mxu0 0.0
    %5254 = vmatprep.subr.mxu0 0.0
    %5255 = vmatpush1.msra.mxu0 0.0
    %5256 = vmatprep.subr.mxu0 0.0
    %5257 = vmatpush1.msra.mxu0 0.0
    %5258 = vmatprep.subr.mxu0 0.0
    %5259 = vmatpush1.msra.mxu0 0.0
    %5260 = vmatprep.subr.mxu0 0.0
    %5261 = vmatpush1.msra.mxu0 0.0
    %5262 = vmatprep.subr.mxu0 0.0
    %5263 = vmatpush1.msra.mxu0 0.0
    %5264 = vmatprep.mubr.f32.mxu0 0.0
    %5265 = vmatmul.mubr.f32.gmra.mrb[0].mxu0 %v5198
    %v5266 = vpop.f32.mrb[0].mxu0
    %v5267 = vadd.f32 %v380, %v5266
    %v5268 = vpop.f32.mrb[0].mxu0
    %5269 = vdwg.mxu0
    %v5270 = vmax.f32 %v5267, 0.0
    %v5271 = vld [vmem:[#allocation17] sm:$0xff]
    %v5272 = vld [vmem:[#allocation17 + $0x8] sm:$0xff]
    %v5273 = vld [vmem:[#allocation17 + $0x10] sm:$0xff]
    %v5274 = vld [vmem:[#allocation17 + $0x18] sm:$0xff]
    %v5275 = vld [vmem:[%s14] sm:$0xff]
    %v5276 = vld [vmem:[%s14 + $0x8] sm:$0xff]
    %v5277 = vld [vmem:[%s14 + $0x10] sm:$0xff]
    %v5278 = vld [vmem:[%s14 + $0x18] sm:$0xff]
    %5279 = vmatprep.subr.mxu0 0.0
    %5280 = vmatpush1.msra.mxu0 %v5275
    %5281 = vmatprep.subr.mxu0 0.0
    %5282 = vmatpush1.msra.mxu0 %v5276
    %5283 = vmatprep.subr.mxu0 0.0
    %5284 = vmatpush1.msra.mxu0 %v5277
    %5285 = vmatprep.subr.mxu0 0.0
    %5286 = vmatpush1.msra.mxu0 %v5278
    %5287 = vmatprep.subr.mxu0 0.0
    %5288 = vmatpush1.msra.mxu0 0.0
    %5289 = vmatprep.subr.mxu0 0.0
    %5290 = vmatpush1.msra.mxu0 0.0
    %5291 = vmatprep.subr.mxu0 0.0
    %5292 = vmatpush1.msra.mxu0 0.0
    %5293 = vmatprep.subr.mxu0 0.0
    %5294 = vmatpush1.msra.mxu0 0.0
    %5295 = vmatprep.subr.mxu0 0.0
    %5296 = vmatpush1.msra.mxu0 0.0
    %5297 = vmatprep.subr.mxu0 0.0
    %5298 = vmatpush1.msra.mxu0 0.0
    %5299 = vmatprep.subr.mxu0 0.0
    %5300 = vmatpush1.msra.mxu0 0.0
    %5301 = vmatprep.subr.mxu0 0.0
    %5302 = vmatpush1.msra.mxu0 0.0
    %5303 = vmatprep.subr.mxu0 0.0
    %5304 = vmatpush1.msra.mxu0 0.0
    %5305 = vmatprep.subr.mxu0 0.0
    %5306 = vmatpush1.msra.mxu0 0.0
    %5307 = vmatprep.subr.mxu0 0.0
    %5308 = vmatpush1.msra.mxu0 0.0
    %5309 = vmatprep.subr.mxu0 0.0
    %5310 = vmatpush1.msra.mxu0 0.0
    %5311 = vmatprep.subr.mxu0 0.0
    %5312 = vmatpush1.msra.mxu0 0.0
    %5313 = vmatprep.subr.mxu0 0.0
    %5314 = vmatpush1.msra.mxu0 0.0
    %5315 = vmatprep.subr.mxu0 0.0
    %5316 = vmatpush1.msra.mxu0 0.0
    %5317 = vmatprep.subr.mxu0 0.0
    %5318 = vmatpush1.msra.mxu0 0.0
    %5319 = vmatprep.subr.mxu0 0.0
    %5320 = vmatpush1.msra.mxu0 0.0
    %5321 = vmatprep.subr.mxu0 0.0
    %5322 = vmatpush1.msra.mxu0 0.0
    %5323 = vmatprep.subr.mxu0 0.0
    %5324 = vmatpush1.msra.mxu0 0.0
    %5325 = vmatprep.subr.mxu0 0.0
    %5326 = vmatpush1.msra.mxu0 0.0
    %5327 = vmatprep.subr.mxu0 0.0
    %5328 = vmatpush1.msra.mxu0 0.0
    %5329 = vmatprep.subr.mxu0 0.0
    %5330 = vmatpush1.msra.mxu0 0.0
    %5331 = vmatprep.subr.mxu0 0.0
    %5332 = vmatpush1.msra.mxu0 0.0
    %5333 = vmatprep.subr.mxu0 0.0
    %5334 = vmatpush1.msra.mxu0 0.0
    %5335 = vmatprep.subr.mxu0 0.0
    %5336 = vmatpush1.msra.mxu0 0.0
    %5337 = vmatprep.subr.mxu0 0.0
    %5338 = vmatpush1.msra.mxu0 0.0
    %5339 = vmatprep.subr.mxu0 0.0
    %5340 = vmatpush1.msra.mxu0 0.0
    %5341 = vmatprep.subr.mxu0 0.0
    %5342 = vmatpush1.msra.mxu0 0.0
    %5343 = vmatprep.mubr.f32.mxu0 0.0
    %5344 = vmatmul.mubr.f32.gmra.mrb[0].mxu0 %v5022
    %v5345 = vpop.f32.mrb[0].mxu0
    %v5346 = vadd.f32 0.0, %v5345
    %v5347 = vpop.f32.mrb[0].mxu0
    %5348 = vdwg.mxu0
    %v5350 = vsel %vm423, %v5270, 0
    %5352 = vmatprep.subr.mxu0 0.0
    %5353 = vmatpush1.msra.mxu0 %v5271
    %5354 = vmatprep.subr.mxu0 0.0
    %5355 = vmatpush1.msra.mxu0 %v5272
    %5356 = vmatprep.subr.mxu0 0.0
    %5357 = vmatpush1.msra.mxu0 %v5273
    %5358 = vmatprep.subr.mxu0 0.0
    %5359 = vmatpush1.msra.mxu0 %v5274
    %5360 = vmatprep.subr.mxu0 0.0
    %5361 = vmatpush1.msra.mxu0 0.0
    %5362 = vmatprep.subr.mxu0 0.0
    %5363 = vmatpush1.msra.mxu0 0.0
    %5364 = vmatprep.subr.mxu0 0.0
    %5365 = vmatpush1.msra.mxu0 0.0
    %5366 = vmatprep.subr.mxu0 0.0
    %5367 = vmatpush1.msra.mxu0 0.0
    %5368 = vmatprep.subr.mxu0 0.0
    %5369 = vmatpush1.msra.mxu0 0.0
    %5370 = vmatprep.subr.mxu0 0.0
    %5371 = vmatpush1.msra.mxu0 0.0
    %5372 = vmatprep.subr.mxu0 0.0
    %5373 = vmatpush1.msra.mxu0 0.0
    %5374 = vmatprep.subr.mxu0 0.0
    %5375 = vmatpush1.msra.mxu0 0.0
    %5376 = vmatprep.subr.mxu0 0.0
    %5377 = vmatpush1.msra.mxu0 0.0
    %5378 = vmatprep.subr.mxu0 0.0
    %5379 = vmatpush1.msra.mxu0 0.0
    %5380 = vmatprep.subr.mxu0 0.0
    %5381 = vmatpush1.msra.mxu0 0.0
    %5382 = vmatprep.subr.mxu0 0.0
    %5383 = vmatpush1.msra.mxu0 0.0
    %5384 = vmatprep.subr.mxu0 0.0
    %5385 = vmatpush1.msra.mxu0 0.0
    %5386 = vmatprep.subr.mxu0 0.0
    %5387 = vmatpush1.msra.mxu0 0.0
    %5388 = vmatprep.subr.mxu0 0.0
    %5389 = vmatpush1.msra.mxu0 0.0
    %5390 = vmatprep.subr.mxu0 0.0
    %5391 = vmatpush1.msra.mxu0 0.0
    %5392 = vmatprep.subr.mxu0 0.0
    %5393 = vmatpush1.msra.mxu0 0.0
    %5394 = vmatprep.subr.mxu0 0.0
    %5395 = vmatpush1.msra.mxu0 0.0
    %5396 = vmatprep.subr.mxu0 0.0
    %5397 = vmatpush1.msra.mxu0 0.0
    %5398 = vmatprep.subr.mxu0 0.0
    %5399 = vmatpush1.msra.mxu0 0.0
    %5400 = vmatprep.subr.mxu0 0.0
    %5401 = vmatpush1.msra.mxu0 0.0
    %5402 = vmatprep.subr.mxu0 0.0
    %5403 = vmatpush1.msra.mxu0 0.0
    %5404 = vmatprep.subr.mxu0 0.0
    %5405 = vmatpush1.msra.mxu0 0.0
    %5406 = vmatprep.subr.mxu0 0.0
    %5407 = vmatpush1.msra.mxu0 0.0
    %5408 = vmatprep.subr.mxu0 0.0
    %5409 = vmatpush1.msra.mxu0 0.0
    %5410 = vmatprep.subr.mxu0 0.0
    %5411 = vmatpush1.msra.mxu0 0.0
    %5412 = vmatprep.subr.mxu0 0.0
    %5413 = vmatpush1.msra.mxu0 0.0
    %5414 = vmatprep.subr.mxu0 0.0
    %5415 = vmatpush1.msra.mxu0 0.0
    %5416 = vmatprep.mubr.f32.mxu0 0.0
    %5417 = vmatmul.mubr.f32.gmra.mrb[0].mxu0 %v5350
    %v5418 = vpop.f32.mrb[0].mxu0
    %v5419 = vadd.f32 %v5346, %v5418
    %v5420 = vpop.f32.mrb[0].mxu0
    %5421 = vdwg.mxu0
    %v5422 = vld [vmem:[#allocation19] sm:$0x1]
    %v5424 = vlaneseq
    %v5425 = vshrl.u32 %v5424, 7
    %v5426 = vsub.s32 0, %v5425
    %v5427 = vrot.slane %v5422, %v5426
    %v5429 = vadd.f32 %v5419, %v5427
    %v5430 = vmax.f32 %v5429, 0.0
    %v5431 = vld [vmem:[%s16] sm:$0xff]
    %v5432 = vld [vmem:[%s16 + $0x8] sm:$0xff]
    %v5433 = vld [vmem:[%s16 + $0x10] sm:$0xff]
    %v5434 = vld [vmem:[%s16 + $0x18] sm:$0xff]
    %v5435 = vld [vmem:[#allocation20] sm:$0x1]
    %v5437 = vlaneseq
    %v5438 = vshrl.u32 %v5437, 7
    %v5439 = vsub.s32 0, %v5438
    %v5440 = vrot.slane %v5435, %v5439
    %v5443 = vsel %vm423, %v5430, 0
    %5445 = vmatprep.subr.mxu0 0.0
    %5446 = vmatpush1.msra.mxu0 %v5431
    %5447 = vmatprep.subr.mxu0 0.0
    %5448 = vmatpush1.msra.mxu0 %v5432
    %5449 = vmatprep.subr.mxu0 0.0
    %5450 = vmatpush1.msra.mxu0 %v5433
    %5451 = vmatprep.subr.mxu0 0.0
    %5452 = vmatpush1.msra.mxu0 %v5434
    %5453 = vmatprep.subr.mxu0 0.0
    %5454 = vmatpush1.msra.mxu0 0.0
    %5455 = vmatprep.subr.mxu0 0.0
    %5456 = vmatpush1.msra.mxu0 0.0
    %5457 = vmatprep.subr.mxu0 0.0
    %5458 = vmatpush1.msra.mxu0 0.0
    %5459 = vmatprep.subr.mxu0 0.0
    %5460 = vmatpush1.msra.mxu0 0.0
    %5461 = vmatprep.subr.mxu0 0.0
    %5462 = vmatpush1.msra.mxu0 0.0
    %5463 = vmatprep.subr.mxu0 0.0
    %5464 = vmatpush1.msra.mxu0 0.0
    %5465 = vmatprep.subr.mxu0 0.0
    %5466 = vmatpush1.msra.mxu0 0.0
    %5467 = vmatprep.subr.mxu0 0.0
    %5468 = vmatpush1.msra.mxu0 0.0
    %5469 = vmatprep.subr.mxu0 0.0
    %5470 = vmatpush1.msra.mxu0 0.0
    %5471 = vmatprep.subr.mxu0 0.0
    %5472 = vmatpush1.msra.mxu0 0.0
    %5473 = vmatprep.subr.mxu0 0.0
    %5474 = vmatpush1.msra.mxu0 0.0
    %5475 = vmatprep.subr.mxu0 0.0
    %5476 = vmatpush1.msra.mxu0 0.0
    %5477 = vmatprep.subr.mxu0 0.0
    %5478 = vmatpush1.msra.mxu0 0.0
    %5479 = vmatprep.subr.mxu0 0.0
    %5480 = vmatpush1.msra.mxu0 0.0
    %5481 = vmatprep.subr.mxu0 0.0
    %5482 = vmatpush1.msra.mxu0 0.0
    %5483 = vmatprep.subr.mxu0 0.0
    %5484 = vmatpush1.msra.mxu0 0.0
    %5485 = vmatprep.subr.mxu0 0.0
    %5486 = vmatpush1.msra.mxu0 0.0
    %5487 = vmatprep.subr.mxu0 0.0
    %5488 = vmatpush1.msra.mxu0 0.0
    %5489 = vmatprep.subr.mxu0 0.0
    %5490 = vmatpush1.msra.mxu0 0.0
    %5491 = vmatprep.subr.mxu0 0.0
    %5492 = vmatpush1.msra.mxu0 0.0
    %5493 = vmatprep.subr.mxu0 0.0
    %5494 = vmatpush1.msra.mxu0 0.0
    %5495 = vmatprep.subr.mxu0 0.0
    %5496 = vmatpush1.msra.mxu0 0.0
    %5497 = vmatprep.subr.mxu0 0.0
    %5498 = vmatpush1.msra.mxu0 0.0
    %5499 = vmatprep.subr.mxu0 0.0
    %5500 = vmatpush1.msra.mxu0 0.0
    %5501 = vmatprep.subr.mxu0 0.0
    %5502 = vmatpush1.msra.mxu0 0.0
    %5503 = vmatprep.subr.mxu0 0.0
    %5504 = vmatpush1.msra.mxu0 0.0
    %5505 = vmatprep.subr.mxu0 0.0
    %5506 = vmatpush1.msra.mxu0 0.0
    %5507 = vmatprep.subr.mxu0 0.0
    %5508 = vmatpush1.msra.mxu0 0.0
    %5509 = vmatprep.mubr.f32.mxu0 0.0
    %5510 = vmatmul.mubr.f32.gmra.mrb[0].mxu0 %v5443
    %v5511 = vpop.f32.mrb[0].mxu0
    %v5512 = vadd.f32 %v5440, %v5511
    %v5513 = vpop.f32.mrb[0].mxu0
    %5514 = vdwg.mxu0
    %vm5515 = vcmask 60416
    %5516 = vst.msk [vmem:[#allocation23] sm:$0xf] %vm5515, %v5512
    %5518 = vrot.lane.b32.xlu0 %v4529, 112
    %v5519 = vpop.permute.xlu0 %5518
    %vm5521 = vcmask 125952
    %v5522 = vsel %vm5521, %v5519, 0.0
    %5523 = vadd.xlane.f32.xlu0 %v5522
    %v5524 = vpop.xlane.xlu0 %5523
    %v5525 = vrot.slane %v5524, 4
    %v5526 = vadd.f32 %v5524, %v5525
    %v5527 = vrot.slane %v5526, 2
    %v5528 = vadd.f32 %v5526, %v5527
    %v5529 = vrot.slane %v5528, 1
    %v5530 = vadd.f32 %v5528, %v5529
    %s5531 = vtos %v5530
    %v5532 = vstv %s5531
    %v5533 = vsub.f32 %v5532, 384.0
    %v5534 = vmul.f32 %v5533, 0.5
    %vm5535 = vcmask 0
    %5536 = vst.msk [vmem:[#allocation24] sm:$0x1] %vm5535, %v5534
    // Predicated region
    $region142: #{cvrae_next_action.1} parent=1 // pred_check
      _
    $region143: #{cvrae_next_action.1} parent=1 // pred_check_branch
      %5538 = sbr.rel (0) target = $region145
    $region144: #{cvrae_next_action.1} parent=1 // pred_region
      %s5540 = ssub.s32 64, 64
      %5541 = vsyncadd [#allocation4], %s5540
      %s5543 = sshll.u32 [#allocation23], 4
      %s5544 = int_to_ptr.vmem [resolvable:$true] %s5543
      %5546 = dma.vmem_to_hbm [thread:$0]  %s5544, 64, %s22, [#allocation4]
    $region145: #{cvrae_next_action.1} parent=1 // pred_fallthru
      _
    // Predicated region
    $region146: #{cvrae_next_action.1} parent=1 // pred_check
      _
    $region147: #{cvrae_next_action.1} parent=1 // pred_check_branch
      %5548 = sbr.rel (0) target = $region149
    $region148: #{cvrae_next_action.1} parent=1 // pred_region
      %s5550 = ssub.s32 16, 16
      %5551 = vsyncadd [#allocation25], %s5550
      %s5553 = sshll.u32 [#allocation24], 4
      %s5554 = int_to_ptr.vmem [resolvable:$true] %s5553
      %5556 = dma.vmem_to_hbm [thread:$0]  %s5554, 16, %s23, [#allocation25]
    $region149: #{cvrae_next_action.1} parent=1 // pred_fallthru
      _
    // Predicated region
    $region150: #{cvrae_next_action.1} parent=1 // pred_check
      _
    $region151: #{cvrae_next_action.1} parent=1 // pred_check_branch
      %5558 = sbr.rel (0) target = $region153
    $region152: #{cvrae_next_action.1} parent=1 // pred_region
      %5559 = dma.done [#allocation4], 64
    $region153: #{cvrae_next_action.1} parent=1 // pred_fallthru
      _
    // Predicated region
    $region154: #{cvrae_next_action.1} parent=1 // pred_check
      _
    $region155: #{cvrae_next_action.1} parent=1 // pred_check_branch
      %5561 = sbr.rel (0) target = $region157
    $region156: #{cvrae_next_action.1} parent=1 // pred_region
      %5562 = dma.done [#allocation25], 16
    $region157: #{cvrae_next_action.1} parent=1 // pred_fallthru
      _
    %5563 = vsyncpa [#allocation3], 1
    %5564 = vsyncpa [#allocation6], 1
    %5565 = vsyncpa [#allocation9], 1
    %5566 = vsyncpa [#allocation12], 1
    %5567 = vsyncpa [#allocation15], 1
    %5568 = vsyncpa [#allocation18], 1
    %5569 = vsyncpa [#allocation21], 1
    %5570 = vsyncpa [#allocation4], 1
    %5571 = vsyncpa [#allocation25], 1

</llo_original>
